<compile_context>
chip_gen: v5e
topology: v5e:2x2
jax: 0.10.0
libtpu: 0.0.40
codegen_flags: <defaults>
</compile_context>

<pallas_src>
import math

import jax
import jax.numpy as jnp
from jax.experimental import pallas as pl
from jax.experimental.pallas import tpu as pltpu


def _rup(x, m=128):
    return ((x + m - 1) // m) * m


def _leaky_relu(x, slope=0.2):
    return jnp.where(x > 0, x, slope * x)


def _batchnorm_train(x, gamma, beta, eps=1e-5):
    """Training-mode BN folded into a single scale/shift pass.

    var = E[x^2] - mean^2 (biased), scale = gamma * rsqrt(var + eps),
    shift = beta - mean * scale.  Padded feature columns have gamma == 0, so
    they come out exactly 0 and cannot perturb later (zero-padded) matmuls.
    """
    mean = jnp.mean(x, axis=0, keepdims=True)
    mean_sq = jnp.mean(x * x, axis=0, keepdims=True)
    var = jnp.maximum(mean_sq - mean * mean, 0.0)
    scale = gamma * jax.lax.rsqrt(var + eps)
    shift = beta - mean * scale
    return x * scale + shift


def g_kernel(labels_ref, noise_ref,
             wy_ref, by_ref,
             wz_ref, bz_ref, gz_ref, betaz_ref,
             w1_ref, b1_ref, g1_ref, beta1_ref,
             w2_hbm_ref, b2_ref,
             out_ref,
             w2_vmem, w2_sem):
    # ---- kick off the w2 weight DMA immediately; hide it behind the earlier
    #      branches (it is only needed by the final matmul) ----
    w2_copy = pltpu.make_async_copy(w2_hbm_ref, w2_vmem, w2_sem)
    w2_copy.start()

    bsz = labels_ref.shape[0]
    nc_p = wy_ref.shape[0]          # padded n_classes
    z_p = wz_ref.shape[1]           # padded z width (split point inside w1 rows)

    # ---- one-hot encoding of the labels: scatter_(1, labels, 1) ----
    labels = labels_ref[...]                                   # (bsz, 1) int32
    onehot = (jax.lax.broadcasted_iota(jnp.int32, (bsz, nc_p), 1)
              == labels).astype(jnp.bfloat16)                  # (bsz, nc_p)

    # ---- y branch: Linear(n_classes, 1000) + LeakyReLU(0.2) ----
    y = jnp.dot(onehot, wy_ref[...], preferred_element_type=jnp.float32)
    y = _leaky_relu(y + by_ref[...])                           # (bsz, Y_P) f32

    # ---- z branch: Linear(hidden_dim, 200) + BatchNorm1d(200) + LeakyReLU ----
    z = jnp.dot(noise_ref[...].astype(jnp.bfloat16), wz_ref[...],
                preferred_element_type=jnp.float32) + bz_ref[...]
    z = _leaky_relu(_batchnorm_train(z, gz_ref[...], betaz_ref[...]))

    # ---- zy branch: cat([z, y]) @ W1 done as a split matmul (no concat) ----
    h = (jnp.dot(z.astype(jnp.bfloat16), w1_ref[:z_p, :],
                 preferred_element_type=jnp.float32)
         + jnp.dot(y.astype(jnp.bfloat16), w1_ref[z_p:, :],
                   preferred_element_type=jnp.float32)
         + b1_ref[...])                                        # (bsz, H_P)
    h = _leaky_relu(_batchnorm_train(h, g1_ref[...], beta1_ref[...]))

    # ---- final Linear(1200, 784) + Sigmoid (exact divide keeps out <= 1) ----
    w2_copy.wait()
    o = jnp.dot(h.astype(jnp.bfloat16), w2_vmem[...],
                preferred_element_type=jnp.float32) + b2_ref[...]
    out_ref[...] = 1.0 / (1.0 + jnp.exp(-o))                   # (bsz, O_P)


def init_params(key, n_classes, hidden_dim):
    """PyTorch-style Linear init: U(-1/sqrt(fan_in)); BN: gamma=1, beta=0."""
    def linear(k, fan_in, fan_out):
        k1, k2 = jax.random.split(k)
        bound = 1.0 / math.sqrt(fan_in)
        w = jax.random.uniform(k1, (fan_in, fan_out), jnp.float32, -bound, bound)
        b = jax.random.uniform(k2, (1, fan_out), jnp.float32, -bound, bound)
        return w, b

    k0, k1, k2, k3 = jax.random.split(key, 4)
    wy, by = linear(k0, n_classes, 1000)
    wz, bz = linear(k1, hidden_dim, 200)
    w1, b1 = linear(k2, 1200, 1200)
    w2, b2 = linear(k3, 1200, 784)
    return dict(
        wy=wy, by=by,
        wz=wz, bz=bz,
        gz=jnp.ones((1, 200), jnp.float32), betaz=jnp.zeros((1, 200), jnp.float32),
        w1=w1, b1=b1,
        g1=jnp.ones((1, 1200), jnp.float32), beta1=jnp.zeros((1, 1200), jnp.float32),
        w2=w2, b2=b2,
    )


def prepare_params(params):
    """One-time preprocessing: pad feature dims to multiples of 128 and cast
    weights to bf16 (biases / BN params stay f32).  Padding is all zeros, and
    padded BN gammas are zero, so results on the real lanes are unchanged."""
    n_classes, y_dim = params["wy"].shape            # (10, 1000)
    hidden_dim, z_dim = params["wz"].shape           # (32, 200)
    h_dim = params["w1"].shape[1]                    # 1200
    o_dim = params["w2"].shape[1]                    # 784

    nc_p, y_p, z_p, hd_p = _rup(n_classes), _rup(y_dim), _rup(z_dim), _rup(hidden_dim)
    hrow_p = z_p + y_p                               # padded w1 row count (1280)
    hcol_p = _rup(h_dim)                             # padded hidden width  (1280)
    o_p = _rup(o_dim)                                # padded output width  (896)

    def pad_to(a, shape, dtype=None):
        out = jnp.zeros(shape, a.dtype)
        out = out.at[tuple(slice(0, s) for s in a.shape)].set(a)
        return out if dtype is None else out.astype(dtype)

    # w1 rows are split [z | y]; re-lay them out at padded offsets [0:z_p | z_p:].
    w1 = params["w1"]
    w1_p = jnp.zeros((hrow_p, hcol_p), jnp.float32)
    w1_p = w1_p.at[:z_dim, :h_dim].set(w1[:z_dim])
    w1_p = w1_p.at[z_p:z_p + y_dim, :h_dim].set(w1[z_dim:])

    return dict(
        wy=pad_to(params["wy"], (nc_p, y_p), jnp.bfloat16),
        by=pad_to(params["by"], (1, y_p)),
        wz=pad_to(params["wz"], (hd_p, z_p), jnp.bfloat16),
        bz=pad_to(params["bz"], (1, z_p)),
        gz=pad_to(params["gz"], (1, z_p)),
        betaz=pad_to(params["betaz"], (1, z_p)),
        w1=w1_p.astype(jnp.bfloat16),
        b1=pad_to(params["b1"], (1, hcol_p)),
        g1=pad_to(params["g1"], (1, hcol_p)),
        beta1=pad_to(params["beta1"], (1, hcol_p)),
        w2=pad_to(params["w2"], (hcol_p, o_p), jnp.bfloat16),
        b2=pad_to(params["b2"], (1, o_p)),
        dims=dict(hidden_dim=hidden_dim, o_dim=o_dim),
    )


def g_forward(noise, labels, prep):
    bsz = labels.shape[0]
    hd_p = prep["wz"].shape[0]
    hcol_p, o_p = prep["w2"].shape
    o_dim = prep["dims"]["o_dim"]

    noise_p = jnp.zeros((bsz, hd_p), jnp.float32)
    noise_p = noise_p.at[:, :noise.shape[1]].set(noise.astype(jnp.float32))
    labels2d = labels.reshape(bsz, 1).astype(jnp.int32)

    args = (
        labels2d, noise_p,
        prep["wy"], prep["by"],
        prep["wz"], prep["bz"], prep["gz"], prep["betaz"],
        prep["w1"], prep["b1"], prep["g1"], prep["beta1"],
        prep["w2"], prep["b2"],
    )
    in_specs = [pl.BlockSpec(memory_space=pltpu.VMEM)] * len(args)
    in_specs[12] = pl.BlockSpec(memory_space=pl.ANY)   # w2 stays in HBM; manual DMA

    out_p = pl.pallas_call(
        g_kernel,
        out_shape=jax.ShapeDtypeStruct((bsz, o_p), jnp.float32),
        in_specs=in_specs,
        out_specs=pl.BlockSpec(memory_space=pltpu.VMEM),
        scratch_shapes=[
            pltpu.VMEM((hcol_p, o_p), jnp.bfloat16),   # w2 landing buffer
            pltpu.SemaphoreType.DMA(()),               # its completion semaphore
        ],
        compiler_params=pltpu.CompilerParams(vmem_limit_bytes=32 << 20),
    )(*args)

    # TODO(synk): for v7x, add a 'parallel' grid axis over output-feature tiles
    # (or batch) so the second TensorCore is used; at bsz=8 it is not worth it.
    return out_p[:, :o_dim]


if __name__ == "__main__":
    n_classes = 10
    hidden_dim = 32
    bsz = 8

    key = jax.random.PRNGKey(0)
    kp, kn, kl = jax.random.split(key, 3)

    params = init_params(kp, n_classes, hidden_dim)
    prep = prepare_params(params)

    noise = jax.random.uniform(kn, (bsz, hidden_dim), jnp.float32, 0.0, 1.0)
    labels = jax.random.randint(kl, (bsz,), 0, n_classes, dtype=jnp.int32)

    out = g_forward(noise, labels, prep)
    out = jax.block_until_ready(out)
    assert out.shape == (bsz, 784) and out.dtype == jnp.float32
    assert bool(jnp.all(jnp.isfinite(out))) and bool(jnp.all((out >= 0) & (out <= 1)))
    print("KERNEL_OK")
</pallas_src>

<mosaic_0001>
module attributes {stable_mosaic.version = 11 : i64} {
  func.func @g_kernel(%arg0: memref<8x1xi32, #tpu.memory_space<vmem>>, %arg1: memref<8x128xf32, #tpu.memory_space<vmem>>, %arg2: memref<128x1024xbf16, #tpu.memory_space<vmem>>, %arg3: memref<1x1024xf32, #tpu.memory_space<vmem>>, %arg4: memref<128x256xbf16, #tpu.memory_space<vmem>>, %arg5: memref<1x256xf32, #tpu.memory_space<vmem>>, %arg6: memref<1x256xf32, #tpu.memory_space<vmem>>, %arg7: memref<1x256xf32, #tpu.memory_space<vmem>>, %arg8: memref<1280x1280xbf16, #tpu.memory_space<vmem>>, %arg9: memref<1x1280xf32, #tpu.memory_space<vmem>>, %arg10: memref<1x1280xf32, #tpu.memory_space<vmem>>, %arg11: memref<1x1280xf32, #tpu.memory_space<vmem>>, %arg12: memref<1280x896xbf16, #tpu.memory_space<any>>, %arg13: memref<1x896xf32, #tpu.memory_space<vmem>>, %arg14: memref<8x896xf32, #tpu.memory_space<vmem>>, %arg15: memref<1280x896xbf16, #tpu.memory_space<vmem>>, %arg16: memref<!tpu.dma_semaphore, #tpu.memory_space<semaphore_mem>>) attributes {dimension_semantics = [], scalar_prefetch = 0 : i64, scratch_operands = 2 : i64, tpu.core_type = #tpu.core_type<tc>} {
    tpu.enqueue_dma source(%arg12 : memref<1280x896xbf16, #tpu.memory_space<any>>) target(%arg15 : memref<1280x896xbf16, #tpu.memory_space<vmem>>) target_semaphore(%arg16 : memref<!tpu.dma_semaphore, #tpu.memory_space<semaphore_mem>>)
    %c0 = arith.constant 0 : index
    %c0_0 = arith.constant 0 : index
    %0 = vector.load %arg0[%c0, %c0_0] : memref<8x1xi32, #tpu.memory_space<vmem>>, vector<8x1xi32>
    %1 = tpu.iota {dimensions = array<i32: 1>} : vector<8x128xi32>
    %2 = vector.broadcast %0 : vector<8x1xi32> to vector<8x128xi32>
    %3 = arith.cmpi eq, %1, %2 : vector<8x128xi32>
    %4 = arith.extui %3 : vector<8x128xi1> to vector<8x128xi32>
    %5 = arith.sitofp %4 : vector<8x128xi32> to vector<8x128xf32>
    %6 = arith.truncf %5 : vector<8x128xf32> to vector<8x128xbf16>
    %c0_1 = arith.constant 0 : index
    %c0_2 = arith.constant 0 : index
    %7 = vector.load %arg2[%c0_1, %c0_2] : memref<128x1024xbf16, #tpu.memory_space<vmem>>, vector<128x1024xbf16>
    %cst = arith.constant dense<0.000000e+00> : vector<8x1024xf32>
    %8 = tpu.matmul %6, %7, %cst {dimension_numbers = #tpu.dot_dimension_numbers<[1], [0], [0], [1], [0, 0, 1, 1], [], []>} : vector<8x128xbf16>, vector<128x1024xbf16>, vector<8x1024xf32> -> vector<8x1024xf32>
    %c0_3 = arith.constant 0 : index
    %c0_4 = arith.constant 0 : index
    %9 = vector.load %arg3[%c0_3, %c0_4] : memref<1x1024xf32, #tpu.memory_space<vmem>>, vector<1x1024xf32>
    %10 = vector.broadcast %9 : vector<1x1024xf32> to vector<8x1024xf32>
    %11 = arith.addf %8, %10 : vector<8x1024xf32>
    %cst_5 = arith.constant 0.000000e+00 : f32
    %12 = vector.broadcast %cst_5 : f32 to vector<8x1024xf32>
    %13 = arith.cmpf ogt, %11, %12 : vector<8x1024xf32>
    %cst_6 = arith.constant 2.000000e-01 : f32
    %14 = vector.broadcast %cst_6 : f32 to vector<8x1024xf32>
    %15 = arith.mulf %14, %11 : vector<8x1024xf32>
    %16 = arith.select %13, %11, %15 : vector<8x1024xi1>, vector<8x1024xf32>
    %c0_7 = arith.constant 0 : index
    %c0_8 = arith.constant 0 : index
    %17 = vector.load %arg1[%c0_7, %c0_8] : memref<8x128xf32, #tpu.memory_space<vmem>>, vector<8x128xf32>
    %18 = arith.truncf %17 : vector<8x128xf32> to vector<8x128xbf16>
    %c0_9 = arith.constant 0 : index
    %c0_10 = arith.constant 0 : index
    %19 = vector.load %arg4[%c0_9, %c0_10] : memref<128x256xbf16, #tpu.memory_space<vmem>>, vector<128x256xbf16>
    %cst_11 = arith.constant dense<0.000000e+00> : vector<8x256xf32>
    %20 = tpu.matmul %18, %19, %cst_11 {dimension_numbers = #tpu.dot_dimension_numbers<[1], [0], [0], [1], [0, 0, 1, 1], [], []>} : vector<8x128xbf16>, vector<128x256xbf16>, vector<8x256xf32> -> vector<8x256xf32>
    %c0_12 = arith.constant 0 : index
    %c0_13 = arith.constant 0 : index
    %21 = vector.load %arg5[%c0_12, %c0_13] : memref<1x256xf32, #tpu.memory_space<vmem>>, vector<1x256xf32>
    %22 = vector.broadcast %21 : vector<1x256xf32> to vector<8x256xf32>
    %23 = arith.addf %20, %22 : vector<8x256xf32>
    %c0_14 = arith.constant 0 : index
    %c0_15 = arith.constant 0 : index
    %24 = vector.load %arg6[%c0_14, %c0_15] : memref<1x256xf32, #tpu.memory_space<vmem>>, vector<1x256xf32>
    %c0_16 = arith.constant 0 : index
    %c0_17 = arith.constant 0 : index
    %25 = vector.load %arg7[%c0_16, %c0_17] : memref<1x256xf32, #tpu.memory_space<vmem>>, vector<1x256xf32>
    %cst_18 = arith.constant dense<0.000000e+00> : vector<256xf32>
    %26 = vector.multi_reduction <add>, %23, %cst_18 [0] : vector<8x256xf32> to vector<256xf32>
    %27 = vector.shape_cast %26 : vector<256xf32> to vector<1x256xf32>
    %cst_19 = arith.constant 8.000000e+00 : f32
    %28 = vector.broadcast %cst_19 : f32 to vector<1x256xf32>
    %29 = arith.divf %27, %28 : vector<1x256xf32>
    %30 = arith.mulf %23, %23 : vector<8x256xf32>
    %cst_20 = arith.constant dense<0.000000e+00> : vector<256xf32>
    %31 = vector.multi_reduction <add>, %30, %cst_20 [0] : vector<8x256xf32> to vector<256xf32>
    %32 = vector.shape_cast %31 : vector<256xf32> to vector<1x256xf32>
    %cst_21 = arith.constant 8.000000e+00 : f32
    %33 = vector.broadcast %cst_21 : f32 to vector<1x256xf32>
    %34 = arith.divf %32, %33 : vector<1x256xf32>
    %35 = arith.mulf %29, %29 : vector<1x256xf32>
    %36 = arith.subf %34, %35 : vector<1x256xf32>
    %cst_22 = arith.constant 0.000000e+00 : f32
    %37 = vector.broadcast %cst_22 : f32 to vector<1x256xf32>
    %38 = arith.maximumf %36, %37 : vector<1x256xf32>
    %cst_23 = arith.constant 9.99999974E-6 : f32
    %39 = vector.broadcast %cst_23 : f32 to vector<1x256xf32>
    %40 = arith.addf %38, %39 : vector<1x256xf32>
    %41 = math.rsqrt %40 : vector<1x256xf32>
    %42 = arith.mulf %24, %41 : vector<1x256xf32>
    %43 = arith.mulf %29, %42 : vector<1x256xf32>
    %44 = arith.subf %25, %43 : vector<1x256xf32>
    %45 = vector.broadcast %42 : vector<1x256xf32> to vector<8x256xf32>
    %46 = arith.mulf %23, %45 : vector<8x256xf32>
    %47 = vector.broadcast %44 : vector<1x256xf32> to vector<8x256xf32>
    %48 = arith.addf %46, %47 : vector<8x256xf32>
    %cst_24 = arith.constant 0.000000e+00 : f32
    %49 = vector.broadcast %cst_24 : f32 to vector<8x256xf32>
    %50 = arith.cmpf ogt, %48, %49 : vector<8x256xf32>
    %cst_25 = arith.constant 2.000000e-01 : f32
    %51 = vector.broadcast %cst_25 : f32 to vector<8x256xf32>
    %52 = arith.mulf %51, %48 : vector<8x256xf32>
    %53 = arith.select %50, %48, %52 : vector<8x256xi1>, vector<8x256xf32>
    %54 = arith.truncf %53 : vector<8x256xf32> to vector<8x256xbf16>
    %c0_26 = arith.constant 0 : index
    %c0_27 = arith.constant 0 : index
    %55 = vector.load %arg8[%c0_26, %c0_27] : memref<1280x1280xbf16, #tpu.memory_space<vmem>>, vector<256x1280xbf16>
    %cst_28 = arith.constant dense<0.000000e+00> : vector<8x1280xf32>
    %56 = tpu.matmul %54, %55, %cst_28 {dimension_numbers = #tpu.dot_dimension_numbers<[1], [0], [0], [1], [0, 0, 1, 1], [], []>} : vector<8x256xbf16>, vector<256x1280xbf16>, vector<8x1280xf32> -> vector<8x1280xf32>
    %57 = arith.truncf %16 : vector<8x1024xf32> to vector<8x1024xbf16>
    %c256 = arith.constant 256 : index
    %c0_29 = arith.constant 0 : index
    %58 = vector.load %arg8[%c256, %c0_29] : memref<1280x1280xbf16, #tpu.memory_space<vmem>>, vector<1024x1280xbf16>
    %cst_30 = arith.constant dense<0.000000e+00> : vector<8x1280xf32>
    %59 = tpu.matmul %57, %58, %cst_30 {dimension_numbers = #tpu.dot_dimension_numbers<[1], [0], [0], [1], [0, 0, 1, 1], [], []>} : vector<8x1024xbf16>, vector<1024x1280xbf16>, vector<8x1280xf32> -> vector<8x1280xf32>
    %60 = arith.addf %56, %59 : vector<8x1280xf32>
    %c0_31 = arith.constant 0 : index
    %c0_32 = arith.constant 0 : index
    %61 = vector.load %arg9[%c0_31, %c0_32] : memref<1x1280xf32, #tpu.memory_space<vmem>>, vector<1x1280xf32>
    %62 = vector.broadcast %61 : vector<1x1280xf32> to vector<8x1280xf32>
    %63 = arith.addf %60, %62 : vector<8x1280xf32>
    %c0_33 = arith.constant 0 : index
    %c0_34 = arith.constant 0 : index
    %64 = vector.load %arg10[%c0_33, %c0_34] : memref<1x1280xf32, #tpu.memory_space<vmem>>, vector<1x1280xf32>
    %c0_35 = arith.constant 0 : index
    %c0_36 = arith.constant 0 : index
    %65 = vector.load %arg11[%c0_35, %c0_36] : memref<1x1280xf32, #tpu.memory_space<vmem>>, vector<1x1280xf32>
    %cst_37 = arith.constant dense<0.000000e+00> : vector<1280xf32>
    %66 = vector.multi_reduction <add>, %63, %cst_37 [0] : vector<8x1280xf32> to vector<1280xf32>
    %67 = vector.shape_cast %66 : vector<1280xf32> to vector<1x1280xf32>
    %cst_38 = arith.constant 8.000000e+00 : f32
    %68 = vector.broadcast %cst_38 : f32 to vector<1x1280xf32>
    %69 = arith.divf %67, %68 : vector<1x1280xf32>
    %70 = arith.mulf %63, %63 : vector<8x1280xf32>
    %cst_39 = arith.constant dense<0.000000e+00> : vector<1280xf32>
    %71 = vector.multi_reduction <add>, %70, %cst_39 [0] : vector<8x1280xf32> to vector<1280xf32>
    %72 = vector.shape_cast %71 : vector<1280xf32> to vector<1x1280xf32>
    %cst_40 = arith.constant 8.000000e+00 : f32
    %73 = vector.broadcast %cst_40 : f32 to vector<1x1280xf32>
    %74 = arith.divf %72, %73 : vector<1x1280xf32>
    %75 = arith.mulf %69, %69 : vector<1x1280xf32>
    %76 = arith.subf %74, %75 : vector<1x1280xf32>
    %cst_41 = arith.constant 0.000000e+00 : f32
    %77 = vector.broadcast %cst_41 : f32 to vector<1x1280xf32>
    %78 = arith.maximumf %76, %77 : vector<1x1280xf32>
    %cst_42 = arith.constant 9.99999974E-6 : f32
    %79 = vector.broadcast %cst_42 : f32 to vector<1x1280xf32>
    %80 = arith.addf %78, %79 : vector<1x1280xf32>
    %81 = math.rsqrt %80 : vector<1x1280xf32>
    %82 = arith.mulf %64, %81 : vector<1x1280xf32>
    %83 = arith.mulf %69, %82 : vector<1x1280xf32>
    %84 = arith.subf %65, %83 : vector<1x1280xf32>
    %85 = vector.broadcast %82 : vector<1x1280xf32> to vector<8x1280xf32>
    %86 = arith.mulf %63, %85 : vector<8x1280xf32>
    %87 = vector.broadcast %84 : vector<1x1280xf32> to vector<8x1280xf32>
    %88 = arith.addf %86, %87 : vector<8x1280xf32>
    %cst_43 = arith.constant 0.000000e+00 : f32
    %89 = vector.broadcast %cst_43 : f32 to vector<8x1280xf32>
    %90 = arith.cmpf ogt, %88, %89 : vector<8x1280xf32>
    %cst_44 = arith.constant 2.000000e-01 : f32
    %91 = vector.broadcast %cst_44 : f32 to vector<8x1280xf32>
    %92 = arith.mulf %91, %88 : vector<8x1280xf32>
    %93 = arith.select %90, %88, %92 : vector<8x1280xi1>, vector<8x1280xf32>
    tpu.wait_dma2 semaphore(%arg16 : memref<!tpu.dma_semaphore, #tpu.memory_space<semaphore_mem>>) src(%arg12 : memref<1280x896xbf16, #tpu.memory_space<any>>) dst(%arg15 : memref<1280x896xbf16, #tpu.memory_space<vmem>>)
    %94 = arith.truncf %93 : vector<8x1280xf32> to vector<8x1280xbf16>
    %c0_45 = arith.constant 0 : index
    %c0_46 = arith.constant 0 : index
    %95 = vector.load %arg15[%c0_45, %c0_46] : memref<1280x896xbf16, #tpu.memory_space<vmem>>, vector<1280x896xbf16>
    %cst_47 = arith.constant dense<0.000000e+00> : vector<8x896xf32>
    %96 = tpu.matmul %94, %95, %cst_47 {dimension_numbers = #tpu.dot_dimension_numbers<[1], [0], [0], [1], [0, 0, 1, 1], [], []>} : vector<8x1280xbf16>, vector<1280x896xbf16>, vector<8x896xf32> -> vector<8x896xf32>
    %c0_48 = arith.constant 0 : index
    %c0_49 = arith.constant 0 : index
    %97 = vector.load %arg13[%c0_48, %c0_49] : memref<1x896xf32, #tpu.memory_space<vmem>>, vector<1x896xf32>
    %98 = vector.broadcast %97 : vector<1x896xf32> to vector<8x896xf32>
    %99 = arith.addf %96, %98 : vector<8x896xf32>
    %cst_50 = arith.constant 0.000000e+00 : f32
    %100 = vector.broadcast %cst_50 : f32 to vector<8x896xf32>
    %101 = arith.subf %100, %99 : vector<8x896xf32>
    %102 = math.exp %101 : vector<8x896xf32>
    %cst_51 = arith.constant 1.000000e+00 : f32
    %103 = vector.broadcast %cst_51 : f32 to vector<8x896xf32>
    %104 = arith.addf %103, %102 : vector<8x896xf32>
    %cst_52 = arith.constant 1.000000e+00 : f32
    %105 = vector.broadcast %cst_52 : f32 to vector<8x896xf32>
    %106 = arith.divf %105, %104 : vector<8x896xf32>
    %c0_53 = arith.constant 0 : index
    %c0_54 = arith.constant 0 : index
    %107 = vector.load %arg14[%c0_53, %c0_54] : memref<8x896xf32, #tpu.memory_space<vmem>>, vector<8x896xf32>
    tpu.vector_store %arg14[%c0_53, %c0_54], %106 {strides = array<i32>} : memref<8x896xf32, #tpu.memory_space<vmem>>, vector<8x896xf32>,
    return
  }
}

</mosaic_0001>

<llo_original>
// kernel: tpu_custom_call.1
$region0: #{tpu_custom_call.1}
  #allocation0 [shape = 'u32[]', space=smem, size = 0x4, offset = 0x4, fixed_abs, tag = 'smem constant byte address 0x4 - core index']
  #allocation1 [shape = 'u32[72,128]{1,0:T(1,128)}', space=vmem, size = 0x9000, scoped, tag = 'internal scratch']
  #allocation2 [shape = 'bf16[1280,896]{1,0:T(8,128)(2,1)}', space=vmem, size = 0x230000, scoped, tag = 'scratch operand']
  #allocation3 [shape = 's32[1]{0}', space=sflag, size = 0x4, scoped, tag = 'scratch operand']
  #allocation25 [shape = 's32[]', space=sflag, size = 0x4, offset = 0, fixed_abs, tag = 'sflag constant byte address 0x0 - dummy sync flag']
  #allocation26 [shape = 's32[]', space=sflag, size = 0x4, offset = 0, fixed_abs, tag = 'sflag constant byte address 0x0 - dummy sync flag']
  #allocation27 [shape = 'u32[]', space=smem, size = 0x4, offset = 0x44, fixed_abs, tag = 'smem constant byte address 0x44 - assertion arg 0']
  #allocation28 [shape = 'u32[]', space=smem, size = 0x4, offset = 0x48, fixed_abs, tag = 'smem constant byte address 0x48 - assertion arg 1']
  %s0 = inlined_call_operand.vmem [shape: s32[8,1], index: 0, kind: input, shape index: {}]
  %s1 = inlined_call_operand.hbm [shape: f32[8,128], index: 1, kind: input, shape index: {}]
  %s2 = inlined_call_operand.hbm [shape: bf16[128,1024], index: 2, kind: input, shape index: {}]
  %s3 = inlined_call_operand.hbm [shape: f32[1,1024], index: 3, kind: input, shape index: {}]
  %s4 = inlined_call_operand.hbm [shape: bf16[128,256], index: 4, kind: input, shape index: {}]
  %s5 = inlined_call_operand.hbm [shape: f32[1,256], index: 5, kind: input, shape index: {}]
  %s6 = inlined_call_operand.hbm [shape: f32[1,256], index: 6, kind: input, shape index: {}]
  %s7 = inlined_call_operand.hbm [shape: f32[1,256], index: 7, kind: input, shape index: {}]
  %s8 = inlined_call_operand.hbm [shape: bf16[1280,1280], index: 8, kind: input, shape index: {}]
  %s9 = inlined_call_operand.hbm [shape: f32[1,1280], index: 9, kind: input, shape index: {}]
  %s10 = inlined_call_operand.hbm [shape: f32[1,1280], index: 10, kind: input, shape index: {}]
  %s11 = inlined_call_operand.hbm [shape: f32[1,1280], index: 11, kind: input, shape index: {}]
  %s12 = inlined_call_operand.hbm [shape: bf16[1280,896], index: 12, kind: input, shape index: {}]
  %s13 = inlined_call_operand.hbm [shape: f32[1,896], index: 13, kind: input, shape index: {}]
  %s14 = inlined_call_operand.hbm [shape: f32[8,896], index: 14, kind: output, shape index: {}]
  %s15 = sld [smem:[#allocation0]]
  $region114: #{tpu_custom_call.1} parent=0
    _
  %s17 = ssub.s32 1, %s15
  %s18 = scalar_select 0, %s17, %s15
  $region1: #{tpu_custom_call.1} parent=0
    #allocation4 [shape = 'u8[4096]{0}', space=vmem, size = 0x1000, scoped, tag = 'input window, operand 1, single buffered']
    #allocation5 [shape = 's32[1]{0}', space=sflag, size = 0x4, scoped, tag = 'scoped memory for tpu_custom_call.1']
    #allocation6 [shape = 's32[1]{0}', space=sflag, size = 0x4, scoped, tag = 'scoped memory for tpu_custom_call.1']
    #allocation7 [shape = 'u8[262144]{0}', space=vmem, size = 0x40000, scoped, tag = 'input window, operand 2, single buffered']
    #allocation8 [shape = 's32[1]{0}', space=sflag, size = 0x4, scoped, tag = 'scoped memory for tpu_custom_call.1']
    #allocation9 [shape = 'u8[4096]{0}', space=vmem, size = 0x1000, scoped, tag = 'input window, operand 3, single buffered']
    #allocation10 [shape = 'u8[65536]{0}', space=vmem, size = 0x10000, scoped, tag = 'input window, operand 4, single buffered']
    #allocation11 [shape = 's32[1]{0}', space=sflag, size = 0x4, scoped, tag = 'scoped memory for tpu_custom_call.1']
    #allocation12 [shape = 'u8[1024]{0}', space=vmem, size = 0x400, scoped, tag = 'input window, operand 5, single buffered']
    #allocation13 [shape = 'u8[1024]{0}', space=vmem, size = 0x400, scoped, tag = 'input window, operand 6, single buffered']
    #allocation14 [shape = 's32[1]{0}', space=sflag, size = 0x4, scoped, tag = 'scoped memory for tpu_custom_call.1']
    #allocation15 [shape = 'u8[1024]{0}', space=vmem, size = 0x400, scoped, tag = 'input window, operand 7, single buffered']
    #allocation16 [shape = 'u8[3276800]{0}', space=vmem, size = 0x320000, scoped, tag = 'input window, operand 8, single buffered']
    #allocation17 [shape = 's32[1]{0}', space=sflag, size = 0x4, scoped, tag = 'scoped memory for tpu_custom_call.1']
    #allocation18 [shape = 'u8[5120]{0}', space=vmem, size = 0x1400, scoped, tag = 'input window, operand 9, single buffered']
    #allocation19 [shape = 'u8[5120]{0}', space=vmem, size = 0x1400, scoped, tag = 'input window, operand 10, single buffered']
    #allocation20 [shape = 's32[1]{0}', space=sflag, size = 0x4, scoped, tag = 'scoped memory for tpu_custom_call.1']
    #allocation21 [shape = 'u8[5120]{0}', space=vmem, size = 0x1400, scoped, tag = 'input window, operand 11, single buffered']
    #allocation22 [shape = 'u8[3584]{0}', space=vmem, size = 0x1000, scoped, tag = 'input window, operand 13, single buffered']
    #allocation23 [shape = 's32[1]{0}', space=sflag, size = 0x4, scoped, tag = 'scoped memory for tpu_custom_call.1']
    #allocation24 [shape = 'u8[28672]{0}', space=vmem, size = 0x7000, scoped, tag = 'output window, operand 0, single buffered']
    %19 = vsyncpa [#allocation5], 0
    %20 = vsyncpa [#allocation8], 0
    %21 = vsyncpa [#allocation11], 0
    %22 = vsyncpa [#allocation14], 0
    %23 = vsyncpa [#allocation17], 0
    %24 = vsyncpa [#allocation20], 0
    %25 = vsyncpa [#allocation23], 0
    %26 = vsyncpa [#allocation6], 0
    // Predicated region
    $region2: #{tpu_custom_call.1} parent=1 // pred_check
      _
    $region3: #{tpu_custom_call.1} parent=1 // pred_check_branch
      %28 = sbr.rel (0) target = $region5
    $region4: #{tpu_custom_call.1} parent=1 // pred_region
      _
    $region5: #{tpu_custom_call.1} parent=1 // pred_fallthru
      _
    // Predicated region
    $region6: #{tpu_custom_call.1} parent=1 // pred_check
      _
    $region7: #{tpu_custom_call.1} parent=1 // pred_check_branch
      %30 = sbr.rel (0) target = $region9
    $region8: #{tpu_custom_call.1} parent=1 // pred_region
      %32 = vsyncadd [#allocation5], 0
      %s34 = sshll.u32 %s1, 4
      %s35 = int_to_ptr.hbm [resolvable:$true] %s34
      %s36 = sshll.u32 [#allocation4], 4
      %s37 = int_to_ptr.vmem [resolvable:$true] %s36
      %39 = dma.hbm_to_vmem [thread:$0]  %s35, 128, %s37, [#allocation5]
    $region9: #{tpu_custom_call.1} parent=1 // pred_fallthru
      _
    // Predicated region
    $region10: #{tpu_custom_call.1} parent=1 // pred_check
      _
    $region11: #{tpu_custom_call.1} parent=1 // pred_check_branch
      %41 = sbr.rel (0) target = $region13
    $region12: #{tpu_custom_call.1} parent=1 // pred_region
      %43 = vsyncadd [#allocation8], 0
      %s44 = sshll.u32 %s2, 4
      %s45 = int_to_ptr.hbm [resolvable:$true] %s44
      %s46 = sshll.u32 [#allocation7], 4
      %s47 = int_to_ptr.vmem [resolvable:$true] %s46
      %52 = dma.hbm_to_vmem [thread:$0]  %s45, 8192, %s47, [#allocation8], 512, 512, 32
    $region13: #{tpu_custom_call.1} parent=1 // pred_fallthru
      _
    // Predicated region
    $region14: #{tpu_custom_call.1} parent=1 // pred_check
      _
    $region15: #{tpu_custom_call.1} parent=1 // pred_check_branch
      %54 = sbr.rel (0) target = $region17
    $region16: #{tpu_custom_call.1} parent=1 // pred_region
      %56 = vsyncadd [#allocation8], 0
      %s58 = sshll.u32 %s3, 4
      %s59 = int_to_ptr.hbm [resolvable:$true] %s58
      %s60 = sshll.u32 [#allocation9], 4
      %s61 = int_to_ptr.vmem [resolvable:$true] %s60
      %63 = dma.hbm_to_vmem [thread:$0]  %s59, 128, %s61, [#allocation8]
    $region17: #{tpu_custom_call.1} parent=1 // pred_fallthru
      _
    // Predicated region
    $region18: #{tpu_custom_call.1} parent=1 // pred_check
      _
    $region19: #{tpu_custom_call.1} parent=1 // pred_check_branch
      %65 = sbr.rel (0) target = $region21
    $region20: #{tpu_custom_call.1} parent=1 // pred_region
      %67 = vsyncadd [#allocation11], 0
      %s68 = sshll.u32 %s4, 4
      %s69 = int_to_ptr.hbm [resolvable:$true] %s68
      %s70 = sshll.u32 [#allocation10], 4
      %s71 = int_to_ptr.vmem [resolvable:$true] %s70
      %76 = dma.hbm_to_vmem [thread:$0]  %s69, 2048, %s71, [#allocation11], 128, 128, 8
    $region21: #{tpu_custom_call.1} parent=1 // pred_fallthru
      _
    // Predicated region
    $region22: #{tpu_custom_call.1} parent=1 // pred_check
      _
    $region23: #{tpu_custom_call.1} parent=1 // pred_check_branch
      %78 = sbr.rel (0) target = $region25
    $region24: #{tpu_custom_call.1} parent=1 // pred_region
      %80 = vsyncadd [#allocation11], 0
      %s82 = sshll.u32 %s5, 4
      %s83 = int_to_ptr.hbm [resolvable:$true] %s82
      %s84 = sshll.u32 [#allocation12], 4
      %s85 = int_to_ptr.vmem [resolvable:$true] %s84
      %87 = dma.hbm_to_vmem [thread:$0]  %s83, 32, %s85, [#allocation11]
    $region25: #{tpu_custom_call.1} parent=1 // pred_fallthru
      _
    // Predicated region
    $region26: #{tpu_custom_call.1} parent=1 // pred_check
      _
    $region27: #{tpu_custom_call.1} parent=1 // pred_check_branch
      %89 = sbr.rel (0) target = $region29
    $region28: #{tpu_custom_call.1} parent=1 // pred_region
      %91 = vsyncadd [#allocation14], 0
      %s93 = sshll.u32 %s6, 4
      %s94 = int_to_ptr.hbm [resolvable:$true] %s93
      %s95 = sshll.u32 [#allocation13], 4
      %s96 = int_to_ptr.vmem [resolvable:$true] %s95
      %98 = dma.hbm_to_vmem [thread:$0]  %s94, 32, %s96, [#allocation14]
    $region29: #{tpu_custom_call.1} parent=1 // pred_fallthru
      _
    // Predicated region
    $region30: #{tpu_custom_call.1} parent=1 // pred_check
      _
    $region31: #{tpu_custom_call.1} parent=1 // pred_check_branch
      %100 = sbr.rel (0) target = $region33
    $region32: #{tpu_custom_call.1} parent=1 // pred_region
      %102 = vsyncadd [#allocation14], 0
      %s104 = sshll.u32 %s7, 4
      %s105 = int_to_ptr.hbm [resolvable:$true] %s104
      %s106 = sshll.u32 [#allocation15], 4
      %s107 = int_to_ptr.vmem [resolvable:$true] %s106
      %109 = dma.hbm_to_vmem [thread:$0]  %s105, 32, %s107, [#allocation14]
    $region33: #{tpu_custom_call.1} parent=1 // pred_fallthru
      _
    // Predicated region
    $region34: #{tpu_custom_call.1} parent=1 // pred_check
      _
    $region35: #{tpu_custom_call.1} parent=1 // pred_check_branch
      %111 = sbr.rel (0) target = $region37
    $region36: #{tpu_custom_call.1} parent=1 // pred_region
      %113 = vsyncadd [#allocation17], 0
      %s114 = sshll.u32 %s8, 4
      %s115 = int_to_ptr.hbm [resolvable:$true] %s114
      %s116 = sshll.u32 [#allocation16], 4
      %s117 = int_to_ptr.vmem [resolvable:$true] %s116
      %122 = dma.hbm_to_vmem [thread:$0]  %s115, 102400, %s117, [#allocation17], 640, 640, 40
    $region37: #{tpu_custom_call.1} parent=1 // pred_fallthru
      _
    // Predicated region
    $region38: #{tpu_custom_call.1} parent=1 // pred_check
      _
    $region39: #{tpu_custom_call.1} parent=1 // pred_check_branch
      %124 = sbr.rel (0) target = $region41
    $region40: #{tpu_custom_call.1} parent=1 // pred_region
      %126 = vsyncadd [#allocation17], 0
      %s128 = sshll.u32 %s9, 4
      %s129 = int_to_ptr.hbm [resolvable:$true] %s128
      %s130 = sshll.u32 [#allocation18], 4
      %s131 = int_to_ptr.vmem [resolvable:$true] %s130
      %133 = dma.hbm_to_vmem [thread:$0]  %s129, 160, %s131, [#allocation17]
    $region41: #{tpu_custom_call.1} parent=1 // pred_fallthru
      _
    // Predicated region
    $region42: #{tpu_custom_call.1} parent=1 // pred_check
      _
    $region43: #{tpu_custom_call.1} parent=1 // pred_check_branch
      %135 = sbr.rel (0) target = $region45
    $region44: #{tpu_custom_call.1} parent=1 // pred_region
      %137 = vsyncadd [#allocation20], 0
      %s139 = sshll.u32 %s10, 4
      %s140 = int_to_ptr.hbm [resolvable:$true] %s139
      %s141 = sshll.u32 [#allocation19], 4
      %s142 = int_to_ptr.vmem [resolvable:$true] %s141
      %144 = dma.hbm_to_vmem [thread:$0]  %s140, 160, %s142, [#allocation20]
    $region45: #{tpu_custom_call.1} parent=1 // pred_fallthru
      _
    // Predicated region
    $region46: #{tpu_custom_call.1} parent=1 // pred_check
      _
    $region47: #{tpu_custom_call.1} parent=1 // pred_check_branch
      %146 = sbr.rel (0) target = $region49
    $region48: #{tpu_custom_call.1} parent=1 // pred_region
      %148 = vsyncadd [#allocation20], 0
      %s150 = sshll.u32 %s11, 4
      %s151 = int_to_ptr.hbm [resolvable:$true] %s150
      %s152 = sshll.u32 [#allocation21], 4
      %s153 = int_to_ptr.vmem [resolvable:$true] %s152
      %155 = dma.hbm_to_vmem [thread:$0]  %s151, 160, %s153, [#allocation20]
    $region49: #{tpu_custom_call.1} parent=1 // pred_fallthru
      _
    // Predicated region
    $region50: #{tpu_custom_call.1} parent=1 // pred_check
      _
    $region51: #{tpu_custom_call.1} parent=1 // pred_check_branch
      %157 = sbr.rel (0) target = $region53
    $region52: #{tpu_custom_call.1} parent=1 // pred_region
      %159 = vsyncadd [#allocation23], 0
      %s161 = sshll.u32 %s13, 4
      %s162 = int_to_ptr.hbm [resolvable:$true] %s161
      %s163 = sshll.u32 [#allocation22], 4
      %s164 = int_to_ptr.vmem [resolvable:$true] %s163
      %166 = dma.hbm_to_vmem [thread:$0]  %s162, 112, %s164, [#allocation23]
    $region53: #{tpu_custom_call.1} parent=1 // pred_fallthru
      _
    // Predicated region
    $region54: #{tpu_custom_call.1} parent=1 // pred_check
      _
    $region55: #{tpu_custom_call.1} parent=1 // pred_check_branch
      %168 = sbr.rel (0) target = $region57
    $region56: #{tpu_custom_call.1} parent=1 // pred_region
      %170 = dma.done [#allocation5], 128
    $region57: #{tpu_custom_call.1} parent=1 // pred_fallthru
      _
    // Predicated region
    $region58: #{tpu_custom_call.1} parent=1 // pred_check
      _
    $region59: #{tpu_custom_call.1} parent=1 // pred_check_branch
      %172 = sbr.rel (0) target = $region61
    $region60: #{tpu_custom_call.1} parent=1 // pred_region
      %174 = dma.done [#allocation8], 8192
    $region61: #{tpu_custom_call.1} parent=1 // pred_fallthru
      _
    // Predicated region
    $region62: #{tpu_custom_call.1} parent=1 // pred_check
      _
    $region63: #{tpu_custom_call.1} parent=1 // pred_check_branch
      %176 = sbr.rel (0) target = $region65
    $region64: #{tpu_custom_call.1} parent=1 // pred_region
      %178 = dma.done [#allocation8], 128
    $region65: #{tpu_custom_call.1} parent=1 // pred_fallthru
      _
    // Predicated region
    $region66: #{tpu_custom_call.1} parent=1 // pred_check
      _
    $region67: #{tpu_custom_call.1} parent=1 // pred_check_branch
      %180 = sbr.rel (0) target = $region69
    $region68: #{tpu_custom_call.1} parent=1 // pred_region
      %182 = dma.done [#allocation11], 2048
    $region69: #{tpu_custom_call.1} parent=1 // pred_fallthru
      _
    // Predicated region
    $region70: #{tpu_custom_call.1} parent=1 // pred_check
      _
    $region71: #{tpu_custom_call.1} parent=1 // pred_check_branch
      %184 = sbr.rel (0) target = $region73
    $region72: #{tpu_custom_call.1} parent=1 // pred_region
      %186 = dma.done [#allocation11], 32
    $region73: #{tpu_custom_call.1} parent=1 // pred_fallthru
      _
    // Predicated region
    $region74: #{tpu_custom_call.1} parent=1 // pred_check
      _
    $region75: #{tpu_custom_call.1} parent=1 // pred_check_branch
      %188 = sbr.rel (0) target = $region77
    $region76: #{tpu_custom_call.1} parent=1 // pred_region
      %190 = dma.done [#allocation14], 32
    $region77: #{tpu_custom_call.1} parent=1 // pred_fallthru
      _
    // Predicated region
    $region78: #{tpu_custom_call.1} parent=1 // pred_check
      _
    $region79: #{tpu_custom_call.1} parent=1 // pred_check_branch
      %192 = sbr.rel (0) target = $region81
    $region80: #{tpu_custom_call.1} parent=1 // pred_region
      %194 = dma.done [#allocation14], 32
    $region81: #{tpu_custom_call.1} parent=1 // pred_fallthru
      _
    // Predicated region
    $region82: #{tpu_custom_call.1} parent=1 // pred_check
      _
    $region83: #{tpu_custom_call.1} parent=1 // pred_check_branch
      %196 = sbr.rel (0) target = $region85
    $region84: #{tpu_custom_call.1} parent=1 // pred_region
      %198 = dma.done [#allocation17], 102400
    $region85: #{tpu_custom_call.1} parent=1 // pred_fallthru
      _
    // Predicated region
    $region86: #{tpu_custom_call.1} parent=1 // pred_check
      _
    $region87: #{tpu_custom_call.1} parent=1 // pred_check_branch
      %200 = sbr.rel (0) target = $region89
    $region88: #{tpu_custom_call.1} parent=1 // pred_region
      %202 = dma.done [#allocation17], 160
    $region89: #{tpu_custom_call.1} parent=1 // pred_fallthru
      _
    // Predicated region
    $region90: #{tpu_custom_call.1} parent=1 // pred_check
      _
    $region91: #{tpu_custom_call.1} parent=1 // pred_check_branch
      %204 = sbr.rel (0) target = $region93
    $region92: #{tpu_custom_call.1} parent=1 // pred_region
      %206 = dma.done [#allocation20], 160
    $region93: #{tpu_custom_call.1} parent=1 // pred_fallthru
      _
    // Predicated region
    $region94: #{tpu_custom_call.1} parent=1 // pred_check
      _
    $region95: #{tpu_custom_call.1} parent=1 // pred_check_branch
      %208 = sbr.rel (0) target = $region97
    $region96: #{tpu_custom_call.1} parent=1 // pred_region
      %210 = dma.done [#allocation20], 160
    $region97: #{tpu_custom_call.1} parent=1 // pred_fallthru
      _
    // Predicated region
    $region98: #{tpu_custom_call.1} parent=1 // pred_check
      _
    $region99: #{tpu_custom_call.1} parent=1 // pred_check_branch
      %212 = sbr.rel (0) target = $region101
    $region100: #{tpu_custom_call.1} parent=1 // pred_region
      %214 = dma.done [#allocation23], 112
    $region101: #{tpu_custom_call.1} parent=1 // pred_fallthru
      _
    // Predicated region
    $region102: #{tpu_custom_call.1} parent=1 // pred_check
      _
    $region103: #{tpu_custom_call.1} parent=1 // pred_check_branch
      %216 = sbr.rel target = $region105
    $region104: #{tpu_custom_call.1} parent=1 // pred_region
      %217 = sst [smem:[#allocation27]] [#allocation26]
      %218 = sst [smem:[#allocation28]] [#allocation25]
    $region105: #{tpu_custom_call.1} parent=1 // pred_fallthru
      _
    %220 = shalt.err (0)
    %s222 = sshll.u32 %s12, 4
    %s223 = int_to_ptr.hbm [resolvable:$true] %s222
    %s224 = sshll.u32 [#allocation2], 4
    %s225 = int_to_ptr.vmem [resolvable:$true] %s224
    %227 = dma.hbm_to_vmem [thread:$0]  %s223, 71680, %s225, [#allocation3]
    %v228 = vld [vmem:[%s0] sm:$0xff]
    %v229 = vlaneseq
    %v230 = vand.u32 %v229, 127
    %231 = vset.pattern.permute.xlu0 0
    %232 = vperm.xlu0 %231, %v228
    %v233 = vpop.permute.xlu0 %232
    %vm234 = vcmp.eq.s32.totalorder %v230, %v233
    %v235 = vsel %vm234, 1, 0
    %v236 = vcvt.s32.f32 %v235
    %v237 = vpack.c.bf16 %v236, %v236
    %v238 = vld [vmem:[#allocation7] sm:$0xff]
    %v239 = vld [vmem:[#allocation7 + $0x8] sm:$0xff]
    %v240 = vld [vmem:[#allocation7 + $0x10] sm:$0xff]
    %v241 = vld [vmem:[#allocation7 + $0x18] sm:$0xff]
    %v242 = vld [vmem:[#allocation7 + $0x20] sm:$0xff]
    %v243 = vld [vmem:[#allocation7 + $0x28] sm:$0xff]
    %v244 = vld [vmem:[#allocation7 + $0x30] sm:$0xff]
    %v245 = vld [vmem:[#allocation7 + $0x38] sm:$0xff]
    %v246 = vld [vmem:[#allocation7 + $0x40] sm:$0xff]
    %v247 = vld [vmem:[#allocation7 + $0x48] sm:$0xff]
    %v248 = vld [vmem:[#allocation7 + $0x50] sm:$0xff]
    %v249 = vld [vmem:[#allocation7 + $0x58] sm:$0xff]
    %v250 = vld [vmem:[#allocation7 + $0x60] sm:$0xff]
    %v251 = vld [vmem:[#allocation7 + $0x68] sm:$0xff]
    %v252 = vld [vmem:[#allocation7 + $0x70] sm:$0xff]
    %v253 = vld [vmem:[#allocation7 + $0x78] sm:$0xff]
    %v254 = vld [vmem:[#allocation7 + $0x80] sm:$0xff]
    %v255 = vld [vmem:[#allocation7 + $0x88] sm:$0xff]
    %v256 = vld [vmem:[#allocation7 + $0x90] sm:$0xff]
    %v257 = vld [vmem:[#allocation7 + $0x98] sm:$0xff]
    %v258 = vld [vmem:[#allocation7 + $0xa0] sm:$0xff]
    %v259 = vld [vmem:[#allocation7 + $0xa8] sm:$0xff]
    %v260 = vld [vmem:[#allocation7 + $0xb0] sm:$0xff]
    %v261 = vld [vmem:[#allocation7 + $0xb8] sm:$0xff]
    %v262 = vld [vmem:[#allocation7 + $0xc0] sm:$0xff]
    %v263 = vld [vmem:[#allocation7 + $0xc8] sm:$0xff]
    %v264 = vld [vmem:[#allocation7 + $0xd0] sm:$0xff]
    %v265 = vld [vmem:[#allocation7 + $0xd8] sm:$0xff]
    %v266 = vld [vmem:[#allocation7 + $0xe0] sm:$0xff]
    %v267 = vld [vmem:[#allocation7 + $0xe8] sm:$0xff]
    %v268 = vld [vmem:[#allocation7 + $0xf0] sm:$0xff]
    %v269 = vld [vmem:[#allocation7 + $0xf8] sm:$0xff]
    %v270 = vld [vmem:[#allocation7 + $0x100] sm:$0xff]
    %v271 = vld [vmem:[#allocation7 + $0x108] sm:$0xff]
    %v272 = vld [vmem:[#allocation7 + $0x110] sm:$0xff]
    %v273 = vld [vmem:[#allocation7 + $0x118] sm:$0xff]
    %v274 = vld [vmem:[#allocation7 + $0x120] sm:$0xff]
    %v275 = vld [vmem:[#allocation7 + $0x128] sm:$0xff]
    %v276 = vld [vmem:[#allocation7 + $0x130] sm:$0xff]
    %v277 = vld [vmem:[#allocation7 + $0x138] sm:$0xff]
    %v278 = vld [vmem:[#allocation7 + $0x140] sm:$0xff]
    %v279 = vld [vmem:[#allocation7 + $0x148] sm:$0xff]
    %v280 = vld [vmem:[#allocation7 + $0x150] sm:$0xff]
    %v281 = vld [vmem:[#allocation7 + $0x158] sm:$0xff]
    %v282 = vld [vmem:[#allocation7 + $0x160] sm:$0xff]
    %v283 = vld [vmem:[#allocation7 + $0x168] sm:$0xff]
    %v284 = vld [vmem:[#allocation7 + $0x170] sm:$0xff]
    %v285 = vld [vmem:[#allocation7 + $0x178] sm:$0xff]
    %v286 = vld [vmem:[#allocation7 + $0x180] sm:$0xff]
    %v287 = vld [vmem:[#allocation7 + $0x188] sm:$0xff]
    %v288 = vld [vmem:[#allocation7 + $0x190] sm:$0xff]
    %v289 = vld [vmem:[#allocation7 + $0x198] sm:$0xff]
    %v290 = vld [vmem:[#allocation7 + $0x1a0] sm:$0xff]
    %v291 = vld [vmem:[#allocation7 + $0x1a8] sm:$0xff]
    %v292 = vld [vmem:[#allocation7 + $0x1b0] sm:$0xff]
    %v293 = vld [vmem:[#allocation7 + $0x1b8] sm:$0xff]
    %v294 = vld [vmem:[#allocation7 + $0x1c0] sm:$0xff]
    %v295 = vld [vmem:[#allocation7 + $0x1c8] sm:$0xff]
    %v296 = vld [vmem:[#allocation7 + $0x1d0] sm:$0xff]
    %v297 = vld [vmem:[#allocation7 + $0x1d8] sm:$0xff]
    %v298 = vld [vmem:[#allocation7 + $0x1e0] sm:$0xff]
    %v299 = vld [vmem:[#allocation7 + $0x1e8] sm:$0xff]
    %v300 = vld [vmem:[#allocation7 + $0x1f0] sm:$0xff]
    %v301 = vld [vmem:[#allocation7 + $0x1f8] sm:$0xff]
    %v302 = vld [vmem:[#allocation9] sm:$0xff]
    %v304 = vperm.slane %v302, 0
    %v305 = vperm.slane %v302, 1
    %v306 = vperm.slane %v302, 2
    %v307 = vperm.slane %v302, 3
    %v308 = vperm.slane %v302, 4
    %v309 = vperm.slane %v302, 5
    %v310 = vperm.slane %v302, 6
    %v311 = vperm.slane %v302, 7
    %v384 = vunpack.c.l.b16 %v238
    %v385 = vunpack.c.h.b16 %v238
    %v386 = vunpack.c.l.b16 %v239
    %v387 = vunpack.c.h.b16 %v239
    %v388 = vunpack.c.l.b16 %v240
    %v389 = vunpack.c.h.b16 %v240
    %v390 = vunpack.c.l.b16 %v241
    %v391 = vunpack.c.h.b16 %v241
    %v392 = vunpack.c.l.b16 %v242
    %v393 = vunpack.c.h.b16 %v242
    %v394 = vunpack.c.l.b16 %v243
    %v395 = vunpack.c.h.b16 %v243
    %v396 = vunpack.c.l.b16 %v244
    %v397 = vunpack.c.h.b16 %v244
    %v398 = vunpack.c.l.b16 %v245
    %v399 = vunpack.c.h.b16 %v245
    %v400 = vunpack.c.l.b16 %v246
    %v401 = vunpack.c.h.b16 %v246
    %v402 = vunpack.c.l.b16 %v247
    %v403 = vunpack.c.h.b16 %v247
    %v404 = vunpack.c.l.b16 %v248
    %v405 = vunpack.c.h.b16 %v248
    %v406 = vunpack.c.l.b16 %v249
    %v407 = vunpack.c.h.b16 %v249
    %v408 = vunpack.c.l.b16 %v250
    %v409 = vunpack.c.h.b16 %v250
    %v410 = vunpack.c.l.b16 %v251
    %v411 = vunpack.c.h.b16 %v251
    %v412 = vunpack.c.l.b16 %v252
    %v413 = vunpack.c.h.b16 %v252
    %v414 = vunpack.c.l.b16 %v253
    %v415 = vunpack.c.h.b16 %v253
    %v416 = vunpack.c.l.b16 %v254
    %v417 = vunpack.c.h.b16 %v254
    %v418 = vunpack.c.l.b16 %v255
    %v419 = vunpack.c.h.b16 %v255
    %v420 = vunpack.c.l.b16 %v256
    %v421 = vunpack.c.h.b16 %v256
    %v422 = vunpack.c.l.b16 %v257
    %v423 = vunpack.c.h.b16 %v257
    %v424 = vunpack.c.l.b16 %v258
    %v425 = vunpack.c.h.b16 %v258
    %v426 = vunpack.c.l.b16 %v259
    %v427 = vunpack.c.h.b16 %v259
    %v428 = vunpack.c.l.b16 %v260
    %v429 = vunpack.c.h.b16 %v260
    %v430 = vunpack.c.l.b16 %v261
    %v431 = vunpack.c.h.b16 %v261
    %v432 = vunpack.c.l.b16 %v262
    %v433 = vunpack.c.h.b16 %v262
    %v434 = vunpack.c.l.b16 %v263
    %v435 = vunpack.c.h.b16 %v263
    %v436 = vunpack.c.l.b16 %v264
    %v437 = vunpack.c.h.b16 %v264
    %v438 = vunpack.c.l.b16 %v265
    %v439 = vunpack.c.h.b16 %v265
    %v440 = vunpack.c.l.b16 %v266
    %v441 = vunpack.c.h.b16 %v266
    %v442 = vunpack.c.l.b16 %v267
    %v443 = vunpack.c.h.b16 %v267
    %v444 = vunpack.c.l.b16 %v268
    %v445 = vunpack.c.h.b16 %v268
    %v446 = vunpack.c.l.b16 %v269
    %v447 = vunpack.c.h.b16 %v269
    %v448 = vunpack.c.l.b16 %v270
    %v449 = vunpack.c.h.b16 %v270
    %v450 = vunpack.c.l.b16 %v271
    %v451 = vunpack.c.h.b16 %v271
    %v452 = vunpack.c.l.b16 %v272
    %v453 = vunpack.c.h.b16 %v272
    %v454 = vunpack.c.l.b16 %v273
    %v455 = vunpack.c.h.b16 %v273
    %v456 = vunpack.c.l.b16 %v274
    %v457 = vunpack.c.h.b16 %v274
    %v458 = vunpack.c.l.b16 %v275
    %v459 = vunpack.c.h.b16 %v275
    %v460 = vunpack.c.l.b16 %v276
    %v461 = vunpack.c.h.b16 %v276
    %v462 = vunpack.c.l.b16 %v277
    %v463 = vunpack.c.h.b16 %v277
    %v464 = vunpack.c.l.b16 %v278
    %v465 = vunpack.c.h.b16 %v278
    %v466 = vunpack.c.l.b16 %v279
    %v467 = vunpack.c.h.b16 %v279
    %v468 = vunpack.c.l.b16 %v280
    %v469 = vunpack.c.h.b16 %v280
    %v470 = vunpack.c.l.b16 %v281
    %v471 = vunpack.c.h.b16 %v281
    %v472 = vunpack.c.l.b16 %v282
    %v473 = vunpack.c.h.b16 %v282
    %v474 = vunpack.c.l.b16 %v283
    %v475 = vunpack.c.h.b16 %v283
    %v476 = vunpack.c.l.b16 %v284
    %v477 = vunpack.c.h.b16 %v284
    %v478 = vunpack.c.l.b16 %v285
    %v479 = vunpack.c.h.b16 %v285
    %v480 = vunpack.c.l.b16 %v286
    %v481 = vunpack.c.h.b16 %v286
    %v482 = vunpack.c.l.b16 %v287
    %v483 = vunpack.c.h.b16 %v287
    %v484 = vunpack.c.l.b16 %v288
    %v485 = vunpack.c.h.b16 %v288
    %v486 = vunpack.c.l.b16 %v289
    %v487 = vunpack.c.h.b16 %v289
    %v488 = vunpack.c.l.b16 %v290
    %v489 = vunpack.c.h.b16 %v290
    %v490 = vunpack.c.l.b16 %v291
    %v491 = vunpack.c.h.b16 %v291
    %v492 = vunpack.c.l.b16 %v292
    %v493 = vunpack.c.h.b16 %v292
    %v494 = vunpack.c.l.b16 %v293
    %v495 = vunpack.c.h.b16 %v293
    %v496 = vunpack.c.l.b16 %v294
    %v497 = vunpack.c.h.b16 %v294
    %v498 = vunpack.c.l.b16 %v295
    %v499 = vunpack.c.h.b16 %v295
    %v500 = vunpack.c.l.b16 %v296
    %v501 = vunpack.c.h.b16 %v296
    %v502 = vunpack.c.l.b16 %v297
    %v503 = vunpack.c.h.b16 %v297
    %v504 = vunpack.c.l.b16 %v298
    %v505 = vunpack.c.h.b16 %v298
    %v506 = vunpack.c.l.b16 %v299
    %v507 = vunpack.c.h.b16 %v299
    %v508 = vunpack.c.l.b16 %v300
    %v509 = vunpack.c.h.b16 %v300
    %v510 = vunpack.c.l.b16 %v301
    %v511 = vunpack.c.h.b16 %v301
    %v512 = vpack.c.b16 %v392, %v384
    %v513 = vpack.c.b16 %v393, %v385
    %v514 = vpack.c.b16 %v394, %v386
    %v515 = vpack.c.b16 %v395, %v387
    %v516 = vpack.c.b16 %v396, %v388
    %v517 = vpack.c.b16 %v397, %v389
    %v518 = vpack.c.b16 %v398, %v390
    %v519 = vpack.c.b16 %v399, %v391
    %v520 = vpack.c.b16 %v408, %v400
    %v521 = vpack.c.b16 %v409, %v401
    %v522 = vpack.c.b16 %v410, %v402
    %v523 = vpack.c.b16 %v411, %v403
    %v524 = vpack.c.b16 %v412, %v404
    %v525 = vpack.c.b16 %v413, %v405
    %v526 = vpack.c.b16 %v414, %v406
    %v527 = vpack.c.b16 %v415, %v407
    %v528 = vpack.c.b16 %v424, %v416
    %v529 = vpack.c.b16 %v425, %v417
    %v530 = vpack.c.b16 %v426, %v418
    %v531 = vpack.c.b16 %v427, %v419
    %v532 = vpack.c.b16 %v428, %v420
    %v533 = vpack.c.b16 %v429, %v421
    %v534 = vpack.c.b16 %v430, %v422
    %v535 = vpack.c.b16 %v431, %v423
    %v536 = vpack.c.b16 %v440, %v432
    %v537 = vpack.c.b16 %v441, %v433
    %v538 = vpack.c.b16 %v442, %v434
    %v539 = vpack.c.b16 %v443, %v435
    %v540 = vpack.c.b16 %v444, %v436
    %v541 = vpack.c.b16 %v445, %v437
    %v542 = vpack.c.b16 %v446, %v438
    %v543 = vpack.c.b16 %v447, %v439
    %v544 = vpack.c.b16 %v456, %v448
    %v545 = vpack.c.b16 %v457, %v449
    %v546 = vpack.c.b16 %v458, %v450
    %v547 = vpack.c.b16 %v459, %v451
    %v548 = vpack.c.b16 %v460, %v452
    %v549 = vpack.c.b16 %v461, %v453
    %v550 = vpack.c.b16 %v462, %v454
    %v551 = vpack.c.b16 %v463, %v455
    %v552 = vpack.c.b16 %v472, %v464
    %v553 = vpack.c.b16 %v473, %v465
    %v554 = vpack.c.b16 %v474, %v466
    %v555 = vpack.c.b16 %v475, %v467
    %v556 = vpack.c.b16 %v476, %v468
    %v557 = vpack.c.b16 %v477, %v469
    %v558 = vpack.c.b16 %v478, %v470
    %v559 = vpack.c.b16 %v479, %v471
    %v560 = vpack.c.b16 %v488, %v480
    %v561 = vpack.c.b16 %v489, %v481
    %v562 = vpack.c.b16 %v490, %v482
    %v563 = vpack.c.b16 %v491, %v483
    %v564 = vpack.c.b16 %v492, %v484
    %v565 = vpack.c.b16 %v493, %v485
    %v566 = vpack.c.b16 %v494, %v486
    %v567 = vpack.c.b16 %v495, %v487
    %v568 = vpack.c.b16 %v504, %v496
    %v569 = vpack.c.b16 %v505, %v497
    %v570 = vpack.c.b16 %v506, %v498
    %v571 = vpack.c.b16 %v507, %v499
    %v572 = vpack.c.b16 %v508, %v500
    %v573 = vpack.c.b16 %v509, %v501
    %v574 = vpack.c.b16 %v510, %v502
    %v575 = vpack.c.b16 %v511, %v503
    %640 = vmatpush.bf16.msra.mxu0 %v568
    %641 = vmatpush.bf16.msra.mxu0 %v560
    %642 = vmatpush.bf16.msra.mxu0 %v552
    %643 = vmatpush.bf16.msra.mxu0 %v544
    %644 = vmatpush.bf16.msra.mxu0 %v536
    %645 = vmatpush.bf16.msra.mxu0 %v528
    %646 = vmatpush.bf16.msra.mxu0 %v520
    %647 = vmatpush.bf16.msra.mxu0 %v512
    %648 = vmatmul.bf16.gmra.mxu0 %v237
    %v649 = vpop.f32.mrf.mxu0
    %v650 = vadd.f32 %v304, %v649
    %v651 = vpop.f32.mrf.mxu0
    %652 = vdwg.mxu0
    %653 = vmatpush.bf16.msra.mxu0 %v569
    %654 = vmatpush.bf16.msra.mxu0 %v561
    %655 = vmatpush.bf16.msra.mxu0 %v553
    %656 = vmatpush.bf16.msra.mxu0 %v545
    %657 = vmatpush.bf16.msra.mxu0 %v537
    %658 = vmatpush.bf16.msra.mxu0 %v529
    %659 = vmatpush.bf16.msra.mxu0 %v521
    %660 = vmatpush.bf16.msra.mxu0 %v513
    %661 = vmatmul.bf16.gmra.mxu0 %v237
    %v662 = vpop.f32.mrf.mxu0
    %v663 = vadd.f32 %v305, %v662
    %v664 = vpop.f32.mrf.mxu0
    %665 = vdwg.mxu0
    %666 = vmatpush.bf16.msra.mxu0 %v570
    %667 = vmatpush.bf16.msra.mxu0 %v562
    %668 = vmatpush.bf16.msra.mxu0 %v554
    %669 = vmatpush.bf16.msra.mxu0 %v546
    %670 = vmatpush.bf16.msra.mxu0 %v538
    %671 = vmatpush.bf16.msra.mxu0 %v530
    %672 = vmatpush.bf16.msra.mxu0 %v522
    %673 = vmatpush.bf16.msra.mxu0 %v514
    %674 = vmatmul.bf16.gmra.mxu0 %v237
    %v675 = vpop.f32.mrf.mxu0
    %v676 = vadd.f32 %v306, %v675
    %v677 = vpop.f32.mrf.mxu0
    %678 = vdwg.mxu0
    %679 = vmatpush.bf16.msra.mxu0 %v571
    %680 = vmatpush.bf16.msra.mxu0 %v563
    %681 = vmatpush.bf16.msra.mxu0 %v555
    %682 = vmatpush.bf16.msra.mxu0 %v547
    %683 = vmatpush.bf16.msra.mxu0 %v539
    %684 = vmatpush.bf16.msra.mxu0 %v531
    %685 = vmatpush.bf16.msra.mxu0 %v523
    %686 = vmatpush.bf16.msra.mxu0 %v515
    %687 = vmatmul.bf16.gmra.mxu0 %v237
    %v688 = vpop.f32.mrf.mxu0
    %v689 = vadd.f32 %v307, %v688
    %v690 = vpop.f32.mrf.mxu0
    %691 = vdwg.mxu0
    %692 = vmatpush.bf16.msra.mxu0 %v572
    %693 = vmatpush.bf16.msra.mxu0 %v564
    %694 = vmatpush.bf16.msra.mxu0 %v556
    %695 = vmatpush.bf16.msra.mxu0 %v548
    %696 = vmatpush.bf16.msra.mxu0 %v540
    %697 = vmatpush.bf16.msra.mxu0 %v532
    %698 = vmatpush.bf16.msra.mxu0 %v524
    %699 = vmatpush.bf16.msra.mxu0 %v516
    %700 = vmatmul.bf16.gmra.mxu0 %v237
    %v701 = vpop.f32.mrf.mxu0
    %v702 = vadd.f32 %v308, %v701
    %v703 = vpop.f32.mrf.mxu0
    %704 = vdwg.mxu0
    %705 = vmatpush.bf16.msra.mxu0 %v573
    %706 = vmatpush.bf16.msra.mxu0 %v565
    %707 = vmatpush.bf16.msra.mxu0 %v557
    %708 = vmatpush.bf16.msra.mxu0 %v549
    %709 = vmatpush.bf16.msra.mxu0 %v541
    %710 = vmatpush.bf16.msra.mxu0 %v533
    %711 = vmatpush.bf16.msra.mxu0 %v525
    %712 = vmatpush.bf16.msra.mxu0 %v517
    %713 = vmatmul.bf16.gmra.mxu0 %v237
    %v714 = vpop.f32.mrf.mxu0
    %v715 = vadd.f32 %v309, %v714
    %v716 = vpop.f32.mrf.mxu0
    %717 = vdwg.mxu0
    %718 = vmatpush.bf16.msra.mxu0 %v574
    %719 = vmatpush.bf16.msra.mxu0 %v566
    %720 = vmatpush.bf16.msra.mxu0 %v558
    %721 = vmatpush.bf16.msra.mxu0 %v550
    %722 = vmatpush.bf16.msra.mxu0 %v542
    %723 = vmatpush.bf16.msra.mxu0 %v534
    %724 = vmatpush.bf16.msra.mxu0 %v526
    %725 = vmatpush.bf16.msra.mxu0 %v518
    %726 = vmatmul.bf16.gmra.mxu0 %v237
    %v727 = vpop.f32.mrf.mxu0
    %v728 = vadd.f32 %v310, %v727
    %v729 = vpop.f32.mrf.mxu0
    %730 = vdwg.mxu0
    %731 = vmatpush.bf16.msra.mxu0 %v575
    %732 = vmatpush.bf16.msra.mxu0 %v567
    %733 = vmatpush.bf16.msra.mxu0 %v559
    %734 = vmatpush.bf16.msra.mxu0 %v551
    %735 = vmatpush.bf16.msra.mxu0 %v543
    %736 = vmatpush.bf16.msra.mxu0 %v535
    %737 = vmatpush.bf16.msra.mxu0 %v527
    %738 = vmatpush.bf16.msra.mxu0 %v519
    %739 = vmatmul.bf16.gmra.mxu0 %v237
    %v740 = vpop.f32.mrf.mxu0
    %v741 = vadd.f32 %v311, %v740
    %v742 = vpop.f32.mrf.mxu0
    %743 = vdwg.mxu0
    %vm744 = vcmp.gt.f32.partialorder %v650, 0.0
    %vm745 = vcmp.gt.f32.partialorder %v663, 0.0
    %vm746 = vcmp.gt.f32.partialorder %v676, 0.0
    %vm747 = vcmp.gt.f32.partialorder %v689, 0.0
    %vm748 = vcmp.gt.f32.partialorder %v702, 0.0
    %vm749 = vcmp.gt.f32.partialorder %v715, 0.0
    %vm750 = vcmp.gt.f32.partialorder %v728, 0.0
    %vm751 = vcmp.gt.f32.partialorder %v741, 0.0
    %v752 = vmul.f32 %v650, 0.2
    %v753 = vmul.f32 %v663, 0.2
    %v754 = vmul.f32 %v676, 0.2
    %v755 = vmul.f32 %v689, 0.2
    %v756 = vmul.f32 %v702, 0.2
    %v757 = vmul.f32 %v715, 0.2
    %v758 = vmul.f32 %v728, 0.2
    %v759 = vmul.f32 %v741, 0.2
    %v760 = vsel %vm744, %v650, %v752
    %v761 = vsel %vm745, %v663, %v753
    %v762 = vsel %vm746, %v676, %v754
    %v763 = vsel %vm747, %v689, %v755
    %v764 = vsel %vm748, %v702, %v756
    %v765 = vsel %vm749, %v715, %v757
    %v766 = vsel %vm750, %v728, %v758
    %v767 = vsel %vm751, %v741, %v759
    %v768 = vld [vmem:[#allocation4] sm:$0xff]
    %v769 = vpack.c.bf16 %v768, %v768
    %v770 = vld [vmem:[#allocation10] sm:$0xff]
    %v771 = vld [vmem:[#allocation10 + $0x8] sm:$0xff]
    %v772 = vld [vmem:[#allocation10 + $0x10] sm:$0xff]
    %v773 = vld [vmem:[#allocation10 + $0x18] sm:$0xff]
    %v774 = vld [vmem:[#allocation10 + $0x20] sm:$0xff]
    %v775 = vld [vmem:[#allocation10 + $0x28] sm:$0xff]
    %v776 = vld [vmem:[#allocation10 + $0x30] sm:$0xff]
    %v777 = vld [vmem:[#allocation10 + $0x38] sm:$0xff]
    %v778 = vld [vmem:[#allocation10 + $0x40] sm:$0xff]
    %v779 = vld [vmem:[#allocation10 + $0x48] sm:$0xff]
    %v780 = vld [vmem:[#allocation10 + $0x50] sm:$0xff]
    %v781 = vld [vmem:[#allocation10 + $0x58] sm:$0xff]
    %v782 = vld [vmem:[#allocation10 + $0x60] sm:$0xff]
    %v783 = vld [vmem:[#allocation10 + $0x68] sm:$0xff]
    %v784 = vld [vmem:[#allocation10 + $0x70] sm:$0xff]
    %v785 = vld [vmem:[#allocation10 + $0x78] sm:$0xff]
    %v786 = vld [vmem:[#allocation12] sm:$0x3]
    %v788 = vperm.slane %v786, 0
    %v789 = vperm.slane %v786, 1
    %v808 = vunpack.c.l.b16 %v770
    %v809 = vunpack.c.h.b16 %v770
    %v810 = vunpack.c.l.b16 %v771
    %v811 = vunpack.c.h.b16 %v771
    %v812 = vunpack.c.l.b16 %v772
    %v813 = vunpack.c.h.b16 %v772
    %v814 = vunpack.c.l.b16 %v773
    %v815 = vunpack.c.h.b16 %v773
    %v816 = vunpack.c.l.b16 %v774
    %v817 = vunpack.c.h.b16 %v774
    %v818 = vunpack.c.l.b16 %v775
    %v819 = vunpack.c.h.b16 %v775
    %v820 = vunpack.c.l.b16 %v776
    %v821 = vunpack.c.h.b16 %v776
    %v822 = vunpack.c.l.b16 %v777
    %v823 = vunpack.c.h.b16 %v777
    %v824 = vunpack.c.l.b16 %v778
    %v825 = vunpack.c.h.b16 %v778
    %v826 = vunpack.c.l.b16 %v779
    %v827 = vunpack.c.h.b16 %v779
    %v828 = vunpack.c.l.b16 %v780
    %v829 = vunpack.c.h.b16 %v780
    %v830 = vunpack.c.l.b16 %v781
    %v831 = vunpack.c.h.b16 %v781
    %v832 = vunpack.c.l.b16 %v782
    %v833 = vunpack.c.h.b16 %v782
    %v834 = vunpack.c.l.b16 %v783
    %v835 = vunpack.c.h.b16 %v783
    %v836 = vunpack.c.l.b16 %v784
    %v837 = vunpack.c.h.b16 %v784
    %v838 = vunpack.c.l.b16 %v785
    %v839 = vunpack.c.h.b16 %v785
    %v840 = vpack.c.b16 %v810, %v808
    %v841 = vpack.c.b16 %v811, %v809
    %v842 = vpack.c.b16 %v814, %v812
    %v843 = vpack.c.b16 %v815, %v813
    %v844 = vpack.c.b16 %v818, %v816
    %v845 = vpack.c.b16 %v819, %v817
    %v846 = vpack.c.b16 %v822, %v820
    %v847 = vpack.c.b16 %v823, %v821
    %v848 = vpack.c.b16 %v826, %v824
    %v849 = vpack.c.b16 %v827, %v825
    %v850 = vpack.c.b16 %v830, %v828
    %v851 = vpack.c.b16 %v831, %v829
    %v852 = vpack.c.b16 %v834, %v832
    %v853 = vpack.c.b16 %v835, %v833
    %v854 = vpack.c.b16 %v838, %v836
    %v855 = vpack.c.b16 %v839, %v837
    %872 = vmatpush.bf16.msra.mxu0 %v854
    %873 = vmatpush.bf16.msra.mxu0 %v852
    %874 = vmatpush.bf16.msra.mxu0 %v850
    %875 = vmatpush.bf16.msra.mxu0 %v848
    %876 = vmatpush.bf16.msra.mxu0 %v846
    %877 = vmatpush.bf16.msra.mxu0 %v844
    %878 = vmatpush.bf16.msra.mxu0 %v842
    %879 = vmatpush.bf16.msra.mxu0 %v840
    %880 = vmatmul.bf16.gmra.mxu0 %v769
    %v881 = vpop.f32.mrf.mxu0
    %v882 = vadd.f32 %v788, %v881
    %v883 = vpop.f32.mrf.mxu0
    %884 = vdwg.mxu0
    %885 = vmatpush.bf16.msra.mxu0 %v855
    %886 = vmatpush.bf16.msra.mxu0 %v853
    %887 = vmatpush.bf16.msra.mxu0 %v851
    %888 = vmatpush.bf16.msra.mxu0 %v849
    %889 = vmatpush.bf16.msra.mxu0 %v847
    %890 = vmatpush.bf16.msra.mxu0 %v845
    %891 = vmatpush.bf16.msra.mxu0 %v843
    %892 = vmatpush.bf16.msra.mxu0 %v841
    %893 = vmatmul.bf16.gmra.mxu0 %v769
    %v894 = vpop.f32.mrf.mxu0
    %v895 = vadd.f32 %v789, %v894
    %v896 = vpop.f32.mrf.mxu0
    %897 = vdwg.mxu0
    %v898 = vld [vmem:[#allocation13] sm:$0x3]
    %v899 = vld [vmem:[#allocation15] sm:$0x3]
    %v900 = vrot.slane %v882, 4
    %v901 = vadd.f32 %v882, %v900
    %v902 = vrot.slane %v901, 2
    %v903 = vadd.f32 %v901, %v902
    %v904 = vrot.slane %v903, 1
    %v905 = vadd.f32 %v903, %v904
    %v906 = vrot.slane %v895, 4
    %v907 = vadd.f32 %v895, %v906
    %v908 = vrot.slane %v907, 2
    %v909 = vadd.f32 %v907, %v908
    %v910 = vrot.slane %v909, 1
    %v911 = vadd.f32 %v909, %v910
    %v912 = vrcp.pop 8.0
    %v913 = vmul.f32 8.0, %v912
    %v914 = vsub.f32 1.0, %v913
    %v915 = vmul.f32 %v912, %v914
    %v916 = vadd.f32 %v912, %v915
    %vm917 = vweird.f32 %v912
    %v918 = vsel %vm917, %v912, %v916
    %v919 = vmul.f32 %v905, %v918
    %v920 = vmul.f32 %v911, %v918
    %v921 = vmul.f32 %v882, %v882
    %v922 = vmul.f32 %v895, %v895
    %v923 = vrot.slane %v921, 4
    %v924 = vadd.f32 %v921, %v923
    %v925 = vrot.slane %v924, 2
    %v926 = vadd.f32 %v924, %v925
    %v927 = vrot.slane %v926, 1
    %v928 = vadd.f32 %v926, %v927
    %v929 = vrot.slane %v922, 4
    %v930 = vadd.f32 %v922, %v929
    %v931 = vrot.slane %v930, 2
    %v932 = vadd.f32 %v930, %v931
    %v933 = vrot.slane %v932, 1
    %v934 = vadd.f32 %v932, %v933
    %v935 = vmul.f32 %v928, %v918
    %v936 = vmul.f32 %v934, %v918
    %v937 = vmul.f32 %v919, %v919
    %v938 = vmul.f32 %v920, %v920
    %v939 = vsub.f32 %v935, %v937
    %v940 = vsub.f32 %v936, %v938
    %v941 = vmax.f32 %v939, 0.0
    %v942 = vmax.f32 %v940, 0.0
    %v943 = vadd.f32 %v941, 1e-05
    %v944 = vadd.f32 %v942, 1e-05
    %v945 = vrsqrt.pop %v943
    %v946 = vmul.f32 %v945, %v943
    %v947 = vmul.f32 %v946, %v945
    %v948 = vmul.f32 0.5, %v947
    %v949 = vsub.f32 1.5, %v948
    %v950 = vmul.f32 %v945, %v949
    %vm951 = vweird.f32 %v943
    %vm952 = vweird.f32 %v945
    %vm953 = vmor %vm951, %vm952
    %v954 = vsel %vm953, %v945, %v950
    %v955 = vrsqrt.pop %v944
    %v956 = vmul.f32 %v955, %v944
    %v957 = vmul.f32 %v956, %v955
    %v958 = vmul.f32 0.5, %v957
    %v959 = vsub.f32 1.5, %v958
    %v960 = vmul.f32 %v955, %v959
    %vm961 = vweird.f32 %v944
    %vm962 = vweird.f32 %v955
    %vm963 = vmor %vm961, %vm962
    %v964 = vsel %vm963, %v955, %v960
    %v967 = vrot.slane %v964, 7
    %vm968 = vcmask 1040384
    %v969 = vsel %vm968, %v954, %v967
    %v971 = vmul.f32 %v898, %v969
    %v973 = vperm.slane %v971, 0
    %v974 = vperm.slane %v971, 1
    %v977 = vmul.f32 %v919, %v973
    %v978 = vmul.f32 %v920, %v974
    %v981 = vrot.slane %v978, 7
    %v982 = vsel %vm968, %v977, %v981
    %v984 = vsub.f32 %v899, %v982
    %v985 = vmul.f32 %v882, %v973
    %v986 = vmul.f32 %v895, %v974
    %v988 = vperm.slane %v984, 0
    %v989 = vperm.slane %v984, 1
    %v992 = vadd.f32 %v985, %v988
    %v993 = vadd.f32 %v986, %v989
    %vm994 = vcmp.gt.f32.partialorder %v992, 0.0
    %vm995 = vcmp.gt.f32.partialorder %v993, 0.0
    %v996 = vmul.f32 %v992, 0.2
    %v997 = vmul.f32 %v993, 0.2
    %v998 = vsel %vm994, %v992, %v996
    %v999 = vsel %vm995, %v993, %v997
    %v1000 = vpack.c.bf16 %v998, %v998
    %v1001 = vpack.c.bf16 %v999, %v999
    %v1002 = vld [vmem:[#allocation16] sm:$0xff]
    %v1003 = vld [vmem:[#allocation16 + $0x8] sm:$0xff]
    %v1004 = vld [vmem:[#allocation16 + $0x10] sm:$0xff]
    %v1005 = vld [vmem:[#allocation16 + $0x18] sm:$0xff]
    %v1006 = vld [vmem:[#allocation16 + $0x20] sm:$0xff]
    %v1007 = vld [vmem:[#allocation16 + $0x28] sm:$0xff]
    %v1008 = vld [vmem:[#allocation16 + $0x30] sm:$0xff]
    %v1009 = vld [vmem:[#allocation16 + $0x38] sm:$0xff]
    %v1010 = vld [vmem:[#allocation16 + $0x40] sm:$0xff]
    %v1011 = vld [vmem:[#allocation16 + $0x48] sm:$0xff]
    %v1012 = vld [vmem:[#allocation16 + $0x50] sm:$0xff]
    %v1013 = vld [vmem:[#allocation16 + $0x58] sm:$0xff]
    %v1014 = vld [vmem:[#allocation16 + $0x60] sm:$0xff]
    %v1015 = vld [vmem:[#allocation16 + $0x68] sm:$0xff]
    %v1016 = vld [vmem:[#allocation16 + $0x70] sm:$0xff]
    %v1017 = vld [vmem:[#allocation16 + $0x78] sm:$0xff]
    %v1018 = vld [vmem:[#allocation16 + $0x80] sm:$0xff]
    %v1019 = vld [vmem:[#allocation16 + $0x88] sm:$0xff]
    %v1020 = vld [vmem:[#allocation16 + $0x90] sm:$0xff]
    %v1021 = vld [vmem:[#allocation16 + $0x98] sm:$0xff]
    %v1022 = vld [vmem:[#allocation16 + $0xa0] sm:$0xff]
    %v1023 = vld [vmem:[#allocation16 + $0xa8] sm:$0xff]
    %v1024 = vld [vmem:[#allocation16 + $0xb0] sm:$0xff]
    %v1025 = vld [vmem:[#allocation16 + $0xb8] sm:$0xff]
    %v1026 = vld [vmem:[#allocation16 + $0xc0] sm:$0xff]
    %v1027 = vld [vmem:[#allocation16 + $0xc8] sm:$0xff]
    %v1028 = vld [vmem:[#allocation16 + $0xd0] sm:$0xff]
    %v1029 = vld [vmem:[#allocation16 + $0xd8] sm:$0xff]
    %v1030 = vld [vmem:[#allocation16 + $0xe0] sm:$0xff]
    %v1031 = vld [vmem:[#allocation16 + $0xe8] sm:$0xff]
    %v1032 = vld [vmem:[#allocation16 + $0xf0] sm:$0xff]
    %v1033 = vld [vmem:[#allocation16 + $0xf8] sm:$0xff]
    %v1034 = vld [vmem:[#allocation16 + $0x100] sm:$0xff]
    %v1035 = vld [vmem:[#allocation16 + $0x108] sm:$0xff]
    %v1036 = vld [vmem:[#allocation16 + $0x110] sm:$0xff]
    %v1037 = vld [vmem:[#allocation16 + $0x118] sm:$0xff]
    %v1038 = vld [vmem:[#allocation16 + $0x120] sm:$0xff]
    %v1039 = vld [vmem:[#allocation16 + $0x128] sm:$0xff]
    %v1040 = vld [vmem:[#allocation16 + $0x130] sm:$0xff]
    %v1041 = vld [vmem:[#allocation16 + $0x138] sm:$0xff]
    %v1042 = vld [vmem:[#allocation16 + $0x140] sm:$0xff]
    %v1043 = vld [vmem:[#allocation16 + $0x148] sm:$0xff]
    %v1044 = vld [vmem:[#allocation16 + $0x150] sm:$0xff]
    %v1045 = vld [vmem:[#allocation16 + $0x158] sm:$0xff]
    %v1046 = vld [vmem:[#allocation16 + $0x160] sm:$0xff]
    %v1047 = vld [vmem:[#allocation16 + $0x168] sm:$0xff]
    %v1048 = vld [vmem:[#allocation16 + $0x170] sm:$0xff]
    %v1049 = vld [vmem:[#allocation16 + $0x178] sm:$0xff]
    %v1050 = vld [vmem:[#allocation16 + $0x180] sm:$0xff]
    %v1051 = vld [vmem:[#allocation16 + $0x188] sm:$0xff]
    %v1052 = vld [vmem:[#allocation16 + $0x190] sm:$0xff]
    %v1053 = vld [vmem:[#allocation16 + $0x198] sm:$0xff]
    %v1054 = vld [vmem:[#allocation16 + $0x1a0] sm:$0xff]
    %v1055 = vld [vmem:[#allocation16 + $0x1a8] sm:$0xff]
    %v1056 = vld [vmem:[#allocation16 + $0x1b0] sm:$0xff]
    %v1057 = vld [vmem:[#allocation16 + $0x1b8] sm:$0xff]
    %v1058 = vld [vmem:[#allocation16 + $0x1c0] sm:$0xff]
    %v1059 = vld [vmem:[#allocation16 + $0x1c8] sm:$0xff]
    %v1060 = vld [vmem:[#allocation16 + $0x1d0] sm:$0xff]
    %v1061 = vld [vmem:[#allocation16 + $0x1d8] sm:$0xff]
    %v1062 = vld [vmem:[#allocation16 + $0x1e0] sm:$0xff]
    %v1063 = vld [vmem:[#allocation16 + $0x1e8] sm:$0xff]
    %v1064 = vld [vmem:[#allocation16 + $0x1f0] sm:$0xff]
    %v1065 = vld [vmem:[#allocation16 + $0x1f8] sm:$0xff]
    %v1066 = vld [vmem:[#allocation16 + $0x200] sm:$0xff]
    %v1067 = vld [vmem:[#allocation16 + $0x208] sm:$0xff]
    %v1068 = vld [vmem:[#allocation16 + $0x210] sm:$0xff]
    %v1069 = vld [vmem:[#allocation16 + $0x218] sm:$0xff]
    %v1070 = vld [vmem:[#allocation16 + $0x220] sm:$0xff]
    %v1071 = vld [vmem:[#allocation16 + $0x228] sm:$0xff]
    %v1072 = vld [vmem:[#allocation16 + $0x230] sm:$0xff]
    %v1073 = vld [vmem:[#allocation16 + $0x238] sm:$0xff]
    %v1074 = vld [vmem:[#allocation16 + $0x240] sm:$0xff]
    %v1075 = vld [vmem:[#allocation16 + $0x248] sm:$0xff]
    %v1076 = vld [vmem:[#allocation16 + $0x250] sm:$0xff]
    %v1077 = vld [vmem:[#allocation16 + $0x258] sm:$0xff]
    %v1078 = vld [vmem:[#allocation16 + $0x260] sm:$0xff]
    %v1079 = vld [vmem:[#allocation16 + $0x268] sm:$0xff]
    %v1080 = vld [vmem:[#allocation16 + $0x270] sm:$0xff]
    %v1081 = vld [vmem:[#allocation16 + $0x278] sm:$0xff]
    %v1082 = vld [vmem:[#allocation16 + $0x280] sm:$0xff]
    %v1083 = vld [vmem:[#allocation16 + $0x288] sm:$0xff]
    %v1084 = vld [vmem:[#allocation16 + $0x290] sm:$0xff]
    %v1085 = vld [vmem:[#allocation16 + $0x298] sm:$0xff]
    %v1086 = vld [vmem:[#allocation16 + $0x2a0] sm:$0xff]
    %v1087 = vld [vmem:[#allocation16 + $0x2a8] sm:$0xff]
    %v1088 = vld [vmem:[#allocation16 + $0x2b0] sm:$0xff]
    %v1089 = vld [vmem:[#allocation16 + $0x2b8] sm:$0xff]
    %v1090 = vld [vmem:[#allocation16 + $0x2c0] sm:$0xff]
    %v1091 = vld [vmem:[#allocation16 + $0x2c8] sm:$0xff]
    %v1092 = vld [vmem:[#allocation16 + $0x2d0] sm:$0xff]
    %v1093 = vld [vmem:[#allocation16 + $0x2d8] sm:$0xff]
    %v1094 = vld [vmem:[#allocation16 + $0x2e0] sm:$0xff]
    %v1095 = vld [vmem:[#allocation16 + $0x2e8] sm:$0xff]
    %v1096 = vld [vmem:[#allocation16 + $0x2f0] sm:$0xff]
    %v1097 = vld [vmem:[#allocation16 + $0x2f8] sm:$0xff]
    %v1098 = vld [vmem:[#allocation16 + $0x300] sm:$0xff]
    %v1099 = vld [vmem:[#allocation16 + $0x308] sm:$0xff]
    %v1100 = vld [vmem:[#allocation16 + $0x310] sm:$0xff]
    %v1101 = vld [vmem:[#allocation16 + $0x318] sm:$0xff]
    %v1102 = vld [vmem:[#allocation16 + $0x320] sm:$0xff]
    %v1103 = vld [vmem:[#allocation16 + $0x328] sm:$0xff]
    %v1104 = vld [vmem:[#allocation16 + $0x330] sm:$0xff]
    %v1105 = vld [vmem:[#allocation16 + $0x338] sm:$0xff]
    %v1106 = vld [vmem:[#allocation16 + $0x340] sm:$0xff]
    %v1107 = vld [vmem:[#allocation16 + $0x348] sm:$0xff]
    %v1108 = vld [vmem:[#allocation16 + $0x350] sm:$0xff]
    %v1109 = vld [vmem:[#allocation16 + $0x358] sm:$0xff]
    %v1110 = vld [vmem:[#allocation16 + $0x360] sm:$0xff]
    %v1111 = vld [vmem:[#allocation16 + $0x368] sm:$0xff]
    %v1112 = vld [vmem:[#allocation16 + $0x370] sm:$0xff]
    %v1113 = vld [vmem:[#allocation16 + $0x378] sm:$0xff]
    %v1114 = vld [vmem:[#allocation16 + $0x380] sm:$0xff]
    %v1115 = vld [vmem:[#allocation16 + $0x388] sm:$0xff]
    %v1116 = vld [vmem:[#allocation16 + $0x390] sm:$0xff]
    %v1117 = vld [vmem:[#allocation16 + $0x398] sm:$0xff]
    %v1118 = vld [vmem:[#allocation16 + $0x3a0] sm:$0xff]
    %v1119 = vld [vmem:[#allocation16 + $0x3a8] sm:$0xff]
    %v1120 = vld [vmem:[#allocation16 + $0x3b0] sm:$0xff]
    %v1121 = vld [vmem:[#allocation16 + $0x3b8] sm:$0xff]
    %v1122 = vld [vmem:[#allocation16 + $0x3c0] sm:$0xff]
    %v1123 = vld [vmem:[#allocation16 + $0x3c8] sm:$0xff]
    %v1124 = vld [vmem:[#allocation16 + $0x3d0] sm:$0xff]
    %v1125 = vld [vmem:[#allocation16 + $0x3d8] sm:$0xff]
    %v1126 = vld [vmem:[#allocation16 + $0x3e0] sm:$0xff]
    %v1127 = vld [vmem:[#allocation16 + $0x3e8] sm:$0xff]
    %v1128 = vld [vmem:[#allocation16 + $0x3f0] sm:$0xff]
    %v1129 = vld [vmem:[#allocation16 + $0x3f8] sm:$0xff]
    %v1130 = vld [vmem:[#allocation16 + $0x400] sm:$0xff]
    %v1131 = vld [vmem:[#allocation16 + $0x408] sm:$0xff]
    %v1132 = vld [vmem:[#allocation16 + $0x410] sm:$0xff]
    %v1133 = vld [vmem:[#allocation16 + $0x418] sm:$0xff]
    %v1134 = vld [vmem:[#allocation16 + $0x420] sm:$0xff]
    %v1135 = vld [vmem:[#allocation16 + $0x428] sm:$0xff]
    %v1136 = vld [vmem:[#allocation16 + $0x430] sm:$0xff]
    %v1137 = vld [vmem:[#allocation16 + $0x438] sm:$0xff]
    %v1138 = vld [vmem:[#allocation16 + $0x440] sm:$0xff]
    %v1139 = vld [vmem:[#allocation16 + $0x448] sm:$0xff]
    %v1140 = vld [vmem:[#allocation16 + $0x450] sm:$0xff]
    %v1141 = vld [vmem:[#allocation16 + $0x458] sm:$0xff]
    %v1142 = vld [vmem:[#allocation16 + $0x460] sm:$0xff]
    %v1143 = vld [vmem:[#allocation16 + $0x468] sm:$0xff]
    %v1144 = vld [vmem:[#allocation16 + $0x470] sm:$0xff]
    %v1145 = vld [vmem:[#allocation16 + $0x478] sm:$0xff]
    %v1146 = vld [vmem:[#allocation16 + $0x480] sm:$0xff]
    %v1147 = vld [vmem:[#allocation16 + $0x488] sm:$0xff]
    %v1148 = vld [vmem:[#allocation16 + $0x490] sm:$0xff]
    %v1149 = vld [vmem:[#allocation16 + $0x498] sm:$0xff]
    %v1150 = vld [vmem:[#allocation16 + $0x4a0] sm:$0xff]
    %v1151 = vld [vmem:[#allocation16 + $0x4a8] sm:$0xff]
    %v1152 = vld [vmem:[#allocation16 + $0x4b0] sm:$0xff]
    %v1153 = vld [vmem:[#allocation16 + $0x4b8] sm:$0xff]
    %v1154 = vld [vmem:[#allocation16 + $0x4c0] sm:$0xff]
    %v1155 = vld [vmem:[#allocation16 + $0x4c8] sm:$0xff]
    %v1156 = vld [vmem:[#allocation16 + $0x4d0] sm:$0xff]
    %v1157 = vld [vmem:[#allocation16 + $0x4d8] sm:$0xff]
    %v1158 = vld [vmem:[#allocation16 + $0x4e0] sm:$0xff]
    %v1159 = vld [vmem:[#allocation16 + $0x4e8] sm:$0xff]
    %v1160 = vld [vmem:[#allocation16 + $0x4f0] sm:$0xff]
    %v1161 = vld [vmem:[#allocation16 + $0x4f8] sm:$0xff]
    %v1162 = vpack.c.bf16 %v760, %v760
    %v1163 = vpack.c.bf16 %v761, %v761
    %v1164 = vpack.c.bf16 %v762, %v762
    %v1165 = vpack.c.bf16 %v763, %v763
    %v1166 = vpack.c.bf16 %v764, %v764
    %v1167 = vpack.c.bf16 %v765, %v765
    %v1168 = vpack.c.bf16 %v766, %v766
    %v1169 = vpack.c.bf16 %v767, %v767
    %v1170 = vld [vmem:[#allocation16 + $0x500] sm:$0xff]
    %v1171 = vld [vmem:[#allocation16 + $0x508] sm:$0xff]
    %v1172 = vld [vmem:[#allocation16 + $0x510] sm:$0xff]
    %v1173 = vld [vmem:[#allocation16 + $0x518] sm:$0xff]
    %v1174 = vld [vmem:[#allocation16 + $0x520] sm:$0xff]
    %v1175 = vld [vmem:[#allocation16 + $0x528] sm:$0xff]
    %v1176 = vld [vmem:[#allocation16 + $0x530] sm:$0xff]
    %v1177 = vld [vmem:[#allocation16 + $0x538] sm:$0xff]
    %v1178 = vld [vmem:[#allocation16 + $0x540] sm:$0xff]
    %v1179 = vld [vmem:[#allocation16 + $0x548] sm:$0xff]
    %v1180 = vld [vmem:[#allocation16 + $0x550] sm:$0xff]
    %v1181 = vld [vmem:[#allocation16 + $0x558] sm:$0xff]
    %v1182 = vld [vmem:[#allocation16 + $0x560] sm:$0xff]
    %v1183 = vld [vmem:[#allocation16 + $0x568] sm:$0xff]
    %v1184 = vld [vmem:[#allocation16 + $0x570] sm:$0xff]
    %v1185 = vld [vmem:[#allocation16 + $0x578] sm:$0xff]
    %v1186 = vld [vmem:[#allocation16 + $0x580] sm:$0xff]
    %v1187 = vld [vmem:[#allocation16 + $0x588] sm:$0xff]
    %v1188 = vld [vmem:[#allocation16 + $0x590] sm:$0xff]
    %v1189 = vld [vmem:[#allocation16 + $0x598] sm:$0xff]
    %v1190 = vld [vmem:[#allocation16 + $0x5a0] sm:$0xff]
    %v1191 = vld [vmem:[#allocation16 + $0x5a8] sm:$0xff]
    %v1192 = vld [vmem:[#allocation16 + $0x5b0] sm:$0xff]
    %v1193 = vld [vmem:[#allocation16 + $0x5b8] sm:$0xff]
    %v1194 = vld [vmem:[#allocation16 + $0x5c0] sm:$0xff]
    %v1195 = vld [vmem:[#allocation16 + $0x5c8] sm:$0xff]
    %v1196 = vld [vmem:[#allocation16 + $0x5d0] sm:$0xff]
    %v1197 = vld [vmem:[#allocation16 + $0x5d8] sm:$0xff]
    %v1198 = vld [vmem:[#allocation16 + $0x5e0] sm:$0xff]
    %v1199 = vld [vmem:[#allocation16 + $0x5e8] sm:$0xff]
    %v1200 = vld [vmem:[#allocation16 + $0x5f0] sm:$0xff]
    %v1201 = vld [vmem:[#allocation16 + $0x5f8] sm:$0xff]
    %v1202 = vld [vmem:[#allocation16 + $0x600] sm:$0xff]
    %v1203 = vld [vmem:[#allocation16 + $0x608] sm:$0xff]
    %v1204 = vld [vmem:[#allocation16 + $0x610] sm:$0xff]
    %v1205 = vld [vmem:[#allocation16 + $0x618] sm:$0xff]
    %v1206 = vld [vmem:[#allocation16 + $0x620] sm:$0xff]
    %v1207 = vld [vmem:[#allocation16 + $0x628] sm:$0xff]
    %v1208 = vld [vmem:[#allocation16 + $0x630] sm:$0xff]
    %v1209 = vld [vmem:[#allocation16 + $0x638] sm:$0xff]
    %v1210 = vld [vmem:[#allocation16 + $0x640] sm:$0xff]
    %v1211 = vld [vmem:[#allocation16 + $0x648] sm:$0xff]
    %v1212 = vld [vmem:[#allocation16 + $0x650] sm:$0xff]
    %v1213 = vld [vmem:[#allocation16 + $0x658] sm:$0xff]
    %v1214 = vld [vmem:[#allocation16 + $0x660] sm:$0xff]
    %v1215 = vld [vmem:[#allocation16 + $0x668] sm:$0xff]
    %v1216 = vld [vmem:[#allocation16 + $0x670] sm:$0xff]
    %v1217 = vld [vmem:[#allocation16 + $0x678] sm:$0xff]
    %v1218 = vld [vmem:[#allocation16 + $0x680] sm:$0xff]
    %v1219 = vld [vmem:[#allocation16 + $0x688] sm:$0xff]
    %v1220 = vld [vmem:[#allocation16 + $0x690] sm:$0xff]
    %v1221 = vld [vmem:[#allocation16 + $0x698] sm:$0xff]
    %v1222 = vld [vmem:[#allocation16 + $0x6a0] sm:$0xff]
    %v1223 = vld [vmem:[#allocation16 + $0x6a8] sm:$0xff]
    %v1224 = vld [vmem:[#allocation16 + $0x6b0] sm:$0xff]
    %v1225 = vld [vmem:[#allocation16 + $0x6b8] sm:$0xff]
    %v1226 = vld [vmem:[#allocation16 + $0x6c0] sm:$0xff]
    %v1227 = vld [vmem:[#allocation16 + $0x6c8] sm:$0xff]
    %v1228 = vld [vmem:[#allocation16 + $0x6d0] sm:$0xff]
    %v1229 = vld [vmem:[#allocation16 + $0x6d8] sm:$0xff]
    %v1230 = vld [vmem:[#allocation16 + $0x6e0] sm:$0xff]
    %v1231 = vld [vmem:[#allocation16 + $0x6e8] sm:$0xff]
    %v1232 = vld [vmem:[#allocation16 + $0x6f0] sm:$0xff]
    %v1233 = vld [vmem:[#allocation16 + $0x6f8] sm:$0xff]
    %v1234 = vld [vmem:[#allocation16 + $0x700] sm:$0xff]
    %v1235 = vld [vmem:[#allocation16 + $0x708] sm:$0xff]
    %v1236 = vld [vmem:[#allocation16 + $0x710] sm:$0xff]
    %v1237 = vld [vmem:[#allocation16 + $0x718] sm:$0xff]
    %v1238 = vld [vmem:[#allocation16 + $0x720] sm:$0xff]
    %v1239 = vld [vmem:[#allocation16 + $0x728] sm:$0xff]
    %v1240 = vld [vmem:[#allocation16 + $0x730] sm:$0xff]
    %v1241 = vld [vmem:[#allocation16 + $0x738] sm:$0xff]
    %v1242 = vld [vmem:[#allocation16 + $0x740] sm:$0xff]
    %v1243 = vld [vmem:[#allocation16 + $0x748] sm:$0xff]
    %v1244 = vld [vmem:[#allocation16 + $0x750] sm:$0xff]
    %v1245 = vld [vmem:[#allocation16 + $0x758] sm:$0xff]
    %v1246 = vld [vmem:[#allocation16 + $0x760] sm:$0xff]
    %v1247 = vld [vmem:[#allocation16 + $0x768] sm:$0xff]
    %v1248 = vld [vmem:[#allocation16 + $0x770] sm:$0xff]
    %v1249 = vld [vmem:[#allocation16 + $0x778] sm:$0xff]
    %v1250 = vld [vmem:[#allocation16 + $0x780] sm:$0xff]
    %v1251 = vld [vmem:[#allocation16 + $0x788] sm:$0xff]
    %v1252 = vld [vmem:[#allocation16 + $0x790] sm:$0xff]
    %v1253 = vld [vmem:[#allocation16 + $0x798] sm:$0xff]
    %v1254 = vld [vmem:[#allocation16 + $0x7a0] sm:$0xff]
    %v1255 = vld [vmem:[#allocation16 + $0x7a8] sm:$0xff]
    %v1256 = vld [vmem:[#allocation16 + $0x7b0] sm:$0xff]
    %v1257 = vld [vmem:[#allocation16 + $0x7b8] sm:$0xff]
    %v1258 = vld [vmem:[#allocation16 + $0x7c0] sm:$0xff]
    %v1259 = vld [vmem:[#allocation16 + $0x7c8] sm:$0xff]
    %v1260 = vld [vmem:[#allocation16 + $0x7d0] sm:$0xff]
    %v1261 = vld [vmem:[#allocation16 + $0x7d8] sm:$0xff]
    %v1262 = vld [vmem:[#allocation16 + $0x7e0] sm:$0xff]
    %v1263 = vld [vmem:[#allocation16 + $0x7e8] sm:$0xff]
    %v1264 = vld [vmem:[#allocation16 + $0x7f0] sm:$0xff]
    %v1265 = vld [vmem:[#allocation16 + $0x7f8] sm:$0xff]
    %v1266 = vld [vmem:[#allocation16 + $0x800] sm:$0xff]
    %v1267 = vld [vmem:[#allocation16 + $0x808] sm:$0xff]
    %v1268 = vld [vmem:[#allocation16 + $0x810] sm:$0xff]
    %v1269 = vld [vmem:[#allocation16 + $0x818] sm:$0xff]
    %v1270 = vld [vmem:[#allocation16 + $0x820] sm:$0xff]
    %v1271 = vld [vmem:[#allocation16 + $0x828] sm:$0xff]
    %v1272 = vld [vmem:[#allocation16 + $0x830] sm:$0xff]
    %v1273 = vld [vmem:[#allocation16 + $0x838] sm:$0xff]
    %v1274 = vld [vmem:[#allocation16 + $0x840] sm:$0xff]
    %v1275 = vld [vmem:[#allocation16 + $0x848] sm:$0xff]
    %v1276 = vld [vmem:[#allocation16 + $0x850] sm:$0xff]
    %v1277 = vld [vmem:[#allocation16 + $0x858] sm:$0xff]
    %v1278 = vld [vmem:[#allocation16 + $0x860] sm:$0xff]
    %v1279 = vld [vmem:[#allocation16 + $0x868] sm:$0xff]
    %v1280 = vld [vmem:[#allocation16 + $0x870] sm:$0xff]
    %v1281 = vld [vmem:[#allocation16 + $0x878] sm:$0xff]
    %v1282 = vld [vmem:[#allocation16 + $0x880] sm:$0xff]
    %v1283 = vld [vmem:[#allocation16 + $0x888] sm:$0xff]
    %v1284 = vld [vmem:[#allocation16 + $0x890] sm:$0xff]
    %v1285 = vld [vmem:[#allocation16 + $0x898] sm:$0xff]
    %v1286 = vld [vmem:[#allocation16 + $0x8a0] sm:$0xff]
    %v1287 = vld [vmem:[#allocation16 + $0x8a8] sm:$0xff]
    %v1288 = vld [vmem:[#allocation16 + $0x8b0] sm:$0xff]
    %v1289 = vld [vmem:[#allocation16 + $0x8b8] sm:$0xff]
    %v1290 = vld [vmem:[#allocation16 + $0x8c0] sm:$0xff]
    %v1291 = vld [vmem:[#allocation16 + $0x8c8] sm:$0xff]
    %v1292 = vld [vmem:[#allocation16 + $0x8d0] sm:$0xff]
    %v1293 = vld [vmem:[#allocation16 + $0x8d8] sm:$0xff]
    %v1294 = vld [vmem:[#allocation16 + $0x8e0] sm:$0xff]
    %v1295 = vld [vmem:[#allocation16 + $0x8e8] sm:$0xff]
    %v1296 = vld [vmem:[#allocation16 + $0x8f0] sm:$0xff]
    %v1297 = vld [vmem:[#allocation16 + $0x8f8] sm:$0xff]
    %v1298 = vld [vmem:[#allocation16 + $0x900] sm:$0xff]
    %v1299 = vld [vmem:[#allocation16 + $0x908] sm:$0xff]
    %v1300 = vld [vmem:[#allocation16 + $0x910] sm:$0xff]
    %v1301 = vld [vmem:[#allocation16 + $0x918] sm:$0xff]
    %v1302 = vld [vmem:[#allocation16 + $0x920] sm:$0xff]
    %v1303 = vld [vmem:[#allocation16 + $0x928] sm:$0xff]
    %v1304 = vld [vmem:[#allocation16 + $0x930] sm:$0xff]
    %v1305 = vld [vmem:[#allocation16 + $0x938] sm:$0xff]
    %v1306 = vld [vmem:[#allocation16 + $0x940] sm:$0xff]
    %v1307 = vld [vmem:[#allocation16 + $0x948] sm:$0xff]
    %v1308 = vld [vmem:[#allocation16 + $0x950] sm:$0xff]
    %v1309 = vld [vmem:[#allocation16 + $0x958] sm:$0xff]
    %v1310 = vld [vmem:[#allocation16 + $0x960] sm:$0xff]
    %v1311 = vld [vmem:[#allocation16 + $0x968] sm:$0xff]
    %v1312 = vld [vmem:[#allocation16 + $0x970] sm:$0xff]
    %v1313 = vld [vmem:[#allocation16 + $0x978] sm:$0xff]
    %v1314 = vld [vmem:[#allocation16 + $0x980] sm:$0xff]
    %v1315 = vld [vmem:[#allocation16 + $0x988] sm:$0xff]
    %v1316 = vld [vmem:[#allocation16 + $0x990] sm:$0xff]
    %v1317 = vld [vmem:[#allocation16 + $0x998] sm:$0xff]
    %v1318 = vld [vmem:[#allocation16 + $0x9a0] sm:$0xff]
    %v1319 = vld [vmem:[#allocation16 + $0x9a8] sm:$0xff]
    %v1320 = vld [vmem:[#allocation16 + $0x9b0] sm:$0xff]
    %v1321 = vld [vmem:[#allocation16 + $0x9b8] sm:$0xff]
    %v1322 = vld [vmem:[#allocation16 + $0x9c0] sm:$0xff]
    %v1323 = vld [vmem:[#allocation16 + $0x9c8] sm:$0xff]
    %v1324 = vld [vmem:[#allocation16 + $0x9d0] sm:$0xff]
    %v1325 = vld [vmem:[#allocation16 + $0x9d8] sm:$0xff]
    %v1326 = vld [vmem:[#allocation16 + $0x9e0] sm:$0xff]
    %v1327 = vld [vmem:[#allocation16 + $0x9e8] sm:$0xff]
    %v1328 = vld [vmem:[#allocation16 + $0x9f0] sm:$0xff]
    %v1329 = vld [vmem:[#allocation16 + $0x9f8] sm:$0xff]
    %v1330 = vld [vmem:[#allocation16 + $0xa00] sm:$0xff]
    %v1331 = vld [vmem:[#allocation16 + $0xa08] sm:$0xff]
    %v1332 = vld [vmem:[#allocation16 + $0xa10] sm:$0xff]
    %v1333 = vld [vmem:[#allocation16 + $0xa18] sm:$0xff]
    %v1334 = vld [vmem:[#allocation16 + $0xa20] sm:$0xff]
    %v1335 = vld [vmem:[#allocation16 + $0xa28] sm:$0xff]
    %v1336 = vld [vmem:[#allocation16 + $0xa30] sm:$0xff]
    %v1337 = vld [vmem:[#allocation16 + $0xa38] sm:$0xff]
    %v1338 = vld [vmem:[#allocation16 + $0xa40] sm:$0xff]
    %v1339 = vld [vmem:[#allocation16 + $0xa48] sm:$0xff]
    %v1340 = vld [vmem:[#allocation16 + $0xa50] sm:$0xff]
    %v1341 = vld [vmem:[#allocation16 + $0xa58] sm:$0xff]
    %v1342 = vld [vmem:[#allocation16 + $0xa60] sm:$0xff]
    %v1343 = vld [vmem:[#allocation16 + $0xa68] sm:$0xff]
    %v1344 = vld [vmem:[#allocation16 + $0xa70] sm:$0xff]
    %v1345 = vld [vmem:[#allocation16 + $0xa78] sm:$0xff]
    %v1346 = vld [vmem:[#allocation16 + $0xa80] sm:$0xff]
    %v1347 = vld [vmem:[#allocation16 + $0xa88] sm:$0xff]
    %v1348 = vld [vmem:[#allocation16 + $0xa90] sm:$0xff]
    %v1349 = vld [vmem:[#allocation16 + $0xa98] sm:$0xff]
    %v1350 = vld [vmem:[#allocation16 + $0xaa0] sm:$0xff]
    %v1351 = vld [vmem:[#allocation16 + $0xaa8] sm:$0xff]
    %v1352 = vld [vmem:[#allocation16 + $0xab0] sm:$0xff]
    %v1353 = vld [vmem:[#allocation16 + $0xab8] sm:$0xff]
    %v1354 = vld [vmem:[#allocation16 + $0xac0] sm:$0xff]
    %v1355 = vld [vmem:[#allocation16 + $0xac8] sm:$0xff]
    %v1356 = vld [vmem:[#allocation16 + $0xad0] sm:$0xff]
    %v1357 = vld [vmem:[#allocation16 + $0xad8] sm:$0xff]
    %v1358 = vld [vmem:[#allocation16 + $0xae0] sm:$0xff]
    %v1359 = vld [vmem:[#allocation16 + $0xae8] sm:$0xff]
    %v1360 = vld [vmem:[#allocation16 + $0xaf0] sm:$0xff]
    %v1361 = vld [vmem:[#allocation16 + $0xaf8] sm:$0xff]
    %v1362 = vld [vmem:[#allocation16 + $0xb00] sm:$0xff]
    %v1363 = vld [vmem:[#allocation16 + $0xb08] sm:$0xff]
    %v1364 = vld [vmem:[#allocation16 + $0xb10] sm:$0xff]
    %v1365 = vld [vmem:[#allocation16 + $0xb18] sm:$0xff]
    %v1366 = vld [vmem:[#allocation16 + $0xb20] sm:$0xff]
    %v1367 = vld [vmem:[#allocation16 + $0xb28] sm:$0xff]
    %v1368 = vld [vmem:[#allocation16 + $0xb30] sm:$0xff]
    %v1369 = vld [vmem:[#allocation16 + $0xb38] sm:$0xff]
    %v1370 = vld [vmem:[#allocation16 + $0xb40] sm:$0xff]
    %v1371 = vld [vmem:[#allocation16 + $0xb48] sm:$0xff]
    %v1372 = vld [vmem:[#allocation16 + $0xb50] sm:$0xff]
    %v1373 = vld [vmem:[#allocation16 + $0xb58] sm:$0xff]
    %v1374 = vld [vmem:[#allocation16 + $0xb60] sm:$0xff]
    %v1375 = vld [vmem:[#allocation16 + $0xb68] sm:$0xff]
    %v1376 = vld [vmem:[#allocation16 + $0xb70] sm:$0xff]
    %v1377 = vld [vmem:[#allocation16 + $0xb78] sm:$0xff]
    %v1378 = vld [vmem:[#allocation16 + $0xb80] sm:$0xff]
    %v1379 = vld [vmem:[#allocation16 + $0xb88] sm:$0xff]
    %v1380 = vld [vmem:[#allocation16 + $0xb90] sm:$0xff]
    %v1381 = vld [vmem:[#allocation16 + $0xb98] sm:$0xff]
    %v1382 = vld [vmem:[#allocation16 + $0xba0] sm:$0xff]
    %v1383 = vld [vmem:[#allocation16 + $0xba8] sm:$0xff]
    %v1384 = vld [vmem:[#allocation16 + $0xbb0] sm:$0xff]
    %v1385 = vld [vmem:[#allocation16 + $0xbb8] sm:$0xff]
    %v1386 = vld [vmem:[#allocation16 + $0xbc0] sm:$0xff]
    %v1387 = vld [vmem:[#allocation16 + $0xbc8] sm:$0xff]
    %v1388 = vld [vmem:[#allocation16 + $0xbd0] sm:$0xff]
    %v1389 = vld [vmem:[#allocation16 + $0xbd8] sm:$0xff]
    %v1390 = vld [vmem:[#allocation16 + $0xbe0] sm:$0xff]
    %v1391 = vld [vmem:[#allocation16 + $0xbe8] sm:$0xff]
    %v1392 = vld [vmem:[#allocation16 + $0xbf0] sm:$0xff]
    %v1393 = vld [vmem:[#allocation16 + $0xbf8] sm:$0xff]
    %v1394 = vld [vmem:[#allocation16 + $0xc00] sm:$0xff]
    %v1395 = vld [vmem:[#allocation16 + $0xc08] sm:$0xff]
    %v1396 = vld [vmem:[#allocation16 + $0xc10] sm:$0xff]
    %v1397 = vld [vmem:[#allocation16 + $0xc18] sm:$0xff]
    %v1398 = vld [vmem:[#allocation16 + $0xc20] sm:$0xff]
    %v1399 = vld [vmem:[#allocation16 + $0xc28] sm:$0xff]
    %v1400 = vld [vmem:[#allocation16 + $0xc30] sm:$0xff]
    %v1401 = vld [vmem:[#allocation16 + $0xc38] sm:$0xff]
    %v1402 = vld [vmem:[#allocation16 + $0xc40] sm:$0xff]
    %v1403 = vld [vmem:[#allocation16 + $0xc48] sm:$0xff]
    %v1404 = vld [vmem:[#allocation16 + $0xc50] sm:$0xff]
    %v1405 = vld [vmem:[#allocation16 + $0xc58] sm:$0xff]
    %v1406 = vld [vmem:[#allocation16 + $0xc60] sm:$0xff]
    %v1407 = vld [vmem:[#allocation16 + $0xc68] sm:$0xff]
    %v1408 = vld [vmem:[#allocation16 + $0xc70] sm:$0xff]
    %v1409 = vld [vmem:[#allocation16 + $0xc78] sm:$0xff]
    %v1410 = vld [vmem:[#allocation16 + $0xc80] sm:$0xff]
    %v1411 = vld [vmem:[#allocation16 + $0xc88] sm:$0xff]
    %v1412 = vld [vmem:[#allocation16 + $0xc90] sm:$0xff]
    %v1413 = vld [vmem:[#allocation16 + $0xc98] sm:$0xff]
    %v1414 = vld [vmem:[#allocation16 + $0xca0] sm:$0xff]
    %v1415 = vld [vmem:[#allocation16 + $0xca8] sm:$0xff]
    %v1416 = vld [vmem:[#allocation16 + $0xcb0] sm:$0xff]
    %v1417 = vld [vmem:[#allocation16 + $0xcb8] sm:$0xff]
    %v1418 = vld [vmem:[#allocation16 + $0xcc0] sm:$0xff]
    %v1419 = vld [vmem:[#allocation16 + $0xcc8] sm:$0xff]
    %v1420 = vld [vmem:[#allocation16 + $0xcd0] sm:$0xff]
    %v1421 = vld [vmem:[#allocation16 + $0xcd8] sm:$0xff]
    %v1422 = vld [vmem:[#allocation16 + $0xce0] sm:$0xff]
    %v1423 = vld [vmem:[#allocation16 + $0xce8] sm:$0xff]
    %v1424 = vld [vmem:[#allocation16 + $0xcf0] sm:$0xff]
    %v1425 = vld [vmem:[#allocation16 + $0xcf8] sm:$0xff]
    %v1426 = vld [vmem:[#allocation16 + $0xd00] sm:$0xff]
    %v1427 = vld [vmem:[#allocation16 + $0xd08] sm:$0xff]
    %v1428 = vld [vmem:[#allocation16 + $0xd10] sm:$0xff]
    %v1429 = vld [vmem:[#allocation16 + $0xd18] sm:$0xff]
    %v1430 = vld [vmem:[#allocation16 + $0xd20] sm:$0xff]
    %v1431 = vld [vmem:[#allocation16 + $0xd28] sm:$0xff]
    %v1432 = vld [vmem:[#allocation16 + $0xd30] sm:$0xff]
    %v1433 = vld [vmem:[#allocation16 + $0xd38] sm:$0xff]
    %v1434 = vld [vmem:[#allocation16 + $0xd40] sm:$0xff]
    %v1435 = vld [vmem:[#allocation16 + $0xd48] sm:$0xff]
    %v1436 = vld [vmem:[#allocation16 + $0xd50] sm:$0xff]
    %v1437 = vld [vmem:[#allocation16 + $0xd58] sm:$0xff]
    %v1438 = vld [vmem:[#allocation16 + $0xd60] sm:$0xff]
    %v1439 = vld [vmem:[#allocation16 + $0xd68] sm:$0xff]
    %v1440 = vld [vmem:[#allocation16 + $0xd70] sm:$0xff]
    %v1441 = vld [vmem:[#allocation16 + $0xd78] sm:$0xff]
    %v1442 = vld [vmem:[#allocation16 + $0xd80] sm:$0xff]
    %v1443 = vld [vmem:[#allocation16 + $0xd88] sm:$0xff]
    %v1444 = vld [vmem:[#allocation16 + $0xd90] sm:$0xff]
    %v1445 = vld [vmem:[#allocation16 + $0xd98] sm:$0xff]
    %v1446 = vld [vmem:[#allocation16 + $0xda0] sm:$0xff]
    %v1447 = vld [vmem:[#allocation16 + $0xda8] sm:$0xff]
    %v1448 = vld [vmem:[#allocation16 + $0xdb0] sm:$0xff]
    %v1449 = vld [vmem:[#allocation16 + $0xdb8] sm:$0xff]
    %v1450 = vld [vmem:[#allocation16 + $0xdc0] sm:$0xff]
    %v1451 = vld [vmem:[#allocation16 + $0xdc8] sm:$0xff]
    %v1452 = vld [vmem:[#allocation16 + $0xdd0] sm:$0xff]
    %v1453 = vld [vmem:[#allocation16 + $0xdd8] sm:$0xff]
    %v1454 = vld [vmem:[#allocation16 + $0xde0] sm:$0xff]
    %v1455 = vld [vmem:[#allocation16 + $0xde8] sm:$0xff]
    %v1456 = vld [vmem:[#allocation16 + $0xdf0] sm:$0xff]
    %v1457 = vld [vmem:[#allocation16 + $0xdf8] sm:$0xff]
    %v1458 = vld [vmem:[#allocation16 + $0xe00] sm:$0xff]
    %v1459 = vld [vmem:[#allocation16 + $0xe08] sm:$0xff]
    %v1460 = vld [vmem:[#allocation16 + $0xe10] sm:$0xff]
    %v1461 = vld [vmem:[#allocation16 + $0xe18] sm:$0xff]
    %v1462 = vld [vmem:[#allocation16 + $0xe20] sm:$0xff]
    %v1463 = vld [vmem:[#allocation16 + $0xe28] sm:$0xff]
    %v1464 = vld [vmem:[#allocation16 + $0xe30] sm:$0xff]
    %v1465 = vld [vmem:[#allocation16 + $0xe38] sm:$0xff]
    %v1466 = vld [vmem:[#allocation16 + $0xe40] sm:$0xff]
    %v1467 = vld [vmem:[#allocation16 + $0xe48] sm:$0xff]
    %v1468 = vld [vmem:[#allocation16 + $0xe50] sm:$0xff]
    %v1469 = vld [vmem:[#allocation16 + $0xe58] sm:$0xff]
    %v1470 = vld [vmem:[#allocation16 + $0xe60] sm:$0xff]
    %v1471 = vld [vmem:[#allocation16 + $0xe68] sm:$0xff]
    %v1472 = vld [vmem:[#allocation16 + $0xe70] sm:$0xff]
    %v1473 = vld [vmem:[#allocation16 + $0xe78] sm:$0xff]
    %v1474 = vld [vmem:[#allocation16 + $0xe80] sm:$0xff]
    %v1475 = vld [vmem:[#allocation16 + $0xe88] sm:$0xff]
    %v1476 = vld [vmem:[#allocation16 + $0xe90] sm:$0xff]
    %v1477 = vld [vmem:[#allocation16 + $0xe98] sm:$0xff]
    %v1478 = vld [vmem:[#allocation16 + $0xea0] sm:$0xff]
    %v1479 = vld [vmem:[#allocation16 + $0xea8] sm:$0xff]
    %v1480 = vld [vmem:[#allocation16 + $0xeb0] sm:$0xff]
    %v1481 = vld [vmem:[#allocation16 + $0xeb8] sm:$0xff]
    %v1482 = vld [vmem:[#allocation16 + $0xec0] sm:$0xff]
    %v1483 = vld [vmem:[#allocation16 + $0xec8] sm:$0xff]
    %v1484 = vld [vmem:[#allocation16 + $0xed0] sm:$0xff]
    %v1485 = vld [vmem:[#allocation16 + $0xed8] sm:$0xff]
    %v1486 = vld [vmem:[#allocation16 + $0xee0] sm:$0xff]
    %v1487 = vld [vmem:[#allocation16 + $0xee8] sm:$0xff]
    %v1488 = vld [vmem:[#allocation16 + $0xef0] sm:$0xff]
    %v1489 = vld [vmem:[#allocation16 + $0xef8] sm:$0xff]
    %v1490 = vld [vmem:[#allocation16 + $0xf00] sm:$0xff]
    %v1491 = vld [vmem:[#allocation16 + $0xf08] sm:$0xff]
    %v1492 = vld [vmem:[#allocation16 + $0xf10] sm:$0xff]
    %v1493 = vld [vmem:[#allocation16 + $0xf18] sm:$0xff]
    %v1494 = vld [vmem:[#allocation16 + $0xf20] sm:$0xff]
    %v1495 = vld [vmem:[#allocation16 + $0xf28] sm:$0xff]
    %v1496 = vld [vmem:[#allocation16 + $0xf30] sm:$0xff]
    %v1497 = vld [vmem:[#allocation16 + $0xf38] sm:$0xff]
    %v1498 = vld [vmem:[#allocation16 + $0xf40] sm:$0xff]
    %v1499 = vld [vmem:[#allocation16 + $0xf48] sm:$0xff]
    %v1500 = vld [vmem:[#allocation16 + $0xf50] sm:$0xff]
    %v1501 = vld [vmem:[#allocation16 + $0xf58] sm:$0xff]
    %v1502 = vld [vmem:[#allocation16 + $0xf60] sm:$0xff]
    %v1503 = vld [vmem:[#allocation16 + $0xf68] sm:$0xff]
    %v1504 = vld [vmem:[#allocation16 + $0xf70] sm:$0xff]
    %v1505 = vld [vmem:[#allocation16 + $0xf78] sm:$0xff]
    %v1506 = vld [vmem:[#allocation16 + $0xf80] sm:$0xff]
    %v1507 = vld [vmem:[#allocation16 + $0xf88] sm:$0xff]
    %v1508 = vld [vmem:[#allocation16 + $0xf90] sm:$0xff]
    %v1509 = vld [vmem:[#allocation16 + $0xf98] sm:$0xff]
    %v1510 = vld [vmem:[#allocation16 + $0xfa0] sm:$0xff]
    %v1511 = vld [vmem:[#allocation16 + $0xfa8] sm:$0xff]
    %v1512 = vld [vmem:[#allocation16 + $0xfb0] sm:$0xff]
    %v1513 = vld [vmem:[#allocation16 + $0xfb8] sm:$0xff]
    %v1514 = vld [vmem:[#allocation16 + $0xfc0] sm:$0xff]
    %v1515 = vld [vmem:[#allocation16 + $0xfc8] sm:$0xff]
    %v1516 = vld [vmem:[#allocation16 + $0xfd0] sm:$0xff]
    %v1517 = vld [vmem:[#allocation16 + $0xfd8] sm:$0xff]
    %v1518 = vld [vmem:[#allocation16 + $0xfe0] sm:$0xff]
    %v1519 = vld [vmem:[#allocation16 + $0xfe8] sm:$0xff]
    %v1520 = vld [vmem:[#allocation16 + $0xff0] sm:$0xff]
    %v1521 = vld [vmem:[#allocation16 + $0xff8] sm:$0xff]
    %v1522 = vld [vmem:[#allocation16 + $0x1000] sm:$0xff]
    %v1523 = vld [vmem:[#allocation16 + $0x1008] sm:$0xff]
    %v1524 = vld [vmem:[#allocation16 + $0x1010] sm:$0xff]
    %v1525 = vld [vmem:[#allocation16 + $0x1018] sm:$0xff]
    %v1526 = vld [vmem:[#allocation16 + $0x1020] sm:$0xff]
    %v1527 = vld [vmem:[#allocation16 + $0x1028] sm:$0xff]
    %v1528 = vld [vmem:[#allocation16 + $0x1030] sm:$0xff]
    %v1529 = vld [vmem:[#allocation16 + $0x1038] sm:$0xff]
    %v1530 = vld [vmem:[#allocation16 + $0x1040] sm:$0xff]
    %v1531 = vld [vmem:[#allocation16 + $0x1048] sm:$0xff]
    %v1532 = vld [vmem:[#allocation16 + $0x1050] sm:$0xff]
    %v1533 = vld [vmem:[#allocation16 + $0x1058] sm:$0xff]
    %v1534 = vld [vmem:[#allocation16 + $0x1060] sm:$0xff]
    %v1535 = vld [vmem:[#allocation16 + $0x1068] sm:$0xff]
    %v1536 = vld [vmem:[#allocation16 + $0x1070] sm:$0xff]
    %v1537 = vld [vmem:[#allocation16 + $0x1078] sm:$0xff]
    %v1538 = vld [vmem:[#allocation16 + $0x1080] sm:$0xff]
    %v1539 = vld [vmem:[#allocation16 + $0x1088] sm:$0xff]
    %v1540 = vld [vmem:[#allocation16 + $0x1090] sm:$0xff]
    %v1541 = vld [vmem:[#allocation16 + $0x1098] sm:$0xff]
    %v1542 = vld [vmem:[#allocation16 + $0x10a0] sm:$0xff]
    %v1543 = vld [vmem:[#allocation16 + $0x10a8] sm:$0xff]
    %v1544 = vld [vmem:[#allocation16 + $0x10b0] sm:$0xff]
    %v1545 = vld [vmem:[#allocation16 + $0x10b8] sm:$0xff]
    %v1546 = vld [vmem:[#allocation16 + $0x10c0] sm:$0xff]
    %v1547 = vld [vmem:[#allocation16 + $0x10c8] sm:$0xff]
    %v1548 = vld [vmem:[#allocation16 + $0x10d0] sm:$0xff]
    %v1549 = vld [vmem:[#allocation16 + $0x10d8] sm:$0xff]
    %v1550 = vld [vmem:[#allocation16 + $0x10e0] sm:$0xff]
    %v1551 = vld [vmem:[#allocation16 + $0x10e8] sm:$0xff]
    %v1552 = vld [vmem:[#allocation16 + $0x10f0] sm:$0xff]
    %v1553 = vld [vmem:[#allocation16 + $0x10f8] sm:$0xff]
    %v1554 = vld [vmem:[#allocation16 + $0x1100] sm:$0xff]
    %v1555 = vld [vmem:[#allocation16 + $0x1108] sm:$0xff]
    %v1556 = vld [vmem:[#allocation16 + $0x1110] sm:$0xff]
    %v1557 = vld [vmem:[#allocation16 + $0x1118] sm:$0xff]
    %v1558 = vld [vmem:[#allocation16 + $0x1120] sm:$0xff]
    %v1559 = vld [vmem:[#allocation16 + $0x1128] sm:$0xff]
    %v1560 = vld [vmem:[#allocation16 + $0x1130] sm:$0xff]
    %v1561 = vld [vmem:[#allocation16 + $0x1138] sm:$0xff]
    %v1562 = vld [vmem:[#allocation16 + $0x1140] sm:$0xff]
    %v1563 = vld [vmem:[#allocation16 + $0x1148] sm:$0xff]
    %v1564 = vld [vmem:[#allocation16 + $0x1150] sm:$0xff]
    %v1565 = vld [vmem:[#allocation16 + $0x1158] sm:$0xff]
    %v1566 = vld [vmem:[#allocation16 + $0x1160] sm:$0xff]
    %v1567 = vld [vmem:[#allocation16 + $0x1168] sm:$0xff]
    %v1568 = vld [vmem:[#allocation16 + $0x1170] sm:$0xff]
    %v1569 = vld [vmem:[#allocation16 + $0x1178] sm:$0xff]
    %v1570 = vld [vmem:[#allocation16 + $0x1180] sm:$0xff]
    %v1571 = vld [vmem:[#allocation16 + $0x1188] sm:$0xff]
    %v1572 = vld [vmem:[#allocation16 + $0x1190] sm:$0xff]
    %v1573 = vld [vmem:[#allocation16 + $0x1198] sm:$0xff]
    %v1574 = vld [vmem:[#allocation16 + $0x11a0] sm:$0xff]
    %v1575 = vld [vmem:[#allocation16 + $0x11a8] sm:$0xff]
    %v1576 = vld [vmem:[#allocation16 + $0x11b0] sm:$0xff]
    %v1577 = vld [vmem:[#allocation16 + $0x11b8] sm:$0xff]
    %v1578 = vld [vmem:[#allocation16 + $0x11c0] sm:$0xff]
    %v1579 = vld [vmem:[#allocation16 + $0x11c8] sm:$0xff]
    %v1580 = vld [vmem:[#allocation16 + $0x11d0] sm:$0xff]
    %v1581 = vld [vmem:[#allocation16 + $0x11d8] sm:$0xff]
    %v1582 = vld [vmem:[#allocation16 + $0x11e0] sm:$0xff]
    %v1583 = vld [vmem:[#allocation16 + $0x11e8] sm:$0xff]
    %v1584 = vld [vmem:[#allocation16 + $0x11f0] sm:$0xff]
    %v1585 = vld [vmem:[#allocation16 + $0x11f8] sm:$0xff]
    %v1586 = vld [vmem:[#allocation16 + $0x1200] sm:$0xff]
    %v1587 = vld [vmem:[#allocation16 + $0x1208] sm:$0xff]
    %v1588 = vld [vmem:[#allocation16 + $0x1210] sm:$0xff]
    %v1589 = vld [vmem:[#allocation16 + $0x1218] sm:$0xff]
    %v1590 = vld [vmem:[#allocation16 + $0x1220] sm:$0xff]
    %v1591 = vld [vmem:[#allocation16 + $0x1228] sm:$0xff]
    %v1592 = vld [vmem:[#allocation16 + $0x1230] sm:$0xff]
    %v1593 = vld [vmem:[#allocation16 + $0x1238] sm:$0xff]
    %v1594 = vld [vmem:[#allocation16 + $0x1240] sm:$0xff]
    %v1595 = vld [vmem:[#allocation16 + $0x1248] sm:$0xff]
    %v1596 = vld [vmem:[#allocation16 + $0x1250] sm:$0xff]
    %v1597 = vld [vmem:[#allocation16 + $0x1258] sm:$0xff]
    %v1598 = vld [vmem:[#allocation16 + $0x1260] sm:$0xff]
    %v1599 = vld [vmem:[#allocation16 + $0x1268] sm:$0xff]
    %v1600 = vld [vmem:[#allocation16 + $0x1270] sm:$0xff]
    %v1601 = vld [vmem:[#allocation16 + $0x1278] sm:$0xff]
    %v1602 = vld [vmem:[#allocation16 + $0x1280] sm:$0xff]
    %v1603 = vld [vmem:[#allocation16 + $0x1288] sm:$0xff]
    %v1604 = vld [vmem:[#allocation16 + $0x1290] sm:$0xff]
    %v1605 = vld [vmem:[#allocation16 + $0x1298] sm:$0xff]
    %v1606 = vld [vmem:[#allocation16 + $0x12a0] sm:$0xff]
    %v1607 = vld [vmem:[#allocation16 + $0x12a8] sm:$0xff]
    %v1608 = vld [vmem:[#allocation16 + $0x12b0] sm:$0xff]
    %v1609 = vld [vmem:[#allocation16 + $0x12b8] sm:$0xff]
    %v1610 = vld [vmem:[#allocation16 + $0x12c0] sm:$0xff]
    %v1611 = vld [vmem:[#allocation16 + $0x12c8] sm:$0xff]
    %v1612 = vld [vmem:[#allocation16 + $0x12d0] sm:$0xff]
    %v1613 = vld [vmem:[#allocation16 + $0x12d8] sm:$0xff]
    %v1614 = vld [vmem:[#allocation16 + $0x12e0] sm:$0xff]
    %v1615 = vld [vmem:[#allocation16 + $0x12e8] sm:$0xff]
    %v1616 = vld [vmem:[#allocation16 + $0x12f0] sm:$0xff]
    %v1617 = vld [vmem:[#allocation16 + $0x12f8] sm:$0xff]
    %v1618 = vld [vmem:[#allocation16 + $0x1300] sm:$0xff]
    %v1619 = vld [vmem:[#allocation16 + $0x1308] sm:$0xff]
    %v1620 = vld [vmem:[#allocation16 + $0x1310] sm:$0xff]
    %v1621 = vld [vmem:[#allocation16 + $0x1318] sm:$0xff]
    %v1622 = vld [vmem:[#allocation16 + $0x1320] sm:$0xff]
    %v1623 = vld [vmem:[#allocation16 + $0x1328] sm:$0xff]
    %v1624 = vld [vmem:[#allocation16 + $0x1330] sm:$0xff]
    %v1625 = vld [vmem:[#allocation16 + $0x1338] sm:$0xff]
    %v1626 = vld [vmem:[#allocation16 + $0x1340] sm:$0xff]
    %v1627 = vld [vmem:[#allocation16 + $0x1348] sm:$0xff]
    %v1628 = vld [vmem:[#allocation16 + $0x1350] sm:$0xff]
    %v1629 = vld [vmem:[#allocation16 + $0x1358] sm:$0xff]
    %v1630 = vld [vmem:[#allocation16 + $0x1360] sm:$0xff]
    %v1631 = vld [vmem:[#allocation16 + $0x1368] sm:$0xff]
    %v1632 = vld [vmem:[#allocation16 + $0x1370] sm:$0xff]
    %v1633 = vld [vmem:[#allocation16 + $0x1378] sm:$0xff]
    %v1634 = vld [vmem:[#allocation16 + $0x1380] sm:$0xff]
    %v1635 = vld [vmem:[#allocation16 + $0x1388] sm:$0xff]
    %v1636 = vld [vmem:[#allocation16 + $0x1390] sm:$0xff]
    %v1637 = vld [vmem:[#allocation16 + $0x1398] sm:$0xff]
    %v1638 = vld [vmem:[#allocation16 + $0x13a0] sm:$0xff]
    %v1639 = vld [vmem:[#allocation16 + $0x13a8] sm:$0xff]
    %v1640 = vld [vmem:[#allocation16 + $0x13b0] sm:$0xff]
    %v1641 = vld [vmem:[#allocation16 + $0x13b8] sm:$0xff]
    %v1642 = vld [vmem:[#allocation16 + $0x13c0] sm:$0xff]
    %v1643 = vld [vmem:[#allocation16 + $0x13c8] sm:$0xff]
    %v1644 = vld [vmem:[#allocation16 + $0x13d0] sm:$0xff]
    %v1645 = vld [vmem:[#allocation16 + $0x13d8] sm:$0xff]
    %v1646 = vld [vmem:[#allocation16 + $0x13e0] sm:$0xff]
    %v1647 = vld [vmem:[#allocation16 + $0x13e8] sm:$0xff]
    %v1648 = vld [vmem:[#allocation16 + $0x13f0] sm:$0xff]
    %v1649 = vld [vmem:[#allocation16 + $0x13f8] sm:$0xff]
    %v1650 = vld [vmem:[#allocation16 + $0x1400] sm:$0xff]
    %v1651 = vld [vmem:[#allocation16 + $0x1408] sm:$0xff]
    %v1652 = vld [vmem:[#allocation16 + $0x1410] sm:$0xff]
    %v1653 = vld [vmem:[#allocation16 + $0x1418] sm:$0xff]
    %v1654 = vld [vmem:[#allocation16 + $0x1420] sm:$0xff]
    %v1655 = vld [vmem:[#allocation16 + $0x1428] sm:$0xff]
    %v1656 = vld [vmem:[#allocation16 + $0x1430] sm:$0xff]
    %v1657 = vld [vmem:[#allocation16 + $0x1438] sm:$0xff]
    %v1658 = vld [vmem:[#allocation16 + $0x1440] sm:$0xff]
    %v1659 = vld [vmem:[#allocation16 + $0x1448] sm:$0xff]
    %v1660 = vld [vmem:[#allocation16 + $0x1450] sm:$0xff]
    %v1661 = vld [vmem:[#allocation16 + $0x1458] sm:$0xff]
    %v1662 = vld [vmem:[#allocation16 + $0x1460] sm:$0xff]
    %v1663 = vld [vmem:[#allocation16 + $0x1468] sm:$0xff]
    %v1664 = vld [vmem:[#allocation16 + $0x1470] sm:$0xff]
    %v1665 = vld [vmem:[#allocation16 + $0x1478] sm:$0xff]
    %v1666 = vld [vmem:[#allocation16 + $0x1480] sm:$0xff]
    %v1667 = vld [vmem:[#allocation16 + $0x1488] sm:$0xff]
    %v1668 = vld [vmem:[#allocation16 + $0x1490] sm:$0xff]
    %v1669 = vld [vmem:[#allocation16 + $0x1498] sm:$0xff]
    %v1670 = vld [vmem:[#allocation16 + $0x14a0] sm:$0xff]
    %v1671 = vld [vmem:[#allocation16 + $0x14a8] sm:$0xff]
    %v1672 = vld [vmem:[#allocation16 + $0x14b0] sm:$0xff]
    %v1673 = vld [vmem:[#allocation16 + $0x14b8] sm:$0xff]
    %v1674 = vld [vmem:[#allocation16 + $0x14c0] sm:$0xff]
    %v1675 = vld [vmem:[#allocation16 + $0x14c8] sm:$0xff]
    %v1676 = vld [vmem:[#allocation16 + $0x14d0] sm:$0xff]
    %v1677 = vld [vmem:[#allocation16 + $0x14d8] sm:$0xff]
    %v1678 = vld [vmem:[#allocation16 + $0x14e0] sm:$0xff]
    %v1679 = vld [vmem:[#allocation16 + $0x14e8] sm:$0xff]
    %v1680 = vld [vmem:[#allocation16 + $0x14f0] sm:$0xff]
    %v1681 = vld [vmem:[#allocation16 + $0x14f8] sm:$0xff]
    %v1682 = vld [vmem:[#allocation16 + $0x1500] sm:$0xff]
    %v1683 = vld [vmem:[#allocation16 + $0x1508] sm:$0xff]
    %v1684 = vld [vmem:[#allocation16 + $0x1510] sm:$0xff]
    %v1685 = vld [vmem:[#allocation16 + $0x1518] sm:$0xff]
    %v1686 = vld [vmem:[#allocation16 + $0x1520] sm:$0xff]
    %v1687 = vld [vmem:[#allocation16 + $0x1528] sm:$0xff]
    %v1688 = vld [vmem:[#allocation16 + $0x1530] sm:$0xff]
    %v1689 = vld [vmem:[#allocation16 + $0x1538] sm:$0xff]
    %v1690 = vld [vmem:[#allocation16 + $0x1540] sm:$0xff]
    %v1691 = vld [vmem:[#allocation16 + $0x1548] sm:$0xff]
    %v1692 = vld [vmem:[#allocation16 + $0x1550] sm:$0xff]
    %v1693 = vld [vmem:[#allocation16 + $0x1558] sm:$0xff]
    %v1694 = vld [vmem:[#allocation16 + $0x1560] sm:$0xff]
    %v1695 = vld [vmem:[#allocation16 + $0x1568] sm:$0xff]
    %v1696 = vld [vmem:[#allocation16 + $0x1570] sm:$0xff]
    %v1697 = vld [vmem:[#allocation16 + $0x1578] sm:$0xff]
    %v1698 = vld [vmem:[#allocation16 + $0x1580] sm:$0xff]
    %v1699 = vld [vmem:[#allocation16 + $0x1588] sm:$0xff]
    %v1700 = vld [vmem:[#allocation16 + $0x1590] sm:$0xff]
    %v1701 = vld [vmem:[#allocation16 + $0x1598] sm:$0xff]
    %v1702 = vld [vmem:[#allocation16 + $0x15a0] sm:$0xff]
    %v1703 = vld [vmem:[#allocation16 + $0x15a8] sm:$0xff]
    %v1704 = vld [vmem:[#allocation16 + $0x15b0] sm:$0xff]
    %v1705 = vld [vmem:[#allocation16 + $0x15b8] sm:$0xff]
    %v1706 = vld [vmem:[#allocation16 + $0x15c0] sm:$0xff]
    %v1707 = vld [vmem:[#allocation16 + $0x15c8] sm:$0xff]
    %v1708 = vld [vmem:[#allocation16 + $0x15d0] sm:$0xff]
    %v1709 = vld [vmem:[#allocation16 + $0x15d8] sm:$0xff]
    %v1710 = vld [vmem:[#allocation16 + $0x15e0] sm:$0xff]
    %v1711 = vld [vmem:[#allocation16 + $0x15e8] sm:$0xff]
    %v1712 = vld [vmem:[#allocation16 + $0x15f0] sm:$0xff]
    %v1713 = vld [vmem:[#allocation16 + $0x15f8] sm:$0xff]
    %v1714 = vld [vmem:[#allocation16 + $0x1600] sm:$0xff]
    %v1715 = vld [vmem:[#allocation16 + $0x1608] sm:$0xff]
    %v1716 = vld [vmem:[#allocation16 + $0x1610] sm:$0xff]
    %v1717 = vld [vmem:[#allocation16 + $0x1618] sm:$0xff]
    %v1718 = vld [vmem:[#allocation16 + $0x1620] sm:$0xff]
    %v1719 = vld [vmem:[#allocation16 + $0x1628] sm:$0xff]
    %v1720 = vld [vmem:[#allocation16 + $0x1630] sm:$0xff]
    %v1721 = vld [vmem:[#allocation16 + $0x1638] sm:$0xff]
    %v1722 = vld [vmem:[#allocation16 + $0x1640] sm:$0xff]
    %v1723 = vld [vmem:[#allocation16 + $0x1648] sm:$0xff]
    %v1724 = vld [vmem:[#allocation16 + $0x1650] sm:$0xff]
    %v1725 = vld [vmem:[#allocation16 + $0x1658] sm:$0xff]
    %v1726 = vld [vmem:[#allocation16 + $0x1660] sm:$0xff]
    %v1727 = vld [vmem:[#allocation16 + $0x1668] sm:$0xff]
    %v1728 = vld [vmem:[#allocation16 + $0x1670] sm:$0xff]
    %v1729 = vld [vmem:[#allocation16 + $0x1678] sm:$0xff]
    %v1730 = vld [vmem:[#allocation16 + $0x1680] sm:$0xff]
    %v1731 = vld [vmem:[#allocation16 + $0x1688] sm:$0xff]
    %v1732 = vld [vmem:[#allocation16 + $0x1690] sm:$0xff]
    %v1733 = vld [vmem:[#allocation16 + $0x1698] sm:$0xff]
    %v1734 = vld [vmem:[#allocation16 + $0x16a0] sm:$0xff]
    %v1735 = vld [vmem:[#allocation16 + $0x16a8] sm:$0xff]
    %v1736 = vld [vmem:[#allocation16 + $0x16b0] sm:$0xff]
    %v1737 = vld [vmem:[#allocation16 + $0x16b8] sm:$0xff]
    %v1738 = vld [vmem:[#allocation16 + $0x16c0] sm:$0xff]
    %v1739 = vld [vmem:[#allocation16 + $0x16c8] sm:$0xff]
    %v1740 = vld [vmem:[#allocation16 + $0x16d0] sm:$0xff]
    %v1741 = vld [vmem:[#allocation16 + $0x16d8] sm:$0xff]
    %v1742 = vld [vmem:[#allocation16 + $0x16e0] sm:$0xff]
    %v1743 = vld [vmem:[#allocation16 + $0x16e8] sm:$0xff]
    %v1744 = vld [vmem:[#allocation16 + $0x16f0] sm:$0xff]
    %v1745 = vld [vmem:[#allocation16 + $0x16f8] sm:$0xff]
    %v1746 = vld [vmem:[#allocation16 + $0x1700] sm:$0xff]
    %v1747 = vld [vmem:[#allocation16 + $0x1708] sm:$0xff]
    %v1748 = vld [vmem:[#allocation16 + $0x1710] sm:$0xff]
    %v1749 = vld [vmem:[#allocation16 + $0x1718] sm:$0xff]
    %v1750 = vld [vmem:[#allocation16 + $0x1720] sm:$0xff]
    %v1751 = vld [vmem:[#allocation16 + $0x1728] sm:$0xff]
    %v1752 = vld [vmem:[#allocation16 + $0x1730] sm:$0xff]
    %v1753 = vld [vmem:[#allocation16 + $0x1738] sm:$0xff]
    %v1754 = vld [vmem:[#allocation16 + $0x1740] sm:$0xff]
    %v1755 = vld [vmem:[#allocation16 + $0x1748] sm:$0xff]
    %v1756 = vld [vmem:[#allocation16 + $0x1750] sm:$0xff]
    %v1757 = vld [vmem:[#allocation16 + $0x1758] sm:$0xff]
    %v1758 = vld [vmem:[#allocation16 + $0x1760] sm:$0xff]
    %v1759 = vld [vmem:[#allocation16 + $0x1768] sm:$0xff]
    %v1760 = vld [vmem:[#allocation16 + $0x1770] sm:$0xff]
    %v1761 = vld [vmem:[#allocation16 + $0x1778] sm:$0xff]
    %v1762 = vld [vmem:[#allocation16 + $0x1780] sm:$0xff]
    %v1763 = vld [vmem:[#allocation16 + $0x1788] sm:$0xff]
    %v1764 = vld [vmem:[#allocation16 + $0x1790] sm:$0xff]
    %v1765 = vld [vmem:[#allocation16 + $0x1798] sm:$0xff]
    %v1766 = vld [vmem:[#allocation16 + $0x17a0] sm:$0xff]
    %v1767 = vld [vmem:[#allocation16 + $0x17a8] sm:$0xff]
    %v1768 = vld [vmem:[#allocation16 + $0x17b0] sm:$0xff]
    %v1769 = vld [vmem:[#allocation16 + $0x17b8] sm:$0xff]
    %v1770 = vld [vmem:[#allocation16 + $0x17c0] sm:$0xff]
    %v1771 = vld [vmem:[#allocation16 + $0x17c8] sm:$0xff]
    %v1772 = vld [vmem:[#allocation16 + $0x17d0] sm:$0xff]
    %v1773 = vld [vmem:[#allocation16 + $0x17d8] sm:$0xff]
    %v1774 = vld [vmem:[#allocation16 + $0x17e0] sm:$0xff]
    %v1775 = vld [vmem:[#allocation16 + $0x17e8] sm:$0xff]
    %v1776 = vld [vmem:[#allocation16 + $0x17f0] sm:$0xff]
    %v1777 = vld [vmem:[#allocation16 + $0x17f8] sm:$0xff]
    %v1778 = vld [vmem:[#allocation16 + $0x1800] sm:$0xff]
    %v1779 = vld [vmem:[#allocation16 + $0x1808] sm:$0xff]
    %v1780 = vld [vmem:[#allocation16 + $0x1810] sm:$0xff]
    %v1781 = vld [vmem:[#allocation16 + $0x1818] sm:$0xff]
    %v1782 = vld [vmem:[#allocation16 + $0x1820] sm:$0xff]
    %v1783 = vld [vmem:[#allocation16 + $0x1828] sm:$0xff]
    %v1784 = vld [vmem:[#allocation16 + $0x1830] sm:$0xff]
    %v1785 = vld [vmem:[#allocation16 + $0x1838] sm:$0xff]
    %v1786 = vld [vmem:[#allocation16 + $0x1840] sm:$0xff]
    %v1787 = vld [vmem:[#allocation16 + $0x1848] sm:$0xff]
    %v1788 = vld [vmem:[#allocation16 + $0x1850] sm:$0xff]
    %v1789 = vld [vmem:[#allocation16 + $0x1858] sm:$0xff]
    %v1790 = vld [vmem:[#allocation16 + $0x1860] sm:$0xff]
    %v1791 = vld [vmem:[#allocation16 + $0x1868] sm:$0xff]
    %v1792 = vld [vmem:[#allocation16 + $0x1870] sm:$0xff]
    %v1793 = vld [vmem:[#allocation16 + $0x1878] sm:$0xff]
    %v1794 = vld [vmem:[#allocation16 + $0x1880] sm:$0xff]
    %v1795 = vld [vmem:[#allocation16 + $0x1888] sm:$0xff]
    %v1796 = vld [vmem:[#allocation16 + $0x1890] sm:$0xff]
    %v1797 = vld [vmem:[#allocation16 + $0x1898] sm:$0xff]
    %v1798 = vld [vmem:[#allocation16 + $0x18a0] sm:$0xff]
    %v1799 = vld [vmem:[#allocation16 + $0x18a8] sm:$0xff]
    %v1800 = vld [vmem:[#allocation16 + $0x18b0] sm:$0xff]
    %v1801 = vld [vmem:[#allocation16 + $0x18b8] sm:$0xff]
    %v1802 = vld [vmem:[#allocation16 + $0x18c0] sm:$0xff]
    %v1803 = vld [vmem:[#allocation16 + $0x18c8] sm:$0xff]
    %v1804 = vld [vmem:[#allocation16 + $0x18d0] sm:$0xff]
    %v1805 = vld [vmem:[#allocation16 + $0x18d8] sm:$0xff]
    %v1806 = vld [vmem:[#allocation16 + $0x18e0] sm:$0xff]
    %v1807 = vld [vmem:[#allocation16 + $0x18e8] sm:$0xff]
    %v1808 = vld [vmem:[#allocation16 + $0x18f0] sm:$0xff]
    %v1809 = vld [vmem:[#allocation16 + $0x18f8] sm:$0xff]
    %v2450 = vunpack.c.l.b16 %v1170
    %v2451 = vunpack.c.h.b16 %v1170
    %v2452 = vunpack.c.l.b16 %v1171
    %v2453 = vunpack.c.h.b16 %v1171
    %v2454 = vunpack.c.l.b16 %v1172
    %v2455 = vunpack.c.h.b16 %v1172
    %v2456 = vunpack.c.l.b16 %v1173
    %v2457 = vunpack.c.h.b16 %v1173
    %v2458 = vunpack.c.l.b16 %v1174
    %v2459 = vunpack.c.h.b16 %v1174
    %v2460 = vunpack.c.l.b16 %v1175
    %v2461 = vunpack.c.h.b16 %v1175
    %v2462 = vunpack.c.l.b16 %v1176
    %v2463 = vunpack.c.h.b16 %v1176
    %v2464 = vunpack.c.l.b16 %v1177
    %v2465 = vunpack.c.h.b16 %v1177
    %v2466 = vunpack.c.l.b16 %v1178
    %v2467 = vunpack.c.h.b16 %v1178
    %v2468 = vunpack.c.l.b16 %v1179
    %v2469 = vunpack.c.h.b16 %v1179
    %v2470 = vunpack.c.l.b16 %v1180
    %v2471 = vunpack.c.h.b16 %v1180
    %v2472 = vunpack.c.l.b16 %v1181
    %v2473 = vunpack.c.h.b16 %v1181
    %v2474 = vunpack.c.l.b16 %v1182
    %v2475 = vunpack.c.h.b16 %v1182
    %v2476 = vunpack.c.l.b16 %v1183
    %v2477 = vunpack.c.h.b16 %v1183
    %v2478 = vunpack.c.l.b16 %v1184
    %v2479 = vunpack.c.h.b16 %v1184
    %v2480 = vunpack.c.l.b16 %v1185
    %v2481 = vunpack.c.h.b16 %v1185
    %v2482 = vunpack.c.l.b16 %v1186
    %v2483 = vunpack.c.h.b16 %v1186
    %v2484 = vunpack.c.l.b16 %v1187
    %v2485 = vunpack.c.h.b16 %v1187
    %v2486 = vunpack.c.l.b16 %v1188
    %v2487 = vunpack.c.h.b16 %v1188
    %v2488 = vunpack.c.l.b16 %v1189
    %v2489 = vunpack.c.h.b16 %v1189
    %v2490 = vunpack.c.l.b16 %v1190
    %v2491 = vunpack.c.h.b16 %v1190
    %v2492 = vunpack.c.l.b16 %v1191
    %v2493 = vunpack.c.h.b16 %v1191
    %v2494 = vunpack.c.l.b16 %v1192
    %v2495 = vunpack.c.h.b16 %v1192
    %v2496 = vunpack.c.l.b16 %v1193
    %v2497 = vunpack.c.h.b16 %v1193
    %v2498 = vunpack.c.l.b16 %v1194
    %v2499 = vunpack.c.h.b16 %v1194
    %v2500 = vunpack.c.l.b16 %v1195
    %v2501 = vunpack.c.h.b16 %v1195
    %v2502 = vunpack.c.l.b16 %v1196
    %v2503 = vunpack.c.h.b16 %v1196
    %v2504 = vunpack.c.l.b16 %v1197
    %v2505 = vunpack.c.h.b16 %v1197
    %v2506 = vunpack.c.l.b16 %v1198
    %v2507 = vunpack.c.h.b16 %v1198
    %v2508 = vunpack.c.l.b16 %v1199
    %v2509 = vunpack.c.h.b16 %v1199
    %v2510 = vunpack.c.l.b16 %v1200
    %v2511 = vunpack.c.h.b16 %v1200
    %v2512 = vunpack.c.l.b16 %v1201
    %v2513 = vunpack.c.h.b16 %v1201
    %v2514 = vunpack.c.l.b16 %v1202
    %v2515 = vunpack.c.h.b16 %v1202
    %v2516 = vunpack.c.l.b16 %v1203
    %v2517 = vunpack.c.h.b16 %v1203
    %v2518 = vunpack.c.l.b16 %v1204
    %v2519 = vunpack.c.h.b16 %v1204
    %v2520 = vunpack.c.l.b16 %v1205
    %v2521 = vunpack.c.h.b16 %v1205
    %v2522 = vunpack.c.l.b16 %v1206
    %v2523 = vunpack.c.h.b16 %v1206
    %v2524 = vunpack.c.l.b16 %v1207
    %v2525 = vunpack.c.h.b16 %v1207
    %v2526 = vunpack.c.l.b16 %v1208
    %v2527 = vunpack.c.h.b16 %v1208
    %v2528 = vunpack.c.l.b16 %v1209
    %v2529 = vunpack.c.h.b16 %v1209
    %v2530 = vunpack.c.l.b16 %v1210
    %v2531 = vunpack.c.h.b16 %v1210
    %v2532 = vunpack.c.l.b16 %v1211
    %v2533 = vunpack.c.h.b16 %v1211
    %v2534 = vunpack.c.l.b16 %v1212
    %v2535 = vunpack.c.h.b16 %v1212
    %v2536 = vunpack.c.l.b16 %v1213
    %v2537 = vunpack.c.h.b16 %v1213
    %v2538 = vunpack.c.l.b16 %v1214
    %v2539 = vunpack.c.h.b16 %v1214
    %v2540 = vunpack.c.l.b16 %v1215
    %v2541 = vunpack.c.h.b16 %v1215
    %v2542 = vunpack.c.l.b16 %v1216
    %v2543 = vunpack.c.h.b16 %v1216
    %v2544 = vunpack.c.l.b16 %v1217
    %v2545 = vunpack.c.h.b16 %v1217
    %v2546 = vunpack.c.l.b16 %v1218
    %v2547 = vunpack.c.h.b16 %v1218
    %v2548 = vunpack.c.l.b16 %v1219
    %v2549 = vunpack.c.h.b16 %v1219
    %v2550 = vunpack.c.l.b16 %v1220
    %v2551 = vunpack.c.h.b16 %v1220
    %v2552 = vunpack.c.l.b16 %v1221
    %v2553 = vunpack.c.h.b16 %v1221
    %v2554 = vunpack.c.l.b16 %v1222
    %v2555 = vunpack.c.h.b16 %v1222
    %v2556 = vunpack.c.l.b16 %v1223
    %v2557 = vunpack.c.h.b16 %v1223
    %v2558 = vunpack.c.l.b16 %v1224
    %v2559 = vunpack.c.h.b16 %v1224
    %v2560 = vunpack.c.l.b16 %v1225
    %v2561 = vunpack.c.h.b16 %v1225
    %v2562 = vunpack.c.l.b16 %v1226
    %v2563 = vunpack.c.h.b16 %v1226
    %v2564 = vunpack.c.l.b16 %v1227
    %v2565 = vunpack.c.h.b16 %v1227
    %v2566 = vunpack.c.l.b16 %v1228
    %v2567 = vunpack.c.h.b16 %v1228
    %v2568 = vunpack.c.l.b16 %v1229
    %v2569 = vunpack.c.h.b16 %v1229
    %v2570 = vunpack.c.l.b16 %v1230
    %v2571 = vunpack.c.h.b16 %v1230
    %v2572 = vunpack.c.l.b16 %v1231
    %v2573 = vunpack.c.h.b16 %v1231
    %v2574 = vunpack.c.l.b16 %v1232
    %v2575 = vunpack.c.h.b16 %v1232
    %v2576 = vunpack.c.l.b16 %v1233
    %v2577 = vunpack.c.h.b16 %v1233
    %v2578 = vunpack.c.l.b16 %v1234
    %v2579 = vunpack.c.h.b16 %v1234
    %v2580 = vunpack.c.l.b16 %v1235
    %v2581 = vunpack.c.h.b16 %v1235
    %v2582 = vunpack.c.l.b16 %v1236
    %v2583 = vunpack.c.h.b16 %v1236
    %v2584 = vunpack.c.l.b16 %v1237
    %v2585 = vunpack.c.h.b16 %v1237
    %v2586 = vunpack.c.l.b16 %v1238
    %v2587 = vunpack.c.h.b16 %v1238
    %v2588 = vunpack.c.l.b16 %v1239
    %v2589 = vunpack.c.h.b16 %v1239
    %v2590 = vunpack.c.l.b16 %v1240
    %v2591 = vunpack.c.h.b16 %v1240
    %v2592 = vunpack.c.l.b16 %v1241
    %v2593 = vunpack.c.h.b16 %v1241
    %v2594 = vunpack.c.l.b16 %v1242
    %v2595 = vunpack.c.h.b16 %v1242
    %v2596 = vunpack.c.l.b16 %v1243
    %v2597 = vunpack.c.h.b16 %v1243
    %v2598 = vunpack.c.l.b16 %v1244
    %v2599 = vunpack.c.h.b16 %v1244
    %v2600 = vunpack.c.l.b16 %v1245
    %v2601 = vunpack.c.h.b16 %v1245
    %v2602 = vunpack.c.l.b16 %v1246
    %v2603 = vunpack.c.h.b16 %v1246
    %v2604 = vunpack.c.l.b16 %v1247
    %v2605 = vunpack.c.h.b16 %v1247
    %v2606 = vunpack.c.l.b16 %v1248
    %v2607 = vunpack.c.h.b16 %v1248
    %v2608 = vunpack.c.l.b16 %v1249
    %v2609 = vunpack.c.h.b16 %v1249
    %v2610 = vunpack.c.l.b16 %v1250
    %v2611 = vunpack.c.h.b16 %v1250
    %v2612 = vunpack.c.l.b16 %v1251
    %v2613 = vunpack.c.h.b16 %v1251
    %v2614 = vunpack.c.l.b16 %v1252
    %v2615 = vunpack.c.h.b16 %v1252
    %v2616 = vunpack.c.l.b16 %v1253
    %v2617 = vunpack.c.h.b16 %v1253
    %v2618 = vunpack.c.l.b16 %v1254
    %v2619 = vunpack.c.h.b16 %v1254
    %v2620 = vunpack.c.l.b16 %v1255
    %v2621 = vunpack.c.h.b16 %v1255
    %v2622 = vunpack.c.l.b16 %v1256
    %v2623 = vunpack.c.h.b16 %v1256
    %v2624 = vunpack.c.l.b16 %v1257
    %v2625 = vunpack.c.h.b16 %v1257
    %v2626 = vunpack.c.l.b16 %v1258
    %v2627 = vunpack.c.h.b16 %v1258
    %v2628 = vunpack.c.l.b16 %v1259
    %v2629 = vunpack.c.h.b16 %v1259
    %v2630 = vunpack.c.l.b16 %v1260
    %v2631 = vunpack.c.h.b16 %v1260
    %v2632 = vunpack.c.l.b16 %v1261
    %v2633 = vunpack.c.h.b16 %v1261
    %v2634 = vunpack.c.l.b16 %v1262
    %v2635 = vunpack.c.h.b16 %v1262
    %v2636 = vunpack.c.l.b16 %v1263
    %v2637 = vunpack.c.h.b16 %v1263
    %v2638 = vunpack.c.l.b16 %v1264
    %v2639 = vunpack.c.h.b16 %v1264
    %v2640 = vunpack.c.l.b16 %v1265
    %v2641 = vunpack.c.h.b16 %v1265
    %v2642 = vunpack.c.l.b16 %v1266
    %v2643 = vunpack.c.h.b16 %v1266
    %v2644 = vunpack.c.l.b16 %v1267
    %v2645 = vunpack.c.h.b16 %v1267
    %v2646 = vunpack.c.l.b16 %v1268
    %v2647 = vunpack.c.h.b16 %v1268
    %v2648 = vunpack.c.l.b16 %v1269
    %v2649 = vunpack.c.h.b16 %v1269
    %v2650 = vunpack.c.l.b16 %v1270
    %v2651 = vunpack.c.h.b16 %v1270
    %v2652 = vunpack.c.l.b16 %v1271
    %v2653 = vunpack.c.h.b16 %v1271
    %v2654 = vunpack.c.l.b16 %v1272
    %v2655 = vunpack.c.h.b16 %v1272
    %v2656 = vunpack.c.l.b16 %v1273
    %v2657 = vunpack.c.h.b16 %v1273
    %v2658 = vunpack.c.l.b16 %v1274
    %v2659 = vunpack.c.h.b16 %v1274
    %v2660 = vunpack.c.l.b16 %v1275
    %v2661 = vunpack.c.h.b16 %v1275
    %v2662 = vunpack.c.l.b16 %v1276
    %v2663 = vunpack.c.h.b16 %v1276
    %v2664 = vunpack.c.l.b16 %v1277
    %v2665 = vunpack.c.h.b16 %v1277
    %v2666 = vunpack.c.l.b16 %v1278
    %v2667 = vunpack.c.h.b16 %v1278
    %v2668 = vunpack.c.l.b16 %v1279
    %v2669 = vunpack.c.h.b16 %v1279
    %v2670 = vunpack.c.l.b16 %v1280
    %v2671 = vunpack.c.h.b16 %v1280
    %v2672 = vunpack.c.l.b16 %v1281
    %v2673 = vunpack.c.h.b16 %v1281
    %v2674 = vunpack.c.l.b16 %v1282
    %v2675 = vunpack.c.h.b16 %v1282
    %v2676 = vunpack.c.l.b16 %v1283
    %v2677 = vunpack.c.h.b16 %v1283
    %v2678 = vunpack.c.l.b16 %v1284
    %v2679 = vunpack.c.h.b16 %v1284
    %v2680 = vunpack.c.l.b16 %v1285
    %v2681 = vunpack.c.h.b16 %v1285
    %v2682 = vunpack.c.l.b16 %v1286
    %v2683 = vunpack.c.h.b16 %v1286
    %v2684 = vunpack.c.l.b16 %v1287
    %v2685 = vunpack.c.h.b16 %v1287
    %v2686 = vunpack.c.l.b16 %v1288
    %v2687 = vunpack.c.h.b16 %v1288
    %v2688 = vunpack.c.l.b16 %v1289
    %v2689 = vunpack.c.h.b16 %v1289
    %v2690 = vunpack.c.l.b16 %v1290
    %v2691 = vunpack.c.h.b16 %v1290
    %v2692 = vunpack.c.l.b16 %v1291
    %v2693 = vunpack.c.h.b16 %v1291
    %v2694 = vunpack.c.l.b16 %v1292
    %v2695 = vunpack.c.h.b16 %v1292
    %v2696 = vunpack.c.l.b16 %v1293
    %v2697 = vunpack.c.h.b16 %v1293
    %v2698 = vunpack.c.l.b16 %v1294
    %v2699 = vunpack.c.h.b16 %v1294
    %v2700 = vunpack.c.l.b16 %v1295
    %v2701 = vunpack.c.h.b16 %v1295
    %v2702 = vunpack.c.l.b16 %v1296
    %v2703 = vunpack.c.h.b16 %v1296
    %v2704 = vunpack.c.l.b16 %v1297
    %v2705 = vunpack.c.h.b16 %v1297
    %v2706 = vunpack.c.l.b16 %v1298
    %v2707 = vunpack.c.h.b16 %v1298
    %v2708 = vunpack.c.l.b16 %v1299
    %v2709 = vunpack.c.h.b16 %v1299
    %v2710 = vunpack.c.l.b16 %v1300
    %v2711 = vunpack.c.h.b16 %v1300
    %v2712 = vunpack.c.l.b16 %v1301
    %v2713 = vunpack.c.h.b16 %v1301
    %v2714 = vunpack.c.l.b16 %v1302
    %v2715 = vunpack.c.h.b16 %v1302
    %v2716 = vunpack.c.l.b16 %v1303
    %v2717 = vunpack.c.h.b16 %v1303
    %v2718 = vunpack.c.l.b16 %v1304
    %v2719 = vunpack.c.h.b16 %v1304
    %v2720 = vunpack.c.l.b16 %v1305
    %v2721 = vunpack.c.h.b16 %v1305
    %v2722 = vunpack.c.l.b16 %v1306
    %v2723 = vunpack.c.h.b16 %v1306
    %v2724 = vunpack.c.l.b16 %v1307
    %v2725 = vunpack.c.h.b16 %v1307
    %v2726 = vunpack.c.l.b16 %v1308
    %v2727 = vunpack.c.h.b16 %v1308
    %v2728 = vunpack.c.l.b16 %v1309
    %v2729 = vunpack.c.h.b16 %v1309
    %v2730 = vunpack.c.l.b16 %v1310
    %v2731 = vunpack.c.h.b16 %v1310
    %v2732 = vunpack.c.l.b16 %v1311
    %v2733 = vunpack.c.h.b16 %v1311
    %v2734 = vunpack.c.l.b16 %v1312
    %v2735 = vunpack.c.h.b16 %v1312
    %v2736 = vunpack.c.l.b16 %v1313
    %v2737 = vunpack.c.h.b16 %v1313
    %v2738 = vunpack.c.l.b16 %v1314
    %v2739 = vunpack.c.h.b16 %v1314
    %v2740 = vunpack.c.l.b16 %v1315
    %v2741 = vunpack.c.h.b16 %v1315
    %v2742 = vunpack.c.l.b16 %v1316
    %v2743 = vunpack.c.h.b16 %v1316
    %v2744 = vunpack.c.l.b16 %v1317
    %v2745 = vunpack.c.h.b16 %v1317
    %v2746 = vunpack.c.l.b16 %v1318
    %v2747 = vunpack.c.h.b16 %v1318
    %v2748 = vunpack.c.l.b16 %v1319
    %v2749 = vunpack.c.h.b16 %v1319
    %v2750 = vunpack.c.l.b16 %v1320
    %v2751 = vunpack.c.h.b16 %v1320
    %v2752 = vunpack.c.l.b16 %v1321
    %v2753 = vunpack.c.h.b16 %v1321
    %v2754 = vunpack.c.l.b16 %v1322
    %v2755 = vunpack.c.h.b16 %v1322
    %v2756 = vunpack.c.l.b16 %v1323
    %v2757 = vunpack.c.h.b16 %v1323
    %v2758 = vunpack.c.l.b16 %v1324
    %v2759 = vunpack.c.h.b16 %v1324
    %v2760 = vunpack.c.l.b16 %v1325
    %v2761 = vunpack.c.h.b16 %v1325
    %v2762 = vunpack.c.l.b16 %v1326
    %v2763 = vunpack.c.h.b16 %v1326
    %v2764 = vunpack.c.l.b16 %v1327
    %v2765 = vunpack.c.h.b16 %v1327
    %v2766 = vunpack.c.l.b16 %v1328
    %v2767 = vunpack.c.h.b16 %v1328
    %v2768 = vunpack.c.l.b16 %v1329
    %v2769 = vunpack.c.h.b16 %v1329
    %v2770 = vunpack.c.l.b16 %v1330
    %v2771 = vunpack.c.h.b16 %v1330
    %v2772 = vunpack.c.l.b16 %v1331
    %v2773 = vunpack.c.h.b16 %v1331
    %v2774 = vunpack.c.l.b16 %v1332
    %v2775 = vunpack.c.h.b16 %v1332
    %v2776 = vunpack.c.l.b16 %v1333
    %v2777 = vunpack.c.h.b16 %v1333
    %v2778 = vunpack.c.l.b16 %v1334
    %v2779 = vunpack.c.h.b16 %v1334
    %v2780 = vunpack.c.l.b16 %v1335
    %v2781 = vunpack.c.h.b16 %v1335
    %v2782 = vunpack.c.l.b16 %v1336
    %v2783 = vunpack.c.h.b16 %v1336
    %v2784 = vunpack.c.l.b16 %v1337
    %v2785 = vunpack.c.h.b16 %v1337
    %v2786 = vunpack.c.l.b16 %v1338
    %v2787 = vunpack.c.h.b16 %v1338
    %v2788 = vunpack.c.l.b16 %v1339
    %v2789 = vunpack.c.h.b16 %v1339
    %v2790 = vunpack.c.l.b16 %v1340
    %v2791 = vunpack.c.h.b16 %v1340
    %v2792 = vunpack.c.l.b16 %v1341
    %v2793 = vunpack.c.h.b16 %v1341
    %v2794 = vunpack.c.l.b16 %v1342
    %v2795 = vunpack.c.h.b16 %v1342
    %v2796 = vunpack.c.l.b16 %v1343
    %v2797 = vunpack.c.h.b16 %v1343
    %v2798 = vunpack.c.l.b16 %v1344
    %v2799 = vunpack.c.h.b16 %v1344
    %v2800 = vunpack.c.l.b16 %v1345
    %v2801 = vunpack.c.h.b16 %v1345
    %v2802 = vunpack.c.l.b16 %v1346
    %v2803 = vunpack.c.h.b16 %v1346
    %v2804 = vunpack.c.l.b16 %v1347
    %v2805 = vunpack.c.h.b16 %v1347
    %v2806 = vunpack.c.l.b16 %v1348
    %v2807 = vunpack.c.h.b16 %v1348
    %v2808 = vunpack.c.l.b16 %v1349
    %v2809 = vunpack.c.h.b16 %v1349
    %v2810 = vunpack.c.l.b16 %v1350
    %v2811 = vunpack.c.h.b16 %v1350
    %v2812 = vunpack.c.l.b16 %v1351
    %v2813 = vunpack.c.h.b16 %v1351
    %v2814 = vunpack.c.l.b16 %v1352
    %v2815 = vunpack.c.h.b16 %v1352
    %v2816 = vunpack.c.l.b16 %v1353
    %v2817 = vunpack.c.h.b16 %v1353
    %v2818 = vunpack.c.l.b16 %v1354
    %v2819 = vunpack.c.h.b16 %v1354
    %v2820 = vunpack.c.l.b16 %v1355
    %v2821 = vunpack.c.h.b16 %v1355
    %v2822 = vunpack.c.l.b16 %v1356
    %v2823 = vunpack.c.h.b16 %v1356
    %v2824 = vunpack.c.l.b16 %v1357
    %v2825 = vunpack.c.h.b16 %v1357
    %v2826 = vunpack.c.l.b16 %v1358
    %v2827 = vunpack.c.h.b16 %v1358
    %v2828 = vunpack.c.l.b16 %v1359
    %v2829 = vunpack.c.h.b16 %v1359
    %v2830 = vunpack.c.l.b16 %v1360
    %v2831 = vunpack.c.h.b16 %v1360
    %v2832 = vunpack.c.l.b16 %v1361
    %v2833 = vunpack.c.h.b16 %v1361
    %v2834 = vunpack.c.l.b16 %v1362
    %v2835 = vunpack.c.h.b16 %v1362
    %v2836 = vunpack.c.l.b16 %v1363
    %v2837 = vunpack.c.h.b16 %v1363
    %v2838 = vunpack.c.l.b16 %v1364
    %v2839 = vunpack.c.h.b16 %v1364
    %v2840 = vunpack.c.l.b16 %v1365
    %v2841 = vunpack.c.h.b16 %v1365
    %v2842 = vunpack.c.l.b16 %v1366
    %v2843 = vunpack.c.h.b16 %v1366
    %v2844 = vunpack.c.l.b16 %v1367
    %v2845 = vunpack.c.h.b16 %v1367
    %v2846 = vunpack.c.l.b16 %v1368
    %v2847 = vunpack.c.h.b16 %v1368
    %v2848 = vunpack.c.l.b16 %v1369
    %v2849 = vunpack.c.h.b16 %v1369
    %v2850 = vunpack.c.l.b16 %v1370
    %v2851 = vunpack.c.h.b16 %v1370
    %v2852 = vunpack.c.l.b16 %v1371
    %v2853 = vunpack.c.h.b16 %v1371
    %v2854 = vunpack.c.l.b16 %v1372
    %v2855 = vunpack.c.h.b16 %v1372
    %v2856 = vunpack.c.l.b16 %v1373
    %v2857 = vunpack.c.h.b16 %v1373
    %v2858 = vunpack.c.l.b16 %v1374
    %v2859 = vunpack.c.h.b16 %v1374
    %v2860 = vunpack.c.l.b16 %v1375
    %v2861 = vunpack.c.h.b16 %v1375
    %v2862 = vunpack.c.l.b16 %v1376
    %v2863 = vunpack.c.h.b16 %v1376
    %v2864 = vunpack.c.l.b16 %v1377
    %v2865 = vunpack.c.h.b16 %v1377
    %v2866 = vunpack.c.l.b16 %v1378
    %v2867 = vunpack.c.h.b16 %v1378
    %v2868 = vunpack.c.l.b16 %v1379
    %v2869 = vunpack.c.h.b16 %v1379
    %v2870 = vunpack.c.l.b16 %v1380
    %v2871 = vunpack.c.h.b16 %v1380
    %v2872 = vunpack.c.l.b16 %v1381
    %v2873 = vunpack.c.h.b16 %v1381
    %v2874 = vunpack.c.l.b16 %v1382
    %v2875 = vunpack.c.h.b16 %v1382
    %v2876 = vunpack.c.l.b16 %v1383
    %v2877 = vunpack.c.h.b16 %v1383
    %v2878 = vunpack.c.l.b16 %v1384
    %v2879 = vunpack.c.h.b16 %v1384
    %v2880 = vunpack.c.l.b16 %v1385
    %v2881 = vunpack.c.h.b16 %v1385
    %v2882 = vunpack.c.l.b16 %v1386
    %v2883 = vunpack.c.h.b16 %v1386
    %v2884 = vunpack.c.l.b16 %v1387
    %v2885 = vunpack.c.h.b16 %v1387
    %v2886 = vunpack.c.l.b16 %v1388
    %v2887 = vunpack.c.h.b16 %v1388
    %v2888 = vunpack.c.l.b16 %v1389
    %v2889 = vunpack.c.h.b16 %v1389
    %v2890 = vunpack.c.l.b16 %v1390
    %v2891 = vunpack.c.h.b16 %v1390
    %v2892 = vunpack.c.l.b16 %v1391
    %v2893 = vunpack.c.h.b16 %v1391
    %v2894 = vunpack.c.l.b16 %v1392
    %v2895 = vunpack.c.h.b16 %v1392
    %v2896 = vunpack.c.l.b16 %v1393
    %v2897 = vunpack.c.h.b16 %v1393
    %v2898 = vunpack.c.l.b16 %v1394
    %v2899 = vunpack.c.h.b16 %v1394
    %v2900 = vunpack.c.l.b16 %v1395
    %v2901 = vunpack.c.h.b16 %v1395
    %v2902 = vunpack.c.l.b16 %v1396
    %v2903 = vunpack.c.h.b16 %v1396
    %v2904 = vunpack.c.l.b16 %v1397
    %v2905 = vunpack.c.h.b16 %v1397
    %v2906 = vunpack.c.l.b16 %v1398
    %v2907 = vunpack.c.h.b16 %v1398
    %v2908 = vunpack.c.l.b16 %v1399
    %v2909 = vunpack.c.h.b16 %v1399
    %v2910 = vunpack.c.l.b16 %v1400
    %v2911 = vunpack.c.h.b16 %v1400
    %v2912 = vunpack.c.l.b16 %v1401
    %v2913 = vunpack.c.h.b16 %v1401
    %v2914 = vunpack.c.l.b16 %v1402
    %v2915 = vunpack.c.h.b16 %v1402
    %v2916 = vunpack.c.l.b16 %v1403
    %v2917 = vunpack.c.h.b16 %v1403
    %v2918 = vunpack.c.l.b16 %v1404
    %v2919 = vunpack.c.h.b16 %v1404
    %v2920 = vunpack.c.l.b16 %v1405
    %v2921 = vunpack.c.h.b16 %v1405
    %v2922 = vunpack.c.l.b16 %v1406
    %v2923 = vunpack.c.h.b16 %v1406
    %v2924 = vunpack.c.l.b16 %v1407
    %v2925 = vunpack.c.h.b16 %v1407
    %v2926 = vunpack.c.l.b16 %v1408
    %v2927 = vunpack.c.h.b16 %v1408
    %v2928 = vunpack.c.l.b16 %v1409
    %v2929 = vunpack.c.h.b16 %v1409
    %v2930 = vunpack.c.l.b16 %v1410
    %v2931 = vunpack.c.h.b16 %v1410
    %v2932 = vunpack.c.l.b16 %v1411
    %v2933 = vunpack.c.h.b16 %v1411
    %v2934 = vunpack.c.l.b16 %v1412
    %v2935 = vunpack.c.h.b16 %v1412
    %v2936 = vunpack.c.l.b16 %v1413
    %v2937 = vunpack.c.h.b16 %v1413
    %v2938 = vunpack.c.l.b16 %v1414
    %v2939 = vunpack.c.h.b16 %v1414
    %v2940 = vunpack.c.l.b16 %v1415
    %v2941 = vunpack.c.h.b16 %v1415
    %v2942 = vunpack.c.l.b16 %v1416
    %v2943 = vunpack.c.h.b16 %v1416
    %v2944 = vunpack.c.l.b16 %v1417
    %v2945 = vunpack.c.h.b16 %v1417
    %v2946 = vunpack.c.l.b16 %v1418
    %v2947 = vunpack.c.h.b16 %v1418
    %v2948 = vunpack.c.l.b16 %v1419
    %v2949 = vunpack.c.h.b16 %v1419
    %v2950 = vunpack.c.l.b16 %v1420
    %v2951 = vunpack.c.h.b16 %v1420
    %v2952 = vunpack.c.l.b16 %v1421
    %v2953 = vunpack.c.h.b16 %v1421
    %v2954 = vunpack.c.l.b16 %v1422
    %v2955 = vunpack.c.h.b16 %v1422
    %v2956 = vunpack.c.l.b16 %v1423
    %v2957 = vunpack.c.h.b16 %v1423
    %v2958 = vunpack.c.l.b16 %v1424
    %v2959 = vunpack.c.h.b16 %v1424
    %v2960 = vunpack.c.l.b16 %v1425
    %v2961 = vunpack.c.h.b16 %v1425
    %v2962 = vunpack.c.l.b16 %v1426
    %v2963 = vunpack.c.h.b16 %v1426
    %v2964 = vunpack.c.l.b16 %v1427
    %v2965 = vunpack.c.h.b16 %v1427
    %v2966 = vunpack.c.l.b16 %v1428
    %v2967 = vunpack.c.h.b16 %v1428
    %v2968 = vunpack.c.l.b16 %v1429
    %v2969 = vunpack.c.h.b16 %v1429
    %v2970 = vunpack.c.l.b16 %v1430
    %v2971 = vunpack.c.h.b16 %v1430
    %v2972 = vunpack.c.l.b16 %v1431
    %v2973 = vunpack.c.h.b16 %v1431
    %v2974 = vunpack.c.l.b16 %v1432
    %v2975 = vunpack.c.h.b16 %v1432
    %v2976 = vunpack.c.l.b16 %v1433
    %v2977 = vunpack.c.h.b16 %v1433
    %v2978 = vunpack.c.l.b16 %v1434
    %v2979 = vunpack.c.h.b16 %v1434
    %v2980 = vunpack.c.l.b16 %v1435
    %v2981 = vunpack.c.h.b16 %v1435
    %v2982 = vunpack.c.l.b16 %v1436
    %v2983 = vunpack.c.h.b16 %v1436
    %v2984 = vunpack.c.l.b16 %v1437
    %v2985 = vunpack.c.h.b16 %v1437
    %v2986 = vunpack.c.l.b16 %v1438
    %v2987 = vunpack.c.h.b16 %v1438
    %v2988 = vunpack.c.l.b16 %v1439
    %v2989 = vunpack.c.h.b16 %v1439
    %v2990 = vunpack.c.l.b16 %v1440
    %v2991 = vunpack.c.h.b16 %v1440
    %v2992 = vunpack.c.l.b16 %v1441
    %v2993 = vunpack.c.h.b16 %v1441
    %v2994 = vunpack.c.l.b16 %v1442
    %v2995 = vunpack.c.h.b16 %v1442
    %v2996 = vunpack.c.l.b16 %v1443
    %v2997 = vunpack.c.h.b16 %v1443
    %v2998 = vunpack.c.l.b16 %v1444
    %v2999 = vunpack.c.h.b16 %v1444
    %v3000 = vunpack.c.l.b16 %v1445
    %v3001 = vunpack.c.h.b16 %v1445
    %v3002 = vunpack.c.l.b16 %v1446
    %v3003 = vunpack.c.h.b16 %v1446
    %v3004 = vunpack.c.l.b16 %v1447
    %v3005 = vunpack.c.h.b16 %v1447
    %v3006 = vunpack.c.l.b16 %v1448
    %v3007 = vunpack.c.h.b16 %v1448
    %v3008 = vunpack.c.l.b16 %v1449
    %v3009 = vunpack.c.h.b16 %v1449
    %v3010 = vunpack.c.l.b16 %v1450
    %v3011 = vunpack.c.h.b16 %v1450
    %v3012 = vunpack.c.l.b16 %v1451
    %v3013 = vunpack.c.h.b16 %v1451
    %v3014 = vunpack.c.l.b16 %v1452
    %v3015 = vunpack.c.h.b16 %v1452
    %v3016 = vunpack.c.l.b16 %v1453
    %v3017 = vunpack.c.h.b16 %v1453
    %v3018 = vunpack.c.l.b16 %v1454
    %v3019 = vunpack.c.h.b16 %v1454
    %v3020 = vunpack.c.l.b16 %v1455
    %v3021 = vunpack.c.h.b16 %v1455
    %v3022 = vunpack.c.l.b16 %v1456
    %v3023 = vunpack.c.h.b16 %v1456
    %v3024 = vunpack.c.l.b16 %v1457
    %v3025 = vunpack.c.h.b16 %v1457
    %v3026 = vunpack.c.l.b16 %v1458
    %v3027 = vunpack.c.h.b16 %v1458
    %v3028 = vunpack.c.l.b16 %v1459
    %v3029 = vunpack.c.h.b16 %v1459
    %v3030 = vunpack.c.l.b16 %v1460
    %v3031 = vunpack.c.h.b16 %v1460
    %v3032 = vunpack.c.l.b16 %v1461
    %v3033 = vunpack.c.h.b16 %v1461
    %v3034 = vunpack.c.l.b16 %v1462
    %v3035 = vunpack.c.h.b16 %v1462
    %v3036 = vunpack.c.l.b16 %v1463
    %v3037 = vunpack.c.h.b16 %v1463
    %v3038 = vunpack.c.l.b16 %v1464
    %v3039 = vunpack.c.h.b16 %v1464
    %v3040 = vunpack.c.l.b16 %v1465
    %v3041 = vunpack.c.h.b16 %v1465
    %v3042 = vunpack.c.l.b16 %v1466
    %v3043 = vunpack.c.h.b16 %v1466
    %v3044 = vunpack.c.l.b16 %v1467
    %v3045 = vunpack.c.h.b16 %v1467
    %v3046 = vunpack.c.l.b16 %v1468
    %v3047 = vunpack.c.h.b16 %v1468
    %v3048 = vunpack.c.l.b16 %v1469
    %v3049 = vunpack.c.h.b16 %v1469
    %v3050 = vunpack.c.l.b16 %v1470
    %v3051 = vunpack.c.h.b16 %v1470
    %v3052 = vunpack.c.l.b16 %v1471
    %v3053 = vunpack.c.h.b16 %v1471
    %v3054 = vunpack.c.l.b16 %v1472
    %v3055 = vunpack.c.h.b16 %v1472
    %v3056 = vunpack.c.l.b16 %v1473
    %v3057 = vunpack.c.h.b16 %v1473
    %v3058 = vunpack.c.l.b16 %v1474
    %v3059 = vunpack.c.h.b16 %v1474
    %v3060 = vunpack.c.l.b16 %v1475
    %v3061 = vunpack.c.h.b16 %v1475
    %v3062 = vunpack.c.l.b16 %v1476
    %v3063 = vunpack.c.h.b16 %v1476
    %v3064 = vunpack.c.l.b16 %v1477
    %v3065 = vunpack.c.h.b16 %v1477
    %v3066 = vunpack.c.l.b16 %v1478
    %v3067 = vunpack.c.h.b16 %v1478
    %v3068 = vunpack.c.l.b16 %v1479
    %v3069 = vunpack.c.h.b16 %v1479
    %v3070 = vunpack.c.l.b16 %v1480
    %v3071 = vunpack.c.h.b16 %v1480
    %v3072 = vunpack.c.l.b16 %v1481
    %v3073 = vunpack.c.h.b16 %v1481
    %v3074 = vunpack.c.l.b16 %v1482
    %v3075 = vunpack.c.h.b16 %v1482
    %v3076 = vunpack.c.l.b16 %v1483
    %v3077 = vunpack.c.h.b16 %v1483
    %v3078 = vunpack.c.l.b16 %v1484
    %v3079 = vunpack.c.h.b16 %v1484
    %v3080 = vunpack.c.l.b16 %v1485
    %v3081 = vunpack.c.h.b16 %v1485
    %v3082 = vunpack.c.l.b16 %v1486
    %v3083 = vunpack.c.h.b16 %v1486
    %v3084 = vunpack.c.l.b16 %v1487
    %v3085 = vunpack.c.h.b16 %v1487
    %v3086 = vunpack.c.l.b16 %v1488
    %v3087 = vunpack.c.h.b16 %v1488
    %v3088 = vunpack.c.l.b16 %v1489
    %v3089 = vunpack.c.h.b16 %v1489
    %v3090 = vunpack.c.l.b16 %v1490
    %v3091 = vunpack.c.h.b16 %v1490
    %v3092 = vunpack.c.l.b16 %v1491
    %v3093 = vunpack.c.h.b16 %v1491
    %v3094 = vunpack.c.l.b16 %v1492
    %v3095 = vunpack.c.h.b16 %v1492
    %v3096 = vunpack.c.l.b16 %v1493
    %v3097 = vunpack.c.h.b16 %v1493
    %v3098 = vunpack.c.l.b16 %v1494
    %v3099 = vunpack.c.h.b16 %v1494
    %v3100 = vunpack.c.l.b16 %v1495
    %v3101 = vunpack.c.h.b16 %v1495
    %v3102 = vunpack.c.l.b16 %v1496
    %v3103 = vunpack.c.h.b16 %v1496
    %v3104 = vunpack.c.l.b16 %v1497
    %v3105 = vunpack.c.h.b16 %v1497
    %v3106 = vunpack.c.l.b16 %v1498
    %v3107 = vunpack.c.h.b16 %v1498
    %v3108 = vunpack.c.l.b16 %v1499
    %v3109 = vunpack.c.h.b16 %v1499
    %v3110 = vunpack.c.l.b16 %v1500
    %v3111 = vunpack.c.h.b16 %v1500
    %v3112 = vunpack.c.l.b16 %v1501
    %v3113 = vunpack.c.h.b16 %v1501
    %v3114 = vunpack.c.l.b16 %v1502
    %v3115 = vunpack.c.h.b16 %v1502
    %v3116 = vunpack.c.l.b16 %v1503
    %v3117 = vunpack.c.h.b16 %v1503
    %v3118 = vunpack.c.l.b16 %v1504
    %v3119 = vunpack.c.h.b16 %v1504
    %v3120 = vunpack.c.l.b16 %v1505
    %v3121 = vunpack.c.h.b16 %v1505
    %v3122 = vunpack.c.l.b16 %v1506
    %v3123 = vunpack.c.h.b16 %v1506
    %v3124 = vunpack.c.l.b16 %v1507
    %v3125 = vunpack.c.h.b16 %v1507
    %v3126 = vunpack.c.l.b16 %v1508
    %v3127 = vunpack.c.h.b16 %v1508
    %v3128 = vunpack.c.l.b16 %v1509
    %v3129 = vunpack.c.h.b16 %v1509
    %v3130 = vunpack.c.l.b16 %v1510
    %v3131 = vunpack.c.h.b16 %v1510
    %v3132 = vunpack.c.l.b16 %v1511
    %v3133 = vunpack.c.h.b16 %v1511
    %v3134 = vunpack.c.l.b16 %v1512
    %v3135 = vunpack.c.h.b16 %v1512
    %v3136 = vunpack.c.l.b16 %v1513
    %v3137 = vunpack.c.h.b16 %v1513
    %v3138 = vunpack.c.l.b16 %v1514
    %v3139 = vunpack.c.h.b16 %v1514
    %v3140 = vunpack.c.l.b16 %v1515
    %v3141 = vunpack.c.h.b16 %v1515
    %v3142 = vunpack.c.l.b16 %v1516
    %v3143 = vunpack.c.h.b16 %v1516
    %v3144 = vunpack.c.l.b16 %v1517
    %v3145 = vunpack.c.h.b16 %v1517
    %v3146 = vunpack.c.l.b16 %v1518
    %v3147 = vunpack.c.h.b16 %v1518
    %v3148 = vunpack.c.l.b16 %v1519
    %v3149 = vunpack.c.h.b16 %v1519
    %v3150 = vunpack.c.l.b16 %v1520
    %v3151 = vunpack.c.h.b16 %v1520
    %v3152 = vunpack.c.l.b16 %v1521
    %v3153 = vunpack.c.h.b16 %v1521
    %v3154 = vunpack.c.l.b16 %v1522
    %v3155 = vunpack.c.h.b16 %v1522
    %v3156 = vunpack.c.l.b16 %v1523
    %v3157 = vunpack.c.h.b16 %v1523
    %v3158 = vunpack.c.l.b16 %v1524
    %v3159 = vunpack.c.h.b16 %v1524
    %v3160 = vunpack.c.l.b16 %v1525
    %v3161 = vunpack.c.h.b16 %v1525
    %v3162 = vunpack.c.l.b16 %v1526
    %v3163 = vunpack.c.h.b16 %v1526
    %v3164 = vunpack.c.l.b16 %v1527
    %v3165 = vunpack.c.h.b16 %v1527
    %v3166 = vunpack.c.l.b16 %v1528
    %v3167 = vunpack.c.h.b16 %v1528
    %v3168 = vunpack.c.l.b16 %v1529
    %v3169 = vunpack.c.h.b16 %v1529
    %v3170 = vunpack.c.l.b16 %v1530
    %v3171 = vunpack.c.h.b16 %v1530
    %v3172 = vunpack.c.l.b16 %v1531
    %v3173 = vunpack.c.h.b16 %v1531
    %v3174 = vunpack.c.l.b16 %v1532
    %v3175 = vunpack.c.h.b16 %v1532
    %v3176 = vunpack.c.l.b16 %v1533
    %v3177 = vunpack.c.h.b16 %v1533
    %v3178 = vunpack.c.l.b16 %v1534
    %v3179 = vunpack.c.h.b16 %v1534
    %v3180 = vunpack.c.l.b16 %v1535
    %v3181 = vunpack.c.h.b16 %v1535
    %v3182 = vunpack.c.l.b16 %v1536
    %v3183 = vunpack.c.h.b16 %v1536
    %v3184 = vunpack.c.l.b16 %v1537
    %v3185 = vunpack.c.h.b16 %v1537
    %v3186 = vunpack.c.l.b16 %v1538
    %v3187 = vunpack.c.h.b16 %v1538
    %v3188 = vunpack.c.l.b16 %v1539
    %v3189 = vunpack.c.h.b16 %v1539
    %v3190 = vunpack.c.l.b16 %v1540
    %v3191 = vunpack.c.h.b16 %v1540
    %v3192 = vunpack.c.l.b16 %v1541
    %v3193 = vunpack.c.h.b16 %v1541
    %v3194 = vunpack.c.l.b16 %v1542
    %v3195 = vunpack.c.h.b16 %v1542
    %v3196 = vunpack.c.l.b16 %v1543
    %v3197 = vunpack.c.h.b16 %v1543
    %v3198 = vunpack.c.l.b16 %v1544
    %v3199 = vunpack.c.h.b16 %v1544
    %v3200 = vunpack.c.l.b16 %v1545
    %v3201 = vunpack.c.h.b16 %v1545
    %v3202 = vunpack.c.l.b16 %v1546
    %v3203 = vunpack.c.h.b16 %v1546
    %v3204 = vunpack.c.l.b16 %v1547
    %v3205 = vunpack.c.h.b16 %v1547
    %v3206 = vunpack.c.l.b16 %v1548
    %v3207 = vunpack.c.h.b16 %v1548
    %v3208 = vunpack.c.l.b16 %v1549
    %v3209 = vunpack.c.h.b16 %v1549
    %v3210 = vunpack.c.l.b16 %v1550
    %v3211 = vunpack.c.h.b16 %v1550
    %v3212 = vunpack.c.l.b16 %v1551
    %v3213 = vunpack.c.h.b16 %v1551
    %v3214 = vunpack.c.l.b16 %v1552
    %v3215 = vunpack.c.h.b16 %v1552
    %v3216 = vunpack.c.l.b16 %v1553
    %v3217 = vunpack.c.h.b16 %v1553
    %v3218 = vunpack.c.l.b16 %v1554
    %v3219 = vunpack.c.h.b16 %v1554
    %v3220 = vunpack.c.l.b16 %v1555
    %v3221 = vunpack.c.h.b16 %v1555
    %v3222 = vunpack.c.l.b16 %v1556
    %v3223 = vunpack.c.h.b16 %v1556
    %v3224 = vunpack.c.l.b16 %v1557
    %v3225 = vunpack.c.h.b16 %v1557
    %v3226 = vunpack.c.l.b16 %v1558
    %v3227 = vunpack.c.h.b16 %v1558
    %v3228 = vunpack.c.l.b16 %v1559
    %v3229 = vunpack.c.h.b16 %v1559
    %v3230 = vunpack.c.l.b16 %v1560
    %v3231 = vunpack.c.h.b16 %v1560
    %v3232 = vunpack.c.l.b16 %v1561
    %v3233 = vunpack.c.h.b16 %v1561
    %v3234 = vunpack.c.l.b16 %v1562
    %v3235 = vunpack.c.h.b16 %v1562
    %v3236 = vunpack.c.l.b16 %v1563
    %v3237 = vunpack.c.h.b16 %v1563
    %v3238 = vunpack.c.l.b16 %v1564
    %v3239 = vunpack.c.h.b16 %v1564
    %v3240 = vunpack.c.l.b16 %v1565
    %v3241 = vunpack.c.h.b16 %v1565
    %v3242 = vunpack.c.l.b16 %v1566
    %v3243 = vunpack.c.h.b16 %v1566
    %v3244 = vunpack.c.l.b16 %v1567
    %v3245 = vunpack.c.h.b16 %v1567
    %v3246 = vunpack.c.l.b16 %v1568
    %v3247 = vunpack.c.h.b16 %v1568
    %v3248 = vunpack.c.l.b16 %v1569
    %v3249 = vunpack.c.h.b16 %v1569
    %v3250 = vunpack.c.l.b16 %v1570
    %v3251 = vunpack.c.h.b16 %v1570
    %v3252 = vunpack.c.l.b16 %v1571
    %v3253 = vunpack.c.h.b16 %v1571
    %v3254 = vunpack.c.l.b16 %v1572
    %v3255 = vunpack.c.h.b16 %v1572
    %v3256 = vunpack.c.l.b16 %v1573
    %v3257 = vunpack.c.h.b16 %v1573
    %v3258 = vunpack.c.l.b16 %v1574
    %v3259 = vunpack.c.h.b16 %v1574
    %v3260 = vunpack.c.l.b16 %v1575
    %v3261 = vunpack.c.h.b16 %v1575
    %v3262 = vunpack.c.l.b16 %v1576
    %v3263 = vunpack.c.h.b16 %v1576
    %v3264 = vunpack.c.l.b16 %v1577
    %v3265 = vunpack.c.h.b16 %v1577
    %v3266 = vunpack.c.l.b16 %v1578
    %v3267 = vunpack.c.h.b16 %v1578
    %v3268 = vunpack.c.l.b16 %v1579
    %v3269 = vunpack.c.h.b16 %v1579
    %v3270 = vunpack.c.l.b16 %v1580
    %v3271 = vunpack.c.h.b16 %v1580
    %v3272 = vunpack.c.l.b16 %v1581
    %v3273 = vunpack.c.h.b16 %v1581
    %v3274 = vunpack.c.l.b16 %v1582
    %v3275 = vunpack.c.h.b16 %v1582
    %v3276 = vunpack.c.l.b16 %v1583
    %v3277 = vunpack.c.h.b16 %v1583
    %v3278 = vunpack.c.l.b16 %v1584
    %v3279 = vunpack.c.h.b16 %v1584
    %v3280 = vunpack.c.l.b16 %v1585
    %v3281 = vunpack.c.h.b16 %v1585
    %v3282 = vunpack.c.l.b16 %v1586
    %v3283 = vunpack.c.h.b16 %v1586
    %v3284 = vunpack.c.l.b16 %v1587
    %v3285 = vunpack.c.h.b16 %v1587
    %v3286 = vunpack.c.l.b16 %v1588
    %v3287 = vunpack.c.h.b16 %v1588
    %v3288 = vunpack.c.l.b16 %v1589
    %v3289 = vunpack.c.h.b16 %v1589
    %v3290 = vunpack.c.l.b16 %v1590
    %v3291 = vunpack.c.h.b16 %v1590
    %v3292 = vunpack.c.l.b16 %v1591
    %v3293 = vunpack.c.h.b16 %v1591
    %v3294 = vunpack.c.l.b16 %v1592
    %v3295 = vunpack.c.h.b16 %v1592
    %v3296 = vunpack.c.l.b16 %v1593
    %v3297 = vunpack.c.h.b16 %v1593
    %v3298 = vunpack.c.l.b16 %v1594
    %v3299 = vunpack.c.h.b16 %v1594
    %v3300 = vunpack.c.l.b16 %v1595
    %v3301 = vunpack.c.h.b16 %v1595
    %v3302 = vunpack.c.l.b16 %v1596
    %v3303 = vunpack.c.h.b16 %v1596
    %v3304 = vunpack.c.l.b16 %v1597
    %v3305 = vunpack.c.h.b16 %v1597
    %v3306 = vunpack.c.l.b16 %v1598
    %v3307 = vunpack.c.h.b16 %v1598
    %v3308 = vunpack.c.l.b16 %v1599
    %v3309 = vunpack.c.h.b16 %v1599
    %v3310 = vunpack.c.l.b16 %v1600
    %v3311 = vunpack.c.h.b16 %v1600
    %v3312 = vunpack.c.l.b16 %v1601
    %v3313 = vunpack.c.h.b16 %v1601
    %v3314 = vunpack.c.l.b16 %v1602
    %v3315 = vunpack.c.h.b16 %v1602
    %v3316 = vunpack.c.l.b16 %v1603
    %v3317 = vunpack.c.h.b16 %v1603
    %v3318 = vunpack.c.l.b16 %v1604
    %v3319 = vunpack.c.h.b16 %v1604
    %v3320 = vunpack.c.l.b16 %v1605
    %v3321 = vunpack.c.h.b16 %v1605
    %v3322 = vunpack.c.l.b16 %v1606
    %v3323 = vunpack.c.h.b16 %v1606
    %v3324 = vunpack.c.l.b16 %v1607
    %v3325 = vunpack.c.h.b16 %v1607
    %v3326 = vunpack.c.l.b16 %v1608
    %v3327 = vunpack.c.h.b16 %v1608
    %v3328 = vunpack.c.l.b16 %v1609
    %v3329 = vunpack.c.h.b16 %v1609
    %v3330 = vunpack.c.l.b16 %v1610
    %v3331 = vunpack.c.h.b16 %v1610
    %v3332 = vunpack.c.l.b16 %v1611
    %v3333 = vunpack.c.h.b16 %v1611
    %v3334 = vunpack.c.l.b16 %v1612
    %v3335 = vunpack.c.h.b16 %v1612
    %v3336 = vunpack.c.l.b16 %v1613
    %v3337 = vunpack.c.h.b16 %v1613
    %v3338 = vunpack.c.l.b16 %v1614
    %v3339 = vunpack.c.h.b16 %v1614
    %v3340 = vunpack.c.l.b16 %v1615
    %v3341 = vunpack.c.h.b16 %v1615
    %v3342 = vunpack.c.l.b16 %v1616
    %v3343 = vunpack.c.h.b16 %v1616
    %v3344 = vunpack.c.l.b16 %v1617
    %v3345 = vunpack.c.h.b16 %v1617
    %v3346 = vunpack.c.l.b16 %v1618
    %v3347 = vunpack.c.h.b16 %v1618
    %v3348 = vunpack.c.l.b16 %v1619
    %v3349 = vunpack.c.h.b16 %v1619
    %v3350 = vunpack.c.l.b16 %v1620
    %v3351 = vunpack.c.h.b16 %v1620
    %v3352 = vunpack.c.l.b16 %v1621
    %v3353 = vunpack.c.h.b16 %v1621
    %v3354 = vunpack.c.l.b16 %v1622
    %v3355 = vunpack.c.h.b16 %v1622
    %v3356 = vunpack.c.l.b16 %v1623
    %v3357 = vunpack.c.h.b16 %v1623
    %v3358 = vunpack.c.l.b16 %v1624
    %v3359 = vunpack.c.h.b16 %v1624
    %v3360 = vunpack.c.l.b16 %v1625
    %v3361 = vunpack.c.h.b16 %v1625
    %v3362 = vunpack.c.l.b16 %v1626
    %v3363 = vunpack.c.h.b16 %v1626
    %v3364 = vunpack.c.l.b16 %v1627
    %v3365 = vunpack.c.h.b16 %v1627
    %v3366 = vunpack.c.l.b16 %v1628
    %v3367 = vunpack.c.h.b16 %v1628
    %v3368 = vunpack.c.l.b16 %v1629
    %v3369 = vunpack.c.h.b16 %v1629
    %v3370 = vunpack.c.l.b16 %v1630
    %v3371 = vunpack.c.h.b16 %v1630
    %v3372 = vunpack.c.l.b16 %v1631
    %v3373 = vunpack.c.h.b16 %v1631
    %v3374 = vunpack.c.l.b16 %v1632
    %v3375 = vunpack.c.h.b16 %v1632
    %v3376 = vunpack.c.l.b16 %v1633
    %v3377 = vunpack.c.h.b16 %v1633
    %v3378 = vunpack.c.l.b16 %v1634
    %v3379 = vunpack.c.h.b16 %v1634
    %v3380 = vunpack.c.l.b16 %v1635
    %v3381 = vunpack.c.h.b16 %v1635
    %v3382 = vunpack.c.l.b16 %v1636
    %v3383 = vunpack.c.h.b16 %v1636
    %v3384 = vunpack.c.l.b16 %v1637
    %v3385 = vunpack.c.h.b16 %v1637
    %v3386 = vunpack.c.l.b16 %v1638
    %v3387 = vunpack.c.h.b16 %v1638
    %v3388 = vunpack.c.l.b16 %v1639
    %v3389 = vunpack.c.h.b16 %v1639
    %v3390 = vunpack.c.l.b16 %v1640
    %v3391 = vunpack.c.h.b16 %v1640
    %v3392 = vunpack.c.l.b16 %v1641
    %v3393 = vunpack.c.h.b16 %v1641
    %v3394 = vunpack.c.l.b16 %v1642
    %v3395 = vunpack.c.h.b16 %v1642
    %v3396 = vunpack.c.l.b16 %v1643
    %v3397 = vunpack.c.h.b16 %v1643
    %v3398 = vunpack.c.l.b16 %v1644
    %v3399 = vunpack.c.h.b16 %v1644
    %v3400 = vunpack.c.l.b16 %v1645
    %v3401 = vunpack.c.h.b16 %v1645
    %v3402 = vunpack.c.l.b16 %v1646
    %v3403 = vunpack.c.h.b16 %v1646
    %v3404 = vunpack.c.l.b16 %v1647
    %v3405 = vunpack.c.h.b16 %v1647
    %v3406 = vunpack.c.l.b16 %v1648
    %v3407 = vunpack.c.h.b16 %v1648
    %v3408 = vunpack.c.l.b16 %v1649
    %v3409 = vunpack.c.h.b16 %v1649
    %v3410 = vunpack.c.l.b16 %v1650
    %v3411 = vunpack.c.h.b16 %v1650
    %v3412 = vunpack.c.l.b16 %v1651
    %v3413 = vunpack.c.h.b16 %v1651
    %v3414 = vunpack.c.l.b16 %v1652
    %v3415 = vunpack.c.h.b16 %v1652
    %v3416 = vunpack.c.l.b16 %v1653
    %v3417 = vunpack.c.h.b16 %v1653
    %v3418 = vunpack.c.l.b16 %v1654
    %v3419 = vunpack.c.h.b16 %v1654
    %v3420 = vunpack.c.l.b16 %v1655
    %v3421 = vunpack.c.h.b16 %v1655
    %v3422 = vunpack.c.l.b16 %v1656
    %v3423 = vunpack.c.h.b16 %v1656
    %v3424 = vunpack.c.l.b16 %v1657
    %v3425 = vunpack.c.h.b16 %v1657
    %v3426 = vunpack.c.l.b16 %v1658
    %v3427 = vunpack.c.h.b16 %v1658
    %v3428 = vunpack.c.l.b16 %v1659
    %v3429 = vunpack.c.h.b16 %v1659
    %v3430 = vunpack.c.l.b16 %v1660
    %v3431 = vunpack.c.h.b16 %v1660
    %v3432 = vunpack.c.l.b16 %v1661
    %v3433 = vunpack.c.h.b16 %v1661
    %v3434 = vunpack.c.l.b16 %v1662
    %v3435 = vunpack.c.h.b16 %v1662
    %v3436 = vunpack.c.l.b16 %v1663
    %v3437 = vunpack.c.h.b16 %v1663
    %v3438 = vunpack.c.l.b16 %v1664
    %v3439 = vunpack.c.h.b16 %v1664
    %v3440 = vunpack.c.l.b16 %v1665
    %v3441 = vunpack.c.h.b16 %v1665
    %v3442 = vunpack.c.l.b16 %v1666
    %v3443 = vunpack.c.h.b16 %v1666
    %v3444 = vunpack.c.l.b16 %v1667
    %v3445 = vunpack.c.h.b16 %v1667
    %v3446 = vunpack.c.l.b16 %v1668
    %v3447 = vunpack.c.h.b16 %v1668
    %v3448 = vunpack.c.l.b16 %v1669
    %v3449 = vunpack.c.h.b16 %v1669
    %v3450 = vunpack.c.l.b16 %v1670
    %v3451 = vunpack.c.h.b16 %v1670
    %v3452 = vunpack.c.l.b16 %v1671
    %v3453 = vunpack.c.h.b16 %v1671
    %v3454 = vunpack.c.l.b16 %v1672
    %v3455 = vunpack.c.h.b16 %v1672
    %v3456 = vunpack.c.l.b16 %v1673
    %v3457 = vunpack.c.h.b16 %v1673
    %v3458 = vunpack.c.l.b16 %v1674
    %v3459 = vunpack.c.h.b16 %v1674
    %v3460 = vunpack.c.l.b16 %v1675
    %v3461 = vunpack.c.h.b16 %v1675
    %v3462 = vunpack.c.l.b16 %v1676
    %v3463 = vunpack.c.h.b16 %v1676
    %v3464 = vunpack.c.l.b16 %v1677
    %v3465 = vunpack.c.h.b16 %v1677
    %v3466 = vunpack.c.l.b16 %v1678
    %v3467 = vunpack.c.h.b16 %v1678
    %v3468 = vunpack.c.l.b16 %v1679
    %v3469 = vunpack.c.h.b16 %v1679
    %v3470 = vunpack.c.l.b16 %v1680
    %v3471 = vunpack.c.h.b16 %v1680
    %v3472 = vunpack.c.l.b16 %v1681
    %v3473 = vunpack.c.h.b16 %v1681
    %v3474 = vunpack.c.l.b16 %v1682
    %v3475 = vunpack.c.h.b16 %v1682
    %v3476 = vunpack.c.l.b16 %v1683
    %v3477 = vunpack.c.h.b16 %v1683
    %v3478 = vunpack.c.l.b16 %v1684
    %v3479 = vunpack.c.h.b16 %v1684
    %v3480 = vunpack.c.l.b16 %v1685
    %v3481 = vunpack.c.h.b16 %v1685
    %v3482 = vunpack.c.l.b16 %v1686
    %v3483 = vunpack.c.h.b16 %v1686
    %v3484 = vunpack.c.l.b16 %v1687
    %v3485 = vunpack.c.h.b16 %v1687
    %v3486 = vunpack.c.l.b16 %v1688
    %v3487 = vunpack.c.h.b16 %v1688
    %v3488 = vunpack.c.l.b16 %v1689
    %v3489 = vunpack.c.h.b16 %v1689
    %v3490 = vunpack.c.l.b16 %v1690
    %v3491 = vunpack.c.h.b16 %v1690
    %v3492 = vunpack.c.l.b16 %v1691
    %v3493 = vunpack.c.h.b16 %v1691
    %v3494 = vunpack.c.l.b16 %v1692
    %v3495 = vunpack.c.h.b16 %v1692
    %v3496 = vunpack.c.l.b16 %v1693
    %v3497 = vunpack.c.h.b16 %v1693
    %v3498 = vunpack.c.l.b16 %v1694
    %v3499 = vunpack.c.h.b16 %v1694
    %v3500 = vunpack.c.l.b16 %v1695
    %v3501 = vunpack.c.h.b16 %v1695
    %v3502 = vunpack.c.l.b16 %v1696
    %v3503 = vunpack.c.h.b16 %v1696
    %v3504 = vunpack.c.l.b16 %v1697
    %v3505 = vunpack.c.h.b16 %v1697
    %v3506 = vunpack.c.l.b16 %v1698
    %v3507 = vunpack.c.h.b16 %v1698
    %v3508 = vunpack.c.l.b16 %v1699
    %v3509 = vunpack.c.h.b16 %v1699
    %v3510 = vunpack.c.l.b16 %v1700
    %v3511 = vunpack.c.h.b16 %v1700
    %v3512 = vunpack.c.l.b16 %v1701
    %v3513 = vunpack.c.h.b16 %v1701
    %v3514 = vunpack.c.l.b16 %v1702
    %v3515 = vunpack.c.h.b16 %v1702
    %v3516 = vunpack.c.l.b16 %v1703
    %v3517 = vunpack.c.h.b16 %v1703
    %v3518 = vunpack.c.l.b16 %v1704
    %v3519 = vunpack.c.h.b16 %v1704
    %v3520 = vunpack.c.l.b16 %v1705
    %v3521 = vunpack.c.h.b16 %v1705
    %v3522 = vunpack.c.l.b16 %v1706
    %v3523 = vunpack.c.h.b16 %v1706
    %v3524 = vunpack.c.l.b16 %v1707
    %v3525 = vunpack.c.h.b16 %v1707
    %v3526 = vunpack.c.l.b16 %v1708
    %v3527 = vunpack.c.h.b16 %v1708
    %v3528 = vunpack.c.l.b16 %v1709
    %v3529 = vunpack.c.h.b16 %v1709
    %v3530 = vunpack.c.l.b16 %v1710
    %v3531 = vunpack.c.h.b16 %v1710
    %v3532 = vunpack.c.l.b16 %v1711
    %v3533 = vunpack.c.h.b16 %v1711
    %v3534 = vunpack.c.l.b16 %v1712
    %v3535 = vunpack.c.h.b16 %v1712
    %v3536 = vunpack.c.l.b16 %v1713
    %v3537 = vunpack.c.h.b16 %v1713
    %v3538 = vunpack.c.l.b16 %v1714
    %v3539 = vunpack.c.h.b16 %v1714
    %v3540 = vunpack.c.l.b16 %v1715
    %v3541 = vunpack.c.h.b16 %v1715
    %v3542 = vunpack.c.l.b16 %v1716
    %v3543 = vunpack.c.h.b16 %v1716
    %v3544 = vunpack.c.l.b16 %v1717
    %v3545 = vunpack.c.h.b16 %v1717
    %v3546 = vunpack.c.l.b16 %v1718
    %v3547 = vunpack.c.h.b16 %v1718
    %v3548 = vunpack.c.l.b16 %v1719
    %v3549 = vunpack.c.h.b16 %v1719
    %v3550 = vunpack.c.l.b16 %v1720
    %v3551 = vunpack.c.h.b16 %v1720
    %v3552 = vunpack.c.l.b16 %v1721
    %v3553 = vunpack.c.h.b16 %v1721
    %v3554 = vunpack.c.l.b16 %v1722
    %v3555 = vunpack.c.h.b16 %v1722
    %v3556 = vunpack.c.l.b16 %v1723
    %v3557 = vunpack.c.h.b16 %v1723
    %v3558 = vunpack.c.l.b16 %v1724
    %v3559 = vunpack.c.h.b16 %v1724
    %v3560 = vunpack.c.l.b16 %v1725
    %v3561 = vunpack.c.h.b16 %v1725
    %v3562 = vunpack.c.l.b16 %v1726
    %v3563 = vunpack.c.h.b16 %v1726
    %v3564 = vunpack.c.l.b16 %v1727
    %v3565 = vunpack.c.h.b16 %v1727
    %v3566 = vunpack.c.l.b16 %v1728
    %v3567 = vunpack.c.h.b16 %v1728
    %v3568 = vunpack.c.l.b16 %v1729
    %v3569 = vunpack.c.h.b16 %v1729
    %v3570 = vunpack.c.l.b16 %v1730
    %v3571 = vunpack.c.h.b16 %v1730
    %v3572 = vunpack.c.l.b16 %v1731
    %v3573 = vunpack.c.h.b16 %v1731
    %v3574 = vunpack.c.l.b16 %v1732
    %v3575 = vunpack.c.h.b16 %v1732
    %v3576 = vunpack.c.l.b16 %v1733
    %v3577 = vunpack.c.h.b16 %v1733
    %v3578 = vunpack.c.l.b16 %v1734
    %v3579 = vunpack.c.h.b16 %v1734
    %v3580 = vunpack.c.l.b16 %v1735
    %v3581 = vunpack.c.h.b16 %v1735
    %v3582 = vunpack.c.l.b16 %v1736
    %v3583 = vunpack.c.h.b16 %v1736
    %v3584 = vunpack.c.l.b16 %v1737
    %v3585 = vunpack.c.h.b16 %v1737
    %v3586 = vunpack.c.l.b16 %v1738
    %v3587 = vunpack.c.h.b16 %v1738
    %v3588 = vunpack.c.l.b16 %v1739
    %v3589 = vunpack.c.h.b16 %v1739
    %v3590 = vunpack.c.l.b16 %v1740
    %v3591 = vunpack.c.h.b16 %v1740
    %v3592 = vunpack.c.l.b16 %v1741
    %v3593 = vunpack.c.h.b16 %v1741
    %v3594 = vunpack.c.l.b16 %v1742
    %v3595 = vunpack.c.h.b16 %v1742
    %v3596 = vunpack.c.l.b16 %v1743
    %v3597 = vunpack.c.h.b16 %v1743
    %v3598 = vunpack.c.l.b16 %v1744
    %v3599 = vunpack.c.h.b16 %v1744
    %v3600 = vunpack.c.l.b16 %v1745
    %v3601 = vunpack.c.h.b16 %v1745
    %v3602 = vunpack.c.l.b16 %v1746
    %v3603 = vunpack.c.h.b16 %v1746
    %v3604 = vunpack.c.l.b16 %v1747
    %v3605 = vunpack.c.h.b16 %v1747
    %v3606 = vunpack.c.l.b16 %v1748
    %v3607 = vunpack.c.h.b16 %v1748
    %v3608 = vunpack.c.l.b16 %v1749
    %v3609 = vunpack.c.h.b16 %v1749
    %v3610 = vunpack.c.l.b16 %v1750
    %v3611 = vunpack.c.h.b16 %v1750
    %v3612 = vunpack.c.l.b16 %v1751
    %v3613 = vunpack.c.h.b16 %v1751
    %v3614 = vunpack.c.l.b16 %v1752
    %v3615 = vunpack.c.h.b16 %v1752
    %v3616 = vunpack.c.l.b16 %v1753
    %v3617 = vunpack.c.h.b16 %v1753
    %v3618 = vunpack.c.l.b16 %v1754
    %v3619 = vunpack.c.h.b16 %v1754
    %v3620 = vunpack.c.l.b16 %v1755
    %v3621 = vunpack.c.h.b16 %v1755
    %v3622 = vunpack.c.l.b16 %v1756
    %v3623 = vunpack.c.h.b16 %v1756
    %v3624 = vunpack.c.l.b16 %v1757
    %v3625 = vunpack.c.h.b16 %v1757
    %v3626 = vunpack.c.l.b16 %v1758
    %v3627 = vunpack.c.h.b16 %v1758
    %v3628 = vunpack.c.l.b16 %v1759
    %v3629 = vunpack.c.h.b16 %v1759
    %v3630 = vunpack.c.l.b16 %v1760
    %v3631 = vunpack.c.h.b16 %v1760
    %v3632 = vunpack.c.l.b16 %v1761
    %v3633 = vunpack.c.h.b16 %v1761
    %v3634 = vunpack.c.l.b16 %v1762
    %v3635 = vunpack.c.h.b16 %v1762
    %v3636 = vunpack.c.l.b16 %v1763
    %v3637 = vunpack.c.h.b16 %v1763
    %v3638 = vunpack.c.l.b16 %v1764
    %v3639 = vunpack.c.h.b16 %v1764
    %v3640 = vunpack.c.l.b16 %v1765
    %v3641 = vunpack.c.h.b16 %v1765
    %v3642 = vunpack.c.l.b16 %v1766
    %v3643 = vunpack.c.h.b16 %v1766
    %v3644 = vunpack.c.l.b16 %v1767
    %v3645 = vunpack.c.h.b16 %v1767
    %v3646 = vunpack.c.l.b16 %v1768
    %v3647 = vunpack.c.h.b16 %v1768
    %v3648 = vunpack.c.l.b16 %v1769
    %v3649 = vunpack.c.h.b16 %v1769
    %v3650 = vunpack.c.l.b16 %v1770
    %v3651 = vunpack.c.h.b16 %v1770
    %v3652 = vunpack.c.l.b16 %v1771
    %v3653 = vunpack.c.h.b16 %v1771
    %v3654 = vunpack.c.l.b16 %v1772
    %v3655 = vunpack.c.h.b16 %v1772
    %v3656 = vunpack.c.l.b16 %v1773
    %v3657 = vunpack.c.h.b16 %v1773
    %v3658 = vunpack.c.l.b16 %v1774
    %v3659 = vunpack.c.h.b16 %v1774
    %v3660 = vunpack.c.l.b16 %v1775
    %v3661 = vunpack.c.h.b16 %v1775
    %v3662 = vunpack.c.l.b16 %v1776
    %v3663 = vunpack.c.h.b16 %v1776
    %v3664 = vunpack.c.l.b16 %v1777
    %v3665 = vunpack.c.h.b16 %v1777
    %v3666 = vunpack.c.l.b16 %v1778
    %v3667 = vunpack.c.h.b16 %v1778
    %v3668 = vunpack.c.l.b16 %v1779
    %v3669 = vunpack.c.h.b16 %v1779
    %v3670 = vunpack.c.l.b16 %v1780
    %v3671 = vunpack.c.h.b16 %v1780
    %v3672 = vunpack.c.l.b16 %v1781
    %v3673 = vunpack.c.h.b16 %v1781
    %v3674 = vunpack.c.l.b16 %v1782
    %v3675 = vunpack.c.h.b16 %v1782
    %v3676 = vunpack.c.l.b16 %v1783
    %v3677 = vunpack.c.h.b16 %v1783
    %v3678 = vunpack.c.l.b16 %v1784
    %v3679 = vunpack.c.h.b16 %v1784
    %v3680 = vunpack.c.l.b16 %v1785
    %v3681 = vunpack.c.h.b16 %v1785
    %v3682 = vunpack.c.l.b16 %v1786
    %v3683 = vunpack.c.h.b16 %v1786
    %v3684 = vunpack.c.l.b16 %v1787
    %v3685 = vunpack.c.h.b16 %v1787
    %v3686 = vunpack.c.l.b16 %v1788
    %v3687 = vunpack.c.h.b16 %v1788
    %v3688 = vunpack.c.l.b16 %v1789
    %v3689 = vunpack.c.h.b16 %v1789
    %v3690 = vunpack.c.l.b16 %v1790
    %v3691 = vunpack.c.h.b16 %v1790
    %v3692 = vunpack.c.l.b16 %v1791
    %v3693 = vunpack.c.h.b16 %v1791
    %v3694 = vunpack.c.l.b16 %v1792
    %v3695 = vunpack.c.h.b16 %v1792
    %v3696 = vunpack.c.l.b16 %v1793
    %v3697 = vunpack.c.h.b16 %v1793
    %v3698 = vunpack.c.l.b16 %v1794
    %v3699 = vunpack.c.h.b16 %v1794
    %v3700 = vunpack.c.l.b16 %v1795
    %v3701 = vunpack.c.h.b16 %v1795
    %v3702 = vunpack.c.l.b16 %v1796
    %v3703 = vunpack.c.h.b16 %v1796
    %v3704 = vunpack.c.l.b16 %v1797
    %v3705 = vunpack.c.h.b16 %v1797
    %v3706 = vunpack.c.l.b16 %v1798
    %v3707 = vunpack.c.h.b16 %v1798
    %v3708 = vunpack.c.l.b16 %v1799
    %v3709 = vunpack.c.h.b16 %v1799
    %v3710 = vunpack.c.l.b16 %v1800
    %v3711 = vunpack.c.h.b16 %v1800
    %v3712 = vunpack.c.l.b16 %v1801
    %v3713 = vunpack.c.h.b16 %v1801
    %v3714 = vunpack.c.l.b16 %v1802
    %v3715 = vunpack.c.h.b16 %v1802
    %v3716 = vunpack.c.l.b16 %v1803
    %v3717 = vunpack.c.h.b16 %v1803
    %v3718 = vunpack.c.l.b16 %v1804
    %v3719 = vunpack.c.h.b16 %v1804
    %v3720 = vunpack.c.l.b16 %v1805
    %v3721 = vunpack.c.h.b16 %v1805
    %v3722 = vunpack.c.l.b16 %v1806
    %v3723 = vunpack.c.h.b16 %v1806
    %v3724 = vunpack.c.l.b16 %v1807
    %v3725 = vunpack.c.h.b16 %v1807
    %v3726 = vunpack.c.l.b16 %v1808
    %v3727 = vunpack.c.h.b16 %v1808
    %v3728 = vunpack.c.l.b16 %v1809
    %v3729 = vunpack.c.h.b16 %v1809
    %v3730 = vpack.c.b16 %v2460, %v2450
    %v3731 = vpack.c.b16 %v2461, %v2451
    %v3732 = vpack.c.b16 %v2462, %v2452
    %v3733 = vpack.c.b16 %v2463, %v2453
    %v3734 = vpack.c.b16 %v2464, %v2454
    %v3735 = vpack.c.b16 %v2465, %v2455
    %v3736 = vpack.c.b16 %v2466, %v2456
    %v3737 = vpack.c.b16 %v2467, %v2457
    %v3738 = vpack.c.b16 %v2468, %v2458
    %v3739 = vpack.c.b16 %v2469, %v2459
    %v3740 = vpack.c.b16 %v2480, %v2470
    %v3741 = vpack.c.b16 %v2481, %v2471
    %v3742 = vpack.c.b16 %v2482, %v2472
    %v3743 = vpack.c.b16 %v2483, %v2473
    %v3744 = vpack.c.b16 %v2484, %v2474
    %v3745 = vpack.c.b16 %v2485, %v2475
    %v3746 = vpack.c.b16 %v2486, %v2476
    %v3747 = vpack.c.b16 %v2487, %v2477
    %v3748 = vpack.c.b16 %v2488, %v2478
    %v3749 = vpack.c.b16 %v2489, %v2479
    %v3750 = vpack.c.b16 %v2500, %v2490
    %v3751 = vpack.c.b16 %v2501, %v2491
    %v3752 = vpack.c.b16 %v2502, %v2492
    %v3753 = vpack.c.b16 %v2503, %v2493
    %v3754 = vpack.c.b16 %v2504, %v2494
    %v3755 = vpack.c.b16 %v2505, %v2495
    %v3756 = vpack.c.b16 %v2506, %v2496
    %v3757 = vpack.c.b16 %v2507, %v2497
    %v3758 = vpack.c.b16 %v2508, %v2498
    %v3759 = vpack.c.b16 %v2509, %v2499
    %v3760 = vpack.c.b16 %v2520, %v2510
    %v3761 = vpack.c.b16 %v2521, %v2511
    %v3762 = vpack.c.b16 %v2522, %v2512
    %v3763 = vpack.c.b16 %v2523, %v2513
    %v3764 = vpack.c.b16 %v2524, %v2514
    %v3765 = vpack.c.b16 %v2525, %v2515
    %v3766 = vpack.c.b16 %v2526, %v2516
    %v3767 = vpack.c.b16 %v2527, %v2517
    %v3768 = vpack.c.b16 %v2528, %v2518
    %v3769 = vpack.c.b16 %v2529, %v2519
    %v3770 = vpack.c.b16 %v2540, %v2530
    %v3771 = vpack.c.b16 %v2541, %v2531
    %v3772 = vpack.c.b16 %v2542, %v2532
    %v3773 = vpack.c.b16 %v2543, %v2533
    %v3774 = vpack.c.b16 %v2544, %v2534
    %v3775 = vpack.c.b16 %v2545, %v2535
    %v3776 = vpack.c.b16 %v2546, %v2536
    %v3777 = vpack.c.b16 %v2547, %v2537
    %v3778 = vpack.c.b16 %v2548, %v2538
    %v3779 = vpack.c.b16 %v2549, %v2539
    %v3780 = vpack.c.b16 %v2560, %v2550
    %v3781 = vpack.c.b16 %v2561, %v2551
    %v3782 = vpack.c.b16 %v2562, %v2552
    %v3783 = vpack.c.b16 %v2563, %v2553
    %v3784 = vpack.c.b16 %v2564, %v2554
    %v3785 = vpack.c.b16 %v2565, %v2555
    %v3786 = vpack.c.b16 %v2566, %v2556
    %v3787 = vpack.c.b16 %v2567, %v2557
    %v3788 = vpack.c.b16 %v2568, %v2558
    %v3789 = vpack.c.b16 %v2569, %v2559
    %v3790 = vpack.c.b16 %v2580, %v2570
    %v3791 = vpack.c.b16 %v2581, %v2571
    %v3792 = vpack.c.b16 %v2582, %v2572
    %v3793 = vpack.c.b16 %v2583, %v2573
    %v3794 = vpack.c.b16 %v2584, %v2574
    %v3795 = vpack.c.b16 %v2585, %v2575
    %v3796 = vpack.c.b16 %v2586, %v2576
    %v3797 = vpack.c.b16 %v2587, %v2577
    %v3798 = vpack.c.b16 %v2588, %v2578
    %v3799 = vpack.c.b16 %v2589, %v2579
    %v3800 = vpack.c.b16 %v2600, %v2590
    %v3801 = vpack.c.b16 %v2601, %v2591
    %v3802 = vpack.c.b16 %v2602, %v2592
    %v3803 = vpack.c.b16 %v2603, %v2593
    %v3804 = vpack.c.b16 %v2604, %v2594
    %v3805 = vpack.c.b16 %v2605, %v2595
    %v3806 = vpack.c.b16 %v2606, %v2596
    %v3807 = vpack.c.b16 %v2607, %v2597
    %v3808 = vpack.c.b16 %v2608, %v2598
    %v3809 = vpack.c.b16 %v2609, %v2599
    %v3810 = vpack.c.b16 %v2620, %v2610
    %v3811 = vpack.c.b16 %v2621, %v2611
    %v3812 = vpack.c.b16 %v2622, %v2612
    %v3813 = vpack.c.b16 %v2623, %v2613
    %v3814 = vpack.c.b16 %v2624, %v2614
    %v3815 = vpack.c.b16 %v2625, %v2615
    %v3816 = vpack.c.b16 %v2626, %v2616
    %v3817 = vpack.c.b16 %v2627, %v2617
    %v3818 = vpack.c.b16 %v2628, %v2618
    %v3819 = vpack.c.b16 %v2629, %v2619
    %v3820 = vpack.c.b16 %v2640, %v2630
    %v3821 = vpack.c.b16 %v2641, %v2631
    %v3822 = vpack.c.b16 %v2642, %v2632
    %v3823 = vpack.c.b16 %v2643, %v2633
    %v3824 = vpack.c.b16 %v2644, %v2634
    %v3825 = vpack.c.b16 %v2645, %v2635
    %v3826 = vpack.c.b16 %v2646, %v2636
    %v3827 = vpack.c.b16 %v2647, %v2637
    %v3828 = vpack.c.b16 %v2648, %v2638
    %v3829 = vpack.c.b16 %v2649, %v2639
    %v3830 = vpack.c.b16 %v2660, %v2650
    %v3831 = vpack.c.b16 %v2661, %v2651
    %v3832 = vpack.c.b16 %v2662, %v2652
    %v3833 = vpack.c.b16 %v2663, %v2653
    %v3834 = vpack.c.b16 %v2664, %v2654
    %v3835 = vpack.c.b16 %v2665, %v2655
    %v3836 = vpack.c.b16 %v2666, %v2656
    %v3837 = vpack.c.b16 %v2667, %v2657
    %v3838 = vpack.c.b16 %v2668, %v2658
    %v3839 = vpack.c.b16 %v2669, %v2659
    %v3840 = vpack.c.b16 %v2680, %v2670
    %v3841 = vpack.c.b16 %v2681, %v2671
    %v3842 = vpack.c.b16 %v2682, %v2672
    %v3843 = vpack.c.b16 %v2683, %v2673
    %v3844 = vpack.c.b16 %v2684, %v2674
    %v3845 = vpack.c.b16 %v2685, %v2675
    %v3846 = vpack.c.b16 %v2686, %v2676
    %v3847 = vpack.c.b16 %v2687, %v2677
    %v3848 = vpack.c.b16 %v2688, %v2678
    %v3849 = vpack.c.b16 %v2689, %v2679
    %v3850 = vpack.c.b16 %v2700, %v2690
    %v3851 = vpack.c.b16 %v2701, %v2691
    %v3852 = vpack.c.b16 %v2702, %v2692
    %v3853 = vpack.c.b16 %v2703, %v2693
    %v3854 = vpack.c.b16 %v2704, %v2694
    %v3855 = vpack.c.b16 %v2705, %v2695
    %v3856 = vpack.c.b16 %v2706, %v2696
    %v3857 = vpack.c.b16 %v2707, %v2697
    %v3858 = vpack.c.b16 %v2708, %v2698
    %v3859 = vpack.c.b16 %v2709, %v2699
    %v3860 = vpack.c.b16 %v2720, %v2710
    %v3861 = vpack.c.b16 %v2721, %v2711
    %v3862 = vpack.c.b16 %v2722, %v2712
    %v3863 = vpack.c.b16 %v2723, %v2713
    %v3864 = vpack.c.b16 %v2724, %v2714
    %v3865 = vpack.c.b16 %v2725, %v2715
    %v3866 = vpack.c.b16 %v2726, %v2716
    %v3867 = vpack.c.b16 %v2727, %v2717
    %v3868 = vpack.c.b16 %v2728, %v2718
    %v3869 = vpack.c.b16 %v2729, %v2719
    %v3870 = vpack.c.b16 %v2740, %v2730
    %v3871 = vpack.c.b16 %v2741, %v2731
    %v3872 = vpack.c.b16 %v2742, %v2732
    %v3873 = vpack.c.b16 %v2743, %v2733
    %v3874 = vpack.c.b16 %v2744, %v2734
    %v3875 = vpack.c.b16 %v2745, %v2735
    %v3876 = vpack.c.b16 %v2746, %v2736
    %v3877 = vpack.c.b16 %v2747, %v2737
    %v3878 = vpack.c.b16 %v2748, %v2738
    %v3879 = vpack.c.b16 %v2749, %v2739
    %v3880 = vpack.c.b16 %v2760, %v2750
    %v3881 = vpack.c.b16 %v2761, %v2751
    %v3882 = vpack.c.b16 %v2762, %v2752
    %v3883 = vpack.c.b16 %v2763, %v2753
    %v3884 = vpack.c.b16 %v2764, %v2754
    %v3885 = vpack.c.b16 %v2765, %v2755
    %v3886 = vpack.c.b16 %v2766, %v2756
    %v3887 = vpack.c.b16 %v2767, %v2757
    %v3888 = vpack.c.b16 %v2768, %v2758
    %v3889 = vpack.c.b16 %v2769, %v2759
    %v3890 = vpack.c.b16 %v2780, %v2770
    %v3891 = vpack.c.b16 %v2781, %v2771
    %v3892 = vpack.c.b16 %v2782, %v2772
    %v3893 = vpack.c.b16 %v2783, %v2773
    %v3894 = vpack.c.b16 %v2784, %v2774
    %v3895 = vpack.c.b16 %v2785, %v2775
    %v3896 = vpack.c.b16 %v2786, %v2776
    %v3897 = vpack.c.b16 %v2787, %v2777
    %v3898 = vpack.c.b16 %v2788, %v2778
    %v3899 = vpack.c.b16 %v2789, %v2779
    %v3900 = vpack.c.b16 %v2800, %v2790
    %v3901 = vpack.c.b16 %v2801, %v2791
    %v3902 = vpack.c.b16 %v2802, %v2792
    %v3903 = vpack.c.b16 %v2803, %v2793
    %v3904 = vpack.c.b16 %v2804, %v2794
    %v3905 = vpack.c.b16 %v2805, %v2795
    %v3906 = vpack.c.b16 %v2806, %v2796
    %v3907 = vpack.c.b16 %v2807, %v2797
    %v3908 = vpack.c.b16 %v2808, %v2798
    %v3909 = vpack.c.b16 %v2809, %v2799
    %v3910 = vpack.c.b16 %v2820, %v2810
    %v3911 = vpack.c.b16 %v2821, %v2811
    %v3912 = vpack.c.b16 %v2822, %v2812
    %v3913 = vpack.c.b16 %v2823, %v2813
    %v3914 = vpack.c.b16 %v2824, %v2814
    %v3915 = vpack.c.b16 %v2825, %v2815
    %v3916 = vpack.c.b16 %v2826, %v2816
    %v3917 = vpack.c.b16 %v2827, %v2817
    %v3918 = vpack.c.b16 %v2828, %v2818
    %v3919 = vpack.c.b16 %v2829, %v2819
    %v3920 = vpack.c.b16 %v2840, %v2830
    %v3921 = vpack.c.b16 %v2841, %v2831
    %v3922 = vpack.c.b16 %v2842, %v2832
    %v3923 = vpack.c.b16 %v2843, %v2833
    %v3924 = vpack.c.b16 %v2844, %v2834
    %v3925 = vpack.c.b16 %v2845, %v2835
    %v3926 = vpack.c.b16 %v2846, %v2836
    %v3927 = vpack.c.b16 %v2847, %v2837
    %v3928 = vpack.c.b16 %v2848, %v2838
    %v3929 = vpack.c.b16 %v2849, %v2839
    %v3930 = vpack.c.b16 %v2860, %v2850
    %v3931 = vpack.c.b16 %v2861, %v2851
    %v3932 = vpack.c.b16 %v2862, %v2852
    %v3933 = vpack.c.b16 %v2863, %v2853
    %v3934 = vpack.c.b16 %v2864, %v2854
    %v3935 = vpack.c.b16 %v2865, %v2855
    %v3936 = vpack.c.b16 %v2866, %v2856
    %v3937 = vpack.c.b16 %v2867, %v2857
    %v3938 = vpack.c.b16 %v2868, %v2858
    %v3939 = vpack.c.b16 %v2869, %v2859
    %v3940 = vpack.c.b16 %v2880, %v2870
    %v3941 = vpack.c.b16 %v2881, %v2871
    %v3942 = vpack.c.b16 %v2882, %v2872
    %v3943 = vpack.c.b16 %v2883, %v2873
    %v3944 = vpack.c.b16 %v2884, %v2874
    %v3945 = vpack.c.b16 %v2885, %v2875
    %v3946 = vpack.c.b16 %v2886, %v2876
    %v3947 = vpack.c.b16 %v2887, %v2877
    %v3948 = vpack.c.b16 %v2888, %v2878
    %v3949 = vpack.c.b16 %v2889, %v2879
    %v3950 = vpack.c.b16 %v2900, %v2890
    %v3951 = vpack.c.b16 %v2901, %v2891
    %v3952 = vpack.c.b16 %v2902, %v2892
    %v3953 = vpack.c.b16 %v2903, %v2893
    %v3954 = vpack.c.b16 %v2904, %v2894
    %v3955 = vpack.c.b16 %v2905, %v2895
    %v3956 = vpack.c.b16 %v2906, %v2896
    %v3957 = vpack.c.b16 %v2907, %v2897
    %v3958 = vpack.c.b16 %v2908, %v2898
    %v3959 = vpack.c.b16 %v2909, %v2899
    %v3960 = vpack.c.b16 %v2920, %v2910
    %v3961 = vpack.c.b16 %v2921, %v2911
    %v3962 = vpack.c.b16 %v2922, %v2912
    %v3963 = vpack.c.b16 %v2923, %v2913
    %v3964 = vpack.c.b16 %v2924, %v2914
    %v3965 = vpack.c.b16 %v2925, %v2915
    %v3966 = vpack.c.b16 %v2926, %v2916
    %v3967 = vpack.c.b16 %v2927, %v2917
    %v3968 = vpack.c.b16 %v2928, %v2918
    %v3969 = vpack.c.b16 %v2929, %v2919
    %v3970 = vpack.c.b16 %v2940, %v2930
    %v3971 = vpack.c.b16 %v2941, %v2931
    %v3972 = vpack.c.b16 %v2942, %v2932
    %v3973 = vpack.c.b16 %v2943, %v2933
    %v3974 = vpack.c.b16 %v2944, %v2934
    %v3975 = vpack.c.b16 %v2945, %v2935
    %v3976 = vpack.c.b16 %v2946, %v2936
    %v3977 = vpack.c.b16 %v2947, %v2937
    %v3978 = vpack.c.b16 %v2948, %v2938
    %v3979 = vpack.c.b16 %v2949, %v2939
    %v3980 = vpack.c.b16 %v2960, %v2950
    %v3981 = vpack.c.b16 %v2961, %v2951
    %v3982 = vpack.c.b16 %v2962, %v2952
    %v3983 = vpack.c.b16 %v2963, %v2953
    %v3984 = vpack.c.b16 %v2964, %v2954
    %v3985 = vpack.c.b16 %v2965, %v2955
    %v3986 = vpack.c.b16 %v2966, %v2956
    %v3987 = vpack.c.b16 %v2967, %v2957
    %v3988 = vpack.c.b16 %v2968, %v2958
    %v3989 = vpack.c.b16 %v2969, %v2959
    %v3990 = vpack.c.b16 %v2980, %v2970
    %v3991 = vpack.c.b16 %v2981, %v2971
    %v3992 = vpack.c.b16 %v2982, %v2972
    %v3993 = vpack.c.b16 %v2983, %v2973
    %v3994 = vpack.c.b16 %v2984, %v2974
    %v3995 = vpack.c.b16 %v2985, %v2975
    %v3996 = vpack.c.b16 %v2986, %v2976
    %v3997 = vpack.c.b16 %v2987, %v2977
    %v3998 = vpack.c.b16 %v2988, %v2978
    %v3999 = vpack.c.b16 %v2989, %v2979
    %v4000 = vpack.c.b16 %v3000, %v2990
    %v4001 = vpack.c.b16 %v3001, %v2991
    %v4002 = vpack.c.b16 %v3002, %v2992
    %v4003 = vpack.c.b16 %v3003, %v2993
    %v4004 = vpack.c.b16 %v3004, %v2994
    %v4005 = vpack.c.b16 %v3005, %v2995
    %v4006 = vpack.c.b16 %v3006, %v2996
    %v4007 = vpack.c.b16 %v3007, %v2997
    %v4008 = vpack.c.b16 %v3008, %v2998
    %v4009 = vpack.c.b16 %v3009, %v2999
    %v4010 = vpack.c.b16 %v3020, %v3010
    %v4011 = vpack.c.b16 %v3021, %v3011
    %v4012 = vpack.c.b16 %v3022, %v3012
    %v4013 = vpack.c.b16 %v3023, %v3013
    %v4014 = vpack.c.b16 %v3024, %v3014
    %v4015 = vpack.c.b16 %v3025, %v3015
    %v4016 = vpack.c.b16 %v3026, %v3016
    %v4017 = vpack.c.b16 %v3027, %v3017
    %v4018 = vpack.c.b16 %v3028, %v3018
    %v4019 = vpack.c.b16 %v3029, %v3019
    %v4020 = vpack.c.b16 %v3040, %v3030
    %v4021 = vpack.c.b16 %v3041, %v3031
    %v4022 = vpack.c.b16 %v3042, %v3032
    %v4023 = vpack.c.b16 %v3043, %v3033
    %v4024 = vpack.c.b16 %v3044, %v3034
    %v4025 = vpack.c.b16 %v3045, %v3035
    %v4026 = vpack.c.b16 %v3046, %v3036
    %v4027 = vpack.c.b16 %v3047, %v3037
    %v4028 = vpack.c.b16 %v3048, %v3038
    %v4029 = vpack.c.b16 %v3049, %v3039
    %v4030 = vpack.c.b16 %v3060, %v3050
    %v4031 = vpack.c.b16 %v3061, %v3051
    %v4032 = vpack.c.b16 %v3062, %v3052
    %v4033 = vpack.c.b16 %v3063, %v3053
    %v4034 = vpack.c.b16 %v3064, %v3054
    %v4035 = vpack.c.b16 %v3065, %v3055
    %v4036 = vpack.c.b16 %v3066, %v3056
    %v4037 = vpack.c.b16 %v3067, %v3057
    %v4038 = vpack.c.b16 %v3068, %v3058
    %v4039 = vpack.c.b16 %v3069, %v3059
    %v4040 = vpack.c.b16 %v3080, %v3070
    %v4041 = vpack.c.b16 %v3081, %v3071
    %v4042 = vpack.c.b16 %v3082, %v3072
    %v4043 = vpack.c.b16 %v3083, %v3073
    %v4044 = vpack.c.b16 %v3084, %v3074
    %v4045 = vpack.c.b16 %v3085, %v3075
    %v4046 = vpack.c.b16 %v3086, %v3076
    %v4047 = vpack.c.b16 %v3087, %v3077
    %v4048 = vpack.c.b16 %v3088, %v3078
    %v4049 = vpack.c.b16 %v3089, %v3079
    %v4050 = vpack.c.b16 %v3100, %v3090
    %v4051 = vpack.c.b16 %v3101, %v3091
    %v4052 = vpack.c.b16 %v3102, %v3092
    %v4053 = vpack.c.b16 %v3103, %v3093
    %v4054 = vpack.c.b16 %v3104, %v3094
    %v4055 = vpack.c.b16 %v3105, %v3095
    %v4056 = vpack.c.b16 %v3106, %v3096
    %v4057 = vpack.c.b16 %v3107, %v3097
    %v4058 = vpack.c.b16 %v3108, %v3098
    %v4059 = vpack.c.b16 %v3109, %v3099
    %v4060 = vpack.c.b16 %v3120, %v3110
    %v4061 = vpack.c.b16 %v3121, %v3111
    %v4062 = vpack.c.b16 %v3122, %v3112
    %v4063 = vpack.c.b16 %v3123, %v3113
    %v4064 = vpack.c.b16 %v3124, %v3114
    %v4065 = vpack.c.b16 %v3125, %v3115
    %v4066 = vpack.c.b16 %v3126, %v3116
    %v4067 = vpack.c.b16 %v3127, %v3117
    %v4068 = vpack.c.b16 %v3128, %v3118
    %v4069 = vpack.c.b16 %v3129, %v3119
    %v4070 = vpack.c.b16 %v3140, %v3130
    %v4071 = vpack.c.b16 %v3141, %v3131
    %v4072 = vpack.c.b16 %v3142, %v3132
    %v4073 = vpack.c.b16 %v3143, %v3133
    %v4074 = vpack.c.b16 %v3144, %v3134
    %v4075 = vpack.c.b16 %v3145, %v3135
    %v4076 = vpack.c.b16 %v3146, %v3136
    %v4077 = vpack.c.b16 %v3147, %v3137
    %v4078 = vpack.c.b16 %v3148, %v3138
    %v4079 = vpack.c.b16 %v3149, %v3139
    %v4080 = vpack.c.b16 %v3160, %v3150
    %v4081 = vpack.c.b16 %v3161, %v3151
    %v4082 = vpack.c.b16 %v3162, %v3152
    %v4083 = vpack.c.b16 %v3163, %v3153
    %v4084 = vpack.c.b16 %v3164, %v3154
    %v4085 = vpack.c.b16 %v3165, %v3155
    %v4086 = vpack.c.b16 %v3166, %v3156
    %v4087 = vpack.c.b16 %v3167, %v3157
    %v4088 = vpack.c.b16 %v3168, %v3158
    %v4089 = vpack.c.b16 %v3169, %v3159
    %v4090 = vpack.c.b16 %v3180, %v3170
    %v4091 = vpack.c.b16 %v3181, %v3171
    %v4092 = vpack.c.b16 %v3182, %v3172
    %v4093 = vpack.c.b16 %v3183, %v3173
    %v4094 = vpack.c.b16 %v3184, %v3174
    %v4095 = vpack.c.b16 %v3185, %v3175
    %v4096 = vpack.c.b16 %v3186, %v3176
    %v4097 = vpack.c.b16 %v3187, %v3177
    %v4098 = vpack.c.b16 %v3188, %v3178
    %v4099 = vpack.c.b16 %v3189, %v3179
    %v4100 = vpack.c.b16 %v3200, %v3190
    %v4101 = vpack.c.b16 %v3201, %v3191
    %v4102 = vpack.c.b16 %v3202, %v3192
    %v4103 = vpack.c.b16 %v3203, %v3193
    %v4104 = vpack.c.b16 %v3204, %v3194
    %v4105 = vpack.c.b16 %v3205, %v3195
    %v4106 = vpack.c.b16 %v3206, %v3196
    %v4107 = vpack.c.b16 %v3207, %v3197
    %v4108 = vpack.c.b16 %v3208, %v3198
    %v4109 = vpack.c.b16 %v3209, %v3199
    %v4110 = vpack.c.b16 %v3220, %v3210
    %v4111 = vpack.c.b16 %v3221, %v3211
    %v4112 = vpack.c.b16 %v3222, %v3212
    %v4113 = vpack.c.b16 %v3223, %v3213
    %v4114 = vpack.c.b16 %v3224, %v3214
    %v4115 = vpack.c.b16 %v3225, %v3215
    %v4116 = vpack.c.b16 %v3226, %v3216
    %v4117 = vpack.c.b16 %v3227, %v3217
    %v4118 = vpack.c.b16 %v3228, %v3218
    %v4119 = vpack.c.b16 %v3229, %v3219
    %v4120 = vpack.c.b16 %v3240, %v3230
    %v4121 = vpack.c.b16 %v3241, %v3231
    %v4122 = vpack.c.b16 %v3242, %v3232
    %v4123 = vpack.c.b16 %v3243, %v3233
    %v4124 = vpack.c.b16 %v3244, %v3234
    %v4125 = vpack.c.b16 %v3245, %v3235
    %v4126 = vpack.c.b16 %v3246, %v3236
    %v4127 = vpack.c.b16 %v3247, %v3237
    %v4128 = vpack.c.b16 %v3248, %v3238
    %v4129 = vpack.c.b16 %v3249, %v3239
    %v4130 = vpack.c.b16 %v3260, %v3250
    %v4131 = vpack.c.b16 %v3261, %v3251
    %v4132 = vpack.c.b16 %v3262, %v3252
    %v4133 = vpack.c.b16 %v3263, %v3253
    %v4134 = vpack.c.b16 %v3264, %v3254
    %v4135 = vpack.c.b16 %v3265, %v3255
    %v4136 = vpack.c.b16 %v3266, %v3256
    %v4137 = vpack.c.b16 %v3267, %v3257
    %v4138 = vpack.c.b16 %v3268, %v3258
    %v4139 = vpack.c.b16 %v3269, %v3259
    %v4140 = vpack.c.b16 %v3280, %v3270
    %v4141 = vpack.c.b16 %v3281, %v3271
    %v4142 = vpack.c.b16 %v3282, %v3272
    %v4143 = vpack.c.b16 %v3283, %v3273
    %v4144 = vpack.c.b16 %v3284, %v3274
    %v4145 = vpack.c.b16 %v3285, %v3275
    %v4146 = vpack.c.b16 %v3286, %v3276
    %v4147 = vpack.c.b16 %v3287, %v3277
    %v4148 = vpack.c.b16 %v3288, %v3278
    %v4149 = vpack.c.b16 %v3289, %v3279
    %v4150 = vpack.c.b16 %v3300, %v3290
    %v4151 = vpack.c.b16 %v3301, %v3291
    %v4152 = vpack.c.b16 %v3302, %v3292
    %v4153 = vpack.c.b16 %v3303, %v3293
    %v4154 = vpack.c.b16 %v3304, %v3294
    %v4155 = vpack.c.b16 %v3305, %v3295
    %v4156 = vpack.c.b16 %v3306, %v3296
    %v4157 = vpack.c.b16 %v3307, %v3297
    %v4158 = vpack.c.b16 %v3308, %v3298
    %v4159 = vpack.c.b16 %v3309, %v3299
    %v4160 = vpack.c.b16 %v3320, %v3310
    %v4161 = vpack.c.b16 %v3321, %v3311
    %v4162 = vpack.c.b16 %v3322, %v3312
    %v4163 = vpack.c.b16 %v3323, %v3313
    %v4164 = vpack.c.b16 %v3324, %v3314
    %v4165 = vpack.c.b16 %v3325, %v3315
    %v4166 = vpack.c.b16 %v3326, %v3316
    %v4167 = vpack.c.b16 %v3327, %v3317
    %v4168 = vpack.c.b16 %v3328, %v3318
    %v4169 = vpack.c.b16 %v3329, %v3319
    %v4170 = vpack.c.b16 %v3340, %v3330
    %v4171 = vpack.c.b16 %v3341, %v3331
    %v4172 = vpack.c.b16 %v3342, %v3332
    %v4173 = vpack.c.b16 %v3343, %v3333
    %v4174 = vpack.c.b16 %v3344, %v3334
    %v4175 = vpack.c.b16 %v3345, %v3335
    %v4176 = vpack.c.b16 %v3346, %v3336
    %v4177 = vpack.c.b16 %v3347, %v3337
    %v4178 = vpack.c.b16 %v3348, %v3338
    %v4179 = vpack.c.b16 %v3349, %v3339
    %v4180 = vpack.c.b16 %v3360, %v3350
    %v4181 = vpack.c.b16 %v3361, %v3351
    %v4182 = vpack.c.b16 %v3362, %v3352
    %v4183 = vpack.c.b16 %v3363, %v3353
    %v4184 = vpack.c.b16 %v3364, %v3354
    %v4185 = vpack.c.b16 %v3365, %v3355
    %v4186 = vpack.c.b16 %v3366, %v3356
    %v4187 = vpack.c.b16 %v3367, %v3357
    %v4188 = vpack.c.b16 %v3368, %v3358
    %v4189 = vpack.c.b16 %v3369, %v3359
    %v4190 = vpack.c.b16 %v3380, %v3370
    %v4191 = vpack.c.b16 %v3381, %v3371
    %v4192 = vpack.c.b16 %v3382, %v3372
    %v4193 = vpack.c.b16 %v3383, %v3373
    %v4194 = vpack.c.b16 %v3384, %v3374
    %v4195 = vpack.c.b16 %v3385, %v3375
    %v4196 = vpack.c.b16 %v3386, %v3376
    %v4197 = vpack.c.b16 %v3387, %v3377
    %v4198 = vpack.c.b16 %v3388, %v3378
    %v4199 = vpack.c.b16 %v3389, %v3379
    %v4200 = vpack.c.b16 %v3400, %v3390
    %v4201 = vpack.c.b16 %v3401, %v3391
    %v4202 = vpack.c.b16 %v3402, %v3392
    %v4203 = vpack.c.b16 %v3403, %v3393
    %v4204 = vpack.c.b16 %v3404, %v3394
    %v4205 = vpack.c.b16 %v3405, %v3395
    %v4206 = vpack.c.b16 %v3406, %v3396
    %v4207 = vpack.c.b16 %v3407, %v3397
    %v4208 = vpack.c.b16 %v3408, %v3398
    %v4209 = vpack.c.b16 %v3409, %v3399
    %v4210 = vpack.c.b16 %v3420, %v3410
    %v4211 = vpack.c.b16 %v3421, %v3411
    %v4212 = vpack.c.b16 %v3422, %v3412
    %v4213 = vpack.c.b16 %v3423, %v3413
    %v4214 = vpack.c.b16 %v3424, %v3414
    %v4215 = vpack.c.b16 %v3425, %v3415
    %v4216 = vpack.c.b16 %v3426, %v3416
    %v4217 = vpack.c.b16 %v3427, %v3417
    %v4218 = vpack.c.b16 %v3428, %v3418
    %v4219 = vpack.c.b16 %v3429, %v3419
    %v4220 = vpack.c.b16 %v3440, %v3430
    %v4221 = vpack.c.b16 %v3441, %v3431
    %v4222 = vpack.c.b16 %v3442, %v3432
    %v4223 = vpack.c.b16 %v3443, %v3433
    %v4224 = vpack.c.b16 %v3444, %v3434
    %v4225 = vpack.c.b16 %v3445, %v3435
    %v4226 = vpack.c.b16 %v3446, %v3436
    %v4227 = vpack.c.b16 %v3447, %v3437
    %v4228 = vpack.c.b16 %v3448, %v3438
    %v4229 = vpack.c.b16 %v3449, %v3439
    %v4230 = vpack.c.b16 %v3460, %v3450
    %v4231 = vpack.c.b16 %v3461, %v3451
    %v4232 = vpack.c.b16 %v3462, %v3452
    %v4233 = vpack.c.b16 %v3463, %v3453
    %v4234 = vpack.c.b16 %v3464, %v3454
    %v4235 = vpack.c.b16 %v3465, %v3455
    %v4236 = vpack.c.b16 %v3466, %v3456
    %v4237 = vpack.c.b16 %v3467, %v3457
    %v4238 = vpack.c.b16 %v3468, %v3458
    %v4239 = vpack.c.b16 %v3469, %v3459
    %v4240 = vpack.c.b16 %v3480, %v3470
    %v4241 = vpack.c.b16 %v3481, %v3471
    %v4242 = vpack.c.b16 %v3482, %v3472
    %v4243 = vpack.c.b16 %v3483, %v3473
    %v4244 = vpack.c.b16 %v3484, %v3474
    %v4245 = vpack.c.b16 %v3485, %v3475
    %v4246 = vpack.c.b16 %v3486, %v3476
    %v4247 = vpack.c.b16 %v3487, %v3477
    %v4248 = vpack.c.b16 %v3488, %v3478
    %v4249 = vpack.c.b16 %v3489, %v3479
    %v4250 = vpack.c.b16 %v3500, %v3490
    %v4251 = vpack.c.b16 %v3501, %v3491
    %v4252 = vpack.c.b16 %v3502, %v3492
    %v4253 = vpack.c.b16 %v3503, %v3493
    %v4254 = vpack.c.b16 %v3504, %v3494
    %v4255 = vpack.c.b16 %v3505, %v3495
    %v4256 = vpack.c.b16 %v3506, %v3496
    %v4257 = vpack.c.b16 %v3507, %v3497
    %v4258 = vpack.c.b16 %v3508, %v3498
    %v4259 = vpack.c.b16 %v3509, %v3499
    %v4260 = vpack.c.b16 %v3520, %v3510
    %v4261 = vpack.c.b16 %v3521, %v3511
    %v4262 = vpack.c.b16 %v3522, %v3512
    %v4263 = vpack.c.b16 %v3523, %v3513
    %v4264 = vpack.c.b16 %v3524, %v3514
    %v4265 = vpack.c.b16 %v3525, %v3515
    %v4266 = vpack.c.b16 %v3526, %v3516
    %v4267 = vpack.c.b16 %v3527, %v3517
    %v4268 = vpack.c.b16 %v3528, %v3518
    %v4269 = vpack.c.b16 %v3529, %v3519
    %v4270 = vpack.c.b16 %v3540, %v3530
    %v4271 = vpack.c.b16 %v3541, %v3531
    %v4272 = vpack.c.b16 %v3542, %v3532
    %v4273 = vpack.c.b16 %v3543, %v3533
    %v4274 = vpack.c.b16 %v3544, %v3534
    %v4275 = vpack.c.b16 %v3545, %v3535
    %v4276 = vpack.c.b16 %v3546, %v3536
    %v4277 = vpack.c.b16 %v3547, %v3537
    %v4278 = vpack.c.b16 %v3548, %v3538
    %v4279 = vpack.c.b16 %v3549, %v3539
    %v4280 = vpack.c.b16 %v3560, %v3550
    %v4281 = vpack.c.b16 %v3561, %v3551
    %v4282 = vpack.c.b16 %v3562, %v3552
    %v4283 = vpack.c.b16 %v3563, %v3553
    %v4284 = vpack.c.b16 %v3564, %v3554
    %v4285 = vpack.c.b16 %v3565, %v3555
    %v4286 = vpack.c.b16 %v3566, %v3556
    %v4287 = vpack.c.b16 %v3567, %v3557
    %v4288 = vpack.c.b16 %v3568, %v3558
    %v4289 = vpack.c.b16 %v3569, %v3559
    %v4290 = vpack.c.b16 %v3580, %v3570
    %v4291 = vpack.c.b16 %v3581, %v3571
    %v4292 = vpack.c.b16 %v3582, %v3572
    %v4293 = vpack.c.b16 %v3583, %v3573
    %v4294 = vpack.c.b16 %v3584, %v3574
    %v4295 = vpack.c.b16 %v3585, %v3575
    %v4296 = vpack.c.b16 %v3586, %v3576
    %v4297 = vpack.c.b16 %v3587, %v3577
    %v4298 = vpack.c.b16 %v3588, %v3578
    %v4299 = vpack.c.b16 %v3589, %v3579
    %v4300 = vpack.c.b16 %v3600, %v3590
    %v4301 = vpack.c.b16 %v3601, %v3591
    %v4302 = vpack.c.b16 %v3602, %v3592
    %v4303 = vpack.c.b16 %v3603, %v3593
    %v4304 = vpack.c.b16 %v3604, %v3594
    %v4305 = vpack.c.b16 %v3605, %v3595
    %v4306 = vpack.c.b16 %v3606, %v3596
    %v4307 = vpack.c.b16 %v3607, %v3597
    %v4308 = vpack.c.b16 %v3608, %v3598
    %v4309 = vpack.c.b16 %v3609, %v3599
    %v4310 = vpack.c.b16 %v3620, %v3610
    %v4311 = vpack.c.b16 %v3621, %v3611
    %v4312 = vpack.c.b16 %v3622, %v3612
    %v4313 = vpack.c.b16 %v3623, %v3613
    %v4314 = vpack.c.b16 %v3624, %v3614
    %v4315 = vpack.c.b16 %v3625, %v3615
    %v4316 = vpack.c.b16 %v3626, %v3616
    %v4317 = vpack.c.b16 %v3627, %v3617
    %v4318 = vpack.c.b16 %v3628, %v3618
    %v4319 = vpack.c.b16 %v3629, %v3619
    %v4320 = vpack.c.b16 %v3640, %v3630
    %v4321 = vpack.c.b16 %v3641, %v3631
    %v4322 = vpack.c.b16 %v3642, %v3632
    %v4323 = vpack.c.b16 %v3643, %v3633
    %v4324 = vpack.c.b16 %v3644, %v3634
    %v4325 = vpack.c.b16 %v3645, %v3635
    %v4326 = vpack.c.b16 %v3646, %v3636
    %v4327 = vpack.c.b16 %v3647, %v3637
    %v4328 = vpack.c.b16 %v3648, %v3638
    %v4329 = vpack.c.b16 %v3649, %v3639
    %v4330 = vpack.c.b16 %v3660, %v3650
    %v4331 = vpack.c.b16 %v3661, %v3651
    %v4332 = vpack.c.b16 %v3662, %v3652
    %v4333 = vpack.c.b16 %v3663, %v3653
    %v4334 = vpack.c.b16 %v3664, %v3654
    %v4335 = vpack.c.b16 %v3665, %v3655
    %v4336 = vpack.c.b16 %v3666, %v3656
    %v4337 = vpack.c.b16 %v3667, %v3657
    %v4338 = vpack.c.b16 %v3668, %v3658
    %v4339 = vpack.c.b16 %v3669, %v3659
    %v4340 = vpack.c.b16 %v3680, %v3670
    %v4341 = vpack.c.b16 %v3681, %v3671
    %v4342 = vpack.c.b16 %v3682, %v3672
    %v4343 = vpack.c.b16 %v3683, %v3673
    %v4344 = vpack.c.b16 %v3684, %v3674
    %v4345 = vpack.c.b16 %v3685, %v3675
    %v4346 = vpack.c.b16 %v3686, %v3676
    %v4347 = vpack.c.b16 %v3687, %v3677
    %v4348 = vpack.c.b16 %v3688, %v3678
    %v4349 = vpack.c.b16 %v3689, %v3679
    %v4350 = vpack.c.b16 %v3700, %v3690
    %v4351 = vpack.c.b16 %v3701, %v3691
    %v4352 = vpack.c.b16 %v3702, %v3692
    %v4353 = vpack.c.b16 %v3703, %v3693
    %v4354 = vpack.c.b16 %v3704, %v3694
    %v4355 = vpack.c.b16 %v3705, %v3695
    %v4356 = vpack.c.b16 %v3706, %v3696
    %v4357 = vpack.c.b16 %v3707, %v3697
    %v4358 = vpack.c.b16 %v3708, %v3698
    %v4359 = vpack.c.b16 %v3709, %v3699
    %v4360 = vpack.c.b16 %v3720, %v3710
    %v4361 = vpack.c.b16 %v3721, %v3711
    %v4362 = vpack.c.b16 %v3722, %v3712
    %v4363 = vpack.c.b16 %v3723, %v3713
    %v4364 = vpack.c.b16 %v3724, %v3714
    %v4365 = vpack.c.b16 %v3725, %v3715
    %v4366 = vpack.c.b16 %v3726, %v3716
    %v4367 = vpack.c.b16 %v3727, %v3717
    %v4368 = vpack.c.b16 %v3728, %v3718
    %v4369 = vpack.c.b16 %v3729, %v3719
    %5010 = vmatpush.bf16.msra.mxu0 %v3800
    %5011 = vmatpush.bf16.msra.mxu0 %v3790
    %5012 = vmatpush.bf16.msra.mxu0 %v3780
    %5013 = vmatpush.bf16.msra.mxu0 %v3770
    %5014 = vmatpush.bf16.msra.mxu0 %v3760
    %5015 = vmatpush.bf16.msra.mxu0 %v3750
    %5016 = vmatpush.bf16.msra.mxu0 %v3740
    %5017 = vmatpush.bf16.msra.mxu0 %v3730
    %5018 = vmatmul.bf16.gmra.mxu0 %v1162
    %v5019 = vpop.f32.mrf.mxu0
    %v5020 = vadd.f32 0.0, %v5019
    %v5021 = vpop.f32.mrf.mxu0
    %5022 = vdwg.mxu0
    %5023 = vmatpush.bf16.msra.mxu0 %v3880
    %5024 = vmatpush.bf16.msra.mxu0 %v3870
    %5025 = vmatpush.bf16.msra.mxu0 %v3860
    %5026 = vmatpush.bf16.msra.mxu0 %v3850
    %5027 = vmatpush.bf16.msra.mxu0 %v3840
    %5028 = vmatpush.bf16.msra.mxu0 %v3830
    %5029 = vmatpush.bf16.msra.mxu0 %v3820
    %5030 = vmatpush.bf16.msra.mxu0 %v3810
    %5031 = vmatmul.bf16.gmra.mxu0 %v1163
    %v5032 = vpop.f32.mrf.mxu0
    %v5033 = vadd.f32 %v5020, %v5032
    %v5034 = vpop.f32.mrf.mxu0
    %5035 = vdwg.mxu0
    %5036 = vmatpush.bf16.msra.mxu0 %v3960
    %5037 = vmatpush.bf16.msra.mxu0 %v3950
    %5038 = vmatpush.bf16.msra.mxu0 %v3940
    %5039 = vmatpush.bf16.msra.mxu0 %v3930
    %5040 = vmatpush.bf16.msra.mxu0 %v3920
    %5041 = vmatpush.bf16.msra.mxu0 %v3910
    %5042 = vmatpush.bf16.msra.mxu0 %v3900
    %5043 = vmatpush.bf16.msra.mxu0 %v3890
    %5044 = vmatmul.bf16.gmra.mxu0 %v1164
    %v5045 = vpop.f32.mrf.mxu0
    %v5046 = vadd.f32 %v5033, %v5045
    %v5047 = vpop.f32.mrf.mxu0
    %5048 = vdwg.mxu0
    %5049 = vmatpush.bf16.msra.mxu0 %v4040
    %5050 = vmatpush.bf16.msra.mxu0 %v4030
    %5051 = vmatpush.bf16.msra.mxu0 %v4020
    %5052 = vmatpush.bf16.msra.mxu0 %v4010
    %5053 = vmatpush.bf16.msra.mxu0 %v4000
    %5054 = vmatpush.bf16.msra.mxu0 %v3990
    %5055 = vmatpush.bf16.msra.mxu0 %v3980
    %5056 = vmatpush.bf16.msra.mxu0 %v3970
    %5057 = vmatmul.bf16.gmra.mxu0 %v1165
    %v5058 = vpop.f32.mrf.mxu0
    %v5059 = vadd.f32 %v5046, %v5058
    %v5060 = vpop.f32.mrf.mxu0
    %5061 = vdwg.mxu0
    %5062 = vmatpush.bf16.msra.mxu0 %v4120
    %5063 = vmatpush.bf16.msra.mxu0 %v4110
    %5064 = vmatpush.bf16.msra.mxu0 %v4100
    %5065 = vmatpush.bf16.msra.mxu0 %v4090
    %5066 = vmatpush.bf16.msra.mxu0 %v4080
    %5067 = vmatpush.bf16.msra.mxu0 %v4070
    %5068 = vmatpush.bf16.msra.mxu0 %v4060
    %5069 = vmatpush.bf16.msra.mxu0 %v4050
    %5070 = vmatmul.bf16.gmra.mxu0 %v1166
    %v5071 = vpop.f32.mrf.mxu0
    %v5072 = vadd.f32 %v5059, %v5071
    %v5073 = vpop.f32.mrf.mxu0
    %5074 = vdwg.mxu0
    %5075 = vmatpush.bf16.msra.mxu0 %v4200
    %5076 = vmatpush.bf16.msra.mxu0 %v4190
    %5077 = vmatpush.bf16.msra.mxu0 %v4180
    %5078 = vmatpush.bf16.msra.mxu0 %v4170
    %5079 = vmatpush.bf16.msra.mxu0 %v4160
    %5080 = vmatpush.bf16.msra.mxu0 %v4150
    %5081 = vmatpush.bf16.msra.mxu0 %v4140
    %5082 = vmatpush.bf16.msra.mxu0 %v4130
    %5083 = vmatmul.bf16.gmra.mxu0 %v1167
    %v5084 = vpop.f32.mrf.mxu0
    %v5085 = vadd.f32 %v5072, %v5084
    %v5086 = vpop.f32.mrf.mxu0
    %5087 = vdwg.mxu0
    %5088 = vmatpush.bf16.msra.mxu0 %v4280
    %5089 = vmatpush.bf16.msra.mxu0 %v4270
    %5090 = vmatpush.bf16.msra.mxu0 %v4260
    %5091 = vmatpush.bf16.msra.mxu0 %v4250
    %5092 = vmatpush.bf16.msra.mxu0 %v4240
    %5093 = vmatpush.bf16.msra.mxu0 %v4230
    %5094 = vmatpush.bf16.msra.mxu0 %v4220
    %5095 = vmatpush.bf16.msra.mxu0 %v4210
    %5096 = vmatmul.bf16.gmra.mxu0 %v1168
    %v5097 = vpop.f32.mrf.mxu0
    %v5098 = vadd.f32 %v5085, %v5097
    %v5099 = vpop.f32.mrf.mxu0
    %5100 = vdwg.mxu0
    %5101 = vmatpush.bf16.msra.mxu0 %v4360
    %5102 = vmatpush.bf16.msra.mxu0 %v4350
    %5103 = vmatpush.bf16.msra.mxu0 %v4340
    %5104 = vmatpush.bf16.msra.mxu0 %v4330
    %5105 = vmatpush.bf16.msra.mxu0 %v4320
    %5106 = vmatpush.bf16.msra.mxu0 %v4310
    %5107 = vmatpush.bf16.msra.mxu0 %v4300
    %5108 = vmatpush.bf16.msra.mxu0 %v4290
    %5109 = vmatmul.bf16.gmra.mxu0 %v1169
    %v5110 = vpop.f32.mrf.mxu0
    %v5111 = vadd.f32 %v5098, %v5110
    %v5112 = vpop.f32.mrf.mxu0
    %5113 = vdwg.mxu0
    %5114 = vmatpush.bf16.msra.mxu0 %v3801
    %5115 = vmatpush.bf16.msra.mxu0 %v3791
    %5116 = vmatpush.bf16.msra.mxu0 %v3781
    %5117 = vmatpush.bf16.msra.mxu0 %v3771
    %5118 = vmatpush.bf16.msra.mxu0 %v3761
    %5119 = vmatpush.bf16.msra.mxu0 %v3751
    %5120 = vmatpush.bf16.msra.mxu0 %v3741
    %5121 = vmatpush.bf16.msra.mxu0 %v3731
    %5122 = vmatmul.bf16.gmra.mxu0 %v1162
    %v5123 = vpop.f32.mrf.mxu0
    %v5124 = vadd.f32 0.0, %v5123
    %v5125 = vpop.f32.mrf.mxu0
    %5126 = vdwg.mxu0
    %5127 = vmatpush.bf16.msra.mxu0 %v3881
    %5128 = vmatpush.bf16.msra.mxu0 %v3871
    %5129 = vmatpush.bf16.msra.mxu0 %v3861
    %5130 = vmatpush.bf16.msra.mxu0 %v3851
    %5131 = vmatpush.bf16.msra.mxu0 %v3841
    %5132 = vmatpush.bf16.msra.mxu0 %v3831
    %5133 = vmatpush.bf16.msra.mxu0 %v3821
    %5134 = vmatpush.bf16.msra.mxu0 %v3811
    %5135 = vmatmul.bf16.gmra.mxu0 %v1163
    %v5136 = vpop.f32.mrf.mxu0
    %v5137 = vadd.f32 %v5124, %v5136
    %v5138 = vpop.f32.mrf.mxu0
    %5139 = vdwg.mxu0
    %5140 = vmatpush.bf16.msra.mxu0 %v3961
    %5141 = vmatpush.bf16.msra.mxu0 %v3951
    %5142 = vmatpush.bf16.msra.mxu0 %v3941
    %5143 = vmatpush.bf16.msra.mxu0 %v3931
    %5144 = vmatpush.bf16.msra.mxu0 %v3921
    %5145 = vmatpush.bf16.msra.mxu0 %v3911
    %5146 = vmatpush.bf16.msra.mxu0 %v3901
    %5147 = vmatpush.bf16.msra.mxu0 %v3891
    %5148 = vmatmul.bf16.gmra.mxu0 %v1164
    %v5149 = vpop.f32.mrf.mxu0
    %v5150 = vadd.f32 %v5137, %v5149
    %v5151 = vpop.f32.mrf.mxu0
    %5152 = vdwg.mxu0
    %5153 = vmatpush.bf16.msra.mxu0 %v4041
    %5154 = vmatpush.bf16.msra.mxu0 %v4031
    %5155 = vmatpush.bf16.msra.mxu0 %v4021
    %5156 = vmatpush.bf16.msra.mxu0 %v4011
    %5157 = vmatpush.bf16.msra.mxu0 %v4001
    %5158 = vmatpush.bf16.msra.mxu0 %v3991
    %5159 = vmatpush.bf16.msra.mxu0 %v3981
    %5160 = vmatpush.bf16.msra.mxu0 %v3971
    %5161 = vmatmul.bf16.gmra.mxu0 %v1165
    %v5162 = vpop.f32.mrf.mxu0
    %v5163 = vadd.f32 %v5150, %v5162
    %v5164 = vpop.f32.mrf.mxu0
    %5165 = vdwg.mxu0
    %5166 = vmatpush.bf16.msra.mxu0 %v4121
    %5167 = vmatpush.bf16.msra.mxu0 %v4111
    %5168 = vmatpush.bf16.msra.mxu0 %v4101
    %5169 = vmatpush.bf16.msra.mxu0 %v4091
    %5170 = vmatpush.bf16.msra.mxu0 %v4081
    %5171 = vmatpush.bf16.msra.mxu0 %v4071
    %5172 = vmatpush.bf16.msra.mxu0 %v4061
    %5173 = vmatpush.bf16.msra.mxu0 %v4051
    %5174 = vmatmul.bf16.gmra.mxu0 %v1166
    %v5175 = vpop.f32.mrf.mxu0
    %v5176 = vadd.f32 %v5163, %v5175
    %v5177 = vpop.f32.mrf.mxu0
    %5178 = vdwg.mxu0
    %5179 = vmatpush.bf16.msra.mxu0 %v4201
    %5180 = vmatpush.bf16.msra.mxu0 %v4191
    %5181 = vmatpush.bf16.msra.mxu0 %v4181
    %5182 = vmatpush.bf16.msra.mxu0 %v4171
    %5183 = vmatpush.bf16.msra.mxu0 %v4161
    %5184 = vmatpush.bf16.msra.mxu0 %v4151
    %5185 = vmatpush.bf16.msra.mxu0 %v4141
    %5186 = vmatpush.bf16.msra.mxu0 %v4131
    %5187 = vmatmul.bf16.gmra.mxu0 %v1167
    %v5188 = vpop.f32.mrf.mxu0
    %v5189 = vadd.f32 %v5176, %v5188
    %v5190 = vpop.f32.mrf.mxu0
    %5191 = vdwg.mxu0
    %5192 = vmatpush.bf16.msra.mxu0 %v4281
    %5193 = vmatpush.bf16.msra.mxu0 %v4271
    %5194 = vmatpush.bf16.msra.mxu0 %v4261
    %5195 = vmatpush.bf16.msra.mxu0 %v4251
    %5196 = vmatpush.bf16.msra.mxu0 %v4241
    %5197 = vmatpush.bf16.msra.mxu0 %v4231
    %5198 = vmatpush.bf16.msra.mxu0 %v4221
    %5199 = vmatpush.bf16.msra.mxu0 %v4211
    %5200 = vmatmul.bf16.gmra.mxu0 %v1168
    %v5201 = vpop.f32.mrf.mxu0
    %v5202 = vadd.f32 %v5189, %v5201
    %v5203 = vpop.f32.mrf.mxu0
    %5204 = vdwg.mxu0
    %5205 = vmatpush.bf16.msra.mxu0 %v4361
    %5206 = vmatpush.bf16.msra.mxu0 %v4351
    %5207 = vmatpush.bf16.msra.mxu0 %v4341
    %5208 = vmatpush.bf16.msra.mxu0 %v4331
    %5209 = vmatpush.bf16.msra.mxu0 %v4321
    %5210 = vmatpush.bf16.msra.mxu0 %v4311
    %5211 = vmatpush.bf16.msra.mxu0 %v4301
    %5212 = vmatpush.bf16.msra.mxu0 %v4291
    %5213 = vmatmul.bf16.gmra.mxu0 %v1169
    %v5214 = vpop.f32.mrf.mxu0
    %v5215 = vadd.f32 %v5202, %v5214
    %v5216 = vpop.f32.mrf.mxu0
    %5217 = vdwg.mxu0
    %5218 = vmatpush.bf16.msra.mxu0 %v3802
    %5219 = vmatpush.bf16.msra.mxu0 %v3792
    %5220 = vmatpush.bf16.msra.mxu0 %v3782
    %5221 = vmatpush.bf16.msra.mxu0 %v3772
    %5222 = vmatpush.bf16.msra.mxu0 %v3762
    %5223 = vmatpush.bf16.msra.mxu0 %v3752
    %5224 = vmatpush.bf16.msra.mxu0 %v3742
    %5225 = vmatpush.bf16.msra.mxu0 %v3732
    %5226 = vmatmul.bf16.gmra.mxu0 %v1162
    %v5227 = vpop.f32.mrf.mxu0
    %v5228 = vadd.f32 0.0, %v5227
    %v5229 = vpop.f32.mrf.mxu0
    %5230 = vdwg.mxu0
    %5231 = vmatpush.bf16.msra.mxu0 %v3882
    %5232 = vmatpush.bf16.msra.mxu0 %v3872
    %5233 = vmatpush.bf16.msra.mxu0 %v3862
    %5234 = vmatpush.bf16.msra.mxu0 %v3852
    %5235 = vmatpush.bf16.msra.mxu0 %v3842
    %5236 = vmatpush.bf16.msra.mxu0 %v3832
    %5237 = vmatpush.bf16.msra.mxu0 %v3822
    %5238 = vmatpush.bf16.msra.mxu0 %v3812
    %5239 = vmatmul.bf16.gmra.mxu0 %v1163
    %v5240 = vpop.f32.mrf.mxu0
    %v5241 = vadd.f32 %v5228, %v5240
    %v5242 = vpop.f32.mrf.mxu0
    %5243 = vdwg.mxu0
    %5244 = vmatpush.bf16.msra.mxu0 %v3962
    %5245 = vmatpush.bf16.msra.mxu0 %v3952
    %5246 = vmatpush.bf16.msra.mxu0 %v3942
    %5247 = vmatpush.bf16.msra.mxu0 %v3932
    %5248 = vmatpush.bf16.msra.mxu0 %v3922
    %5249 = vmatpush.bf16.msra.mxu0 %v3912
    %5250 = vmatpush.bf16.msra.mxu0 %v3902
    %5251 = vmatpush.bf16.msra.mxu0 %v3892
    %5252 = vmatmul.bf16.gmra.mxu0 %v1164
    %v5253 = vpop.f32.mrf.mxu0
    %v5254 = vadd.f32 %v5241, %v5253
    %v5255 = vpop.f32.mrf.mxu0
    %5256 = vdwg.mxu0
    %5257 = vmatpush.bf16.msra.mxu0 %v4042
    %5258 = vmatpush.bf16.msra.mxu0 %v4032
    %5259 = vmatpush.bf16.msra.mxu0 %v4022
    %5260 = vmatpush.bf16.msra.mxu0 %v4012
    %5261 = vmatpush.bf16.msra.mxu0 %v4002
    %5262 = vmatpush.bf16.msra.mxu0 %v3992
    %5263 = vmatpush.bf16.msra.mxu0 %v3982
    %5264 = vmatpush.bf16.msra.mxu0 %v3972
    %5265 = vmatmul.bf16.gmra.mxu0 %v1165
    %v5266 = vpop.f32.mrf.mxu0
    %v5267 = vadd.f32 %v5254, %v5266
    %v5268 = vpop.f32.mrf.mxu0
    %5269 = vdwg.mxu0
    %5270 = vmatpush.bf16.msra.mxu0 %v4122
    %5271 = vmatpush.bf16.msra.mxu0 %v4112
    %5272 = vmatpush.bf16.msra.mxu0 %v4102
    %5273 = vmatpush.bf16.msra.mxu0 %v4092
    %5274 = vmatpush.bf16.msra.mxu0 %v4082
    %5275 = vmatpush.bf16.msra.mxu0 %v4072
    %5276 = vmatpush.bf16.msra.mxu0 %v4062
    %5277 = vmatpush.bf16.msra.mxu0 %v4052
    %5278 = vmatmul.bf16.gmra.mxu0 %v1166
    %v5279 = vpop.f32.mrf.mxu0
    %v5280 = vadd.f32 %v5267, %v5279
    %v5281 = vpop.f32.mrf.mxu0
    %5282 = vdwg.mxu0
    %5283 = vmatpush.bf16.msra.mxu0 %v4202
    %5284 = vmatpush.bf16.msra.mxu0 %v4192
    %5285 = vmatpush.bf16.msra.mxu0 %v4182
    %5286 = vmatpush.bf16.msra.mxu0 %v4172
    %5287 = vmatpush.bf16.msra.mxu0 %v4162
    %5288 = vmatpush.bf16.msra.mxu0 %v4152
    %5289 = vmatpush.bf16.msra.mxu0 %v4142
    %5290 = vmatpush.bf16.msra.mxu0 %v4132
    %5291 = vmatmul.bf16.gmra.mxu0 %v1167
    %v5292 = vpop.f32.mrf.mxu0
    %v5293 = vadd.f32 %v5280, %v5292
    %v5294 = vpop.f32.mrf.mxu0
    %5295 = vdwg.mxu0
    %5296 = vmatpush.bf16.msra.mxu0 %v4282
    %5297 = vmatpush.bf16.msra.mxu0 %v4272
    %5298 = vmatpush.bf16.msra.mxu0 %v4262
    %5299 = vmatpush.bf16.msra.mxu0 %v4252
    %5300 = vmatpush.bf16.msra.mxu0 %v4242
    %5301 = vmatpush.bf16.msra.mxu0 %v4232
    %5302 = vmatpush.bf16.msra.mxu0 %v4222
    %5303 = vmatpush.bf16.msra.mxu0 %v4212
    %5304 = vmatmul.bf16.gmra.mxu0 %v1168
    %v5305 = vpop.f32.mrf.mxu0
    %v5306 = vadd.f32 %v5293, %v5305
    %v5307 = vpop.f32.mrf.mxu0
    %5308 = vdwg.mxu0
    %5309 = vmatpush.bf16.msra.mxu0 %v4362
    %5310 = vmatpush.bf16.msra.mxu0 %v4352
    %5311 = vmatpush.bf16.msra.mxu0 %v4342
    %5312 = vmatpush.bf16.msra.mxu0 %v4332
    %5313 = vmatpush.bf16.msra.mxu0 %v4322
    %5314 = vmatpush.bf16.msra.mxu0 %v4312
    %5315 = vmatpush.bf16.msra.mxu0 %v4302
    %5316 = vmatpush.bf16.msra.mxu0 %v4292
    %5317 = vmatmul.bf16.gmra.mxu0 %v1169
    %v5318 = vpop.f32.mrf.mxu0
    %v5319 = vadd.f32 %v5306, %v5318
    %v5320 = vpop.f32.mrf.mxu0
    %5321 = vdwg.mxu0
    %5322 = vmatpush.bf16.msra.mxu0 %v3803
    %5323 = vmatpush.bf16.msra.mxu0 %v3793
    %5324 = vmatpush.bf16.msra.mxu0 %v3783
    %5325 = vmatpush.bf16.msra.mxu0 %v3773
    %5326 = vmatpush.bf16.msra.mxu0 %v3763
    %5327 = vmatpush.bf16.msra.mxu0 %v3753
    %5328 = vmatpush.bf16.msra.mxu0 %v3743
    %5329 = vmatpush.bf16.msra.mxu0 %v3733
    %5330 = vmatmul.bf16.gmra.mxu0 %v1162
    %v5331 = vpop.f32.mrf.mxu0
    %v5332 = vadd.f32 0.0, %v5331
    %v5333 = vpop.f32.mrf.mxu0
    %5334 = vdwg.mxu0
    %5335 = vmatpush.bf16.msra.mxu0 %v3883
    %5336 = vmatpush.bf16.msra.mxu0 %v3873
    %5337 = vmatpush.bf16.msra.mxu0 %v3863
    %5338 = vmatpush.bf16.msra.mxu0 %v3853
    %5339 = vmatpush.bf16.msra.mxu0 %v3843
    %5340 = vmatpush.bf16.msra.mxu0 %v3833
    %5341 = vmatpush.bf16.msra.mxu0 %v3823
    %5342 = vmatpush.bf16.msra.mxu0 %v3813
    %5343 = vmatmul.bf16.gmra.mxu0 %v1163
    %v5344 = vpop.f32.mrf.mxu0
    %v5345 = vadd.f32 %v5332, %v5344
    %v5346 = vpop.f32.mrf.mxu0
    %5347 = vdwg.mxu0
    %5348 = vmatpush.bf16.msra.mxu0 %v3963
    %5349 = vmatpush.bf16.msra.mxu0 %v3953
    %5350 = vmatpush.bf16.msra.mxu0 %v3943
    %5351 = vmatpush.bf16.msra.mxu0 %v3933
    %5352 = vmatpush.bf16.msra.mxu0 %v3923
    %5353 = vmatpush.bf16.msra.mxu0 %v3913
    %5354 = vmatpush.bf16.msra.mxu0 %v3903
    %5355 = vmatpush.bf16.msra.mxu0 %v3893
    %5356 = vmatmul.bf16.gmra.mxu0 %v1164
    %v5357 = vpop.f32.mrf.mxu0
    %v5358 = vadd.f32 %v5345, %v5357
    %v5359 = vpop.f32.mrf.mxu0
    %5360 = vdwg.mxu0
    %5361 = vmatpush.bf16.msra.mxu0 %v4043
    %5362 = vmatpush.bf16.msra.mxu0 %v4033
    %5363 = vmatpush.bf16.msra.mxu0 %v4023
    %5364 = vmatpush.bf16.msra.mxu0 %v4013
    %5365 = vmatpush.bf16.msra.mxu0 %v4003
    %5366 = vmatpush.bf16.msra.mxu0 %v3993
    %5367 = vmatpush.bf16.msra.mxu0 %v3983
    %5368 = vmatpush.bf16.msra.mxu0 %v3973
    %5369 = vmatmul.bf16.gmra.mxu0 %v1165
    %v5370 = vpop.f32.mrf.mxu0
    %v5371 = vadd.f32 %v5358, %v5370
    %v5372 = vpop.f32.mrf.mxu0
    %5373 = vdwg.mxu0
    %5374 = vmatpush.bf16.msra.mxu0 %v4123
    %5375 = vmatpush.bf16.msra.mxu0 %v4113
    %5376 = vmatpush.bf16.msra.mxu0 %v4103
    %5377 = vmatpush.bf16.msra.mxu0 %v4093
    %5378 = vmatpush.bf16.msra.mxu0 %v4083
    %5379 = vmatpush.bf16.msra.mxu0 %v4073
    %5380 = vmatpush.bf16.msra.mxu0 %v4063
    %5381 = vmatpush.bf16.msra.mxu0 %v4053
    %5382 = vmatmul.bf16.gmra.mxu0 %v1166
    %v5383 = vpop.f32.mrf.mxu0
    %v5384 = vadd.f32 %v5371, %v5383
    %v5385 = vpop.f32.mrf.mxu0
    %5386 = vdwg.mxu0
    %5387 = vmatpush.bf16.msra.mxu0 %v4203
    %5388 = vmatpush.bf16.msra.mxu0 %v4193
    %5389 = vmatpush.bf16.msra.mxu0 %v4183
    %5390 = vmatpush.bf16.msra.mxu0 %v4173
    %5391 = vmatpush.bf16.msra.mxu0 %v4163
    %5392 = vmatpush.bf16.msra.mxu0 %v4153
    %5393 = vmatpush.bf16.msra.mxu0 %v4143
    %5394 = vmatpush.bf16.msra.mxu0 %v4133
    %5395 = vmatmul.bf16.gmra.mxu0 %v1167
    %v5396 = vpop.f32.mrf.mxu0
    %v5397 = vadd.f32 %v5384, %v5396
    %v5398 = vpop.f32.mrf.mxu0
    %5399 = vdwg.mxu0
    %5400 = vmatpush.bf16.msra.mxu0 %v4283
    %5401 = vmatpush.bf16.msra.mxu0 %v4273
    %5402 = vmatpush.bf16.msra.mxu0 %v4263
    %5403 = vmatpush.bf16.msra.mxu0 %v4253
    %5404 = vmatpush.bf16.msra.mxu0 %v4243
    %5405 = vmatpush.bf16.msra.mxu0 %v4233
    %5406 = vmatpush.bf16.msra.mxu0 %v4223
    %5407 = vmatpush.bf16.msra.mxu0 %v4213
    %5408 = vmatmul.bf16.gmra.mxu0 %v1168
    %v5409 = vpop.f32.mrf.mxu0
    %v5410 = vadd.f32 %v5397, %v5409
    %v5411 = vpop.f32.mrf.mxu0
    %5412 = vdwg.mxu0
    %5413 = vmatpush.bf16.msra.mxu0 %v4363
    %5414 = vmatpush.bf16.msra.mxu0 %v4353
    %5415 = vmatpush.bf16.msra.mxu0 %v4343
    %5416 = vmatpush.bf16.msra.mxu0 %v4333
    %5417 = vmatpush.bf16.msra.mxu0 %v4323
    %5418 = vmatpush.bf16.msra.mxu0 %v4313
    %5419 = vmatpush.bf16.msra.mxu0 %v4303
    %5420 = vmatpush.bf16.msra.mxu0 %v4293
    %5421 = vmatmul.bf16.gmra.mxu0 %v1169
    %v5422 = vpop.f32.mrf.mxu0
    %v5423 = vadd.f32 %v5410, %v5422
    %v5424 = vpop.f32.mrf.mxu0
    %5425 = vdwg.mxu0
    %5426 = vmatpush.bf16.msra.mxu0 %v3804
    %5427 = vmatpush.bf16.msra.mxu0 %v3794
    %5428 = vmatpush.bf16.msra.mxu0 %v3784
    %5429 = vmatpush.bf16.msra.mxu0 %v3774
    %5430 = vmatpush.bf16.msra.mxu0 %v3764
    %5431 = vmatpush.bf16.msra.mxu0 %v3754
    %5432 = vmatpush.bf16.msra.mxu0 %v3744
    %5433 = vmatpush.bf16.msra.mxu0 %v3734
    %5434 = vmatmul.bf16.gmra.mxu0 %v1162
    %v5435 = vpop.f32.mrf.mxu0
    %v5436 = vadd.f32 0.0, %v5435
    %v5437 = vpop.f32.mrf.mxu0
    %5438 = vdwg.mxu0
    %5439 = vmatpush.bf16.msra.mxu0 %v3884
    %5440 = vmatpush.bf16.msra.mxu0 %v3874
    %5441 = vmatpush.bf16.msra.mxu0 %v3864
    %5442 = vmatpush.bf16.msra.mxu0 %v3854
    %5443 = vmatpush.bf16.msra.mxu0 %v3844
    %5444 = vmatpush.bf16.msra.mxu0 %v3834
    %5445 = vmatpush.bf16.msra.mxu0 %v3824
    %5446 = vmatpush.bf16.msra.mxu0 %v3814
    %5447 = vmatmul.bf16.gmra.mxu0 %v1163
    %v5448 = vpop.f32.mrf.mxu0
    %v5449 = vadd.f32 %v5436, %v5448
    %v5450 = vpop.f32.mrf.mxu0
    %5451 = vdwg.mxu0
    %5452 = vmatpush.bf16.msra.mxu0 %v3964
    %5453 = vmatpush.bf16.msra.mxu0 %v3954
    %5454 = vmatpush.bf16.msra.mxu0 %v3944
    %5455 = vmatpush.bf16.msra.mxu0 %v3934
    %5456 = vmatpush.bf16.msra.mxu0 %v3924
    %5457 = vmatpush.bf16.msra.mxu0 %v3914
    %5458 = vmatpush.bf16.msra.mxu0 %v3904
    %5459 = vmatpush.bf16.msra.mxu0 %v3894
    %5460 = vmatmul.bf16.gmra.mxu0 %v1164
    %v5461 = vpop.f32.mrf.mxu0
    %v5462 = vadd.f32 %v5449, %v5461
    %v5463 = vpop.f32.mrf.mxu0
    %5464 = vdwg.mxu0
    %5465 = vmatpush.bf16.msra.mxu0 %v4044
    %5466 = vmatpush.bf16.msra.mxu0 %v4034
    %5467 = vmatpush.bf16.msra.mxu0 %v4024
    %5468 = vmatpush.bf16.msra.mxu0 %v4014
    %5469 = vmatpush.bf16.msra.mxu0 %v4004
    %5470 = vmatpush.bf16.msra.mxu0 %v3994
    %5471 = vmatpush.bf16.msra.mxu0 %v3984
    %5472 = vmatpush.bf16.msra.mxu0 %v3974
    %5473 = vmatmul.bf16.gmra.mxu0 %v1165
    %v5474 = vpop.f32.mrf.mxu0
    %v5475 = vadd.f32 %v5462, %v5474
    %v5476 = vpop.f32.mrf.mxu0
    %5477 = vdwg.mxu0
    %5478 = vmatpush.bf16.msra.mxu0 %v4124
    %5479 = vmatpush.bf16.msra.mxu0 %v4114
    %5480 = vmatpush.bf16.msra.mxu0 %v4104
    %5481 = vmatpush.bf16.msra.mxu0 %v4094
    %5482 = vmatpush.bf16.msra.mxu0 %v4084
    %5483 = vmatpush.bf16.msra.mxu0 %v4074
    %5484 = vmatpush.bf16.msra.mxu0 %v4064
    %5485 = vmatpush.bf16.msra.mxu0 %v4054
    %5486 = vmatmul.bf16.gmra.mxu0 %v1166
    %v5487 = vpop.f32.mrf.mxu0
    %v5488 = vadd.f32 %v5475, %v5487
    %v5489 = vpop.f32.mrf.mxu0
    %5490 = vdwg.mxu0
    %5491 = vmatpush.bf16.msra.mxu0 %v4204
    %5492 = vmatpush.bf16.msra.mxu0 %v4194
    %5493 = vmatpush.bf16.msra.mxu0 %v4184
    %5494 = vmatpush.bf16.msra.mxu0 %v4174
    %5495 = vmatpush.bf16.msra.mxu0 %v4164
    %5496 = vmatpush.bf16.msra.mxu0 %v4154
    %5497 = vmatpush.bf16.msra.mxu0 %v4144
    %5498 = vmatpush.bf16.msra.mxu0 %v4134
    %5499 = vmatmul.bf16.gmra.mxu0 %v1167
    %v5500 = vpop.f32.mrf.mxu0
    %v5501 = vadd.f32 %v5488, %v5500
    %v5502 = vpop.f32.mrf.mxu0
    %5503 = vdwg.mxu0
    %5504 = vmatpush.bf16.msra.mxu0 %v4284
    %5505 = vmatpush.bf16.msra.mxu0 %v4274
    %5506 = vmatpush.bf16.msra.mxu0 %v4264
    %5507 = vmatpush.bf16.msra.mxu0 %v4254
    %5508 = vmatpush.bf16.msra.mxu0 %v4244
    %5509 = vmatpush.bf16.msra.mxu0 %v4234
    %5510 = vmatpush.bf16.msra.mxu0 %v4224
    %5511 = vmatpush.bf16.msra.mxu0 %v4214
    %5512 = vmatmul.bf16.gmra.mxu0 %v1168
    %v5513 = vpop.f32.mrf.mxu0
    %v5514 = vadd.f32 %v5501, %v5513
    %v5515 = vpop.f32.mrf.mxu0
    %5516 = vdwg.mxu0
    %5517 = vmatpush.bf16.msra.mxu0 %v4364
    %5518 = vmatpush.bf16.msra.mxu0 %v4354
    %5519 = vmatpush.bf16.msra.mxu0 %v4344
    %5520 = vmatpush.bf16.msra.mxu0 %v4334
    %5521 = vmatpush.bf16.msra.mxu0 %v4324
    %5522 = vmatpush.bf16.msra.mxu0 %v4314
    %5523 = vmatpush.bf16.msra.mxu0 %v4304
    %5524 = vmatpush.bf16.msra.mxu0 %v4294
    %5525 = vmatmul.bf16.gmra.mxu0 %v1169
    %v5526 = vpop.f32.mrf.mxu0
    %v5527 = vadd.f32 %v5514, %v5526
    %v5528 = vpop.f32.mrf.mxu0
    %5529 = vdwg.mxu0
    %5530 = vmatpush.bf16.msra.mxu0 %v3805
    %5531 = vmatpush.bf16.msra.mxu0 %v3795
    %5532 = vmatpush.bf16.msra.mxu0 %v3785
    %5533 = vmatpush.bf16.msra.mxu0 %v3775
    %5534 = vmatpush.bf16.msra.mxu0 %v3765
    %5535 = vmatpush.bf16.msra.mxu0 %v3755
    %5536 = vmatpush.bf16.msra.mxu0 %v3745
    %5537 = vmatpush.bf16.msra.mxu0 %v3735
    %5538 = vmatmul.bf16.gmra.mxu0 %v1162
    %v5539 = vpop.f32.mrf.mxu0
    %v5540 = vadd.f32 0.0, %v5539
    %v5541 = vpop.f32.mrf.mxu0
    %5542 = vdwg.mxu0
    %5543 = vmatpush.bf16.msra.mxu0 %v3885
    %5544 = vmatpush.bf16.msra.mxu0 %v3875
    %5545 = vmatpush.bf16.msra.mxu0 %v3865
    %5546 = vmatpush.bf16.msra.mxu0 %v3855
    %5547 = vmatpush.bf16.msra.mxu0 %v3845
    %5548 = vmatpush.bf16.msra.mxu0 %v3835
    %5549 = vmatpush.bf16.msra.mxu0 %v3825
    %5550 = vmatpush.bf16.msra.mxu0 %v3815
    %5551 = vmatmul.bf16.gmra.mxu0 %v1163
    %v5552 = vpop.f32.mrf.mxu0
    %v5553 = vadd.f32 %v5540, %v5552
    %v5554 = vpop.f32.mrf.mxu0
    %5555 = vdwg.mxu0
    %5556 = vmatpush.bf16.msra.mxu0 %v3965
    %5557 = vmatpush.bf16.msra.mxu0 %v3955
    %5558 = vmatpush.bf16.msra.mxu0 %v3945
    %5559 = vmatpush.bf16.msra.mxu0 %v3935
    %5560 = vmatpush.bf16.msra.mxu0 %v3925
    %5561 = vmatpush.bf16.msra.mxu0 %v3915
    %5562 = vmatpush.bf16.msra.mxu0 %v3905
    %5563 = vmatpush.bf16.msra.mxu0 %v3895
    %5564 = vmatmul.bf16.gmra.mxu0 %v1164
    %v5565 = vpop.f32.mrf.mxu0
    %v5566 = vadd.f32 %v5553, %v5565
    %v5567 = vpop.f32.mrf.mxu0
    %5568 = vdwg.mxu0
    %5569 = vmatpush.bf16.msra.mxu0 %v4045
    %5570 = vmatpush.bf16.msra.mxu0 %v4035
    %5571 = vmatpush.bf16.msra.mxu0 %v4025
    %5572 = vmatpush.bf16.msra.mxu0 %v4015
    %5573 = vmatpush.bf16.msra.mxu0 %v4005
    %5574 = vmatpush.bf16.msra.mxu0 %v3995
    %5575 = vmatpush.bf16.msra.mxu0 %v3985
    %5576 = vmatpush.bf16.msra.mxu0 %v3975
    %5577 = vmatmul.bf16.gmra.mxu0 %v1165
    %v5578 = vpop.f32.mrf.mxu0
    %v5579 = vadd.f32 %v5566, %v5578
    %v5580 = vpop.f32.mrf.mxu0
    %5581 = vdwg.mxu0
    %5582 = vmatpush.bf16.msra.mxu0 %v4125
    %5583 = vmatpush.bf16.msra.mxu0 %v4115
    %5584 = vmatpush.bf16.msra.mxu0 %v4105
    %5585 = vmatpush.bf16.msra.mxu0 %v4095
    %5586 = vmatpush.bf16.msra.mxu0 %v4085
    %5587 = vmatpush.bf16.msra.mxu0 %v4075
    %5588 = vmatpush.bf16.msra.mxu0 %v4065
    %5589 = vmatpush.bf16.msra.mxu0 %v4055
    %5590 = vmatmul.bf16.gmra.mxu0 %v1166
    %v5591 = vpop.f32.mrf.mxu0
    %v5592 = vadd.f32 %v5579, %v5591
    %v5593 = vpop.f32.mrf.mxu0
    %5594 = vdwg.mxu0
    %5595 = vmatpush.bf16.msra.mxu0 %v4205
    %5596 = vmatpush.bf16.msra.mxu0 %v4195
    %5597 = vmatpush.bf16.msra.mxu0 %v4185
    %5598 = vmatpush.bf16.msra.mxu0 %v4175
    %5599 = vmatpush.bf16.msra.mxu0 %v4165
    %5600 = vmatpush.bf16.msra.mxu0 %v4155
    %5601 = vmatpush.bf16.msra.mxu0 %v4145
    %5602 = vmatpush.bf16.msra.mxu0 %v4135
    %5603 = vmatmul.bf16.gmra.mxu0 %v1167
    %v5604 = vpop.f32.mrf.mxu0
    %v5605 = vadd.f32 %v5592, %v5604
    %v5606 = vpop.f32.mrf.mxu0
    %5607 = vdwg.mxu0
    %5608 = vmatpush.bf16.msra.mxu0 %v4285
    %5609 = vmatpush.bf16.msra.mxu0 %v4275
    %5610 = vmatpush.bf16.msra.mxu0 %v4265
    %5611 = vmatpush.bf16.msra.mxu0 %v4255
    %5612 = vmatpush.bf16.msra.mxu0 %v4245
    %5613 = vmatpush.bf16.msra.mxu0 %v4235
    %5614 = vmatpush.bf16.msra.mxu0 %v4225
    %5615 = vmatpush.bf16.msra.mxu0 %v4215
    %5616 = vmatmul.bf16.gmra.mxu0 %v1168
    %v5617 = vpop.f32.mrf.mxu0
    %v5618 = vadd.f32 %v5605, %v5617
    %v5619 = vpop.f32.mrf.mxu0
    %5620 = vdwg.mxu0
    %5621 = vmatpush.bf16.msra.mxu0 %v4365
    %5622 = vmatpush.bf16.msra.mxu0 %v4355
    %5623 = vmatpush.bf16.msra.mxu0 %v4345
    %5624 = vmatpush.bf16.msra.mxu0 %v4335
    %5625 = vmatpush.bf16.msra.mxu0 %v4325
    %5626 = vmatpush.bf16.msra.mxu0 %v4315
    %5627 = vmatpush.bf16.msra.mxu0 %v4305
    %5628 = vmatpush.bf16.msra.mxu0 %v4295
    %5629 = vmatmul.bf16.gmra.mxu0 %v1169
    %v5630 = vpop.f32.mrf.mxu0
    %v5631 = vadd.f32 %v5618, %v5630
    %v5632 = vpop.f32.mrf.mxu0
    %5633 = vdwg.mxu0
    %5634 = vmatpush.bf16.msra.mxu0 %v3806
    %5635 = vmatpush.bf16.msra.mxu0 %v3796
    %5636 = vmatpush.bf16.msra.mxu0 %v3786
    %5637 = vmatpush.bf16.msra.mxu0 %v3776
    %5638 = vmatpush.bf16.msra.mxu0 %v3766
    %5639 = vmatpush.bf16.msra.mxu0 %v3756
    %5640 = vmatpush.bf16.msra.mxu0 %v3746
    %5641 = vmatpush.bf16.msra.mxu0 %v3736
    %5642 = vmatmul.bf16.gmra.mxu0 %v1162
    %v5643 = vpop.f32.mrf.mxu0
    %v5644 = vadd.f32 0.0, %v5643
    %v5645 = vpop.f32.mrf.mxu0
    %5646 = vdwg.mxu0
    %5647 = vmatpush.bf16.msra.mxu0 %v3886
    %5648 = vmatpush.bf16.msra.mxu0 %v3876
    %5649 = vmatpush.bf16.msra.mxu0 %v3866
    %5650 = vmatpush.bf16.msra.mxu0 %v3856
    %5651 = vmatpush.bf16.msra.mxu0 %v3846
    %5652 = vmatpush.bf16.msra.mxu0 %v3836
    %5653 = vmatpush.bf16.msra.mxu0 %v3826
    %5654 = vmatpush.bf16.msra.mxu0 %v3816
    %5655 = vmatmul.bf16.gmra.mxu0 %v1163
    %v5656 = vpop.f32.mrf.mxu0
    %v5657 = vadd.f32 %v5644, %v5656
    %v5658 = vpop.f32.mrf.mxu0
    %5659 = vdwg.mxu0
    %5660 = vmatpush.bf16.msra.mxu0 %v3966
    %5661 = vmatpush.bf16.msra.mxu0 %v3956
    %5662 = vmatpush.bf16.msra.mxu0 %v3946
    %5663 = vmatpush.bf16.msra.mxu0 %v3936
    %5664 = vmatpush.bf16.msra.mxu0 %v3926
    %5665 = vmatpush.bf16.msra.mxu0 %v3916
    %5666 = vmatpush.bf16.msra.mxu0 %v3906
    %5667 = vmatpush.bf16.msra.mxu0 %v3896
    %5668 = vmatmul.bf16.gmra.mxu0 %v1164
    %v5669 = vpop.f32.mrf.mxu0
    %v5670 = vadd.f32 %v5657, %v5669
    %v5671 = vpop.f32.mrf.mxu0
    %5672 = vdwg.mxu0
    %5673 = vmatpush.bf16.msra.mxu0 %v4046
    %5674 = vmatpush.bf16.msra.mxu0 %v4036
    %5675 = vmatpush.bf16.msra.mxu0 %v4026
    %5676 = vmatpush.bf16.msra.mxu0 %v4016
    %5677 = vmatpush.bf16.msra.mxu0 %v4006
    %5678 = vmatpush.bf16.msra.mxu0 %v3996
    %5679 = vmatpush.bf16.msra.mxu0 %v3986
    %5680 = vmatpush.bf16.msra.mxu0 %v3976
    %5681 = vmatmul.bf16.gmra.mxu0 %v1165
    %v5682 = vpop.f32.mrf.mxu0
    %v5683 = vadd.f32 %v5670, %v5682
    %v5684 = vpop.f32.mrf.mxu0
    %5685 = vdwg.mxu0
    %5686 = vmatpush.bf16.msra.mxu0 %v4126
    %5687 = vmatpush.bf16.msra.mxu0 %v4116
    %5688 = vmatpush.bf16.msra.mxu0 %v4106
    %5689 = vmatpush.bf16.msra.mxu0 %v4096
    %5690 = vmatpush.bf16.msra.mxu0 %v4086
    %5691 = vmatpush.bf16.msra.mxu0 %v4076
    %5692 = vmatpush.bf16.msra.mxu0 %v4066
    %5693 = vmatpush.bf16.msra.mxu0 %v4056
    %5694 = vmatmul.bf16.gmra.mxu0 %v1166
    %v5695 = vpop.f32.mrf.mxu0
    %v5696 = vadd.f32 %v5683, %v5695
    %v5697 = vpop.f32.mrf.mxu0
    %5698 = vdwg.mxu0
    %5699 = vmatpush.bf16.msra.mxu0 %v4206
    %5700 = vmatpush.bf16.msra.mxu0 %v4196
    %5701 = vmatpush.bf16.msra.mxu0 %v4186
    %5702 = vmatpush.bf16.msra.mxu0 %v4176
    %5703 = vmatpush.bf16.msra.mxu0 %v4166
    %5704 = vmatpush.bf16.msra.mxu0 %v4156
    %5705 = vmatpush.bf16.msra.mxu0 %v4146
    %5706 = vmatpush.bf16.msra.mxu0 %v4136
    %5707 = vmatmul.bf16.gmra.mxu0 %v1167
    %v5708 = vpop.f32.mrf.mxu0
    %v5709 = vadd.f32 %v5696, %v5708
    %v5710 = vpop.f32.mrf.mxu0
    %5711 = vdwg.mxu0
    %5712 = vmatpush.bf16.msra.mxu0 %v4286
    %5713 = vmatpush.bf16.msra.mxu0 %v4276
    %5714 = vmatpush.bf16.msra.mxu0 %v4266
    %5715 = vmatpush.bf16.msra.mxu0 %v4256
    %5716 = vmatpush.bf16.msra.mxu0 %v4246
    %5717 = vmatpush.bf16.msra.mxu0 %v4236
    %5718 = vmatpush.bf16.msra.mxu0 %v4226
    %5719 = vmatpush.bf16.msra.mxu0 %v4216
    %5720 = vmatmul.bf16.gmra.mxu0 %v1168
    %v5721 = vpop.f32.mrf.mxu0
    %v5722 = vadd.f32 %v5709, %v5721
    %v5723 = vpop.f32.mrf.mxu0
    %5724 = vdwg.mxu0
    %5725 = vmatpush.bf16.msra.mxu0 %v4366
    %5726 = vmatpush.bf16.msra.mxu0 %v4356
    %5727 = vmatpush.bf16.msra.mxu0 %v4346
    %5728 = vmatpush.bf16.msra.mxu0 %v4336
    %5729 = vmatpush.bf16.msra.mxu0 %v4326
    %5730 = vmatpush.bf16.msra.mxu0 %v4316
    %5731 = vmatpush.bf16.msra.mxu0 %v4306
    %5732 = vmatpush.bf16.msra.mxu0 %v4296
    %5733 = vmatmul.bf16.gmra.mxu0 %v1169
    %v5734 = vpop.f32.mrf.mxu0
    %v5735 = vadd.f32 %v5722, %v5734
    %v5736 = vpop.f32.mrf.mxu0
    %5737 = vdwg.mxu0
    %5738 = vmatpush.bf16.msra.mxu0 %v3807
    %5739 = vmatpush.bf16.msra.mxu0 %v3797
    %5740 = vmatpush.bf16.msra.mxu0 %v3787
    %5741 = vmatpush.bf16.msra.mxu0 %v3777
    %5742 = vmatpush.bf16.msra.mxu0 %v3767
    %5743 = vmatpush.bf16.msra.mxu0 %v3757
    %5744 = vmatpush.bf16.msra.mxu0 %v3747
    %5745 = vmatpush.bf16.msra.mxu0 %v3737
    %5746 = vmatmul.bf16.gmra.mxu0 %v1162
    %v5747 = vpop.f32.mrf.mxu0
    %v5748 = vadd.f32 0.0, %v5747
    %v5749 = vpop.f32.mrf.mxu0
    %5750 = vdwg.mxu0
    %5751 = vmatpush.bf16.msra.mxu0 %v3887
    %5752 = vmatpush.bf16.msra.mxu0 %v3877
    %5753 = vmatpush.bf16.msra.mxu0 %v3867
    %5754 = vmatpush.bf16.msra.mxu0 %v3857
    %5755 = vmatpush.bf16.msra.mxu0 %v3847
    %5756 = vmatpush.bf16.msra.mxu0 %v3837
    %5757 = vmatpush.bf16.msra.mxu0 %v3827
    %5758 = vmatpush.bf16.msra.mxu0 %v3817
    %5759 = vmatmul.bf16.gmra.mxu0 %v1163
    %v5760 = vpop.f32.mrf.mxu0
    %v5761 = vadd.f32 %v5748, %v5760
    %v5762 = vpop.f32.mrf.mxu0
    %5763 = vdwg.mxu0
    %5764 = vmatpush.bf16.msra.mxu0 %v3967
    %5765 = vmatpush.bf16.msra.mxu0 %v3957
    %5766 = vmatpush.bf16.msra.mxu0 %v3947
    %5767 = vmatpush.bf16.msra.mxu0 %v3937
    %5768 = vmatpush.bf16.msra.mxu0 %v3927
    %5769 = vmatpush.bf16.msra.mxu0 %v3917
    %5770 = vmatpush.bf16.msra.mxu0 %v3907
    %5771 = vmatpush.bf16.msra.mxu0 %v3897
    %5772 = vmatmul.bf16.gmra.mxu0 %v1164
    %v5773 = vpop.f32.mrf.mxu0
    %v5774 = vadd.f32 %v5761, %v5773
    %v5775 = vpop.f32.mrf.mxu0
    %5776 = vdwg.mxu0
    %5777 = vmatpush.bf16.msra.mxu0 %v4047
    %5778 = vmatpush.bf16.msra.mxu0 %v4037
    %5779 = vmatpush.bf16.msra.mxu0 %v4027
    %5780 = vmatpush.bf16.msra.mxu0 %v4017
    %5781 = vmatpush.bf16.msra.mxu0 %v4007
    %5782 = vmatpush.bf16.msra.mxu0 %v3997
    %5783 = vmatpush.bf16.msra.mxu0 %v3987
    %5784 = vmatpush.bf16.msra.mxu0 %v3977
    %5785 = vmatmul.bf16.gmra.mxu0 %v1165
    %v5786 = vpop.f32.mrf.mxu0
    %v5787 = vadd.f32 %v5774, %v5786
    %v5788 = vpop.f32.mrf.mxu0
    %5789 = vdwg.mxu0
    %5790 = vmatpush.bf16.msra.mxu0 %v4127
    %5791 = vmatpush.bf16.msra.mxu0 %v4117
    %5792 = vmatpush.bf16.msra.mxu0 %v4107
    %5793 = vmatpush.bf16.msra.mxu0 %v4097
    %5794 = vmatpush.bf16.msra.mxu0 %v4087
    %5795 = vmatpush.bf16.msra.mxu0 %v4077
    %5796 = vmatpush.bf16.msra.mxu0 %v4067
    %5797 = vmatpush.bf16.msra.mxu0 %v4057
    %5798 = vmatmul.bf16.gmra.mxu0 %v1166
    %v5799 = vpop.f32.mrf.mxu0
    %v5800 = vadd.f32 %v5787, %v5799
    %v5801 = vpop.f32.mrf.mxu0
    %5802 = vdwg.mxu0
    %5803 = vmatpush.bf16.msra.mxu0 %v4207
    %5804 = vmatpush.bf16.msra.mxu0 %v4197
    %5805 = vmatpush.bf16.msra.mxu0 %v4187
    %5806 = vmatpush.bf16.msra.mxu0 %v4177
    %5807 = vmatpush.bf16.msra.mxu0 %v4167
    %5808 = vmatpush.bf16.msra.mxu0 %v4157
    %5809 = vmatpush.bf16.msra.mxu0 %v4147
    %5810 = vmatpush.bf16.msra.mxu0 %v4137
    %5811 = vmatmul.bf16.gmra.mxu0 %v1167
    %v5812 = vpop.f32.mrf.mxu0
    %v5813 = vadd.f32 %v5800, %v5812
    %v5814 = vpop.f32.mrf.mxu0
    %5815 = vdwg.mxu0
    %5816 = vmatpush.bf16.msra.mxu0 %v4287
    %5817 = vmatpush.bf16.msra.mxu0 %v4277
    %5818 = vmatpush.bf16.msra.mxu0 %v4267
    %5819 = vmatpush.bf16.msra.mxu0 %v4257
    %5820 = vmatpush.bf16.msra.mxu0 %v4247
    %5821 = vmatpush.bf16.msra.mxu0 %v4237
    %5822 = vmatpush.bf16.msra.mxu0 %v4227
    %5823 = vmatpush.bf16.msra.mxu0 %v4217
    %5824 = vmatmul.bf16.gmra.mxu0 %v1168
    %v5825 = vpop.f32.mrf.mxu0
    %v5826 = vadd.f32 %v5813, %v5825
    %v5827 = vpop.f32.mrf.mxu0
    %5828 = vdwg.mxu0
    %5829 = vmatpush.bf16.msra.mxu0 %v4367
    %5830 = vmatpush.bf16.msra.mxu0 %v4357
    %5831 = vmatpush.bf16.msra.mxu0 %v4347
    %5832 = vmatpush.bf16.msra.mxu0 %v4337
    %5833 = vmatpush.bf16.msra.mxu0 %v4327
    %5834 = vmatpush.bf16.msra.mxu0 %v4317
    %5835 = vmatpush.bf16.msra.mxu0 %v4307
    %5836 = vmatpush.bf16.msra.mxu0 %v4297
    %5837 = vmatmul.bf16.gmra.mxu0 %v1169
    %v5838 = vpop.f32.mrf.mxu0
    %v5839 = vadd.f32 %v5826, %v5838
    %v5840 = vpop.f32.mrf.mxu0
    %5841 = vdwg.mxu0
    %5842 = vmatpush.bf16.msra.mxu0 %v3808
    %5843 = vmatpush.bf16.msra.mxu0 %v3798
    %5844 = vmatpush.bf16.msra.mxu0 %v3788
    %5845 = vmatpush.bf16.msra.mxu0 %v3778
    %5846 = vmatpush.bf16.msra.mxu0 %v3768
    %5847 = vmatpush.bf16.msra.mxu0 %v3758
    %5848 = vmatpush.bf16.msra.mxu0 %v3748
    %5849 = vmatpush.bf16.msra.mxu0 %v3738
    %5850 = vmatmul.bf16.gmra.mxu0 %v1162
    %v5851 = vpop.f32.mrf.mxu0
    %v5852 = vadd.f32 0.0, %v5851
    %v5853 = vpop.f32.mrf.mxu0
    %5854 = vdwg.mxu0
    %5855 = vmatpush.bf16.msra.mxu0 %v3888
    %5856 = vmatpush.bf16.msra.mxu0 %v3878
    %5857 = vmatpush.bf16.msra.mxu0 %v3868
    %5858 = vmatpush.bf16.msra.mxu0 %v3858
    %5859 = vmatpush.bf16.msra.mxu0 %v3848
    %5860 = vmatpush.bf16.msra.mxu0 %v3838
    %5861 = vmatpush.bf16.msra.mxu0 %v3828
    %5862 = vmatpush.bf16.msra.mxu0 %v3818
    %5863 = vmatmul.bf16.gmra.mxu0 %v1163
    %v5864 = vpop.f32.mrf.mxu0
    %v5865 = vadd.f32 %v5852, %v5864
    %v5866 = vpop.f32.mrf.mxu0
    %5867 = vdwg.mxu0
    %5868 = vmatpush.bf16.msra.mxu0 %v3968
    %5869 = vmatpush.bf16.msra.mxu0 %v3958
    %5870 = vmatpush.bf16.msra.mxu0 %v3948
    %5871 = vmatpush.bf16.msra.mxu0 %v3938
    %5872 = vmatpush.bf16.msra.mxu0 %v3928
    %5873 = vmatpush.bf16.msra.mxu0 %v3918
    %5874 = vmatpush.bf16.msra.mxu0 %v3908
    %5875 = vmatpush.bf16.msra.mxu0 %v3898
    %5876 = vmatmul.bf16.gmra.mxu0 %v1164
    %v5877 = vpop.f32.mrf.mxu0
    %v5878 = vadd.f32 %v5865, %v5877
    %v5879 = vpop.f32.mrf.mxu0
    %5880 = vdwg.mxu0
    %5881 = vmatpush.bf16.msra.mxu0 %v4048
    %5882 = vmatpush.bf16.msra.mxu0 %v4038
    %5883 = vmatpush.bf16.msra.mxu0 %v4028
    %5884 = vmatpush.bf16.msra.mxu0 %v4018
    %5885 = vmatpush.bf16.msra.mxu0 %v4008
    %5886 = vmatpush.bf16.msra.mxu0 %v3998
    %5887 = vmatpush.bf16.msra.mxu0 %v3988
    %5888 = vmatpush.bf16.msra.mxu0 %v3978
    %5889 = vmatmul.bf16.gmra.mxu0 %v1165
    %v5890 = vpop.f32.mrf.mxu0
    %v5891 = vadd.f32 %v5878, %v5890
    %v5892 = vpop.f32.mrf.mxu0
    %5893 = vdwg.mxu0
    %5894 = vmatpush.bf16.msra.mxu0 %v4128
    %5895 = vmatpush.bf16.msra.mxu0 %v4118
    %5896 = vmatpush.bf16.msra.mxu0 %v4108
    %5897 = vmatpush.bf16.msra.mxu0 %v4098
    %5898 = vmatpush.bf16.msra.mxu0 %v4088
    %5899 = vmatpush.bf16.msra.mxu0 %v4078
    %5900 = vmatpush.bf16.msra.mxu0 %v4068
    %5901 = vmatpush.bf16.msra.mxu0 %v4058
    %5902 = vmatmul.bf16.gmra.mxu0 %v1166
    %v5903 = vpop.f32.mrf.mxu0
    %v5904 = vadd.f32 %v5891, %v5903
    %v5905 = vpop.f32.mrf.mxu0
    %5906 = vdwg.mxu0
    %5907 = vmatpush.bf16.msra.mxu0 %v4208
    %5908 = vmatpush.bf16.msra.mxu0 %v4198
    %5909 = vmatpush.bf16.msra.mxu0 %v4188
    %5910 = vmatpush.bf16.msra.mxu0 %v4178
    %5911 = vmatpush.bf16.msra.mxu0 %v4168
    %5912 = vmatpush.bf16.msra.mxu0 %v4158
    %5913 = vmatpush.bf16.msra.mxu0 %v4148
    %5914 = vmatpush.bf16.msra.mxu0 %v4138
    %5915 = vmatmul.bf16.gmra.mxu0 %v1167
    %v5916 = vpop.f32.mrf.mxu0
    %v5917 = vadd.f32 %v5904, %v5916
    %v5918 = vpop.f32.mrf.mxu0
    %5919 = vdwg.mxu0
    %5920 = vmatpush.bf16.msra.mxu0 %v4288
    %5921 = vmatpush.bf16.msra.mxu0 %v4278
    %5922 = vmatpush.bf16.msra.mxu0 %v4268
    %5923 = vmatpush.bf16.msra.mxu0 %v4258
    %5924 = vmatpush.bf16.msra.mxu0 %v4248
    %5925 = vmatpush.bf16.msra.mxu0 %v4238
    %5926 = vmatpush.bf16.msra.mxu0 %v4228
    %5927 = vmatpush.bf16.msra.mxu0 %v4218
    %5928 = vmatmul.bf16.gmra.mxu0 %v1168
    %v5929 = vpop.f32.mrf.mxu0
    %v5930 = vadd.f32 %v5917, %v5929
    %v5931 = vpop.f32.mrf.mxu0
    %5932 = vdwg.mxu0
    %5933 = vmatpush.bf16.msra.mxu0 %v4368
    %5934 = vmatpush.bf16.msra.mxu0 %v4358
    %5935 = vmatpush.bf16.msra.mxu0 %v4348
    %5936 = vmatpush.bf16.msra.mxu0 %v4338
    %5937 = vmatpush.bf16.msra.mxu0 %v4328
    %5938 = vmatpush.bf16.msra.mxu0 %v4318
    %5939 = vmatpush.bf16.msra.mxu0 %v4308
    %5940 = vmatpush.bf16.msra.mxu0 %v4298
    %5941 = vmatmul.bf16.gmra.mxu0 %v1169
    %v5942 = vpop.f32.mrf.mxu0
    %v5943 = vadd.f32 %v5930, %v5942
    %v5944 = vpop.f32.mrf.mxu0
    %5945 = vdwg.mxu0
    %5946 = vmatpush.bf16.msra.mxu0 %v3809
    %5947 = vmatpush.bf16.msra.mxu0 %v3799
    %5948 = vmatpush.bf16.msra.mxu0 %v3789
    %5949 = vmatpush.bf16.msra.mxu0 %v3779
    %5950 = vmatpush.bf16.msra.mxu0 %v3769
    %5951 = vmatpush.bf16.msra.mxu0 %v3759
    %5952 = vmatpush.bf16.msra.mxu0 %v3749
    %5953 = vmatpush.bf16.msra.mxu0 %v3739
    %5954 = vmatmul.bf16.gmra.mxu0 %v1162
    %v5955 = vpop.f32.mrf.mxu0
    %v5956 = vadd.f32 0.0, %v5955
    %v5957 = vpop.f32.mrf.mxu0
    %5958 = vdwg.mxu0
    %5959 = vmatpush.bf16.msra.mxu0 %v3889
    %5960 = vmatpush.bf16.msra.mxu0 %v3879
    %5961 = vmatpush.bf16.msra.mxu0 %v3869
    %5962 = vmatpush.bf16.msra.mxu0 %v3859
    %5963 = vmatpush.bf16.msra.mxu0 %v3849
    %5964 = vmatpush.bf16.msra.mxu0 %v3839
    %5965 = vmatpush.bf16.msra.mxu0 %v3829
    %5966 = vmatpush.bf16.msra.mxu0 %v3819
    %5967 = vmatmul.bf16.gmra.mxu0 %v1163
    %v5968 = vpop.f32.mrf.mxu0
    %v5969 = vadd.f32 %v5956, %v5968
    %v5970 = vpop.f32.mrf.mxu0
    %5971 = vdwg.mxu0
    %5972 = vmatpush.bf16.msra.mxu0 %v3969
    %5973 = vmatpush.bf16.msra.mxu0 %v3959
    %5974 = vmatpush.bf16.msra.mxu0 %v3949
    %5975 = vmatpush.bf16.msra.mxu0 %v3939
    %5976 = vmatpush.bf16.msra.mxu0 %v3929
    %5977 = vmatpush.bf16.msra.mxu0 %v3919
    %5978 = vmatpush.bf16.msra.mxu0 %v3909
    %5979 = vmatpush.bf16.msra.mxu0 %v3899
    %5980 = vmatmul.bf16.gmra.mxu0 %v1164
    %v5981 = vpop.f32.mrf.mxu0
    %v5982 = vadd.f32 %v5969, %v5981
    %v5983 = vpop.f32.mrf.mxu0
    %5984 = vdwg.mxu0
    %5985 = vmatpush.bf16.msra.mxu0 %v4049
    %5986 = vmatpush.bf16.msra.mxu0 %v4039
    %5987 = vmatpush.bf16.msra.mxu0 %v4029
    %5988 = vmatpush.bf16.msra.mxu0 %v4019
    %5989 = vmatpush.bf16.msra.mxu0 %v4009
    %5990 = vmatpush.bf16.msra.mxu0 %v3999
    %5991 = vmatpush.bf16.msra.mxu0 %v3989
    %5992 = vmatpush.bf16.msra.mxu0 %v3979
    %5993 = vmatmul.bf16.gmra.mxu0 %v1165
    %v5994 = vpop.f32.mrf.mxu0
    %v5995 = vadd.f32 %v5982, %v5994
    %v5996 = vpop.f32.mrf.mxu0
    %5997 = vdwg.mxu0
    %5998 = vmatpush.bf16.msra.mxu0 %v4129
    %5999 = vmatpush.bf16.msra.mxu0 %v4119
    %6000 = vmatpush.bf16.msra.mxu0 %v4109
    %6001 = vmatpush.bf16.msra.mxu0 %v4099
    %6002 = vmatpush.bf16.msra.mxu0 %v4089
    %6003 = vmatpush.bf16.msra.mxu0 %v4079
    %6004 = vmatpush.bf16.msra.mxu0 %v4069
    %6005 = vmatpush.bf16.msra.mxu0 %v4059
    %6006 = vmatmul.bf16.gmra.mxu0 %v1166
    %v6007 = vpop.f32.mrf.mxu0
    %v6008 = vadd.f32 %v5995, %v6007
    %v6009 = vpop.f32.mrf.mxu0
    %6010 = vdwg.mxu0
    %6011 = vmatpush.bf16.msra.mxu0 %v4209
    %6012 = vmatpush.bf16.msra.mxu0 %v4199
    %6013 = vmatpush.bf16.msra.mxu0 %v4189
    %6014 = vmatpush.bf16.msra.mxu0 %v4179
    %6015 = vmatpush.bf16.msra.mxu0 %v4169
    %6016 = vmatpush.bf16.msra.mxu0 %v4159
    %6017 = vmatpush.bf16.msra.mxu0 %v4149
    %6018 = vmatpush.bf16.msra.mxu0 %v4139
    %6019 = vmatmul.bf16.gmra.mxu0 %v1167
    %v6020 = vpop.f32.mrf.mxu0
    %v6021 = vadd.f32 %v6008, %v6020
    %v6022 = vpop.f32.mrf.mxu0
    %6023 = vdwg.mxu0
    %6024 = vmatpush.bf16.msra.mxu0 %v4289
    %6025 = vmatpush.bf16.msra.mxu0 %v4279
    %6026 = vmatpush.bf16.msra.mxu0 %v4269
    %6027 = vmatpush.bf16.msra.mxu0 %v4259
    %6028 = vmatpush.bf16.msra.mxu0 %v4249
    %6029 = vmatpush.bf16.msra.mxu0 %v4239
    %6030 = vmatpush.bf16.msra.mxu0 %v4229
    %6031 = vmatpush.bf16.msra.mxu0 %v4219
    %6032 = vmatmul.bf16.gmra.mxu0 %v1168
    %v6033 = vpop.f32.mrf.mxu0
    %v6034 = vadd.f32 %v6021, %v6033
    %v6035 = vpop.f32.mrf.mxu0
    %6036 = vdwg.mxu0
    %6037 = vmatpush.bf16.msra.mxu0 %v4369
    %6038 = vmatpush.bf16.msra.mxu0 %v4359
    %6039 = vmatpush.bf16.msra.mxu0 %v4349
    %6040 = vmatpush.bf16.msra.mxu0 %v4339
    %6041 = vmatpush.bf16.msra.mxu0 %v4329
    %6042 = vmatpush.bf16.msra.mxu0 %v4319
    %6043 = vmatpush.bf16.msra.mxu0 %v4309
    %6044 = vmatpush.bf16.msra.mxu0 %v4299
    %6045 = vmatmul.bf16.gmra.mxu0 %v1169
    %v6046 = vpop.f32.mrf.mxu0
    %v6047 = vadd.f32 %v6034, %v6046
    %v6048 = vpop.f32.mrf.mxu0
    %6049 = vdwg.mxu0
    %v6210 = vunpack.c.l.b16 %v1002
    %v6211 = vunpack.c.h.b16 %v1002
    %v6212 = vunpack.c.l.b16 %v1003
    %v6213 = vunpack.c.h.b16 %v1003
    %v6214 = vunpack.c.l.b16 %v1004
    %v6215 = vunpack.c.h.b16 %v1004
    %v6216 = vunpack.c.l.b16 %v1005
    %v6217 = vunpack.c.h.b16 %v1005
    %v6218 = vunpack.c.l.b16 %v1006
    %v6219 = vunpack.c.h.b16 %v1006
    %v6220 = vunpack.c.l.b16 %v1007
    %v6221 = vunpack.c.h.b16 %v1007
    %v6222 = vunpack.c.l.b16 %v1008
    %v6223 = vunpack.c.h.b16 %v1008
    %v6224 = vunpack.c.l.b16 %v1009
    %v6225 = vunpack.c.h.b16 %v1009
    %v6226 = vunpack.c.l.b16 %v1010
    %v6227 = vunpack.c.h.b16 %v1010
    %v6228 = vunpack.c.l.b16 %v1011
    %v6229 = vunpack.c.h.b16 %v1011
    %v6230 = vunpack.c.l.b16 %v1012
    %v6231 = vunpack.c.h.b16 %v1012
    %v6232 = vunpack.c.l.b16 %v1013
    %v6233 = vunpack.c.h.b16 %v1013
    %v6234 = vunpack.c.l.b16 %v1014
    %v6235 = vunpack.c.h.b16 %v1014
    %v6236 = vunpack.c.l.b16 %v1015
    %v6237 = vunpack.c.h.b16 %v1015
    %v6238 = vunpack.c.l.b16 %v1016
    %v6239 = vunpack.c.h.b16 %v1016
    %v6240 = vunpack.c.l.b16 %v1017
    %v6241 = vunpack.c.h.b16 %v1017
    %v6242 = vunpack.c.l.b16 %v1018
    %v6243 = vunpack.c.h.b16 %v1018
    %v6244 = vunpack.c.l.b16 %v1019
    %v6245 = vunpack.c.h.b16 %v1019
    %v6246 = vunpack.c.l.b16 %v1020
    %v6247 = vunpack.c.h.b16 %v1020
    %v6248 = vunpack.c.l.b16 %v1021
    %v6249 = vunpack.c.h.b16 %v1021
    %v6250 = vunpack.c.l.b16 %v1022
    %v6251 = vunpack.c.h.b16 %v1022
    %v6252 = vunpack.c.l.b16 %v1023
    %v6253 = vunpack.c.h.b16 %v1023
    %v6254 = vunpack.c.l.b16 %v1024
    %v6255 = vunpack.c.h.b16 %v1024
    %v6256 = vunpack.c.l.b16 %v1025
    %v6257 = vunpack.c.h.b16 %v1025
    %v6258 = vunpack.c.l.b16 %v1026
    %v6259 = vunpack.c.h.b16 %v1026
    %v6260 = vunpack.c.l.b16 %v1027
    %v6261 = vunpack.c.h.b16 %v1027
    %v6262 = vunpack.c.l.b16 %v1028
    %v6263 = vunpack.c.h.b16 %v1028
    %v6264 = vunpack.c.l.b16 %v1029
    %v6265 = vunpack.c.h.b16 %v1029
    %v6266 = vunpack.c.l.b16 %v1030
    %v6267 = vunpack.c.h.b16 %v1030
    %v6268 = vunpack.c.l.b16 %v1031
    %v6269 = vunpack.c.h.b16 %v1031
    %v6270 = vunpack.c.l.b16 %v1032
    %v6271 = vunpack.c.h.b16 %v1032
    %v6272 = vunpack.c.l.b16 %v1033
    %v6273 = vunpack.c.h.b16 %v1033
    %v6274 = vunpack.c.l.b16 %v1034
    %v6275 = vunpack.c.h.b16 %v1034
    %v6276 = vunpack.c.l.b16 %v1035
    %v6277 = vunpack.c.h.b16 %v1035
    %v6278 = vunpack.c.l.b16 %v1036
    %v6279 = vunpack.c.h.b16 %v1036
    %v6280 = vunpack.c.l.b16 %v1037
    %v6281 = vunpack.c.h.b16 %v1037
    %v6282 = vunpack.c.l.b16 %v1038
    %v6283 = vunpack.c.h.b16 %v1038
    %v6284 = vunpack.c.l.b16 %v1039
    %v6285 = vunpack.c.h.b16 %v1039
    %v6286 = vunpack.c.l.b16 %v1040
    %v6287 = vunpack.c.h.b16 %v1040
    %v6288 = vunpack.c.l.b16 %v1041
    %v6289 = vunpack.c.h.b16 %v1041
    %v6290 = vunpack.c.l.b16 %v1042
    %v6291 = vunpack.c.h.b16 %v1042
    %v6292 = vunpack.c.l.b16 %v1043
    %v6293 = vunpack.c.h.b16 %v1043
    %v6294 = vunpack.c.l.b16 %v1044
    %v6295 = vunpack.c.h.b16 %v1044
    %v6296 = vunpack.c.l.b16 %v1045
    %v6297 = vunpack.c.h.b16 %v1045
    %v6298 = vunpack.c.l.b16 %v1046
    %v6299 = vunpack.c.h.b16 %v1046
    %v6300 = vunpack.c.l.b16 %v1047
    %v6301 = vunpack.c.h.b16 %v1047
    %v6302 = vunpack.c.l.b16 %v1048
    %v6303 = vunpack.c.h.b16 %v1048
    %v6304 = vunpack.c.l.b16 %v1049
    %v6305 = vunpack.c.h.b16 %v1049
    %v6306 = vunpack.c.l.b16 %v1050
    %v6307 = vunpack.c.h.b16 %v1050
    %v6308 = vunpack.c.l.b16 %v1051
    %v6309 = vunpack.c.h.b16 %v1051
    %v6310 = vunpack.c.l.b16 %v1052
    %v6311 = vunpack.c.h.b16 %v1052
    %v6312 = vunpack.c.l.b16 %v1053
    %v6313 = vunpack.c.h.b16 %v1053
    %v6314 = vunpack.c.l.b16 %v1054
    %v6315 = vunpack.c.h.b16 %v1054
    %v6316 = vunpack.c.l.b16 %v1055
    %v6317 = vunpack.c.h.b16 %v1055
    %v6318 = vunpack.c.l.b16 %v1056
    %v6319 = vunpack.c.h.b16 %v1056
    %v6320 = vunpack.c.l.b16 %v1057
    %v6321 = vunpack.c.h.b16 %v1057
    %v6322 = vunpack.c.l.b16 %v1058
    %v6323 = vunpack.c.h.b16 %v1058
    %v6324 = vunpack.c.l.b16 %v1059
    %v6325 = vunpack.c.h.b16 %v1059
    %v6326 = vunpack.c.l.b16 %v1060
    %v6327 = vunpack.c.h.b16 %v1060
    %v6328 = vunpack.c.l.b16 %v1061
    %v6329 = vunpack.c.h.b16 %v1061
    %v6330 = vunpack.c.l.b16 %v1062
    %v6331 = vunpack.c.h.b16 %v1062
    %v6332 = vunpack.c.l.b16 %v1063
    %v6333 = vunpack.c.h.b16 %v1063
    %v6334 = vunpack.c.l.b16 %v1064
    %v6335 = vunpack.c.h.b16 %v1064
    %v6336 = vunpack.c.l.b16 %v1065
    %v6337 = vunpack.c.h.b16 %v1065
    %v6338 = vunpack.c.l.b16 %v1066
    %v6339 = vunpack.c.h.b16 %v1066
    %v6340 = vunpack.c.l.b16 %v1067
    %v6341 = vunpack.c.h.b16 %v1067
    %v6342 = vunpack.c.l.b16 %v1068
    %v6343 = vunpack.c.h.b16 %v1068
    %v6344 = vunpack.c.l.b16 %v1069
    %v6345 = vunpack.c.h.b16 %v1069
    %v6346 = vunpack.c.l.b16 %v1070
    %v6347 = vunpack.c.h.b16 %v1070
    %v6348 = vunpack.c.l.b16 %v1071
    %v6349 = vunpack.c.h.b16 %v1071
    %v6350 = vunpack.c.l.b16 %v1072
    %v6351 = vunpack.c.h.b16 %v1072
    %v6352 = vunpack.c.l.b16 %v1073
    %v6353 = vunpack.c.h.b16 %v1073
    %v6354 = vunpack.c.l.b16 %v1074
    %v6355 = vunpack.c.h.b16 %v1074
    %v6356 = vunpack.c.l.b16 %v1075
    %v6357 = vunpack.c.h.b16 %v1075
    %v6358 = vunpack.c.l.b16 %v1076
    %v6359 = vunpack.c.h.b16 %v1076
    %v6360 = vunpack.c.l.b16 %v1077
    %v6361 = vunpack.c.h.b16 %v1077
    %v6362 = vunpack.c.l.b16 %v1078
    %v6363 = vunpack.c.h.b16 %v1078
    %v6364 = vunpack.c.l.b16 %v1079
    %v6365 = vunpack.c.h.b16 %v1079
    %v6366 = vunpack.c.l.b16 %v1080
    %v6367 = vunpack.c.h.b16 %v1080
    %v6368 = vunpack.c.l.b16 %v1081
    %v6369 = vunpack.c.h.b16 %v1081
    %v6370 = vunpack.c.l.b16 %v1082
    %v6371 = vunpack.c.h.b16 %v1082
    %v6372 = vunpack.c.l.b16 %v1083
    %v6373 = vunpack.c.h.b16 %v1083
    %v6374 = vunpack.c.l.b16 %v1084
    %v6375 = vunpack.c.h.b16 %v1084
    %v6376 = vunpack.c.l.b16 %v1085
    %v6377 = vunpack.c.h.b16 %v1085
    %v6378 = vunpack.c.l.b16 %v1086
    %v6379 = vunpack.c.h.b16 %v1086
    %v6380 = vunpack.c.l.b16 %v1087
    %v6381 = vunpack.c.h.b16 %v1087
    %v6382 = vunpack.c.l.b16 %v1088
    %v6383 = vunpack.c.h.b16 %v1088
    %v6384 = vunpack.c.l.b16 %v1089
    %v6385 = vunpack.c.h.b16 %v1089
    %v6386 = vunpack.c.l.b16 %v1090
    %v6387 = vunpack.c.h.b16 %v1090
    %v6388 = vunpack.c.l.b16 %v1091
    %v6389 = vunpack.c.h.b16 %v1091
    %v6390 = vunpack.c.l.b16 %v1092
    %v6391 = vunpack.c.h.b16 %v1092
    %v6392 = vunpack.c.l.b16 %v1093
    %v6393 = vunpack.c.h.b16 %v1093
    %v6394 = vunpack.c.l.b16 %v1094
    %v6395 = vunpack.c.h.b16 %v1094
    %v6396 = vunpack.c.l.b16 %v1095
    %v6397 = vunpack.c.h.b16 %v1095
    %v6398 = vunpack.c.l.b16 %v1096
    %v6399 = vunpack.c.h.b16 %v1096
    %v6400 = vunpack.c.l.b16 %v1097
    %v6401 = vunpack.c.h.b16 %v1097
    %v6402 = vunpack.c.l.b16 %v1098
    %v6403 = vunpack.c.h.b16 %v1098
    %v6404 = vunpack.c.l.b16 %v1099
    %v6405 = vunpack.c.h.b16 %v1099
    %v6406 = vunpack.c.l.b16 %v1100
    %v6407 = vunpack.c.h.b16 %v1100
    %v6408 = vunpack.c.l.b16 %v1101
    %v6409 = vunpack.c.h.b16 %v1101
    %v6410 = vunpack.c.l.b16 %v1102
    %v6411 = vunpack.c.h.b16 %v1102
    %v6412 = vunpack.c.l.b16 %v1103
    %v6413 = vunpack.c.h.b16 %v1103
    %v6414 = vunpack.c.l.b16 %v1104
    %v6415 = vunpack.c.h.b16 %v1104
    %v6416 = vunpack.c.l.b16 %v1105
    %v6417 = vunpack.c.h.b16 %v1105
    %v6418 = vunpack.c.l.b16 %v1106
    %v6419 = vunpack.c.h.b16 %v1106
    %v6420 = vunpack.c.l.b16 %v1107
    %v6421 = vunpack.c.h.b16 %v1107
    %v6422 = vunpack.c.l.b16 %v1108
    %v6423 = vunpack.c.h.b16 %v1108
    %v6424 = vunpack.c.l.b16 %v1109
    %v6425 = vunpack.c.h.b16 %v1109
    %v6426 = vunpack.c.l.b16 %v1110
    %v6427 = vunpack.c.h.b16 %v1110
    %v6428 = vunpack.c.l.b16 %v1111
    %v6429 = vunpack.c.h.b16 %v1111
    %v6430 = vunpack.c.l.b16 %v1112
    %v6431 = vunpack.c.h.b16 %v1112
    %v6432 = vunpack.c.l.b16 %v1113
    %v6433 = vunpack.c.h.b16 %v1113
    %v6434 = vunpack.c.l.b16 %v1114
    %v6435 = vunpack.c.h.b16 %v1114
    %v6436 = vunpack.c.l.b16 %v1115
    %v6437 = vunpack.c.h.b16 %v1115
    %v6438 = vunpack.c.l.b16 %v1116
    %v6439 = vunpack.c.h.b16 %v1116
    %v6440 = vunpack.c.l.b16 %v1117
    %v6441 = vunpack.c.h.b16 %v1117
    %v6442 = vunpack.c.l.b16 %v1118
    %v6443 = vunpack.c.h.b16 %v1118
    %v6444 = vunpack.c.l.b16 %v1119
    %v6445 = vunpack.c.h.b16 %v1119
    %v6446 = vunpack.c.l.b16 %v1120
    %v6447 = vunpack.c.h.b16 %v1120
    %v6448 = vunpack.c.l.b16 %v1121
    %v6449 = vunpack.c.h.b16 %v1121
    %v6450 = vunpack.c.l.b16 %v1122
    %v6451 = vunpack.c.h.b16 %v1122
    %v6452 = vunpack.c.l.b16 %v1123
    %v6453 = vunpack.c.h.b16 %v1123
    %v6454 = vunpack.c.l.b16 %v1124
    %v6455 = vunpack.c.h.b16 %v1124
    %v6456 = vunpack.c.l.b16 %v1125
    %v6457 = vunpack.c.h.b16 %v1125
    %v6458 = vunpack.c.l.b16 %v1126
    %v6459 = vunpack.c.h.b16 %v1126
    %v6460 = vunpack.c.l.b16 %v1127
    %v6461 = vunpack.c.h.b16 %v1127
    %v6462 = vunpack.c.l.b16 %v1128
    %v6463 = vunpack.c.h.b16 %v1128
    %v6464 = vunpack.c.l.b16 %v1129
    %v6465 = vunpack.c.h.b16 %v1129
    %v6466 = vunpack.c.l.b16 %v1130
    %v6467 = vunpack.c.h.b16 %v1130
    %v6468 = vunpack.c.l.b16 %v1131
    %v6469 = vunpack.c.h.b16 %v1131
    %v6470 = vunpack.c.l.b16 %v1132
    %v6471 = vunpack.c.h.b16 %v1132
    %v6472 = vunpack.c.l.b16 %v1133
    %v6473 = vunpack.c.h.b16 %v1133
    %v6474 = vunpack.c.l.b16 %v1134
    %v6475 = vunpack.c.h.b16 %v1134
    %v6476 = vunpack.c.l.b16 %v1135
    %v6477 = vunpack.c.h.b16 %v1135
    %v6478 = vunpack.c.l.b16 %v1136
    %v6479 = vunpack.c.h.b16 %v1136
    %v6480 = vunpack.c.l.b16 %v1137
    %v6481 = vunpack.c.h.b16 %v1137
    %v6482 = vunpack.c.l.b16 %v1138
    %v6483 = vunpack.c.h.b16 %v1138
    %v6484 = vunpack.c.l.b16 %v1139
    %v6485 = vunpack.c.h.b16 %v1139
    %v6486 = vunpack.c.l.b16 %v1140
    %v6487 = vunpack.c.h.b16 %v1140
    %v6488 = vunpack.c.l.b16 %v1141
    %v6489 = vunpack.c.h.b16 %v1141
    %v6490 = vunpack.c.l.b16 %v1142
    %v6491 = vunpack.c.h.b16 %v1142
    %v6492 = vunpack.c.l.b16 %v1143
    %v6493 = vunpack.c.h.b16 %v1143
    %v6494 = vunpack.c.l.b16 %v1144
    %v6495 = vunpack.c.h.b16 %v1144
    %v6496 = vunpack.c.l.b16 %v1145
    %v6497 = vunpack.c.h.b16 %v1145
    %v6498 = vunpack.c.l.b16 %v1146
    %v6499 = vunpack.c.h.b16 %v1146
    %v6500 = vunpack.c.l.b16 %v1147
    %v6501 = vunpack.c.h.b16 %v1147
    %v6502 = vunpack.c.l.b16 %v1148
    %v6503 = vunpack.c.h.b16 %v1148
    %v6504 = vunpack.c.l.b16 %v1149
    %v6505 = vunpack.c.h.b16 %v1149
    %v6506 = vunpack.c.l.b16 %v1150
    %v6507 = vunpack.c.h.b16 %v1150
    %v6508 = vunpack.c.l.b16 %v1151
    %v6509 = vunpack.c.h.b16 %v1151
    %v6510 = vunpack.c.l.b16 %v1152
    %v6511 = vunpack.c.h.b16 %v1152
    %v6512 = vunpack.c.l.b16 %v1153
    %v6513 = vunpack.c.h.b16 %v1153
    %v6514 = vunpack.c.l.b16 %v1154
    %v6515 = vunpack.c.h.b16 %v1154
    %v6516 = vunpack.c.l.b16 %v1155
    %v6517 = vunpack.c.h.b16 %v1155
    %v6518 = vunpack.c.l.b16 %v1156
    %v6519 = vunpack.c.h.b16 %v1156
    %v6520 = vunpack.c.l.b16 %v1157
    %v6521 = vunpack.c.h.b16 %v1157
    %v6522 = vunpack.c.l.b16 %v1158
    %v6523 = vunpack.c.h.b16 %v1158
    %v6524 = vunpack.c.l.b16 %v1159
    %v6525 = vunpack.c.h.b16 %v1159
    %v6526 = vunpack.c.l.b16 %v1160
    %v6527 = vunpack.c.h.b16 %v1160
    %v6528 = vunpack.c.l.b16 %v1161
    %v6529 = vunpack.c.h.b16 %v1161
    %v6530 = vpack.c.b16 %v6220, %v6210
    %v6531 = vpack.c.b16 %v6221, %v6211
    %v6532 = vpack.c.b16 %v6222, %v6212
    %v6533 = vpack.c.b16 %v6223, %v6213
    %v6534 = vpack.c.b16 %v6224, %v6214
    %v6535 = vpack.c.b16 %v6225, %v6215
    %v6536 = vpack.c.b16 %v6226, %v6216
    %v6537 = vpack.c.b16 %v6227, %v6217
    %v6538 = vpack.c.b16 %v6228, %v6218
    %v6539 = vpack.c.b16 %v6229, %v6219
    %v6540 = vpack.c.b16 %v6240, %v6230
    %v6541 = vpack.c.b16 %v6241, %v6231
    %v6542 = vpack.c.b16 %v6242, %v6232
    %v6543 = vpack.c.b16 %v6243, %v6233
    %v6544 = vpack.c.b16 %v6244, %v6234
    %v6545 = vpack.c.b16 %v6245, %v6235
    %v6546 = vpack.c.b16 %v6246, %v6236
    %v6547 = vpack.c.b16 %v6247, %v6237
    %v6548 = vpack.c.b16 %v6248, %v6238
    %v6549 = vpack.c.b16 %v6249, %v6239
    %v6550 = vpack.c.b16 %v6260, %v6250
    %v6551 = vpack.c.b16 %v6261, %v6251
    %v6552 = vpack.c.b16 %v6262, %v6252
    %v6553 = vpack.c.b16 %v6263, %v6253
    %v6554 = vpack.c.b16 %v6264, %v6254
    %v6555 = vpack.c.b16 %v6265, %v6255
    %v6556 = vpack.c.b16 %v6266, %v6256
    %v6557 = vpack.c.b16 %v6267, %v6257
    %v6558 = vpack.c.b16 %v6268, %v6258
    %v6559 = vpack.c.b16 %v6269, %v6259
    %v6560 = vpack.c.b16 %v6280, %v6270
    %v6561 = vpack.c.b16 %v6281, %v6271
    %v6562 = vpack.c.b16 %v6282, %v6272
    %v6563 = vpack.c.b16 %v6283, %v6273
    %v6564 = vpack.c.b16 %v6284, %v6274
    %v6565 = vpack.c.b16 %v6285, %v6275
    %v6566 = vpack.c.b16 %v6286, %v6276
    %v6567 = vpack.c.b16 %v6287, %v6277
    %v6568 = vpack.c.b16 %v6288, %v6278
    %v6569 = vpack.c.b16 %v6289, %v6279
    %v6570 = vpack.c.b16 %v6300, %v6290
    %v6571 = vpack.c.b16 %v6301, %v6291
    %v6572 = vpack.c.b16 %v6302, %v6292
    %v6573 = vpack.c.b16 %v6303, %v6293
    %v6574 = vpack.c.b16 %v6304, %v6294
    %v6575 = vpack.c.b16 %v6305, %v6295
    %v6576 = vpack.c.b16 %v6306, %v6296
    %v6577 = vpack.c.b16 %v6307, %v6297
    %v6578 = vpack.c.b16 %v6308, %v6298
    %v6579 = vpack.c.b16 %v6309, %v6299
    %v6580 = vpack.c.b16 %v6320, %v6310
    %v6581 = vpack.c.b16 %v6321, %v6311
    %v6582 = vpack.c.b16 %v6322, %v6312
    %v6583 = vpack.c.b16 %v6323, %v6313
    %v6584 = vpack.c.b16 %v6324, %v6314
    %v6585 = vpack.c.b16 %v6325, %v6315
    %v6586 = vpack.c.b16 %v6326, %v6316
    %v6587 = vpack.c.b16 %v6327, %v6317
    %v6588 = vpack.c.b16 %v6328, %v6318
    %v6589 = vpack.c.b16 %v6329, %v6319
    %v6590 = vpack.c.b16 %v6340, %v6330
    %v6591 = vpack.c.b16 %v6341, %v6331
    %v6592 = vpack.c.b16 %v6342, %v6332
    %v6593 = vpack.c.b16 %v6343, %v6333
    %v6594 = vpack.c.b16 %v6344, %v6334
    %v6595 = vpack.c.b16 %v6345, %v6335
    %v6596 = vpack.c.b16 %v6346, %v6336
    %v6597 = vpack.c.b16 %v6347, %v6337
    %v6598 = vpack.c.b16 %v6348, %v6338
    %v6599 = vpack.c.b16 %v6349, %v6339
    %v6600 = vpack.c.b16 %v6360, %v6350
    %v6601 = vpack.c.b16 %v6361, %v6351
    %v6602 = vpack.c.b16 %v6362, %v6352
    %v6603 = vpack.c.b16 %v6363, %v6353
    %v6604 = vpack.c.b16 %v6364, %v6354
    %v6605 = vpack.c.b16 %v6365, %v6355
    %v6606 = vpack.c.b16 %v6366, %v6356
    %v6607 = vpack.c.b16 %v6367, %v6357
    %v6608 = vpack.c.b16 %v6368, %v6358
    %v6609 = vpack.c.b16 %v6369, %v6359
    %v6610 = vpack.c.b16 %v6380, %v6370
    %v6611 = vpack.c.b16 %v6381, %v6371
    %v6612 = vpack.c.b16 %v6382, %v6372
    %v6613 = vpack.c.b16 %v6383, %v6373
    %v6614 = vpack.c.b16 %v6384, %v6374
    %v6615 = vpack.c.b16 %v6385, %v6375
    %v6616 = vpack.c.b16 %v6386, %v6376
    %v6617 = vpack.c.b16 %v6387, %v6377
    %v6618 = vpack.c.b16 %v6388, %v6378
    %v6619 = vpack.c.b16 %v6389, %v6379
    %v6620 = vpack.c.b16 %v6400, %v6390
    %v6621 = vpack.c.b16 %v6401, %v6391
    %v6622 = vpack.c.b16 %v6402, %v6392
    %v6623 = vpack.c.b16 %v6403, %v6393
    %v6624 = vpack.c.b16 %v6404, %v6394
    %v6625 = vpack.c.b16 %v6405, %v6395
    %v6626 = vpack.c.b16 %v6406, %v6396
    %v6627 = vpack.c.b16 %v6407, %v6397
    %v6628 = vpack.c.b16 %v6408, %v6398
    %v6629 = vpack.c.b16 %v6409, %v6399
    %v6630 = vpack.c.b16 %v6420, %v6410
    %v6631 = vpack.c.b16 %v6421, %v6411
    %v6632 = vpack.c.b16 %v6422, %v6412
    %v6633 = vpack.c.b16 %v6423, %v6413
    %v6634 = vpack.c.b16 %v6424, %v6414
    %v6635 = vpack.c.b16 %v6425, %v6415
    %v6636 = vpack.c.b16 %v6426, %v6416
    %v6637 = vpack.c.b16 %v6427, %v6417
    %v6638 = vpack.c.b16 %v6428, %v6418
    %v6639 = vpack.c.b16 %v6429, %v6419
    %v6640 = vpack.c.b16 %v6440, %v6430
    %v6641 = vpack.c.b16 %v6441, %v6431
    %v6642 = vpack.c.b16 %v6442, %v6432
    %v6643 = vpack.c.b16 %v6443, %v6433
    %v6644 = vpack.c.b16 %v6444, %v6434
    %v6645 = vpack.c.b16 %v6445, %v6435
    %v6646 = vpack.c.b16 %v6446, %v6436
    %v6647 = vpack.c.b16 %v6447, %v6437
    %v6648 = vpack.c.b16 %v6448, %v6438
    %v6649 = vpack.c.b16 %v6449, %v6439
    %v6650 = vpack.c.b16 %v6460, %v6450
    %v6651 = vpack.c.b16 %v6461, %v6451
    %v6652 = vpack.c.b16 %v6462, %v6452
    %v6653 = vpack.c.b16 %v6463, %v6453
    %v6654 = vpack.c.b16 %v6464, %v6454
    %v6655 = vpack.c.b16 %v6465, %v6455
    %v6656 = vpack.c.b16 %v6466, %v6456
    %v6657 = vpack.c.b16 %v6467, %v6457
    %v6658 = vpack.c.b16 %v6468, %v6458
    %v6659 = vpack.c.b16 %v6469, %v6459
    %v6660 = vpack.c.b16 %v6480, %v6470
    %v6661 = vpack.c.b16 %v6481, %v6471
    %v6662 = vpack.c.b16 %v6482, %v6472
    %v6663 = vpack.c.b16 %v6483, %v6473
    %v6664 = vpack.c.b16 %v6484, %v6474
    %v6665 = vpack.c.b16 %v6485, %v6475
    %v6666 = vpack.c.b16 %v6486, %v6476
    %v6667 = vpack.c.b16 %v6487, %v6477
    %v6668 = vpack.c.b16 %v6488, %v6478
    %v6669 = vpack.c.b16 %v6489, %v6479
    %v6670 = vpack.c.b16 %v6500, %v6490
    %v6671 = vpack.c.b16 %v6501, %v6491
    %v6672 = vpack.c.b16 %v6502, %v6492
    %v6673 = vpack.c.b16 %v6503, %v6493
    %v6674 = vpack.c.b16 %v6504, %v6494
    %v6675 = vpack.c.b16 %v6505, %v6495
    %v6676 = vpack.c.b16 %v6506, %v6496
    %v6677 = vpack.c.b16 %v6507, %v6497
    %v6678 = vpack.c.b16 %v6508, %v6498
    %v6679 = vpack.c.b16 %v6509, %v6499
    %v6680 = vpack.c.b16 %v6520, %v6510
    %v6681 = vpack.c.b16 %v6521, %v6511
    %v6682 = vpack.c.b16 %v6522, %v6512
    %v6683 = vpack.c.b16 %v6523, %v6513
    %v6684 = vpack.c.b16 %v6524, %v6514
    %v6685 = vpack.c.b16 %v6525, %v6515
    %v6686 = vpack.c.b16 %v6526, %v6516
    %v6687 = vpack.c.b16 %v6527, %v6517
    %v6688 = vpack.c.b16 %v6528, %v6518
    %v6689 = vpack.c.b16 %v6529, %v6519
    %6850 = vmatpush.bf16.msra.mxu0 %v6600
    %6851 = vmatpush.bf16.msra.mxu0 %v6590
    %6852 = vmatpush.bf16.msra.mxu0 %v6580
    %6853 = vmatpush.bf16.msra.mxu0 %v6570
    %6854 = vmatpush.bf16.msra.mxu0 %v6560
    %6855 = vmatpush.bf16.msra.mxu0 %v6550
    %6856 = vmatpush.bf16.msra.mxu0 %v6540
    %6857 = vmatpush.bf16.msra.mxu0 %v6530
    %6858 = vmatmul.bf16.gmra.mxu0 %v1000
    %v6859 = vpop.f32.mrf.mxu0
    %v6860 = vadd.f32 %v5111, %v6859
    %v6861 = vpop.f32.mrf.mxu0
    %6862 = vdwg.mxu0
    %6863 = vmatpush.bf16.msra.mxu0 %v6680
    %6864 = vmatpush.bf16.msra.mxu0 %v6670
    %6865 = vmatpush.bf16.msra.mxu0 %v6660
    %6866 = vmatpush.bf16.msra.mxu0 %v6650
    %6867 = vmatpush.bf16.msra.mxu0 %v6640
    %6868 = vmatpush.bf16.msra.mxu0 %v6630
    %6869 = vmatpush.bf16.msra.mxu0 %v6620
    %6870 = vmatpush.bf16.msra.mxu0 %v6610
    %6871 = vmatmul.bf16.gmra.mxu0 %v1001
    %v6872 = vpop.f32.mrf.mxu0
    %v6873 = vadd.f32 %v6860, %v6872
    %v6874 = vpop.f32.mrf.mxu0
    %6875 = vdwg.mxu0
    %6876 = vmatpush.bf16.msra.mxu0 %v6601
    %6877 = vmatpush.bf16.msra.mxu0 %v6591
    %6878 = vmatpush.bf16.msra.mxu0 %v6581
    %6879 = vmatpush.bf16.msra.mxu0 %v6571
    %6880 = vmatpush.bf16.msra.mxu0 %v6561
    %6881 = vmatpush.bf16.msra.mxu0 %v6551
    %6882 = vmatpush.bf16.msra.mxu0 %v6541
    %6883 = vmatpush.bf16.msra.mxu0 %v6531
    %6884 = vmatmul.bf16.gmra.mxu0 %v1000
    %v6885 = vpop.f32.mrf.mxu0
    %v6886 = vadd.f32 %v5215, %v6885
    %v6887 = vpop.f32.mrf.mxu0
    %6888 = vdwg.mxu0
    %6889 = vmatpush.bf16.msra.mxu0 %v6681
    %6890 = vmatpush.bf16.msra.mxu0 %v6671
    %6891 = vmatpush.bf16.msra.mxu0 %v6661
    %6892 = vmatpush.bf16.msra.mxu0 %v6651
    %6893 = vmatpush.bf16.msra.mxu0 %v6641
    %6894 = vmatpush.bf16.msra.mxu0 %v6631
    %6895 = vmatpush.bf16.msra.mxu0 %v6621
    %6896 = vmatpush.bf16.msra.mxu0 %v6611
    %6897 = vmatmul.bf16.gmra.mxu0 %v1001
    %v6898 = vpop.f32.mrf.mxu0
    %v6899 = vadd.f32 %v6886, %v6898
    %v6900 = vpop.f32.mrf.mxu0
    %6901 = vdwg.mxu0
    %6902 = vmatpush.bf16.msra.mxu0 %v6602
    %6903 = vmatpush.bf16.msra.mxu0 %v6592
    %6904 = vmatpush.bf16.msra.mxu0 %v6582
    %6905 = vmatpush.bf16.msra.mxu0 %v6572
    %6906 = vmatpush.bf16.msra.mxu0 %v6562
    %6907 = vmatpush.bf16.msra.mxu0 %v6552
    %6908 = vmatpush.bf16.msra.mxu0 %v6542
    %6909 = vmatpush.bf16.msra.mxu0 %v6532
    %6910 = vmatmul.bf16.gmra.mxu0 %v1000
    %v6911 = vpop.f32.mrf.mxu0
    %v6912 = vadd.f32 %v5319, %v6911
    %v6913 = vpop.f32.mrf.mxu0
    %6914 = vdwg.mxu0
    %6915 = vmatpush.bf16.msra.mxu0 %v6682
    %6916 = vmatpush.bf16.msra.mxu0 %v6672
    %6917 = vmatpush.bf16.msra.mxu0 %v6662
    %6918 = vmatpush.bf16.msra.mxu0 %v6652
    %6919 = vmatpush.bf16.msra.mxu0 %v6642
    %6920 = vmatpush.bf16.msra.mxu0 %v6632
    %6921 = vmatpush.bf16.msra.mxu0 %v6622
    %6922 = vmatpush.bf16.msra.mxu0 %v6612
    %6923 = vmatmul.bf16.gmra.mxu0 %v1001
    %v6924 = vpop.f32.mrf.mxu0
    %v6925 = vadd.f32 %v6912, %v6924
    %v6926 = vpop.f32.mrf.mxu0
    %6927 = vdwg.mxu0
    %6928 = vmatpush.bf16.msra.mxu0 %v6603
    %6929 = vmatpush.bf16.msra.mxu0 %v6593
    %6930 = vmatpush.bf16.msra.mxu0 %v6583
    %6931 = vmatpush.bf16.msra.mxu0 %v6573
    %6932 = vmatpush.bf16.msra.mxu0 %v6563
    %6933 = vmatpush.bf16.msra.mxu0 %v6553
    %6934 = vmatpush.bf16.msra.mxu0 %v6543
    %6935 = vmatpush.bf16.msra.mxu0 %v6533
    %6936 = vmatmul.bf16.gmra.mxu0 %v1000
    %v6937 = vpop.f32.mrf.mxu0
    %v6938 = vadd.f32 %v5423, %v6937
    %v6939 = vpop.f32.mrf.mxu0
    %6940 = vdwg.mxu0
    %6941 = vmatpush.bf16.msra.mxu0 %v6683
    %6942 = vmatpush.bf16.msra.mxu0 %v6673
    %6943 = vmatpush.bf16.msra.mxu0 %v6663
    %6944 = vmatpush.bf16.msra.mxu0 %v6653
    %6945 = vmatpush.bf16.msra.mxu0 %v6643
    %6946 = vmatpush.bf16.msra.mxu0 %v6633
    %6947 = vmatpush.bf16.msra.mxu0 %v6623
    %6948 = vmatpush.bf16.msra.mxu0 %v6613
    %6949 = vmatmul.bf16.gmra.mxu0 %v1001
    %v6950 = vpop.f32.mrf.mxu0
    %v6951 = vadd.f32 %v6938, %v6950
    %v6952 = vpop.f32.mrf.mxu0
    %6953 = vdwg.mxu0
    %6954 = vmatpush.bf16.msra.mxu0 %v6604
    %6955 = vmatpush.bf16.msra.mxu0 %v6594
    %6956 = vmatpush.bf16.msra.mxu0 %v6584
    %6957 = vmatpush.bf16.msra.mxu0 %v6574
    %6958 = vmatpush.bf16.msra.mxu0 %v6564
    %6959 = vmatpush.bf16.msra.mxu0 %v6554
    %6960 = vmatpush.bf16.msra.mxu0 %v6544
    %6961 = vmatpush.bf16.msra.mxu0 %v6534
    %6962 = vmatmul.bf16.gmra.mxu0 %v1000
    %v6963 = vpop.f32.mrf.mxu0
    %v6964 = vadd.f32 %v5527, %v6963
    %v6965 = vpop.f32.mrf.mxu0
    %6966 = vdwg.mxu0
    %6967 = vmatpush.bf16.msra.mxu0 %v6684
    %6968 = vmatpush.bf16.msra.mxu0 %v6674
    %6969 = vmatpush.bf16.msra.mxu0 %v6664
    %6970 = vmatpush.bf16.msra.mxu0 %v6654
    %6971 = vmatpush.bf16.msra.mxu0 %v6644
    %6972 = vmatpush.bf16.msra.mxu0 %v6634
    %6973 = vmatpush.bf16.msra.mxu0 %v6624
    %6974 = vmatpush.bf16.msra.mxu0 %v6614
    %6975 = vmatmul.bf16.gmra.mxu0 %v1001
    %v6976 = vpop.f32.mrf.mxu0
    %v6977 = vadd.f32 %v6964, %v6976
    %v6978 = vpop.f32.mrf.mxu0
    %6979 = vdwg.mxu0
    %6980 = vmatpush.bf16.msra.mxu0 %v6605
    %6981 = vmatpush.bf16.msra.mxu0 %v6595
    %6982 = vmatpush.bf16.msra.mxu0 %v6585
    %6983 = vmatpush.bf16.msra.mxu0 %v6575
    %6984 = vmatpush.bf16.msra.mxu0 %v6565
    %6985 = vmatpush.bf16.msra.mxu0 %v6555
    %6986 = vmatpush.bf16.msra.mxu0 %v6545
    %6987 = vmatpush.bf16.msra.mxu0 %v6535
    %6988 = vmatmul.bf16.gmra.mxu0 %v1000
    %v6989 = vpop.f32.mrf.mxu0
    %v6990 = vadd.f32 %v5631, %v6989
    %v6991 = vpop.f32.mrf.mxu0
    %6992 = vdwg.mxu0
    %6993 = vmatpush.bf16.msra.mxu0 %v6685
    %6994 = vmatpush.bf16.msra.mxu0 %v6675
    %6995 = vmatpush.bf16.msra.mxu0 %v6665
    %6996 = vmatpush.bf16.msra.mxu0 %v6655
    %6997 = vmatpush.bf16.msra.mxu0 %v6645
    %6998 = vmatpush.bf16.msra.mxu0 %v6635
    %6999 = vmatpush.bf16.msra.mxu0 %v6625
    %7000 = vmatpush.bf16.msra.mxu0 %v6615
    %7001 = vmatmul.bf16.gmra.mxu0 %v1001
    %v7002 = vpop.f32.mrf.mxu0
    %v7003 = vadd.f32 %v6990, %v7002
    %v7004 = vpop.f32.mrf.mxu0
    %7005 = vdwg.mxu0
    %7006 = vmatpush.bf16.msra.mxu0 %v6606
    %7007 = vmatpush.bf16.msra.mxu0 %v6596
    %7008 = vmatpush.bf16.msra.mxu0 %v6586
    %7009 = vmatpush.bf16.msra.mxu0 %v6576
    %7010 = vmatpush.bf16.msra.mxu0 %v6566
    %7011 = vmatpush.bf16.msra.mxu0 %v6556
    %7012 = vmatpush.bf16.msra.mxu0 %v6546
    %7013 = vmatpush.bf16.msra.mxu0 %v6536
    %7014 = vmatmul.bf16.gmra.mxu0 %v1000
    %v7015 = vpop.f32.mrf.mxu0
    %v7016 = vadd.f32 %v5735, %v7015
    %v7017 = vpop.f32.mrf.mxu0
    %7018 = vdwg.mxu0
    %7019 = vmatpush.bf16.msra.mxu0 %v6686
    %7020 = vmatpush.bf16.msra.mxu0 %v6676
    %7021 = vmatpush.bf16.msra.mxu0 %v6666
    %7022 = vmatpush.bf16.msra.mxu0 %v6656
    %7023 = vmatpush.bf16.msra.mxu0 %v6646
    %7024 = vmatpush.bf16.msra.mxu0 %v6636
    %7025 = vmatpush.bf16.msra.mxu0 %v6626
    %7026 = vmatpush.bf16.msra.mxu0 %v6616
    %7027 = vmatmul.bf16.gmra.mxu0 %v1001
    %v7028 = vpop.f32.mrf.mxu0
    %v7029 = vadd.f32 %v7016, %v7028
    %v7030 = vpop.f32.mrf.mxu0
    %7031 = vdwg.mxu0
    %7032 = vmatpush.bf16.msra.mxu0 %v6607
    %7033 = vmatpush.bf16.msra.mxu0 %v6597
    %7034 = vmatpush.bf16.msra.mxu0 %v6587
    %7035 = vmatpush.bf16.msra.mxu0 %v6577
    %7036 = vmatpush.bf16.msra.mxu0 %v6567
    %7037 = vmatpush.bf16.msra.mxu0 %v6557
    %7038 = vmatpush.bf16.msra.mxu0 %v6547
    %7039 = vmatpush.bf16.msra.mxu0 %v6537
    %7040 = vmatmul.bf16.gmra.mxu0 %v1000
    %v7041 = vpop.f32.mrf.mxu0
    %v7042 = vadd.f32 %v5839, %v7041
    %v7043 = vpop.f32.mrf.mxu0
    %7044 = vdwg.mxu0
    %7045 = vmatpush.bf16.msra.mxu0 %v6687
    %7046 = vmatpush.bf16.msra.mxu0 %v6677
    %7047 = vmatpush.bf16.msra.mxu0 %v6667
    %7048 = vmatpush.bf16.msra.mxu0 %v6657
    %7049 = vmatpush.bf16.msra.mxu0 %v6647
    %7050 = vmatpush.bf16.msra.mxu0 %v6637
    %7051 = vmatpush.bf16.msra.mxu0 %v6627
    %7052 = vmatpush.bf16.msra.mxu0 %v6617
    %7053 = vmatmul.bf16.gmra.mxu0 %v1001
    %v7054 = vpop.f32.mrf.mxu0
    %v7055 = vadd.f32 %v7042, %v7054
    %v7056 = vpop.f32.mrf.mxu0
    %7057 = vdwg.mxu0
    %7058 = vmatpush.bf16.msra.mxu0 %v6608
    %7059 = vmatpush.bf16.msra.mxu0 %v6598
    %7060 = vmatpush.bf16.msra.mxu0 %v6588
    %7061 = vmatpush.bf16.msra.mxu0 %v6578
    %7062 = vmatpush.bf16.msra.mxu0 %v6568
    %7063 = vmatpush.bf16.msra.mxu0 %v6558
    %7064 = vmatpush.bf16.msra.mxu0 %v6548
    %7065 = vmatpush.bf16.msra.mxu0 %v6538
    %7066 = vmatmul.bf16.gmra.mxu0 %v1000
    %v7067 = vpop.f32.mrf.mxu0
    %v7068 = vadd.f32 %v5943, %v7067
    %v7069 = vpop.f32.mrf.mxu0
    %7070 = vdwg.mxu0
    %7071 = vmatpush.bf16.msra.mxu0 %v6688
    %7072 = vmatpush.bf16.msra.mxu0 %v6678
    %7073 = vmatpush.bf16.msra.mxu0 %v6668
    %7074 = vmatpush.bf16.msra.mxu0 %v6658
    %7075 = vmatpush.bf16.msra.mxu0 %v6648
    %7076 = vmatpush.bf16.msra.mxu0 %v6638
    %7077 = vmatpush.bf16.msra.mxu0 %v6628
    %7078 = vmatpush.bf16.msra.mxu0 %v6618
    %7079 = vmatmul.bf16.gmra.mxu0 %v1001
    %v7080 = vpop.f32.mrf.mxu0
    %v7081 = vadd.f32 %v7068, %v7080
    %v7082 = vpop.f32.mrf.mxu0
    %7083 = vdwg.mxu0
    %7084 = vmatpush.bf16.msra.mxu0 %v6609
    %7085 = vmatpush.bf16.msra.mxu0 %v6599
    %7086 = vmatpush.bf16.msra.mxu0 %v6589
    %7087 = vmatpush.bf16.msra.mxu0 %v6579
    %7088 = vmatpush.bf16.msra.mxu0 %v6569
    %7089 = vmatpush.bf16.msra.mxu0 %v6559
    %7090 = vmatpush.bf16.msra.mxu0 %v6549
    %7091 = vmatpush.bf16.msra.mxu0 %v6539
    %7092 = vmatmul.bf16.gmra.mxu0 %v1000
    %v7093 = vpop.f32.mrf.mxu0
    %v7094 = vadd.f32 %v6047, %v7093
    %v7095 = vpop.f32.mrf.mxu0
    %7096 = vdwg.mxu0
    %7097 = vmatpush.bf16.msra.mxu0 %v6689
    %7098 = vmatpush.bf16.msra.mxu0 %v6679
    %7099 = vmatpush.bf16.msra.mxu0 %v6669
    %7100 = vmatpush.bf16.msra.mxu0 %v6659
    %7101 = vmatpush.bf16.msra.mxu0 %v6649
    %7102 = vmatpush.bf16.msra.mxu0 %v6639
    %7103 = vmatpush.bf16.msra.mxu0 %v6629
    %7104 = vmatpush.bf16.msra.mxu0 %v6619
    %7105 = vmatmul.bf16.gmra.mxu0 %v1001
    %v7106 = vpop.f32.mrf.mxu0
    %v7107 = vadd.f32 %v7094, %v7106
    %v7108 = vpop.f32.mrf.mxu0
    %7109 = vdwg.mxu0
    %v7110 = vld [vmem:[#allocation18] sm:$0xff]
    %v7111 = vld [vmem:[#allocation18 + $0x8] sm:$0x3]
    %v7114 = vperm.slane %v7110, 0
    %v7115 = vperm.slane %v7110, 1
    %v7116 = vperm.slane %v7110, 2
    %v7117 = vperm.slane %v7110, 3
    %v7118 = vperm.slane %v7110, 4
    %v7119 = vperm.slane %v7110, 5
    %v7120 = vperm.slane %v7110, 6
    %v7121 = vperm.slane %v7110, 7
    %v7122 = vperm.slane %v7111, 0
    %v7123 = vperm.slane %v7111, 1
    %v7134 = vadd.f32 %v6873, %v7114
    %v7135 = vadd.f32 %v6899, %v7115
    %v7136 = vadd.f32 %v6925, %v7116
    %v7137 = vadd.f32 %v6951, %v7117
    %v7138 = vadd.f32 %v6977, %v7118
    %v7139 = vadd.f32 %v7003, %v7119
    %v7140 = vadd.f32 %v7029, %v7120
    %v7141 = vadd.f32 %v7055, %v7121
    %v7142 = vadd.f32 %v7081, %v7122
    %v7143 = vadd.f32 %v7107, %v7123
    %v7144 = vld [vmem:[#allocation19] sm:$0xff]
    %v7145 = vld [vmem:[#allocation19 + $0x8] sm:$0x3]
    %v7146 = vld [vmem:[#allocation21] sm:$0xff]
    %v7147 = vld [vmem:[#allocation21 + $0x8] sm:$0x3]
    %v7148 = vrot.slane %v7134, 4
    %v7149 = vadd.f32 %v7134, %v7148
    %v7150 = vrot.slane %v7149, 2
    %v7151 = vadd.f32 %v7149, %v7150
    %v7152 = vrot.slane %v7151, 1
    %v7153 = vadd.f32 %v7151, %v7152
    %v7154 = vrot.slane %v7135, 4
    %v7155 = vadd.f32 %v7135, %v7154
    %v7156 = vrot.slane %v7155, 2
    %v7157 = vadd.f32 %v7155, %v7156
    %v7158 = vrot.slane %v7157, 1
    %v7159 = vadd.f32 %v7157, %v7158
    %v7160 = vrot.slane %v7136, 4
    %v7161 = vadd.f32 %v7136, %v7160
    %v7162 = vrot.slane %v7161, 2
    %v7163 = vadd.f32 %v7161, %v7162
    %v7164 = vrot.slane %v7163, 1
    %v7165 = vadd.f32 %v7163, %v7164
    %v7166 = vrot.slane %v7137, 4
    %v7167 = vadd.f32 %v7137, %v7166
    %v7168 = vrot.slane %v7167, 2
    %v7169 = vadd.f32 %v7167, %v7168
    %v7170 = vrot.slane %v7169, 1
    %v7171 = vadd.f32 %v7169, %v7170
    %v7172 = vrot.slane %v7138, 4
    %v7173 = vadd.f32 %v7138, %v7172
    %v7174 = vrot.slane %v7173, 2
    %v7175 = vadd.f32 %v7173, %v7174
    %v7176 = vrot.slane %v7175, 1
    %v7177 = vadd.f32 %v7175, %v7176
    %v7178 = vrot.slane %v7139, 4
    %v7179 = vadd.f32 %v7139, %v7178
    %v7180 = vrot.slane %v7179, 2
    %v7181 = vadd.f32 %v7179, %v7180
    %v7182 = vrot.slane %v7181, 1
    %v7183 = vadd.f32 %v7181, %v7182
    %v7184 = vrot.slane %v7140, 4
    %v7185 = vadd.f32 %v7140, %v7184
    %v7186 = vrot.slane %v7185, 2
    %v7187 = vadd.f32 %v7185, %v7186
    %v7188 = vrot.slane %v7187, 1
    %v7189 = vadd.f32 %v7187, %v7188
    %v7190 = vrot.slane %v7141, 4
    %v7191 = vadd.f32 %v7141, %v7190
    %v7192 = vrot.slane %v7191, 2
    %v7193 = vadd.f32 %v7191, %v7192
    %v7194 = vrot.slane %v7193, 1
    %v7195 = vadd.f32 %v7193, %v7194
    %v7196 = vrot.slane %v7142, 4
    %v7197 = vadd.f32 %v7142, %v7196
    %v7198 = vrot.slane %v7197, 2
    %v7199 = vadd.f32 %v7197, %v7198
    %v7200 = vrot.slane %v7199, 1
    %v7201 = vadd.f32 %v7199, %v7200
    %v7202 = vrot.slane %v7143, 4
    %v7203 = vadd.f32 %v7143, %v7202
    %v7204 = vrot.slane %v7203, 2
    %v7205 = vadd.f32 %v7203, %v7204
    %v7206 = vrot.slane %v7205, 1
    %v7207 = vadd.f32 %v7205, %v7206
    %v7208 = vmul.f32 %v7153, %v918
    %v7209 = vmul.f32 %v7159, %v918
    %v7210 = vmul.f32 %v7165, %v918
    %v7211 = vmul.f32 %v7171, %v918
    %v7212 = vmul.f32 %v7177, %v918
    %v7213 = vmul.f32 %v7183, %v918
    %v7214 = vmul.f32 %v7189, %v918
    %v7215 = vmul.f32 %v7195, %v918
    %v7216 = vmul.f32 %v7201, %v918
    %v7217 = vmul.f32 %v7207, %v918
    %v7218 = vmul.f32 %v7134, %v7134
    %v7219 = vmul.f32 %v7135, %v7135
    %v7220 = vmul.f32 %v7136, %v7136
    %v7221 = vmul.f32 %v7137, %v7137
    %v7222 = vmul.f32 %v7138, %v7138
    %v7223 = vmul.f32 %v7139, %v7139
    %v7224 = vmul.f32 %v7140, %v7140
    %v7225 = vmul.f32 %v7141, %v7141
    %v7226 = vmul.f32 %v7142, %v7142
    %v7227 = vmul.f32 %v7143, %v7143
    %v7228 = vrot.slane %v7218, 4
    %v7229 = vadd.f32 %v7218, %v7228
    %v7230 = vrot.slane %v7229, 2
    %v7231 = vadd.f32 %v7229, %v7230
    %v7232 = vrot.slane %v7231, 1
    %v7233 = vadd.f32 %v7231, %v7232
    %v7234 = vrot.slane %v7219, 4
    %v7235 = vadd.f32 %v7219, %v7234
    %v7236 = vrot.slane %v7235, 2
    %v7237 = vadd.f32 %v7235, %v7236
    %v7238 = vrot.slane %v7237, 1
    %v7239 = vadd.f32 %v7237, %v7238
    %v7240 = vrot.slane %v7220, 4
    %v7241 = vadd.f32 %v7220, %v7240
    %v7242 = vrot.slane %v7241, 2
    %v7243 = vadd.f32 %v7241, %v7242
    %v7244 = vrot.slane %v7243, 1
    %v7245 = vadd.f32 %v7243, %v7244
    %v7246 = vrot.slane %v7221, 4
    %v7247 = vadd.f32 %v7221, %v7246
    %v7248 = vrot.slane %v7247, 2
    %v7249 = vadd.f32 %v7247, %v7248
    %v7250 = vrot.slane %v7249, 1
    %v7251 = vadd.f32 %v7249, %v7250
    %v7252 = vrot.slane %v7222, 4
    %v7253 = vadd.f32 %v7222, %v7252
    %v7254 = vrot.slane %v7253, 2
    %v7255 = vadd.f32 %v7253, %v7254
    %v7256 = vrot.slane %v7255, 1
    %v7257 = vadd.f32 %v7255, %v7256
    %v7258 = vrot.slane %v7223, 4
    %v7259 = vadd.f32 %v7223, %v7258
    %v7260 = vrot.slane %v7259, 2
    %v7261 = vadd.f32 %v7259, %v7260
    %v7262 = vrot.slane %v7261, 1
    %v7263 = vadd.f32 %v7261, %v7262
    %v7264 = vrot.slane %v7224, 4
    %v7265 = vadd.f32 %v7224, %v7264
    %v7266 = vrot.slane %v7265, 2
    %v7267 = vadd.f32 %v7265, %v7266
    %v7268 = vrot.slane %v7267, 1
    %v7269 = vadd.f32 %v7267, %v7268
    %v7270 = vrot.slane %v7225, 4
    %v7271 = vadd.f32 %v7225, %v7270
    %v7272 = vrot.slane %v7271, 2
    %v7273 = vadd.f32 %v7271, %v7272
    %v7274 = vrot.slane %v7273, 1
    %v7275 = vadd.f32 %v7273, %v7274
    %v7276 = vrot.slane %v7226, 4
    %v7277 = vadd.f32 %v7226, %v7276
    %v7278 = vrot.slane %v7277, 2
    %v7279 = vadd.f32 %v7277, %v7278
    %v7280 = vrot.slane %v7279, 1
    %v7281 = vadd.f32 %v7279, %v7280
    %v7282 = vrot.slane %v7227, 4
    %v7283 = vadd.f32 %v7227, %v7282
    %v7284 = vrot.slane %v7283, 2
    %v7285 = vadd.f32 %v7283, %v7284
    %v7286 = vrot.slane %v7285, 1
    %v7287 = vadd.f32 %v7285, %v7286
    %v7288 = vmul.f32 %v7233, %v918
    %v7289 = vmul.f32 %v7239, %v918
    %v7290 = vmul.f32 %v7245, %v918
    %v7291 = vmul.f32 %v7251, %v918
    %v7292 = vmul.f32 %v7257, %v918
    %v7293 = vmul.f32 %v7263, %v918
    %v7294 = vmul.f32 %v7269, %v918
    %v7295 = vmul.f32 %v7275, %v918
    %v7296 = vmul.f32 %v7281, %v918
    %v7297 = vmul.f32 %v7287, %v918
    %v7298 = vmul.f32 %v7208, %v7208
    %v7299 = vmul.f32 %v7209, %v7209
    %v7300 = vmul.f32 %v7210, %v7210
    %v7301 = vmul.f32 %v7211, %v7211
    %v7302 = vmul.f32 %v7212, %v7212
    %v7303 = vmul.f32 %v7213, %v7213
    %v7304 = vmul.f32 %v7214, %v7214
    %v7305 = vmul.f32 %v7215, %v7215
    %v7306 = vmul.f32 %v7216, %v7216
    %v7307 = vmul.f32 %v7217, %v7217
    %v7308 = vsub.f32 %v7288, %v7298
    %v7309 = vsub.f32 %v7289, %v7299
    %v7310 = vsub.f32 %v7290, %v7300
    %v7311 = vsub.f32 %v7291, %v7301
    %v7312 = vsub.f32 %v7292, %v7302
    %v7313 = vsub.f32 %v7293, %v7303
    %v7314 = vsub.f32 %v7294, %v7304
    %v7315 = vsub.f32 %v7295, %v7305
    %v7316 = vsub.f32 %v7296, %v7306
    %v7317 = vsub.f32 %v7297, %v7307
    %v7318 = vmax.f32 %v7308, 0.0
    %v7319 = vmax.f32 %v7309, 0.0
    %v7320 = vmax.f32 %v7310, 0.0
    %v7321 = vmax.f32 %v7311, 0.0
    %v7322 = vmax.f32 %v7312, 0.0
    %v7323 = vmax.f32 %v7313, 0.0
    %v7324 = vmax.f32 %v7314, 0.0
    %v7325 = vmax.f32 %v7315, 0.0
    %v7326 = vmax.f32 %v7316, 0.0
    %v7327 = vmax.f32 %v7317, 0.0
    %v7328 = vadd.f32 %v7318, 1e-05
    %v7329 = vadd.f32 %v7319, 1e-05
    %v7330 = vadd.f32 %v7320, 1e-05
    %v7331 = vadd.f32 %v7321, 1e-05
    %v7332 = vadd.f32 %v7322, 1e-05
    %v7333 = vadd.f32 %v7323, 1e-05
    %v7334 = vadd.f32 %v7324, 1e-05
    %v7335 = vadd.f32 %v7325, 1e-05
    %v7336 = vadd.f32 %v7326, 1e-05
    %v7337 = vadd.f32 %v7327, 1e-05
    %v7338 = vrsqrt.pop %v7328
    %v7339 = vmul.f32 %v7338, %v7328
    %v7340 = vmul.f32 %v7339, %v7338
    %v7341 = vmul.f32 0.5, %v7340
    %v7342 = vsub.f32 1.5, %v7341
    %v7343 = vmul.f32 %v7338, %v7342
    %vm7344 = vweird.f32 %v7328
    %vm7345 = vweird.f32 %v7338
    %vm7346 = vmor %vm7344, %vm7345
    %v7347 = vsel %vm7346, %v7338, %v7343
    %v7348 = vrsqrt.pop %v7329
    %v7349 = vmul.f32 %v7348, %v7329
    %v7350 = vmul.f32 %v7349, %v7348
    %v7351 = vmul.f32 0.5, %v7350
    %v7352 = vsub.f32 1.5, %v7351
    %v7353 = vmul.f32 %v7348, %v7352
    %vm7354 = vweird.f32 %v7329
    %vm7355 = vweird.f32 %v7348
    %vm7356 = vmor %vm7354, %vm7355
    %v7357 = vsel %vm7356, %v7348, %v7353
    %v7358 = vrsqrt.pop %v7330
    %v7359 = vmul.f32 %v7358, %v7330
    %v7360 = vmul.f32 %v7359, %v7358
    %v7361 = vmul.f32 0.5, %v7360
    %v7362 = vsub.f32 1.5, %v7361
    %v7363 = vmul.f32 %v7358, %v7362
    %vm7364 = vweird.f32 %v7330
    %vm7365 = vweird.f32 %v7358
    %vm7366 = vmor %vm7364, %vm7365
    %v7367 = vsel %vm7366, %v7358, %v7363
    %v7368 = vrsqrt.pop %v7331
    %v7369 = vmul.f32 %v7368, %v7331
    %v7370 = vmul.f32 %v7369, %v7368
    %v7371 = vmul.f32 0.5, %v7370
    %v7372 = vsub.f32 1.5, %v7371
    %v7373 = vmul.f32 %v7368, %v7372
    %vm7374 = vweird.f32 %v7331
    %vm7375 = vweird.f32 %v7368
    %vm7376 = vmor %vm7374, %vm7375
    %v7377 = vsel %vm7376, %v7368, %v7373
    %v7378 = vrsqrt.pop %v7332
    %v7379 = vmul.f32 %v7378, %v7332
    %v7380 = vmul.f32 %v7379, %v7378
    %v7381 = vmul.f32 0.5, %v7380
    %v7382 = vsub.f32 1.5, %v7381
    %v7383 = vmul.f32 %v7378, %v7382
    %vm7384 = vweird.f32 %v7332
    %vm7385 = vweird.f32 %v7378
    %vm7386 = vmor %vm7384, %vm7385
    %v7387 = vsel %vm7386, %v7378, %v7383
    %v7388 = vrsqrt.pop %v7333
    %v7389 = vmul.f32 %v7388, %v7333
    %v7390 = vmul.f32 %v7389, %v7388
    %v7391 = vmul.f32 0.5, %v7390
    %v7392 = vsub.f32 1.5, %v7391
    %v7393 = vmul.f32 %v7388, %v7392
    %vm7394 = vweird.f32 %v7333
    %vm7395 = vweird.f32 %v7388
    %vm7396 = vmor %vm7394, %vm7395
    %v7397 = vsel %vm7396, %v7388, %v7393
    %v7398 = vrsqrt.pop %v7334
    %v7399 = vmul.f32 %v7398, %v7334
    %v7400 = vmul.f32 %v7399, %v7398
    %v7401 = vmul.f32 0.5, %v7400
    %v7402 = vsub.f32 1.5, %v7401
    %v7403 = vmul.f32 %v7398, %v7402
    %vm7404 = vweird.f32 %v7334
    %vm7405 = vweird.f32 %v7398
    %vm7406 = vmor %vm7404, %vm7405
    %v7407 = vsel %vm7406, %v7398, %v7403
    %v7408 = vrsqrt.pop %v7335
    %v7409 = vmul.f32 %v7408, %v7335
    %v7410 = vmul.f32 %v7409, %v7408
    %v7411 = vmul.f32 0.5, %v7410
    %v7412 = vsub.f32 1.5, %v7411
    %v7413 = vmul.f32 %v7408, %v7412
    %vm7414 = vweird.f32 %v7335
    %vm7415 = vweird.f32 %v7408
    %vm7416 = vmor %vm7414, %vm7415
    %v7417 = vsel %vm7416, %v7408, %v7413
    %v7418 = vrsqrt.pop %v7336
    %v7419 = vmul.f32 %v7418, %v7336
    %v7420 = vmul.f32 %v7419, %v7418
    %v7421 = vmul.f32 0.5, %v7420
    %v7422 = vsub.f32 1.5, %v7421
    %v7423 = vmul.f32 %v7418, %v7422
    %vm7424 = vweird.f32 %v7336
    %vm7425 = vweird.f32 %v7418
    %vm7426 = vmor %vm7424, %vm7425
    %v7427 = vsel %vm7426, %v7418, %v7423
    %v7428 = vrsqrt.pop %v7337
    %v7429 = vmul.f32 %v7428, %v7337
    %v7430 = vmul.f32 %v7429, %v7428
    %v7431 = vmul.f32 0.5, %v7430
    %v7432 = vsub.f32 1.5, %v7431
    %v7433 = vmul.f32 %v7428, %v7432
    %vm7434 = vweird.f32 %v7337
    %vm7435 = vweird.f32 %v7428
    %vm7436 = vmor %vm7434, %vm7435
    %v7437 = vsel %vm7436, %v7428, %v7433
    %v7448 = vrot.slane %v7357, 7
    %v7449 = vrot.slane %v7367, 6
    %v7450 = vrot.slane %v7377, 5
    %v7451 = vrot.slane %v7387, 4
    %v7452 = vrot.slane %v7397, 3
    %v7453 = vrot.slane %v7407, 2
    %v7454 = vrot.slane %v7417, 1
    %v7455 = vrot.slane %v7437, 7
    %v7456 = vsel %vm968, %v7347, %v7448
    %vm7457 = vcmask 1042434
    %v7458 = vsel %vm7457, %v7449, %v7450
    %vm7459 = vcmask 1041408
    %v7460 = vsel %vm7459, %v7456, %v7458
    %vm7461 = vcmask 1044484
    %v7462 = vsel %vm7461, %v7451, %v7452
    %vm7463 = vcmask 1046534
    %v7464 = vsel %vm7463, %v7453, %v7454
    %vm7465 = vcmask 1045508
    %v7466 = vsel %vm7465, %v7462, %v7464
    %vm7467 = vcmask 1043456
    %v7468 = vsel %vm7467, %v7460, %v7466
    %v7469 = vsel %vm968, %v7427, %v7455
    %v7472 = vmul.f32 %v7144, %v7468
    %v7473 = vmul.f32 %v7145, %v7469
    %v7476 = vperm.slane %v7472, 0
    %v7477 = vperm.slane %v7472, 1
    %v7478 = vperm.slane %v7472, 2
    %v7479 = vperm.slane %v7472, 3
    %v7480 = vperm.slane %v7472, 4
    %v7481 = vperm.slane %v7472, 5
    %v7482 = vperm.slane %v7472, 6
    %v7483 = vperm.slane %v7472, 7
    %v7484 = vperm.slane %v7473, 0
    %v7485 = vperm.slane %v7473, 1
    %v7496 = vmul.f32 %v7208, %v7476
    %v7497 = vmul.f32 %v7209, %v7477
    %v7498 = vmul.f32 %v7210, %v7478
    %v7499 = vmul.f32 %v7211, %v7479
    %v7500 = vmul.f32 %v7212, %v7480
    %v7501 = vmul.f32 %v7213, %v7481
    %v7502 = vmul.f32 %v7214, %v7482
    %v7503 = vmul.f32 %v7215, %v7483
    %v7504 = vmul.f32 %v7216, %v7484
    %v7505 = vmul.f32 %v7217, %v7485
    %v7516 = vrot.slane %v7497, 7
    %v7517 = vrot.slane %v7498, 6
    %v7518 = vrot.slane %v7499, 5
    %v7519 = vrot.slane %v7500, 4
    %v7520 = vrot.slane %v7501, 3
    %v7521 = vrot.slane %v7502, 2
    %v7522 = vrot.slane %v7503, 1
    %v7523 = vrot.slane %v7505, 7
    %v7524 = vsel %vm968, %v7496, %v7516
    %v7525 = vsel %vm7457, %v7517, %v7518
    %v7526 = vsel %vm7459, %v7524, %v7525
    %v7527 = vsel %vm7461, %v7519, %v7520
    %v7528 = vsel %vm7463, %v7521, %v7522
    %v7529 = vsel %vm7465, %v7527, %v7528
    %v7530 = vsel %vm7467, %v7526, %v7529
    %v7531 = vsel %vm968, %v7504, %v7523
    %v7534 = vsub.f32 %v7146, %v7530
    %v7535 = vsub.f32 %v7147, %v7531
    %v7536 = vmul.f32 %v7134, %v7476
    %v7537 = vmul.f32 %v7135, %v7477
    %v7538 = vmul.f32 %v7136, %v7478
    %v7539 = vmul.f32 %v7137, %v7479
    %v7540 = vmul.f32 %v7138, %v7480
    %v7541 = vmul.f32 %v7139, %v7481
    %v7542 = vmul.f32 %v7140, %v7482
    %v7543 = vmul.f32 %v7141, %v7483
    %v7544 = vmul.f32 %v7142, %v7484
    %v7545 = vmul.f32 %v7143, %v7485
    %v7548 = vperm.slane %v7534, 0
    %v7549 = vperm.slane %v7534, 1
    %v7550 = vperm.slane %v7534, 2
    %v7551 = vperm.slane %v7534, 3
    %v7552 = vperm.slane %v7534, 4
    %v7553 = vperm.slane %v7534, 5
    %v7554 = vperm.slane %v7534, 6
    %v7555 = vperm.slane %v7534, 7
    %v7556 = vperm.slane %v7535, 0
    %v7557 = vperm.slane %v7535, 1
    %v7568 = vadd.f32 %v7536, %v7548
    %v7569 = vadd.f32 %v7537, %v7549
    %v7570 = vadd.f32 %v7538, %v7550
    %v7571 = vadd.f32 %v7539, %v7551
    %v7572 = vadd.f32 %v7540, %v7552
    %v7573 = vadd.f32 %v7541, %v7553
    %v7574 = vadd.f32 %v7542, %v7554
    %v7575 = vadd.f32 %v7543, %v7555
    %v7576 = vadd.f32 %v7544, %v7556
    %v7577 = vadd.f32 %v7545, %v7557
    %vm7578 = vcmp.gt.f32.partialorder %v7568, 0.0
    %vm7579 = vcmp.gt.f32.partialorder %v7569, 0.0
    %vm7580 = vcmp.gt.f32.partialorder %v7570, 0.0
    %vm7581 = vcmp.gt.f32.partialorder %v7571, 0.0
    %vm7582 = vcmp.gt.f32.partialorder %v7572, 0.0
    %vm7583 = vcmp.gt.f32.partialorder %v7573, 0.0
    %vm7584 = vcmp.gt.f32.partialorder %v7574, 0.0
    %vm7585 = vcmp.gt.f32.partialorder %v7575, 0.0
    %vm7586 = vcmp.gt.f32.partialorder %v7576, 0.0
    %vm7587 = vcmp.gt.f32.partialorder %v7577, 0.0
    %v7588 = vmul.f32 %v7568, 0.2
    %v7589 = vmul.f32 %v7569, 0.2
    %v7590 = vmul.f32 %v7570, 0.2
    %v7591 = vmul.f32 %v7571, 0.2
    %v7592 = vmul.f32 %v7572, 0.2
    %v7593 = vmul.f32 %v7573, 0.2
    %v7594 = vmul.f32 %v7574, 0.2
    %v7595 = vmul.f32 %v7575, 0.2
    %v7596 = vmul.f32 %v7576, 0.2
    %v7597 = vmul.f32 %v7577, 0.2
    %v7598 = vsel %vm7578, %v7568, %v7588
    %v7599 = vsel %vm7579, %v7569, %v7589
    %v7600 = vsel %vm7580, %v7570, %v7590
    %v7601 = vsel %vm7581, %v7571, %v7591
    %v7602 = vsel %vm7582, %v7572, %v7592
    %v7603 = vsel %vm7583, %v7573, %v7593
    %v7604 = vsel %vm7584, %v7574, %v7594
    %v7605 = vsel %vm7585, %v7575, %v7595
    %v7606 = vsel %vm7586, %v7576, %v7596
    %v7607 = vsel %vm7587, %v7577, %v7597
    %s7608 = smul.u32 4, 160
    %s7609 = smul.u32 %s7608, 7
    %s7610 = sshll.u32 %s7609, 4
    %7611 = dma.done [#allocation3], %s7610
    %v7612 = vpack.c.bf16 %v7598, %v7598
    %v7613 = vpack.c.bf16 %v7599, %v7599
    %v7614 = vpack.c.bf16 %v7600, %v7600
    %v7615 = vpack.c.bf16 %v7601, %v7601
    %v7616 = vpack.c.bf16 %v7602, %v7602
    %v7617 = vpack.c.bf16 %v7603, %v7603
    %v7618 = vpack.c.bf16 %v7604, %v7604
    %v7619 = vpack.c.bf16 %v7605, %v7605
    %v7620 = vpack.c.bf16 %v7606, %v7606
    %v7621 = vpack.c.bf16 %v7607, %v7607
    %v7622 = vld [vmem:[#allocation2] sm:$0xff]
    %v7623 = vld [vmem:[#allocation2 + $0x8] sm:$0xff]
    %v7624 = vld [vmem:[#allocation2 + $0x10] sm:$0xff]
    %v7625 = vld [vmem:[#allocation2 + $0x18] sm:$0xf]
    %v7626 = vld [vmem:[#allocation2 + $0x1c] sm:$0xff]
    %v7627 = vld [vmem:[#allocation2 + $0x24] sm:$0xff]
    %v7628 = vld [vmem:[#allocation2 + $0x2c] sm:$0xff]
    %v7629 = vld [vmem:[#allocation2 + $0x34] sm:$0xf]
    %v7630 = vld [vmem:[#allocation2 + $0x38] sm:$0xff]
    %v7631 = vld [vmem:[#allocation2 + $0x40] sm:$0xff]
    %v7632 = vld [vmem:[#allocation2 + $0x48] sm:$0xff]
    %v7633 = vld [vmem:[#allocation2 + $0x50] sm:$0xf]
    %v7634 = vld [vmem:[#allocation2 + $0x54] sm:$0xff]
    %v7635 = vld [vmem:[#allocation2 + $0x5c] sm:$0xff]
    %v7636 = vld [vmem:[#allocation2 + $0x64] sm:$0xff]
    %v7637 = vld [vmem:[#allocation2 + $0x6c] sm:$0xf]
    %v7638 = vld [vmem:[#allocation2 + $0x70] sm:$0xff]
    %v7639 = vld [vmem:[#allocation2 + $0x78] sm:$0xff]
    %v7640 = vld [vmem:[#allocation2 + $0x80] sm:$0xff]
    %v7641 = vld [vmem:[#allocation2 + $0x88] sm:$0xf]
    %v7642 = vld [vmem:[#allocation2 + $0x8c] sm:$0xff]
    %v7643 = vld [vmem:[#allocation2 + $0x94] sm:$0xff]
    %v7644 = vld [vmem:[#allocation2 + $0x9c] sm:$0xff]
    %v7645 = vld [vmem:[#allocation2 + $0xa4] sm:$0xf]
    %v7646 = vld [vmem:[#allocation2 + $0xa8] sm:$0xff]
    %v7647 = vld [vmem:[#allocation2 + $0xb0] sm:$0xff]
    %v7648 = vld [vmem:[#allocation2 + $0xb8] sm:$0xff]
    %v7649 = vld [vmem:[#allocation2 + $0xc0] sm:$0xf]
    %v7650 = vld [vmem:[#allocation2 + $0xc4] sm:$0xff]
    %v7651 = vld [vmem:[#allocation2 + $0xcc] sm:$0xff]
    %v7652 = vld [vmem:[#allocation2 + $0xd4] sm:$0xff]
    %v7653 = vld [vmem:[#allocation2 + $0xdc] sm:$0xf]
    %v7654 = vld [vmem:[#allocation2 + $0xe0] sm:$0xff]
    %v7655 = vld [vmem:[#allocation2 + $0xe8] sm:$0xff]
    %v7656 = vld [vmem:[#allocation2 + $0xf0] sm:$0xff]
    %v7657 = vld [vmem:[#allocation2 + $0xf8] sm:$0xf]
    %v7658 = vld [vmem:[#allocation2 + $0xfc] sm:$0xff]
    %v7659 = vld [vmem:[#allocation2 + $0x104] sm:$0xff]
    %v7660 = vld [vmem:[#allocation2 + $0x10c] sm:$0xff]
    %v7661 = vld [vmem:[#allocation2 + $0x114] sm:$0xf]
    %v7662 = vld [vmem:[#allocation2 + $0x118] sm:$0xff]
    %v7663 = vld [vmem:[#allocation2 + $0x120] sm:$0xff]
    %v7664 = vld [vmem:[#allocation2 + $0x128] sm:$0xff]
    %v7665 = vld [vmem:[#allocation2 + $0x130] sm:$0xf]
    %v7666 = vld [vmem:[#allocation2 + $0x134] sm:$0xff]
    %v7667 = vld [vmem:[#allocation2 + $0x13c] sm:$0xff]
    %v7668 = vld [vmem:[#allocation2 + $0x144] sm:$0xff]
    %v7669 = vld [vmem:[#allocation2 + $0x14c] sm:$0xf]
    %v7670 = vld [vmem:[#allocation2 + $0x150] sm:$0xff]
    %v7671 = vld [vmem:[#allocation2 + $0x158] sm:$0xff]
    %v7672 = vld [vmem:[#allocation2 + $0x160] sm:$0xff]
    %v7673 = vld [vmem:[#allocation2 + $0x168] sm:$0xf]
    %v7674 = vld [vmem:[#allocation2 + $0x16c] sm:$0xff]
    %v7675 = vld [vmem:[#allocation2 + $0x174] sm:$0xff]
    %v7676 = vld [vmem:[#allocation2 + $0x17c] sm:$0xff]
    %v7677 = vld [vmem:[#allocation2 + $0x184] sm:$0xf]
    %v7678 = vld [vmem:[#allocation2 + $0x188] sm:$0xff]
    %v7679 = vld [vmem:[#allocation2 + $0x190] sm:$0xff]
    %v7680 = vld [vmem:[#allocation2 + $0x198] sm:$0xff]
    %v7681 = vld [vmem:[#allocation2 + $0x1a0] sm:$0xf]
    %v7682 = vld [vmem:[#allocation2 + $0x1a4] sm:$0xff]
    %v7683 = vld [vmem:[#allocation2 + $0x1ac] sm:$0xff]
    %v7684 = vld [vmem:[#allocation2 + $0x1b4] sm:$0xff]
    %v7685 = vld [vmem:[#allocation2 + $0x1bc] sm:$0xf]
    %v7686 = vld [vmem:[#allocation2 + $0x1c0] sm:$0xff]
    %v7687 = vld [vmem:[#allocation2 + $0x1c8] sm:$0xff]
    %v7688 = vld [vmem:[#allocation2 + $0x1d0] sm:$0xff]
    %v7689 = vld [vmem:[#allocation2 + $0x1d8] sm:$0xf]
    %v7690 = vld [vmem:[#allocation2 + $0x1dc] sm:$0xff]
    %v7691 = vld [vmem:[#allocation2 + $0x1e4] sm:$0xff]
    %v7692 = vld [vmem:[#allocation2 + $0x1ec] sm:$0xff]
    %v7693 = vld [vmem:[#allocation2 + $0x1f4] sm:$0xf]
    %v7694 = vld [vmem:[#allocation2 + $0x1f8] sm:$0xff]
    %v7695 = vld [vmem:[#allocation2 + $0x200] sm:$0xff]
    %v7696 = vld [vmem:[#allocation2 + $0x208] sm:$0xff]
    %v7697 = vld [vmem:[#allocation2 + $0x210] sm:$0xf]
    %v7698 = vld [vmem:[#allocation2 + $0x214] sm:$0xff]
    %v7699 = vld [vmem:[#allocation2 + $0x21c] sm:$0xff]
    %v7700 = vld [vmem:[#allocation2 + $0x224] sm:$0xff]
    %v7701 = vld [vmem:[#allocation2 + $0x22c] sm:$0xf]
    %v7702 = vld [vmem:[#allocation2 + $0x230] sm:$0xff]
    %v7703 = vld [vmem:[#allocation2 + $0x238] sm:$0xff]
    %v7704 = vld [vmem:[#allocation2 + $0x240] sm:$0xff]
    %v7705 = vld [vmem:[#allocation2 + $0x248] sm:$0xf]
    %v7706 = vld [vmem:[#allocation2 + $0x24c] sm:$0xff]
    %v7707 = vld [vmem:[#allocation2 + $0x254] sm:$0xff]
    %v7708 = vld [vmem:[#allocation2 + $0x25c] sm:$0xff]
    %v7709 = vld [vmem:[#allocation2 + $0x264] sm:$0xf]
    %v7710 = vld [vmem:[#allocation2 + $0x268] sm:$0xff]
    %v7711 = vld [vmem:[#allocation2 + $0x270] sm:$0xff]
    %v7712 = vld [vmem:[#allocation2 + $0x278] sm:$0xff]
    %v7713 = vld [vmem:[#allocation2 + $0x280] sm:$0xf]
    %v7714 = vld [vmem:[#allocation2 + $0x284] sm:$0xff]
    %v7715 = vld [vmem:[#allocation2 + $0x28c] sm:$0xff]
    %v7716 = vld [vmem:[#allocation2 + $0x294] sm:$0xff]
    %v7717 = vld [vmem:[#allocation2 + $0x29c] sm:$0xf]
    %v7718 = vld [vmem:[#allocation2 + $0x2a0] sm:$0xff]
    %v7719 = vld [vmem:[#allocation2 + $0x2a8] sm:$0xff]
    %v7720 = vld [vmem:[#allocation2 + $0x2b0] sm:$0xff]
    %v7721 = vld [vmem:[#allocation2 + $0x2b8] sm:$0xf]
    %v7722 = vld [vmem:[#allocation2 + $0x2bc] sm:$0xff]
    %v7723 = vld [vmem:[#allocation2 + $0x2c4] sm:$0xff]
    %v7724 = vld [vmem:[#allocation2 + $0x2cc] sm:$0xff]
    %v7725 = vld [vmem:[#allocation2 + $0x2d4] sm:$0xf]
    %v7726 = vld [vmem:[#allocation2 + $0x2d8] sm:$0xff]
    %v7727 = vld [vmem:[#allocation2 + $0x2e0] sm:$0xff]
    %v7728 = vld [vmem:[#allocation2 + $0x2e8] sm:$0xff]
    %v7729 = vld [vmem:[#allocation2 + $0x2f0] sm:$0xf]
    %v7730 = vld [vmem:[#allocation2 + $0x2f4] sm:$0xff]
    %v7731 = vld [vmem:[#allocation2 + $0x2fc] sm:$0xff]
    %v7732 = vld [vmem:[#allocation2 + $0x304] sm:$0xff]
    %v7733 = vld [vmem:[#allocation2 + $0x30c] sm:$0xf]
    %v7734 = vld [vmem:[#allocation2 + $0x310] sm:$0xff]
    %v7735 = vld [vmem:[#allocation2 + $0x318] sm:$0xff]
    %v7736 = vld [vmem:[#allocation2 + $0x320] sm:$0xff]
    %v7737 = vld [vmem:[#allocation2 + $0x328] sm:$0xf]
    %v7738 = vld [vmem:[#allocation2 + $0x32c] sm:$0xff]
    %v7739 = vld [vmem:[#allocation2 + $0x334] sm:$0xff]
    %v7740 = vld [vmem:[#allocation2 + $0x33c] sm:$0xff]
    %v7741 = vld [vmem:[#allocation2 + $0x344] sm:$0xf]
    %v7742 = vld [vmem:[#allocation2 + $0x348] sm:$0xff]
    %v7743 = vld [vmem:[#allocation2 + $0x350] sm:$0xff]
    %v7744 = vld [vmem:[#allocation2 + $0x358] sm:$0xff]
    %v7745 = vld [vmem:[#allocation2 + $0x360] sm:$0xf]
    %v7746 = vld [vmem:[#allocation2 + $0x364] sm:$0xff]
    %v7747 = vld [vmem:[#allocation2 + $0x36c] sm:$0xff]
    %v7748 = vld [vmem:[#allocation2 + $0x374] sm:$0xff]
    %v7749 = vld [vmem:[#allocation2 + $0x37c] sm:$0xf]
    %v7750 = vld [vmem:[#allocation2 + $0x380] sm:$0xff]
    %v7751 = vld [vmem:[#allocation2 + $0x388] sm:$0xff]
    %v7752 = vld [vmem:[#allocation2 + $0x390] sm:$0xff]
    %v7753 = vld [vmem:[#allocation2 + $0x398] sm:$0xf]
    %v7754 = vld [vmem:[#allocation2 + $0x39c] sm:$0xff]
    %v7755 = vld [vmem:[#allocation2 + $0x3a4] sm:$0xff]
    %v7756 = vld [vmem:[#allocation2 + $0x3ac] sm:$0xff]
    %v7757 = vld [vmem:[#allocation2 + $0x3b4] sm:$0xf]
    %v7758 = vld [vmem:[#allocation2 + $0x3b8] sm:$0xff]
    %v7759 = vld [vmem:[#allocation2 + $0x3c0] sm:$0xff]
    %v7760 = vld [vmem:[#allocation2 + $0x3c8] sm:$0xff]
    %v7761 = vld [vmem:[#allocation2 + $0x3d0] sm:$0xf]
    %v7762 = vld [vmem:[#allocation2 + $0x3d4] sm:$0xff]
    %v7763 = vld [vmem:[#allocation2 + $0x3dc] sm:$0xff]
    %v7764 = vld [vmem:[#allocation2 + $0x3e4] sm:$0xff]
    %v7765 = vld [vmem:[#allocation2 + $0x3ec] sm:$0xf]
    %v7766 = vld [vmem:[#allocation2 + $0x3f0] sm:$0xff]
    %v7767 = vld [vmem:[#allocation2 + $0x3f8] sm:$0xff]
    %v7768 = vld [vmem:[#allocation2 + $0x400] sm:$0xff]
    %v7769 = vld [vmem:[#allocation2 + $0x408] sm:$0xf]
    %v7770 = vld [vmem:[#allocation2 + $0x40c] sm:$0xff]
    %v7771 = vld [vmem:[#allocation2 + $0x414] sm:$0xff]
    %v7772 = vld [vmem:[#allocation2 + $0x41c] sm:$0xff]
    %v7773 = vld [vmem:[#allocation2 + $0x424] sm:$0xf]
    %v7774 = vld [vmem:[#allocation2 + $0x428] sm:$0xff]
    %v7775 = vld [vmem:[#allocation2 + $0x430] sm:$0xff]
    %v7776 = vld [vmem:[#allocation2 + $0x438] sm:$0xff]
    %v7777 = vld [vmem:[#allocation2 + $0x440] sm:$0xf]
    %v7778 = vld [vmem:[#allocation2 + $0x444] sm:$0xff]
    %v7779 = vld [vmem:[#allocation2 + $0x44c] sm:$0xff]
    %v7780 = vld [vmem:[#allocation2 + $0x454] sm:$0xff]
    %v7781 = vld [vmem:[#allocation2 + $0x45c] sm:$0xf]
    %v7782 = vld [vmem:[#allocation2 + $0x460] sm:$0xff]
    %v7783 = vld [vmem:[#allocation2 + $0x468] sm:$0xff]
    %v7784 = vld [vmem:[#allocation2 + $0x470] sm:$0xff]
    %v7785 = vld [vmem:[#allocation2 + $0x478] sm:$0xf]
    %v7786 = vld [vmem:[#allocation2 + $0x47c] sm:$0xff]
    %v7787 = vld [vmem:[#allocation2 + $0x484] sm:$0xff]
    %v7788 = vld [vmem:[#allocation2 + $0x48c] sm:$0xff]
    %v7789 = vld [vmem:[#allocation2 + $0x494] sm:$0xf]
    %v7790 = vld [vmem:[#allocation2 + $0x498] sm:$0xff]
    %v7791 = vld [vmem:[#allocation2 + $0x4a0] sm:$0xff]
    %v7792 = vld [vmem:[#allocation2 + $0x4a8] sm:$0xff]
    %v7793 = vld [vmem:[#allocation2 + $0x4b0] sm:$0xf]
    %v7794 = vld [vmem:[#allocation2 + $0x4b4] sm:$0xff]
    %v7795 = vld [vmem:[#allocation2 + $0x4bc] sm:$0xff]
    %v7796 = vld [vmem:[#allocation2 + $0x4c4] sm:$0xff]
    %v7797 = vld [vmem:[#allocation2 + $0x4cc] sm:$0xf]
    %v7798 = vld [vmem:[#allocation2 + $0x4d0] sm:$0xff]
    %v7799 = vld [vmem:[#allocation2 + $0x4d8] sm:$0xff]
    %v7800 = vld [vmem:[#allocation2 + $0x4e0] sm:$0xff]
    %v7801 = vld [vmem:[#allocation2 + $0x4e8] sm:$0xf]
    %v7802 = vld [vmem:[#allocation2 + $0x4ec] sm:$0xff]
    %v7803 = vld [vmem:[#allocation2 + $0x4f4] sm:$0xff]
    %v7804 = vld [vmem:[#allocation2 + $0x4fc] sm:$0xff]
    %v7805 = vld [vmem:[#allocation2 + $0x504] sm:$0xf]
    %v7806 = vld [vmem:[#allocation2 + $0x508] sm:$0xff]
    %v7807 = vld [vmem:[#allocation2 + $0x510] sm:$0xff]
    %v7808 = vld [vmem:[#allocation2 + $0x518] sm:$0xff]
    %v7809 = vld [vmem:[#allocation2 + $0x520] sm:$0xf]
    %v7810 = vld [vmem:[#allocation2 + $0x524] sm:$0xff]
    %v7811 = vld [vmem:[#allocation2 + $0x52c] sm:$0xff]
    %v7812 = vld [vmem:[#allocation2 + $0x534] sm:$0xff]
    %v7813 = vld [vmem:[#allocation2 + $0x53c] sm:$0xf]
    %v7814 = vld [vmem:[#allocation2 + $0x540] sm:$0xff]
    %v7815 = vld [vmem:[#allocation2 + $0x548] sm:$0xff]
    %v7816 = vld [vmem:[#allocation2 + $0x550] sm:$0xff]
    %v7817 = vld [vmem:[#allocation2 + $0x558] sm:$0xf]
    %v7818 = vld [vmem:[#allocation2 + $0x55c] sm:$0xff]
    %v7819 = vld [vmem:[#allocation2 + $0x564] sm:$0xff]
    %v7820 = vld [vmem:[#allocation2 + $0x56c] sm:$0xff]
    %v7821 = vld [vmem:[#allocation2 + $0x574] sm:$0xf]
    %v7822 = vld [vmem:[#allocation2 + $0x578] sm:$0xff]
    %v7823 = vld [vmem:[#allocation2 + $0x580] sm:$0xff]
    %v7824 = vld [vmem:[#allocation2 + $0x588] sm:$0xff]
    %v7825 = vld [vmem:[#allocation2 + $0x590] sm:$0xf]
    %v7826 = vld [vmem:[#allocation2 + $0x594] sm:$0xff]
    %v7827 = vld [vmem:[#allocation2 + $0x59c] sm:$0xff]
    %v7828 = vld [vmem:[#allocation2 + $0x5a4] sm:$0xff]
    %v7829 = vld [vmem:[#allocation2 + $0x5ac] sm:$0xf]
    %v7830 = vld [vmem:[#allocation2 + $0x5b0] sm:$0xff]
    %v7831 = vld [vmem:[#allocation2 + $0x5b8] sm:$0xff]
    %v7832 = vld [vmem:[#allocation2 + $0x5c0] sm:$0xff]
    %v7833 = vld [vmem:[#allocation2 + $0x5c8] sm:$0xf]
    %v7834 = vld [vmem:[#allocation2 + $0x5cc] sm:$0xff]
    %v7835 = vld [vmem:[#allocation2 + $0x5d4] sm:$0xff]
    %v7836 = vld [vmem:[#allocation2 + $0x5dc] sm:$0xff]
    %v7837 = vld [vmem:[#allocation2 + $0x5e4] sm:$0xf]
    %v7838 = vld [vmem:[#allocation2 + $0x5e8] sm:$0xff]
    %v7839 = vld [vmem:[#allocation2 + $0x5f0] sm:$0xff]
    %v7840 = vld [vmem:[#allocation2 + $0x5f8] sm:$0xff]
    %v7841 = vld [vmem:[#allocation2 + $0x600] sm:$0xf]
    %v7842 = vld [vmem:[#allocation2 + $0x604] sm:$0xff]
    %v7843 = vld [vmem:[#allocation2 + $0x60c] sm:$0xff]
    %v7844 = vld [vmem:[#allocation2 + $0x614] sm:$0xff]
    %v7845 = vld [vmem:[#allocation2 + $0x61c] sm:$0xf]
    %v7846 = vld [vmem:[#allocation2 + $0x620] sm:$0xff]
    %v7847 = vld [vmem:[#allocation2 + $0x628] sm:$0xff]
    %v7848 = vld [vmem:[#allocation2 + $0x630] sm:$0xff]
    %v7849 = vld [vmem:[#allocation2 + $0x638] sm:$0xf]
    %v7850 = vld [vmem:[#allocation2 + $0x63c] sm:$0xff]
    %v7851 = vld [vmem:[#allocation2 + $0x644] sm:$0xff]
    %v7852 = vld [vmem:[#allocation2 + $0x64c] sm:$0xff]
    %v7853 = vld [vmem:[#allocation2 + $0x654] sm:$0xf]
    %v7854 = vld [vmem:[#allocation2 + $0x658] sm:$0xff]
    %v7855 = vld [vmem:[#allocation2 + $0x660] sm:$0xff]
    %v7856 = vld [vmem:[#allocation2 + $0x668] sm:$0xff]
    %v7857 = vld [vmem:[#allocation2 + $0x670] sm:$0xf]
    %v7858 = vld [vmem:[#allocation2 + $0x674] sm:$0xff]
    %v7859 = vld [vmem:[#allocation2 + $0x67c] sm:$0xff]
    %v7860 = vld [vmem:[#allocation2 + $0x684] sm:$0xff]
    %v7861 = vld [vmem:[#allocation2 + $0x68c] sm:$0xf]
    %v7862 = vld [vmem:[#allocation2 + $0x690] sm:$0xff]
    %v7863 = vld [vmem:[#allocation2 + $0x698] sm:$0xff]
    %v7864 = vld [vmem:[#allocation2 + $0x6a0] sm:$0xff]
    %v7865 = vld [vmem:[#allocation2 + $0x6a8] sm:$0xf]
    %v7866 = vld [vmem:[#allocation2 + $0x6ac] sm:$0xff]
    %v7867 = vld [vmem:[#allocation2 + $0x6b4] sm:$0xff]
    %v7868 = vld [vmem:[#allocation2 + $0x6bc] sm:$0xff]
    %v7869 = vld [vmem:[#allocation2 + $0x6c4] sm:$0xf]
    %v7870 = vld [vmem:[#allocation2 + $0x6c8] sm:$0xff]
    %v7871 = vld [vmem:[#allocation2 + $0x6d0] sm:$0xff]
    %v7872 = vld [vmem:[#allocation2 + $0x6d8] sm:$0xff]
    %v7873 = vld [vmem:[#allocation2 + $0x6e0] sm:$0xf]
    %v7874 = vld [vmem:[#allocation2 + $0x6e4] sm:$0xff]
    %v7875 = vld [vmem:[#allocation2 + $0x6ec] sm:$0xff]
    %v7876 = vld [vmem:[#allocation2 + $0x6f4] sm:$0xff]
    %v7877 = vld [vmem:[#allocation2 + $0x6fc] sm:$0xf]
    %v7878 = vld [vmem:[#allocation2 + $0x700] sm:$0xff]
    %v7879 = vld [vmem:[#allocation2 + $0x708] sm:$0xff]
    %v7880 = vld [vmem:[#allocation2 + $0x710] sm:$0xff]
    %v7881 = vld [vmem:[#allocation2 + $0x718] sm:$0xf]
    %v7882 = vld [vmem:[#allocation2 + $0x71c] sm:$0xff]
    %v7883 = vld [vmem:[#allocation2 + $0x724] sm:$0xff]
    %v7884 = vld [vmem:[#allocation2 + $0x72c] sm:$0xff]
    %v7885 = vld [vmem:[#allocation2 + $0x734] sm:$0xf]
    %v7886 = vld [vmem:[#allocation2 + $0x738] sm:$0xff]
    %v7887 = vld [vmem:[#allocation2 + $0x740] sm:$0xff]
    %v7888 = vld [vmem:[#allocation2 + $0x748] sm:$0xff]
    %v7889 = vld [vmem:[#allocation2 + $0x750] sm:$0xf]
    %v7890 = vld [vmem:[#allocation2 + $0x754] sm:$0xff]
    %v7891 = vld [vmem:[#allocation2 + $0x75c] sm:$0xff]
    %v7892 = vld [vmem:[#allocation2 + $0x764] sm:$0xff]
    %v7893 = vld [vmem:[#allocation2 + $0x76c] sm:$0xf]
    %v7894 = vld [vmem:[#allocation2 + $0x770] sm:$0xff]
    %v7895 = vld [vmem:[#allocation2 + $0x778] sm:$0xff]
    %v7896 = vld [vmem:[#allocation2 + $0x780] sm:$0xff]
    %v7897 = vld [vmem:[#allocation2 + $0x788] sm:$0xf]
    %v7898 = vld [vmem:[#allocation2 + $0x78c] sm:$0xff]
    %v7899 = vld [vmem:[#allocation2 + $0x794] sm:$0xff]
    %v7900 = vld [vmem:[#allocation2 + $0x79c] sm:$0xff]
    %v7901 = vld [vmem:[#allocation2 + $0x7a4] sm:$0xf]
    %v7902 = vld [vmem:[#allocation2 + $0x7a8] sm:$0xff]
    %v7903 = vld [vmem:[#allocation2 + $0x7b0] sm:$0xff]
    %v7904 = vld [vmem:[#allocation2 + $0x7b8] sm:$0xff]
    %v7905 = vld [vmem:[#allocation2 + $0x7c0] sm:$0xf]
    %v7906 = vld [vmem:[#allocation2 + $0x7c4] sm:$0xff]
    %v7907 = vld [vmem:[#allocation2 + $0x7cc] sm:$0xff]
    %v7908 = vld [vmem:[#allocation2 + $0x7d4] sm:$0xff]
    %v7909 = vld [vmem:[#allocation2 + $0x7dc] sm:$0xf]
    %v7910 = vld [vmem:[#allocation2 + $0x7e0] sm:$0xff]
    %v7911 = vld [vmem:[#allocation2 + $0x7e8] sm:$0xff]
    %v7912 = vld [vmem:[#allocation2 + $0x7f0] sm:$0xff]
    %v7913 = vld [vmem:[#allocation2 + $0x7f8] sm:$0xf]
    %v7914 = vld [vmem:[#allocation2 + $0x7fc] sm:$0xff]
    %v7915 = vld [vmem:[#allocation2 + $0x804] sm:$0xff]
    %v7916 = vld [vmem:[#allocation2 + $0x80c] sm:$0xff]
    %v7917 = vld [vmem:[#allocation2 + $0x814] sm:$0xf]
    %v7918 = vld [vmem:[#allocation2 + $0x818] sm:$0xff]
    %v7919 = vld [vmem:[#allocation2 + $0x820] sm:$0xff]
    %v7920 = vld [vmem:[#allocation2 + $0x828] sm:$0xff]
    %v7921 = vld [vmem:[#allocation2 + $0x830] sm:$0xf]
    %v7922 = vld [vmem:[#allocation2 + $0x834] sm:$0xff]
    %v7923 = vld [vmem:[#allocation2 + $0x83c] sm:$0xff]
    %v7924 = vld [vmem:[#allocation2 + $0x844] sm:$0xff]
    %v7925 = vld [vmem:[#allocation2 + $0x84c] sm:$0xf]
    %v7926 = vld [vmem:[#allocation2 + $0x850] sm:$0xff]
    %v7927 = vld [vmem:[#allocation2 + $0x858] sm:$0xff]
    %v7928 = vld [vmem:[#allocation2 + $0x860] sm:$0xff]
    %v7929 = vld [vmem:[#allocation2 + $0x868] sm:$0xf]
    %v7930 = vld [vmem:[#allocation2 + $0x86c] sm:$0xff]
    %v7931 = vld [vmem:[#allocation2 + $0x874] sm:$0xff]
    %v7932 = vld [vmem:[#allocation2 + $0x87c] sm:$0xff]
    %v7933 = vld [vmem:[#allocation2 + $0x884] sm:$0xf]
    %v7934 = vld [vmem:[#allocation2 + $0x888] sm:$0xff]
    %v7935 = vld [vmem:[#allocation2 + $0x890] sm:$0xff]
    %v7936 = vld [vmem:[#allocation2 + $0x898] sm:$0xff]
    %v7937 = vld [vmem:[#allocation2 + $0x8a0] sm:$0xf]
    %v7938 = vld [vmem:[#allocation2 + $0x8a4] sm:$0xff]
    %v7939 = vld [vmem:[#allocation2 + $0x8ac] sm:$0xff]
    %v7940 = vld [vmem:[#allocation2 + $0x8b4] sm:$0xff]
    %v7941 = vld [vmem:[#allocation2 + $0x8bc] sm:$0xf]
    %v7942 = vld [vmem:[#allocation2 + $0x8c0] sm:$0xff]
    %v7943 = vld [vmem:[#allocation2 + $0x8c8] sm:$0xff]
    %v7944 = vld [vmem:[#allocation2 + $0x8d0] sm:$0xff]
    %v7945 = vld [vmem:[#allocation2 + $0x8d8] sm:$0xf]
    %v7946 = vld [vmem:[#allocation2 + $0x8dc] sm:$0xff]
    %v7947 = vld [vmem:[#allocation2 + $0x8e4] sm:$0xff]
    %v7948 = vld [vmem:[#allocation2 + $0x8ec] sm:$0xff]
    %v7949 = vld [vmem:[#allocation2 + $0x8f4] sm:$0xf]
    %v7950 = vld [vmem:[#allocation2 + $0x8f8] sm:$0xff]
    %v7951 = vld [vmem:[#allocation2 + $0x900] sm:$0xff]
    %v7952 = vld [vmem:[#allocation2 + $0x908] sm:$0xff]
    %v7953 = vld [vmem:[#allocation2 + $0x910] sm:$0xf]
    %v7954 = vld [vmem:[#allocation2 + $0x914] sm:$0xff]
    %v7955 = vld [vmem:[#allocation2 + $0x91c] sm:$0xff]
    %v7956 = vld [vmem:[#allocation2 + $0x924] sm:$0xff]
    %v7957 = vld [vmem:[#allocation2 + $0x92c] sm:$0xf]
    %v7958 = vld [vmem:[#allocation2 + $0x930] sm:$0xff]
    %v7959 = vld [vmem:[#allocation2 + $0x938] sm:$0xff]
    %v7960 = vld [vmem:[#allocation2 + $0x940] sm:$0xff]
    %v7961 = vld [vmem:[#allocation2 + $0x948] sm:$0xf]
    %v7962 = vld [vmem:[#allocation2 + $0x94c] sm:$0xff]
    %v7963 = vld [vmem:[#allocation2 + $0x954] sm:$0xff]
    %v7964 = vld [vmem:[#allocation2 + $0x95c] sm:$0xff]
    %v7965 = vld [vmem:[#allocation2 + $0x964] sm:$0xf]
    %v7966 = vld [vmem:[#allocation2 + $0x968] sm:$0xff]
    %v7967 = vld [vmem:[#allocation2 + $0x970] sm:$0xff]
    %v7968 = vld [vmem:[#allocation2 + $0x978] sm:$0xff]
    %v7969 = vld [vmem:[#allocation2 + $0x980] sm:$0xf]
    %v7970 = vld [vmem:[#allocation2 + $0x984] sm:$0xff]
    %v7971 = vld [vmem:[#allocation2 + $0x98c] sm:$0xff]
    %v7972 = vld [vmem:[#allocation2 + $0x994] sm:$0xff]
    %v7973 = vld [vmem:[#allocation2 + $0x99c] sm:$0xf]
    %v7974 = vld [vmem:[#allocation2 + $0x9a0] sm:$0xff]
    %v7975 = vld [vmem:[#allocation2 + $0x9a8] sm:$0xff]
    %v7976 = vld [vmem:[#allocation2 + $0x9b0] sm:$0xff]
    %v7977 = vld [vmem:[#allocation2 + $0x9b8] sm:$0xf]
    %v7978 = vld [vmem:[#allocation2 + $0x9bc] sm:$0xff]
    %v7979 = vld [vmem:[#allocation2 + $0x9c4] sm:$0xff]
    %v7980 = vld [vmem:[#allocation2 + $0x9cc] sm:$0xff]
    %v7981 = vld [vmem:[#allocation2 + $0x9d4] sm:$0xf]
    %v7982 = vld [vmem:[#allocation2 + $0x9d8] sm:$0xff]
    %v7983 = vld [vmem:[#allocation2 + $0x9e0] sm:$0xff]
    %v7984 = vld [vmem:[#allocation2 + $0x9e8] sm:$0xff]
    %v7985 = vld [vmem:[#allocation2 + $0x9f0] sm:$0xf]
    %v7986 = vld [vmem:[#allocation2 + $0x9f4] sm:$0xff]
    %v7987 = vld [vmem:[#allocation2 + $0x9fc] sm:$0xff]
    %v7988 = vld [vmem:[#allocation2 + $0xa04] sm:$0xff]
    %v7989 = vld [vmem:[#allocation2 + $0xa0c] sm:$0xf]
    %v7990 = vld [vmem:[#allocation2 + $0xa10] sm:$0xff]
    %v7991 = vld [vmem:[#allocation2 + $0xa18] sm:$0xff]
    %v7992 = vld [vmem:[#allocation2 + $0xa20] sm:$0xff]
    %v7993 = vld [vmem:[#allocation2 + $0xa28] sm:$0xf]
    %v7994 = vld [vmem:[#allocation2 + $0xa2c] sm:$0xff]
    %v7995 = vld [vmem:[#allocation2 + $0xa34] sm:$0xff]
    %v7996 = vld [vmem:[#allocation2 + $0xa3c] sm:$0xff]
    %v7997 = vld [vmem:[#allocation2 + $0xa44] sm:$0xf]
    %v7998 = vld [vmem:[#allocation2 + $0xa48] sm:$0xff]
    %v7999 = vld [vmem:[#allocation2 + $0xa50] sm:$0xff]
    %v8000 = vld [vmem:[#allocation2 + $0xa58] sm:$0xff]
    %v8001 = vld [vmem:[#allocation2 + $0xa60] sm:$0xf]
    %v8002 = vld [vmem:[#allocation2 + $0xa64] sm:$0xff]
    %v8003 = vld [vmem:[#allocation2 + $0xa6c] sm:$0xff]
    %v8004 = vld [vmem:[#allocation2 + $0xa74] sm:$0xff]
    %v8005 = vld [vmem:[#allocation2 + $0xa7c] sm:$0xf]
    %v8006 = vld [vmem:[#allocation2 + $0xa80] sm:$0xff]
    %v8007 = vld [vmem:[#allocation2 + $0xa88] sm:$0xff]
    %v8008 = vld [vmem:[#allocation2 + $0xa90] sm:$0xff]
    %v8009 = vld [vmem:[#allocation2 + $0xa98] sm:$0xf]
    %v8010 = vld [vmem:[#allocation2 + $0xa9c] sm:$0xff]
    %v8011 = vld [vmem:[#allocation2 + $0xaa4] sm:$0xff]
    %v8012 = vld [vmem:[#allocation2 + $0xaac] sm:$0xff]
    %v8013 = vld [vmem:[#allocation2 + $0xab4] sm:$0xf]
    %v8014 = vld [vmem:[#allocation2 + $0xab8] sm:$0xff]
    %v8015 = vld [vmem:[#allocation2 + $0xac0] sm:$0xff]
    %v8016 = vld [vmem:[#allocation2 + $0xac8] sm:$0xff]
    %v8017 = vld [vmem:[#allocation2 + $0xad0] sm:$0xf]
    %v8018 = vld [vmem:[#allocation2 + $0xad4] sm:$0xff]
    %v8019 = vld [vmem:[#allocation2 + $0xadc] sm:$0xff]
    %v8020 = vld [vmem:[#allocation2 + $0xae4] sm:$0xff]
    %v8021 = vld [vmem:[#allocation2 + $0xaec] sm:$0xf]
    %v8022 = vld [vmem:[#allocation2 + $0xaf0] sm:$0xff]
    %v8023 = vld [vmem:[#allocation2 + $0xaf8] sm:$0xff]
    %v8024 = vld [vmem:[#allocation2 + $0xb00] sm:$0xff]
    %v8025 = vld [vmem:[#allocation2 + $0xb08] sm:$0xf]
    %v8026 = vld [vmem:[#allocation2 + $0xb0c] sm:$0xff]
    %v8027 = vld [vmem:[#allocation2 + $0xb14] sm:$0xff]
    %v8028 = vld [vmem:[#allocation2 + $0xb1c] sm:$0xff]
    %v8029 = vld [vmem:[#allocation2 + $0xb24] sm:$0xf]
    %v8030 = vld [vmem:[#allocation2 + $0xb28] sm:$0xff]
    %v8031 = vld [vmem:[#allocation2 + $0xb30] sm:$0xff]
    %v8032 = vld [vmem:[#allocation2 + $0xb38] sm:$0xff]
    %v8033 = vld [vmem:[#allocation2 + $0xb40] sm:$0xf]
    %v8034 = vld [vmem:[#allocation2 + $0xb44] sm:$0xff]
    %v8035 = vld [vmem:[#allocation2 + $0xb4c] sm:$0xff]
    %v8036 = vld [vmem:[#allocation2 + $0xb54] sm:$0xff]
    %v8037 = vld [vmem:[#allocation2 + $0xb5c] sm:$0xf]
    %v8038 = vld [vmem:[#allocation2 + $0xb60] sm:$0xff]
    %v8039 = vld [vmem:[#allocation2 + $0xb68] sm:$0xff]
    %v8040 = vld [vmem:[#allocation2 + $0xb70] sm:$0xff]
    %v8041 = vld [vmem:[#allocation2 + $0xb78] sm:$0xf]
    %v8042 = vld [vmem:[#allocation2 + $0xb7c] sm:$0xff]
    %v8043 = vld [vmem:[#allocation2 + $0xb84] sm:$0xff]
    %v8044 = vld [vmem:[#allocation2 + $0xb8c] sm:$0xff]
    %v8045 = vld [vmem:[#allocation2 + $0xb94] sm:$0xf]
    %v8046 = vld [vmem:[#allocation2 + $0xb98] sm:$0xff]
    %v8047 = vld [vmem:[#allocation2 + $0xba0] sm:$0xff]
    %v8048 = vld [vmem:[#allocation2 + $0xba8] sm:$0xff]
    %v8049 = vld [vmem:[#allocation2 + $0xbb0] sm:$0xf]
    %v8050 = vld [vmem:[#allocation2 + $0xbb4] sm:$0xff]
    %v8051 = vld [vmem:[#allocation2 + $0xbbc] sm:$0xff]
    %v8052 = vld [vmem:[#allocation2 + $0xbc4] sm:$0xff]
    %v8053 = vld [vmem:[#allocation2 + $0xbcc] sm:$0xf]
    %v8054 = vld [vmem:[#allocation2 + $0xbd0] sm:$0xff]
    %v8055 = vld [vmem:[#allocation2 + $0xbd8] sm:$0xff]
    %v8056 = vld [vmem:[#allocation2 + $0xbe0] sm:$0xff]
    %v8057 = vld [vmem:[#allocation2 + $0xbe8] sm:$0xf]
    %v8058 = vld [vmem:[#allocation2 + $0xbec] sm:$0xff]
    %v8059 = vld [vmem:[#allocation2 + $0xbf4] sm:$0xff]
    %v8060 = vld [vmem:[#allocation2 + $0xbfc] sm:$0xff]
    %v8061 = vld [vmem:[#allocation2 + $0xc04] sm:$0xf]
    %v8062 = vld [vmem:[#allocation2 + $0xc08] sm:$0xff]
    %v8063 = vld [vmem:[#allocation2 + $0xc10] sm:$0xff]
    %v8064 = vld [vmem:[#allocation2 + $0xc18] sm:$0xff]
    %v8065 = vld [vmem:[#allocation2 + $0xc20] sm:$0xf]
    %v8066 = vld [vmem:[#allocation2 + $0xc24] sm:$0xff]
    %v8067 = vld [vmem:[#allocation2 + $0xc2c] sm:$0xff]
    %v8068 = vld [vmem:[#allocation2 + $0xc34] sm:$0xff]
    %v8069 = vld [vmem:[#allocation2 + $0xc3c] sm:$0xf]
    %v8070 = vld [vmem:[#allocation2 + $0xc40] sm:$0xff]
    %v8071 = vld [vmem:[#allocation2 + $0xc48] sm:$0xff]
    %v8072 = vld [vmem:[#allocation2 + $0xc50] sm:$0xff]
    %v8073 = vld [vmem:[#allocation2 + $0xc58] sm:$0xf]
    %v8074 = vld [vmem:[#allocation2 + $0xc5c] sm:$0xff]
    %v8075 = vld [vmem:[#allocation2 + $0xc64] sm:$0xff]
    %v8076 = vld [vmem:[#allocation2 + $0xc6c] sm:$0xff]
    %v8077 = vld [vmem:[#allocation2 + $0xc74] sm:$0xf]
    %v8078 = vld [vmem:[#allocation2 + $0xc78] sm:$0xff]
    %v8079 = vld [vmem:[#allocation2 + $0xc80] sm:$0xff]
    %v8080 = vld [vmem:[#allocation2 + $0xc88] sm:$0xff]
    %v8081 = vld [vmem:[#allocation2 + $0xc90] sm:$0xf]
    %v8082 = vld [vmem:[#allocation2 + $0xc94] sm:$0xff]
    %v8083 = vld [vmem:[#allocation2 + $0xc9c] sm:$0xff]
    %v8084 = vld [vmem:[#allocation2 + $0xca4] sm:$0xff]
    %v8085 = vld [vmem:[#allocation2 + $0xcac] sm:$0xf]
    %v8086 = vld [vmem:[#allocation2 + $0xcb0] sm:$0xff]
    %v8087 = vld [vmem:[#allocation2 + $0xcb8] sm:$0xff]
    %v8088 = vld [vmem:[#allocation2 + $0xcc0] sm:$0xff]
    %v8089 = vld [vmem:[#allocation2 + $0xcc8] sm:$0xf]
    %v8090 = vld [vmem:[#allocation2 + $0xccc] sm:$0xff]
    %v8091 = vld [vmem:[#allocation2 + $0xcd4] sm:$0xff]
    %v8092 = vld [vmem:[#allocation2 + $0xcdc] sm:$0xff]
    %v8093 = vld [vmem:[#allocation2 + $0xce4] sm:$0xf]
    %v8094 = vld [vmem:[#allocation2 + $0xce8] sm:$0xff]
    %v8095 = vld [vmem:[#allocation2 + $0xcf0] sm:$0xff]
    %v8096 = vld [vmem:[#allocation2 + $0xcf8] sm:$0xff]
    %v8097 = vld [vmem:[#allocation2 + $0xd00] sm:$0xf]
    %v8098 = vld [vmem:[#allocation2 + $0xd04] sm:$0xff]
    %v8099 = vld [vmem:[#allocation2 + $0xd0c] sm:$0xff]
    %v8100 = vld [vmem:[#allocation2 + $0xd14] sm:$0xff]
    %v8101 = vld [vmem:[#allocation2 + $0xd1c] sm:$0xf]
    %v8102 = vld [vmem:[#allocation2 + $0xd20] sm:$0xff]
    %v8103 = vld [vmem:[#allocation2 + $0xd28] sm:$0xff]
    %v8104 = vld [vmem:[#allocation2 + $0xd30] sm:$0xff]
    %v8105 = vld [vmem:[#allocation2 + $0xd38] sm:$0xf]
    %v8106 = vld [vmem:[#allocation2 + $0xd3c] sm:$0xff]
    %v8107 = vld [vmem:[#allocation2 + $0xd44] sm:$0xff]
    %v8108 = vld [vmem:[#allocation2 + $0xd4c] sm:$0xff]
    %v8109 = vld [vmem:[#allocation2 + $0xd54] sm:$0xf]
    %v8110 = vld [vmem:[#allocation2 + $0xd58] sm:$0xff]
    %v8111 = vld [vmem:[#allocation2 + $0xd60] sm:$0xff]
    %v8112 = vld [vmem:[#allocation2 + $0xd68] sm:$0xff]
    %v8113 = vld [vmem:[#allocation2 + $0xd70] sm:$0xf]
    %v8114 = vld [vmem:[#allocation2 + $0xd74] sm:$0xff]
    %v8115 = vld [vmem:[#allocation2 + $0xd7c] sm:$0xff]
    %v8116 = vld [vmem:[#allocation2 + $0xd84] sm:$0xff]
    %v8117 = vld [vmem:[#allocation2 + $0xd8c] sm:$0xf]
    %v8118 = vld [vmem:[#allocation2 + $0xd90] sm:$0xff]
    %v8119 = vld [vmem:[#allocation2 + $0xd98] sm:$0xff]
    %v8120 = vld [vmem:[#allocation2 + $0xda0] sm:$0xff]
    %v8121 = vld [vmem:[#allocation2 + $0xda8] sm:$0xf]
    %v8122 = vld [vmem:[#allocation2 + $0xdac] sm:$0xff]
    %v8123 = vld [vmem:[#allocation2 + $0xdb4] sm:$0xff]
    %v8124 = vld [vmem:[#allocation2 + $0xdbc] sm:$0xff]
    %v8125 = vld [vmem:[#allocation2 + $0xdc4] sm:$0xf]
    %v8126 = vld [vmem:[#allocation2 + $0xdc8] sm:$0xff]
    %v8127 = vld [vmem:[#allocation2 + $0xdd0] sm:$0xff]
    %v8128 = vld [vmem:[#allocation2 + $0xdd8] sm:$0xff]
    %v8129 = vld [vmem:[#allocation2 + $0xde0] sm:$0xf]
    %v8130 = vld [vmem:[#allocation2 + $0xde4] sm:$0xff]
    %v8131 = vld [vmem:[#allocation2 + $0xdec] sm:$0xff]
    %v8132 = vld [vmem:[#allocation2 + $0xdf4] sm:$0xff]
    %v8133 = vld [vmem:[#allocation2 + $0xdfc] sm:$0xf]
    %v8134 = vld [vmem:[#allocation2 + $0xe00] sm:$0xff]
    %v8135 = vld [vmem:[#allocation2 + $0xe08] sm:$0xff]
    %v8136 = vld [vmem:[#allocation2 + $0xe10] sm:$0xff]
    %v8137 = vld [vmem:[#allocation2 + $0xe18] sm:$0xf]
    %v8138 = vld [vmem:[#allocation2 + $0xe1c] sm:$0xff]
    %v8139 = vld [vmem:[#allocation2 + $0xe24] sm:$0xff]
    %v8140 = vld [vmem:[#allocation2 + $0xe2c] sm:$0xff]
    %v8141 = vld [vmem:[#allocation2 + $0xe34] sm:$0xf]
    %v8142 = vld [vmem:[#allocation2 + $0xe38] sm:$0xff]
    %v8143 = vld [vmem:[#allocation2 + $0xe40] sm:$0xff]
    %v8144 = vld [vmem:[#allocation2 + $0xe48] sm:$0xff]
    %v8145 = vld [vmem:[#allocation2 + $0xe50] sm:$0xf]
    %v8146 = vld [vmem:[#allocation2 + $0xe54] sm:$0xff]
    %v8147 = vld [vmem:[#allocation2 + $0xe5c] sm:$0xff]
    %v8148 = vld [vmem:[#allocation2 + $0xe64] sm:$0xff]
    %v8149 = vld [vmem:[#allocation2 + $0xe6c] sm:$0xf]
    %v8150 = vld [vmem:[#allocation2 + $0xe70] sm:$0xff]
    %v8151 = vld [vmem:[#allocation2 + $0xe78] sm:$0xff]
    %v8152 = vld [vmem:[#allocation2 + $0xe80] sm:$0xff]
    %v8153 = vld [vmem:[#allocation2 + $0xe88] sm:$0xf]
    %v8154 = vld [vmem:[#allocation2 + $0xe8c] sm:$0xff]
    %v8155 = vld [vmem:[#allocation2 + $0xe94] sm:$0xff]
    %v8156 = vld [vmem:[#allocation2 + $0xe9c] sm:$0xff]
    %v8157 = vld [vmem:[#allocation2 + $0xea4] sm:$0xf]
    %v8158 = vld [vmem:[#allocation2 + $0xea8] sm:$0xff]
    %v8159 = vld [vmem:[#allocation2 + $0xeb0] sm:$0xff]
    %v8160 = vld [vmem:[#allocation2 + $0xeb8] sm:$0xff]
    %v8161 = vld [vmem:[#allocation2 + $0xec0] sm:$0xf]
    %v8162 = vld [vmem:[#allocation2 + $0xec4] sm:$0xff]
    %v8163 = vld [vmem:[#allocation2 + $0xecc] sm:$0xff]
    %v8164 = vld [vmem:[#allocation2 + $0xed4] sm:$0xff]
    %v8165 = vld [vmem:[#allocation2 + $0xedc] sm:$0xf]
    %v8166 = vld [vmem:[#allocation2 + $0xee0] sm:$0xff]
    %v8167 = vld [vmem:[#allocation2 + $0xee8] sm:$0xff]
    %v8168 = vld [vmem:[#allocation2 + $0xef0] sm:$0xff]
    %v8169 = vld [vmem:[#allocation2 + $0xef8] sm:$0xf]
    %v8170 = vld [vmem:[#allocation2 + $0xefc] sm:$0xff]
    %v8171 = vld [vmem:[#allocation2 + $0xf04] sm:$0xff]
    %v8172 = vld [vmem:[#allocation2 + $0xf0c] sm:$0xff]
    %v8173 = vld [vmem:[#allocation2 + $0xf14] sm:$0xf]
    %v8174 = vld [vmem:[#allocation2 + $0xf18] sm:$0xff]
    %v8175 = vld [vmem:[#allocation2 + $0xf20] sm:$0xff]
    %v8176 = vld [vmem:[#allocation2 + $0xf28] sm:$0xff]
    %v8177 = vld [vmem:[#allocation2 + $0xf30] sm:$0xf]
    %v8178 = vld [vmem:[#allocation2 + $0xf34] sm:$0xff]
    %v8179 = vld [vmem:[#allocation2 + $0xf3c] sm:$0xff]
    %v8180 = vld [vmem:[#allocation2 + $0xf44] sm:$0xff]
    %v8181 = vld [vmem:[#allocation2 + $0xf4c] sm:$0xf]
    %v8182 = vld [vmem:[#allocation2 + $0xf50] sm:$0xff]
    %v8183 = vld [vmem:[#allocation2 + $0xf58] sm:$0xff]
    %v8184 = vld [vmem:[#allocation2 + $0xf60] sm:$0xff]
    %v8185 = vld [vmem:[#allocation2 + $0xf68] sm:$0xf]
    %v8186 = vld [vmem:[#allocation2 + $0xf6c] sm:$0xff]
    %v8187 = vld [vmem:[#allocation2 + $0xf74] sm:$0xff]
    %v8188 = vld [vmem:[#allocation2 + $0xf7c] sm:$0xff]
    %v8189 = vld [vmem:[#allocation2 + $0xf84] sm:$0xf]
    %v8190 = vld [vmem:[#allocation2 + $0xf88] sm:$0xff]
    %v8191 = vld [vmem:[#allocation2 + $0xf90] sm:$0xff]
    %v8192 = vld [vmem:[#allocation2 + $0xf98] sm:$0xff]
    %v8193 = vld [vmem:[#allocation2 + $0xfa0] sm:$0xf]
    %v8194 = vld [vmem:[#allocation2 + $0xfa4] sm:$0xff]
    %v8195 = vld [vmem:[#allocation2 + $0xfac] sm:$0xff]
    %v8196 = vld [vmem:[#allocation2 + $0xfb4] sm:$0xff]
    %v8197 = vld [vmem:[#allocation2 + $0xfbc] sm:$0xf]
    %v8198 = vld [vmem:[#allocation2 + $0xfc0] sm:$0xff]
    %v8199 = vld [vmem:[#allocation2 + $0xfc8] sm:$0xff]
    %v8200 = vld [vmem:[#allocation2 + $0xfd0] sm:$0xff]
    %v8201 = vld [vmem:[#allocation2 + $0xfd8] sm:$0xf]
    %v8202 = vld [vmem:[#allocation2 + $0xfdc] sm:$0xff]
    %v8203 = vld [vmem:[#allocation2 + $0xfe4] sm:$0xff]
    %v8204 = vld [vmem:[#allocation2 + $0xfec] sm:$0xff]
    %v8205 = vld [vmem:[#allocation2 + $0xff4] sm:$0xf]
    %v8206 = vld [vmem:[#allocation2 + $0xff8] sm:$0xff]
    %v8207 = vld [vmem:[#allocation2 + $0x1000] sm:$0xff]
    %v8208 = vld [vmem:[#allocation2 + $0x1008] sm:$0xff]
    %v8209 = vld [vmem:[#allocation2 + $0x1010] sm:$0xf]
    %v8210 = vld [vmem:[#allocation2 + $0x1014] sm:$0xff]
    %v8211 = vld [vmem:[#allocation2 + $0x101c] sm:$0xff]
    %v8212 = vld [vmem:[#allocation2 + $0x1024] sm:$0xff]
    %v8213 = vld [vmem:[#allocation2 + $0x102c] sm:$0xf]
    %v8214 = vld [vmem:[#allocation2 + $0x1030] sm:$0xff]
    %v8215 = vld [vmem:[#allocation2 + $0x1038] sm:$0xff]
    %v8216 = vld [vmem:[#allocation2 + $0x1040] sm:$0xff]
    %v8217 = vld [vmem:[#allocation2 + $0x1048] sm:$0xf]
    %v8218 = vld [vmem:[#allocation2 + $0x104c] sm:$0xff]
    %v8219 = vld [vmem:[#allocation2 + $0x1054] sm:$0xff]
    %v8220 = vld [vmem:[#allocation2 + $0x105c] sm:$0xff]
    %v8221 = vld [vmem:[#allocation2 + $0x1064] sm:$0xf]
    %v8222 = vld [vmem:[#allocation2 + $0x1068] sm:$0xff]
    %v8223 = vld [vmem:[#allocation2 + $0x1070] sm:$0xff]
    %v8224 = vld [vmem:[#allocation2 + $0x1078] sm:$0xff]
    %v8225 = vld [vmem:[#allocation2 + $0x1080] sm:$0xf]
    %v8226 = vld [vmem:[#allocation2 + $0x1084] sm:$0xff]
    %v8227 = vld [vmem:[#allocation2 + $0x108c] sm:$0xff]
    %v8228 = vld [vmem:[#allocation2 + $0x1094] sm:$0xff]
    %v8229 = vld [vmem:[#allocation2 + $0x109c] sm:$0xf]
    %v8230 = vld [vmem:[#allocation2 + $0x10a0] sm:$0xff]
    %v8231 = vld [vmem:[#allocation2 + $0x10a8] sm:$0xff]
    %v8232 = vld [vmem:[#allocation2 + $0x10b0] sm:$0xff]
    %v8233 = vld [vmem:[#allocation2 + $0x10b8] sm:$0xf]
    %v8234 = vld [vmem:[#allocation2 + $0x10bc] sm:$0xff]
    %v8235 = vld [vmem:[#allocation2 + $0x10c4] sm:$0xff]
    %v8236 = vld [vmem:[#allocation2 + $0x10cc] sm:$0xff]
    %v8237 = vld [vmem:[#allocation2 + $0x10d4] sm:$0xf]
    %v8238 = vld [vmem:[#allocation2 + $0x10d8] sm:$0xff]
    %v8239 = vld [vmem:[#allocation2 + $0x10e0] sm:$0xff]
    %v8240 = vld [vmem:[#allocation2 + $0x10e8] sm:$0xff]
    %v8241 = vld [vmem:[#allocation2 + $0x10f0] sm:$0xf]
    %v8242 = vld [vmem:[#allocation2 + $0x10f4] sm:$0xff]
    %v8243 = vld [vmem:[#allocation2 + $0x10fc] sm:$0xff]
    %v8244 = vld [vmem:[#allocation2 + $0x1104] sm:$0xff]
    %v8245 = vld [vmem:[#allocation2 + $0x110c] sm:$0xf]
    %v8246 = vld [vmem:[#allocation2 + $0x1110] sm:$0xff]
    %v8247 = vld [vmem:[#allocation2 + $0x1118] sm:$0xff]
    %v8248 = vld [vmem:[#allocation2 + $0x1120] sm:$0xff]
    %v8249 = vld [vmem:[#allocation2 + $0x1128] sm:$0xf]
    %v8250 = vld [vmem:[#allocation2 + $0x112c] sm:$0xff]
    %v8251 = vld [vmem:[#allocation2 + $0x1134] sm:$0xff]
    %v8252 = vld [vmem:[#allocation2 + $0x113c] sm:$0xff]
    %v8253 = vld [vmem:[#allocation2 + $0x1144] sm:$0xf]
    %v8254 = vld [vmem:[#allocation2 + $0x1148] sm:$0xff]
    %v8255 = vld [vmem:[#allocation2 + $0x1150] sm:$0xff]
    %v8256 = vld [vmem:[#allocation2 + $0x1158] sm:$0xff]
    %v8257 = vld [vmem:[#allocation2 + $0x1160] sm:$0xf]
    %v8258 = vld [vmem:[#allocation2 + $0x1164] sm:$0xff]
    %v8259 = vld [vmem:[#allocation2 + $0x116c] sm:$0xff]
    %v8260 = vld [vmem:[#allocation2 + $0x1174] sm:$0xff]
    %v8261 = vld [vmem:[#allocation2 + $0x117c] sm:$0xf]
    %v8262 = vld [vmem:[#allocation22] sm:$0xff]
    %v8264 = vperm.slane %v8262, 0
    %v8265 = vperm.slane %v8262, 1
    %v8266 = vperm.slane %v8262, 2
    %v8267 = vperm.slane %v8262, 3
    %v8268 = vperm.slane %v8262, 4
    %v8269 = vperm.slane %v8262, 5
    %v8270 = vperm.slane %v8262, 6
    %v8918 = vunpack.c.l.b16 %v7622
    %v8919 = vunpack.c.h.b16 %v7622
    %v8920 = vunpack.c.l.b16 %v7623
    %v8921 = vunpack.c.h.b16 %v7623
    %v8922 = vunpack.c.l.b16 %v7624
    %v8923 = vunpack.c.h.b16 %v7624
    %v8924 = vunpack.c.l.b16 %v7625
    %v8925 = vunpack.c.l.b16 %v7626
    %v8926 = vunpack.c.h.b16 %v7626
    %v8927 = vunpack.c.l.b16 %v7627
    %v8928 = vunpack.c.h.b16 %v7627
    %v8929 = vunpack.c.l.b16 %v7628
    %v8930 = vunpack.c.h.b16 %v7628
    %v8931 = vunpack.c.l.b16 %v7629
    %v8932 = vunpack.c.l.b16 %v7630
    %v8933 = vunpack.c.h.b16 %v7630
    %v8934 = vunpack.c.l.b16 %v7631
    %v8935 = vunpack.c.h.b16 %v7631
    %v8936 = vunpack.c.l.b16 %v7632
    %v8937 = vunpack.c.h.b16 %v7632
    %v8938 = vunpack.c.l.b16 %v7633
    %v8939 = vunpack.c.l.b16 %v7634
    %v8940 = vunpack.c.h.b16 %v7634
    %v8941 = vunpack.c.l.b16 %v7635
    %v8942 = vunpack.c.h.b16 %v7635
    %v8943 = vunpack.c.l.b16 %v7636
    %v8944 = vunpack.c.h.b16 %v7636
    %v8945 = vunpack.c.l.b16 %v7637
    %v8946 = vunpack.c.l.b16 %v7638
    %v8947 = vunpack.c.h.b16 %v7638
    %v8948 = vunpack.c.l.b16 %v7639
    %v8949 = vunpack.c.h.b16 %v7639
    %v8950 = vunpack.c.l.b16 %v7640
    %v8951 = vunpack.c.h.b16 %v7640
    %v8952 = vunpack.c.l.b16 %v7641
    %v8953 = vunpack.c.l.b16 %v7642
    %v8954 = vunpack.c.h.b16 %v7642
    %v8955 = vunpack.c.l.b16 %v7643
    %v8956 = vunpack.c.h.b16 %v7643
    %v8957 = vunpack.c.l.b16 %v7644
    %v8958 = vunpack.c.h.b16 %v7644
    %v8959 = vunpack.c.l.b16 %v7645
    %v8960 = vunpack.c.l.b16 %v7646
    %v8961 = vunpack.c.h.b16 %v7646
    %v8962 = vunpack.c.l.b16 %v7647
    %v8963 = vunpack.c.h.b16 %v7647
    %v8964 = vunpack.c.l.b16 %v7648
    %v8965 = vunpack.c.h.b16 %v7648
    %v8966 = vunpack.c.l.b16 %v7649
    %v8967 = vunpack.c.l.b16 %v7650
    %v8968 = vunpack.c.h.b16 %v7650
    %v8969 = vunpack.c.l.b16 %v7651
    %v8970 = vunpack.c.h.b16 %v7651
    %v8971 = vunpack.c.l.b16 %v7652
    %v8972 = vunpack.c.h.b16 %v7652
    %v8973 = vunpack.c.l.b16 %v7653
    %v8974 = vunpack.c.l.b16 %v7654
    %v8975 = vunpack.c.h.b16 %v7654
    %v8976 = vunpack.c.l.b16 %v7655
    %v8977 = vunpack.c.h.b16 %v7655
    %v8978 = vunpack.c.l.b16 %v7656
    %v8979 = vunpack.c.h.b16 %v7656
    %v8980 = vunpack.c.l.b16 %v7657
    %v8981 = vunpack.c.l.b16 %v7658
    %v8982 = vunpack.c.h.b16 %v7658
    %v8983 = vunpack.c.l.b16 %v7659
    %v8984 = vunpack.c.h.b16 %v7659
    %v8985 = vunpack.c.l.b16 %v7660
    %v8986 = vunpack.c.h.b16 %v7660
    %v8987 = vunpack.c.l.b16 %v7661
    %v8988 = vunpack.c.l.b16 %v7662
    %v8989 = vunpack.c.h.b16 %v7662
    %v8990 = vunpack.c.l.b16 %v7663
    %v8991 = vunpack.c.h.b16 %v7663
    %v8992 = vunpack.c.l.b16 %v7664
    %v8993 = vunpack.c.h.b16 %v7664
    %v8994 = vunpack.c.l.b16 %v7665
    %v8995 = vunpack.c.l.b16 %v7666
    %v8996 = vunpack.c.h.b16 %v7666
    %v8997 = vunpack.c.l.b16 %v7667
    %v8998 = vunpack.c.h.b16 %v7667
    %v8999 = vunpack.c.l.b16 %v7668
    %v9000 = vunpack.c.h.b16 %v7668
    %v9001 = vunpack.c.l.b16 %v7669
    %v9002 = vunpack.c.l.b16 %v7670
    %v9003 = vunpack.c.h.b16 %v7670
    %v9004 = vunpack.c.l.b16 %v7671
    %v9005 = vunpack.c.h.b16 %v7671
    %v9006 = vunpack.c.l.b16 %v7672
    %v9007 = vunpack.c.h.b16 %v7672
    %v9008 = vunpack.c.l.b16 %v7673
    %v9009 = vunpack.c.l.b16 %v7674
    %v9010 = vunpack.c.h.b16 %v7674
    %v9011 = vunpack.c.l.b16 %v7675
    %v9012 = vunpack.c.h.b16 %v7675
    %v9013 = vunpack.c.l.b16 %v7676
    %v9014 = vunpack.c.h.b16 %v7676
    %v9015 = vunpack.c.l.b16 %v7677
    %v9016 = vunpack.c.l.b16 %v7678
    %v9017 = vunpack.c.h.b16 %v7678
    %v9018 = vunpack.c.l.b16 %v7679
    %v9019 = vunpack.c.h.b16 %v7679
    %v9020 = vunpack.c.l.b16 %v7680
    %v9021 = vunpack.c.h.b16 %v7680
    %v9022 = vunpack.c.l.b16 %v7681
    %v9023 = vunpack.c.l.b16 %v7682
    %v9024 = vunpack.c.h.b16 %v7682
    %v9025 = vunpack.c.l.b16 %v7683
    %v9026 = vunpack.c.h.b16 %v7683
    %v9027 = vunpack.c.l.b16 %v7684
    %v9028 = vunpack.c.h.b16 %v7684
    %v9029 = vunpack.c.l.b16 %v7685
    %v9030 = vunpack.c.l.b16 %v7686
    %v9031 = vunpack.c.h.b16 %v7686
    %v9032 = vunpack.c.l.b16 %v7687
    %v9033 = vunpack.c.h.b16 %v7687
    %v9034 = vunpack.c.l.b16 %v7688
    %v9035 = vunpack.c.h.b16 %v7688
    %v9036 = vunpack.c.l.b16 %v7689
    %v9037 = vunpack.c.l.b16 %v7690
    %v9038 = vunpack.c.h.b16 %v7690
    %v9039 = vunpack.c.l.b16 %v7691
    %v9040 = vunpack.c.h.b16 %v7691
    %v9041 = vunpack.c.l.b16 %v7692
    %v9042 = vunpack.c.h.b16 %v7692
    %v9043 = vunpack.c.l.b16 %v7693
    %v9044 = vunpack.c.l.b16 %v7694
    %v9045 = vunpack.c.h.b16 %v7694
    %v9046 = vunpack.c.l.b16 %v7695
    %v9047 = vunpack.c.h.b16 %v7695
    %v9048 = vunpack.c.l.b16 %v7696
    %v9049 = vunpack.c.h.b16 %v7696
    %v9050 = vunpack.c.l.b16 %v7697
    %v9051 = vunpack.c.l.b16 %v7698
    %v9052 = vunpack.c.h.b16 %v7698
    %v9053 = vunpack.c.l.b16 %v7699
    %v9054 = vunpack.c.h.b16 %v7699
    %v9055 = vunpack.c.l.b16 %v7700
    %v9056 = vunpack.c.h.b16 %v7700
    %v9057 = vunpack.c.l.b16 %v7701
    %v9058 = vunpack.c.l.b16 %v7702
    %v9059 = vunpack.c.h.b16 %v7702
    %v9060 = vunpack.c.l.b16 %v7703
    %v9061 = vunpack.c.h.b16 %v7703
    %v9062 = vunpack.c.l.b16 %v7704
    %v9063 = vunpack.c.h.b16 %v7704
    %v9064 = vunpack.c.l.b16 %v7705
    %v9065 = vunpack.c.l.b16 %v7706
    %v9066 = vunpack.c.h.b16 %v7706
    %v9067 = vunpack.c.l.b16 %v7707
    %v9068 = vunpack.c.h.b16 %v7707
    %v9069 = vunpack.c.l.b16 %v7708
    %v9070 = vunpack.c.h.b16 %v7708
    %v9071 = vunpack.c.l.b16 %v7709
    %v9072 = vunpack.c.l.b16 %v7710
    %v9073 = vunpack.c.h.b16 %v7710
    %v9074 = vunpack.c.l.b16 %v7711
    %v9075 = vunpack.c.h.b16 %v7711
    %v9076 = vunpack.c.l.b16 %v7712
    %v9077 = vunpack.c.h.b16 %v7712
    %v9078 = vunpack.c.l.b16 %v7713
    %v9079 = vunpack.c.l.b16 %v7714
    %v9080 = vunpack.c.h.b16 %v7714
    %v9081 = vunpack.c.l.b16 %v7715
    %v9082 = vunpack.c.h.b16 %v7715
    %v9083 = vunpack.c.l.b16 %v7716
    %v9084 = vunpack.c.h.b16 %v7716
    %v9085 = vunpack.c.l.b16 %v7717
    %v9086 = vunpack.c.l.b16 %v7718
    %v9087 = vunpack.c.h.b16 %v7718
    %v9088 = vunpack.c.l.b16 %v7719
    %v9089 = vunpack.c.h.b16 %v7719
    %v9090 = vunpack.c.l.b16 %v7720
    %v9091 = vunpack.c.h.b16 %v7720
    %v9092 = vunpack.c.l.b16 %v7721
    %v9093 = vunpack.c.l.b16 %v7722
    %v9094 = vunpack.c.h.b16 %v7722
    %v9095 = vunpack.c.l.b16 %v7723
    %v9096 = vunpack.c.h.b16 %v7723
    %v9097 = vunpack.c.l.b16 %v7724
    %v9098 = vunpack.c.h.b16 %v7724
    %v9099 = vunpack.c.l.b16 %v7725
    %v9100 = vunpack.c.l.b16 %v7726
    %v9101 = vunpack.c.h.b16 %v7726
    %v9102 = vunpack.c.l.b16 %v7727
    %v9103 = vunpack.c.h.b16 %v7727
    %v9104 = vunpack.c.l.b16 %v7728
    %v9105 = vunpack.c.h.b16 %v7728
    %v9106 = vunpack.c.l.b16 %v7729
    %v9107 = vunpack.c.l.b16 %v7730
    %v9108 = vunpack.c.h.b16 %v7730
    %v9109 = vunpack.c.l.b16 %v7731
    %v9110 = vunpack.c.h.b16 %v7731
    %v9111 = vunpack.c.l.b16 %v7732
    %v9112 = vunpack.c.h.b16 %v7732
    %v9113 = vunpack.c.l.b16 %v7733
    %v9114 = vunpack.c.l.b16 %v7734
    %v9115 = vunpack.c.h.b16 %v7734
    %v9116 = vunpack.c.l.b16 %v7735
    %v9117 = vunpack.c.h.b16 %v7735
    %v9118 = vunpack.c.l.b16 %v7736
    %v9119 = vunpack.c.h.b16 %v7736
    %v9120 = vunpack.c.l.b16 %v7737
    %v9121 = vunpack.c.l.b16 %v7738
    %v9122 = vunpack.c.h.b16 %v7738
    %v9123 = vunpack.c.l.b16 %v7739
    %v9124 = vunpack.c.h.b16 %v7739
    %v9125 = vunpack.c.l.b16 %v7740
    %v9126 = vunpack.c.h.b16 %v7740
    %v9127 = vunpack.c.l.b16 %v7741
    %v9128 = vunpack.c.l.b16 %v7742
    %v9129 = vunpack.c.h.b16 %v7742
    %v9130 = vunpack.c.l.b16 %v7743
    %v9131 = vunpack.c.h.b16 %v7743
    %v9132 = vunpack.c.l.b16 %v7744
    %v9133 = vunpack.c.h.b16 %v7744
    %v9134 = vunpack.c.l.b16 %v7745
    %v9135 = vunpack.c.l.b16 %v7746
    %v9136 = vunpack.c.h.b16 %v7746
    %v9137 = vunpack.c.l.b16 %v7747
    %v9138 = vunpack.c.h.b16 %v7747
    %v9139 = vunpack.c.l.b16 %v7748
    %v9140 = vunpack.c.h.b16 %v7748
    %v9141 = vunpack.c.l.b16 %v7749
    %v9142 = vunpack.c.l.b16 %v7750
    %v9143 = vunpack.c.h.b16 %v7750
    %v9144 = vunpack.c.l.b16 %v7751
    %v9145 = vunpack.c.h.b16 %v7751
    %v9146 = vunpack.c.l.b16 %v7752
    %v9147 = vunpack.c.h.b16 %v7752
    %v9148 = vunpack.c.l.b16 %v7753
    %v9149 = vunpack.c.l.b16 %v7754
    %v9150 = vunpack.c.h.b16 %v7754
    %v9151 = vunpack.c.l.b16 %v7755
    %v9152 = vunpack.c.h.b16 %v7755
    %v9153 = vunpack.c.l.b16 %v7756
    %v9154 = vunpack.c.h.b16 %v7756
    %v9155 = vunpack.c.l.b16 %v7757
    %v9156 = vunpack.c.l.b16 %v7758
    %v9157 = vunpack.c.h.b16 %v7758
    %v9158 = vunpack.c.l.b16 %v7759
    %v9159 = vunpack.c.h.b16 %v7759
    %v9160 = vunpack.c.l.b16 %v7760
    %v9161 = vunpack.c.h.b16 %v7760
    %v9162 = vunpack.c.l.b16 %v7761
    %v9163 = vunpack.c.l.b16 %v7762
    %v9164 = vunpack.c.h.b16 %v7762
    %v9165 = vunpack.c.l.b16 %v7763
    %v9166 = vunpack.c.h.b16 %v7763
    %v9167 = vunpack.c.l.b16 %v7764
    %v9168 = vunpack.c.h.b16 %v7764
    %v9169 = vunpack.c.l.b16 %v7765
    %v9170 = vunpack.c.l.b16 %v7766
    %v9171 = vunpack.c.h.b16 %v7766
    %v9172 = vunpack.c.l.b16 %v7767
    %v9173 = vunpack.c.h.b16 %v7767
    %v9174 = vunpack.c.l.b16 %v7768
    %v9175 = vunpack.c.h.b16 %v7768
    %v9176 = vunpack.c.l.b16 %v7769
    %v9177 = vunpack.c.l.b16 %v7770
    %v9178 = vunpack.c.h.b16 %v7770
    %v9179 = vunpack.c.l.b16 %v7771
    %v9180 = vunpack.c.h.b16 %v7771
    %v9181 = vunpack.c.l.b16 %v7772
    %v9182 = vunpack.c.h.b16 %v7772
    %v9183 = vunpack.c.l.b16 %v7773
    %v9184 = vunpack.c.l.b16 %v7774
    %v9185 = vunpack.c.h.b16 %v7774
    %v9186 = vunpack.c.l.b16 %v7775
    %v9187 = vunpack.c.h.b16 %v7775
    %v9188 = vunpack.c.l.b16 %v7776
    %v9189 = vunpack.c.h.b16 %v7776
    %v9190 = vunpack.c.l.b16 %v7777
    %v9191 = vunpack.c.l.b16 %v7778
    %v9192 = vunpack.c.h.b16 %v7778
    %v9193 = vunpack.c.l.b16 %v7779
    %v9194 = vunpack.c.h.b16 %v7779
    %v9195 = vunpack.c.l.b16 %v7780
    %v9196 = vunpack.c.h.b16 %v7780
    %v9197 = vunpack.c.l.b16 %v7781
    %v9198 = vunpack.c.l.b16 %v7782
    %v9199 = vunpack.c.h.b16 %v7782
    %v9200 = vunpack.c.l.b16 %v7783
    %v9201 = vunpack.c.h.b16 %v7783
    %v9202 = vunpack.c.l.b16 %v7784
    %v9203 = vunpack.c.h.b16 %v7784
    %v9204 = vunpack.c.l.b16 %v7785
    %v9205 = vunpack.c.l.b16 %v7786
    %v9206 = vunpack.c.h.b16 %v7786
    %v9207 = vunpack.c.l.b16 %v7787
    %v9208 = vunpack.c.h.b16 %v7787
    %v9209 = vunpack.c.l.b16 %v7788
    %v9210 = vunpack.c.h.b16 %v7788
    %v9211 = vunpack.c.l.b16 %v7789
    %v9212 = vunpack.c.l.b16 %v7790
    %v9213 = vunpack.c.h.b16 %v7790
    %v9214 = vunpack.c.l.b16 %v7791
    %v9215 = vunpack.c.h.b16 %v7791
    %v9216 = vunpack.c.l.b16 %v7792
    %v9217 = vunpack.c.h.b16 %v7792
    %v9218 = vunpack.c.l.b16 %v7793
    %v9219 = vunpack.c.l.b16 %v7794
    %v9220 = vunpack.c.h.b16 %v7794
    %v9221 = vunpack.c.l.b16 %v7795
    %v9222 = vunpack.c.h.b16 %v7795
    %v9223 = vunpack.c.l.b16 %v7796
    %v9224 = vunpack.c.h.b16 %v7796
    %v9225 = vunpack.c.l.b16 %v7797
    %v9226 = vunpack.c.l.b16 %v7798
    %v9227 = vunpack.c.h.b16 %v7798
    %v9228 = vunpack.c.l.b16 %v7799
    %v9229 = vunpack.c.h.b16 %v7799
    %v9230 = vunpack.c.l.b16 %v7800
    %v9231 = vunpack.c.h.b16 %v7800
    %v9232 = vunpack.c.l.b16 %v7801
    %v9233 = vunpack.c.l.b16 %v7802
    %v9234 = vunpack.c.h.b16 %v7802
    %v9235 = vunpack.c.l.b16 %v7803
    %v9236 = vunpack.c.h.b16 %v7803
    %v9237 = vunpack.c.l.b16 %v7804
    %v9238 = vunpack.c.h.b16 %v7804
    %v9239 = vunpack.c.l.b16 %v7805
    %v9240 = vunpack.c.l.b16 %v7806
    %v9241 = vunpack.c.h.b16 %v7806
    %v9242 = vunpack.c.l.b16 %v7807
    %v9243 = vunpack.c.h.b16 %v7807
    %v9244 = vunpack.c.l.b16 %v7808
    %v9245 = vunpack.c.h.b16 %v7808
    %v9246 = vunpack.c.l.b16 %v7809
    %v9247 = vunpack.c.l.b16 %v7810
    %v9248 = vunpack.c.h.b16 %v7810
    %v9249 = vunpack.c.l.b16 %v7811
    %v9250 = vunpack.c.h.b16 %v7811
    %v9251 = vunpack.c.l.b16 %v7812
    %v9252 = vunpack.c.h.b16 %v7812
    %v9253 = vunpack.c.l.b16 %v7813
    %v9254 = vunpack.c.l.b16 %v7814
    %v9255 = vunpack.c.h.b16 %v7814
    %v9256 = vunpack.c.l.b16 %v7815
    %v9257 = vunpack.c.h.b16 %v7815
    %v9258 = vunpack.c.l.b16 %v7816
    %v9259 = vunpack.c.h.b16 %v7816
    %v9260 = vunpack.c.l.b16 %v7817
    %v9261 = vunpack.c.l.b16 %v7818
    %v9262 = vunpack.c.h.b16 %v7818
    %v9263 = vunpack.c.l.b16 %v7819
    %v9264 = vunpack.c.h.b16 %v7819
    %v9265 = vunpack.c.l.b16 %v7820
    %v9266 = vunpack.c.h.b16 %v7820
    %v9267 = vunpack.c.l.b16 %v7821
    %v9268 = vunpack.c.l.b16 %v7822
    %v9269 = vunpack.c.h.b16 %v7822
    %v9270 = vunpack.c.l.b16 %v7823
    %v9271 = vunpack.c.h.b16 %v7823
    %v9272 = vunpack.c.l.b16 %v7824
    %v9273 = vunpack.c.h.b16 %v7824
    %v9274 = vunpack.c.l.b16 %v7825
    %v9275 = vunpack.c.l.b16 %v7826
    %v9276 = vunpack.c.h.b16 %v7826
    %v9277 = vunpack.c.l.b16 %v7827
    %v9278 = vunpack.c.h.b16 %v7827
    %v9279 = vunpack.c.l.b16 %v7828
    %v9280 = vunpack.c.h.b16 %v7828
    %v9281 = vunpack.c.l.b16 %v7829
    %v9282 = vunpack.c.l.b16 %v7830
    %v9283 = vunpack.c.h.b16 %v7830
    %v9284 = vunpack.c.l.b16 %v7831
    %v9285 = vunpack.c.h.b16 %v7831
    %v9286 = vunpack.c.l.b16 %v7832
    %v9287 = vunpack.c.h.b16 %v7832
    %v9288 = vunpack.c.l.b16 %v7833
    %v9289 = vunpack.c.l.b16 %v7834
    %v9290 = vunpack.c.h.b16 %v7834
    %v9291 = vunpack.c.l.b16 %v7835
    %v9292 = vunpack.c.h.b16 %v7835
    %v9293 = vunpack.c.l.b16 %v7836
    %v9294 = vunpack.c.h.b16 %v7836
    %v9295 = vunpack.c.l.b16 %v7837
    %v9296 = vunpack.c.l.b16 %v7838
    %v9297 = vunpack.c.h.b16 %v7838
    %v9298 = vunpack.c.l.b16 %v7839
    %v9299 = vunpack.c.h.b16 %v7839
    %v9300 = vunpack.c.l.b16 %v7840
    %v9301 = vunpack.c.h.b16 %v7840
    %v9302 = vunpack.c.l.b16 %v7841
    %v9303 = vunpack.c.l.b16 %v7842
    %v9304 = vunpack.c.h.b16 %v7842
    %v9305 = vunpack.c.l.b16 %v7843
    %v9306 = vunpack.c.h.b16 %v7843
    %v9307 = vunpack.c.l.b16 %v7844
    %v9308 = vunpack.c.h.b16 %v7844
    %v9309 = vunpack.c.l.b16 %v7845
    %v9310 = vunpack.c.l.b16 %v7846
    %v9311 = vunpack.c.h.b16 %v7846
    %v9312 = vunpack.c.l.b16 %v7847
    %v9313 = vunpack.c.h.b16 %v7847
    %v9314 = vunpack.c.l.b16 %v7848
    %v9315 = vunpack.c.h.b16 %v7848
    %v9316 = vunpack.c.l.b16 %v7849
    %v9317 = vunpack.c.l.b16 %v7850
    %v9318 = vunpack.c.h.b16 %v7850
    %v9319 = vunpack.c.l.b16 %v7851
    %v9320 = vunpack.c.h.b16 %v7851
    %v9321 = vunpack.c.l.b16 %v7852
    %v9322 = vunpack.c.h.b16 %v7852
    %v9323 = vunpack.c.l.b16 %v7853
    %v9324 = vunpack.c.l.b16 %v7854
    %v9325 = vunpack.c.h.b16 %v7854
    %v9326 = vunpack.c.l.b16 %v7855
    %v9327 = vunpack.c.h.b16 %v7855
    %v9328 = vunpack.c.l.b16 %v7856
    %v9329 = vunpack.c.h.b16 %v7856
    %v9330 = vunpack.c.l.b16 %v7857
    %v9331 = vunpack.c.l.b16 %v7858
    %v9332 = vunpack.c.h.b16 %v7858
    %v9333 = vunpack.c.l.b16 %v7859
    %v9334 = vunpack.c.h.b16 %v7859
    %v9335 = vunpack.c.l.b16 %v7860
    %v9336 = vunpack.c.h.b16 %v7860
    %v9337 = vunpack.c.l.b16 %v7861
    %v9338 = vunpack.c.l.b16 %v7862
    %v9339 = vunpack.c.h.b16 %v7862
    %v9340 = vunpack.c.l.b16 %v7863
    %v9341 = vunpack.c.h.b16 %v7863
    %v9342 = vunpack.c.l.b16 %v7864
    %v9343 = vunpack.c.h.b16 %v7864
    %v9344 = vunpack.c.l.b16 %v7865
    %v9345 = vunpack.c.l.b16 %v7866
    %v9346 = vunpack.c.h.b16 %v7866
    %v9347 = vunpack.c.l.b16 %v7867
    %v9348 = vunpack.c.h.b16 %v7867
    %v9349 = vunpack.c.l.b16 %v7868
    %v9350 = vunpack.c.h.b16 %v7868
    %v9351 = vunpack.c.l.b16 %v7869
    %v9352 = vunpack.c.l.b16 %v7870
    %v9353 = vunpack.c.h.b16 %v7870
    %v9354 = vunpack.c.l.b16 %v7871
    %v9355 = vunpack.c.h.b16 %v7871
    %v9356 = vunpack.c.l.b16 %v7872
    %v9357 = vunpack.c.h.b16 %v7872
    %v9358 = vunpack.c.l.b16 %v7873
    %v9359 = vunpack.c.l.b16 %v7874
    %v9360 = vunpack.c.h.b16 %v7874
    %v9361 = vunpack.c.l.b16 %v7875
    %v9362 = vunpack.c.h.b16 %v7875
    %v9363 = vunpack.c.l.b16 %v7876
    %v9364 = vunpack.c.h.b16 %v7876
    %v9365 = vunpack.c.l.b16 %v7877
    %v9366 = vunpack.c.l.b16 %v7878
    %v9367 = vunpack.c.h.b16 %v7878
    %v9368 = vunpack.c.l.b16 %v7879
    %v9369 = vunpack.c.h.b16 %v7879
    %v9370 = vunpack.c.l.b16 %v7880
    %v9371 = vunpack.c.h.b16 %v7880
    %v9372 = vunpack.c.l.b16 %v7881
    %v9373 = vunpack.c.l.b16 %v7882
    %v9374 = vunpack.c.h.b16 %v7882
    %v9375 = vunpack.c.l.b16 %v7883
    %v9376 = vunpack.c.h.b16 %v7883
    %v9377 = vunpack.c.l.b16 %v7884
    %v9378 = vunpack.c.h.b16 %v7884
    %v9379 = vunpack.c.l.b16 %v7885
    %v9380 = vunpack.c.l.b16 %v7886
    %v9381 = vunpack.c.h.b16 %v7886
    %v9382 = vunpack.c.l.b16 %v7887
    %v9383 = vunpack.c.h.b16 %v7887
    %v9384 = vunpack.c.l.b16 %v7888
    %v9385 = vunpack.c.h.b16 %v7888
    %v9386 = vunpack.c.l.b16 %v7889
    %v9387 = vunpack.c.l.b16 %v7890
    %v9388 = vunpack.c.h.b16 %v7890
    %v9389 = vunpack.c.l.b16 %v7891
    %v9390 = vunpack.c.h.b16 %v7891
    %v9391 = vunpack.c.l.b16 %v7892
    %v9392 = vunpack.c.h.b16 %v7892
    %v9393 = vunpack.c.l.b16 %v7893
    %v9394 = vunpack.c.l.b16 %v7894
    %v9395 = vunpack.c.h.b16 %v7894
    %v9396 = vunpack.c.l.b16 %v7895
    %v9397 = vunpack.c.h.b16 %v7895
    %v9398 = vunpack.c.l.b16 %v7896
    %v9399 = vunpack.c.h.b16 %v7896
    %v9400 = vunpack.c.l.b16 %v7897
    %v9401 = vunpack.c.l.b16 %v7898
    %v9402 = vunpack.c.h.b16 %v7898
    %v9403 = vunpack.c.l.b16 %v7899
    %v9404 = vunpack.c.h.b16 %v7899
    %v9405 = vunpack.c.l.b16 %v7900
    %v9406 = vunpack.c.h.b16 %v7900
    %v9407 = vunpack.c.l.b16 %v7901
    %v9408 = vunpack.c.l.b16 %v7902
    %v9409 = vunpack.c.h.b16 %v7902
    %v9410 = vunpack.c.l.b16 %v7903
    %v9411 = vunpack.c.h.b16 %v7903
    %v9412 = vunpack.c.l.b16 %v7904
    %v9413 = vunpack.c.h.b16 %v7904
    %v9414 = vunpack.c.l.b16 %v7905
    %v9415 = vunpack.c.l.b16 %v7906
    %v9416 = vunpack.c.h.b16 %v7906
    %v9417 = vunpack.c.l.b16 %v7907
    %v9418 = vunpack.c.h.b16 %v7907
    %v9419 = vunpack.c.l.b16 %v7908
    %v9420 = vunpack.c.h.b16 %v7908
    %v9421 = vunpack.c.l.b16 %v7909
    %v9422 = vunpack.c.l.b16 %v7910
    %v9423 = vunpack.c.h.b16 %v7910
    %v9424 = vunpack.c.l.b16 %v7911
    %v9425 = vunpack.c.h.b16 %v7911
    %v9426 = vunpack.c.l.b16 %v7912
    %v9427 = vunpack.c.h.b16 %v7912
    %v9428 = vunpack.c.l.b16 %v7913
    %v9429 = vunpack.c.l.b16 %v7914
    %v9430 = vunpack.c.h.b16 %v7914
    %v9431 = vunpack.c.l.b16 %v7915
    %v9432 = vunpack.c.h.b16 %v7915
    %v9433 = vunpack.c.l.b16 %v7916
    %v9434 = vunpack.c.h.b16 %v7916
    %v9435 = vunpack.c.l.b16 %v7917
    %v9436 = vunpack.c.l.b16 %v7918
    %v9437 = vunpack.c.h.b16 %v7918
    %v9438 = vunpack.c.l.b16 %v7919
    %v9439 = vunpack.c.h.b16 %v7919
    %v9440 = vunpack.c.l.b16 %v7920
    %v9441 = vunpack.c.h.b16 %v7920
    %v9442 = vunpack.c.l.b16 %v7921
    %v9443 = vunpack.c.l.b16 %v7922
    %v9444 = vunpack.c.h.b16 %v7922
    %v9445 = vunpack.c.l.b16 %v7923
    %v9446 = vunpack.c.h.b16 %v7923
    %v9447 = vunpack.c.l.b16 %v7924
    %v9448 = vunpack.c.h.b16 %v7924
    %v9449 = vunpack.c.l.b16 %v7925
    %v9450 = vunpack.c.l.b16 %v7926
    %v9451 = vunpack.c.h.b16 %v7926
    %v9452 = vunpack.c.l.b16 %v7927
    %v9453 = vunpack.c.h.b16 %v7927
    %v9454 = vunpack.c.l.b16 %v7928
    %v9455 = vunpack.c.h.b16 %v7928
    %v9456 = vunpack.c.l.b16 %v7929
    %v9457 = vunpack.c.l.b16 %v7930
    %v9458 = vunpack.c.h.b16 %v7930
    %v9459 = vunpack.c.l.b16 %v7931
    %v9460 = vunpack.c.h.b16 %v7931
    %v9461 = vunpack.c.l.b16 %v7932
    %v9462 = vunpack.c.h.b16 %v7932
    %v9463 = vunpack.c.l.b16 %v7933
    %v9464 = vunpack.c.l.b16 %v7934
    %v9465 = vunpack.c.h.b16 %v7934
    %v9466 = vunpack.c.l.b16 %v7935
    %v9467 = vunpack.c.h.b16 %v7935
    %v9468 = vunpack.c.l.b16 %v7936
    %v9469 = vunpack.c.h.b16 %v7936
    %v9470 = vunpack.c.l.b16 %v7937
    %v9471 = vunpack.c.l.b16 %v7938
    %v9472 = vunpack.c.h.b16 %v7938
    %v9473 = vunpack.c.l.b16 %v7939
    %v9474 = vunpack.c.h.b16 %v7939
    %v9475 = vunpack.c.l.b16 %v7940
    %v9476 = vunpack.c.h.b16 %v7940
    %v9477 = vunpack.c.l.b16 %v7941
    %v9478 = vunpack.c.l.b16 %v7942
    %v9479 = vunpack.c.h.b16 %v7942
    %v9480 = vunpack.c.l.b16 %v7943
    %v9481 = vunpack.c.h.b16 %v7943
    %v9482 = vunpack.c.l.b16 %v7944
    %v9483 = vunpack.c.h.b16 %v7944
    %v9484 = vunpack.c.l.b16 %v7945
    %v9485 = vunpack.c.l.b16 %v7946
    %v9486 = vunpack.c.h.b16 %v7946
    %v9487 = vunpack.c.l.b16 %v7947
    %v9488 = vunpack.c.h.b16 %v7947
    %v9489 = vunpack.c.l.b16 %v7948
    %v9490 = vunpack.c.h.b16 %v7948
    %v9491 = vunpack.c.l.b16 %v7949
    %v9492 = vunpack.c.l.b16 %v7950
    %v9493 = vunpack.c.h.b16 %v7950
    %v9494 = vunpack.c.l.b16 %v7951
    %v9495 = vunpack.c.h.b16 %v7951
    %v9496 = vunpack.c.l.b16 %v7952
    %v9497 = vunpack.c.h.b16 %v7952
    %v9498 = vunpack.c.l.b16 %v7953
    %v9499 = vunpack.c.l.b16 %v7954
    %v9500 = vunpack.c.h.b16 %v7954
    %v9501 = vunpack.c.l.b16 %v7955
    %v9502 = vunpack.c.h.b16 %v7955
    %v9503 = vunpack.c.l.b16 %v7956
    %v9504 = vunpack.c.h.b16 %v7956
    %v9505 = vunpack.c.l.b16 %v7957
    %v9506 = vunpack.c.l.b16 %v7958
    %v9507 = vunpack.c.h.b16 %v7958
    %v9508 = vunpack.c.l.b16 %v7959
    %v9509 = vunpack.c.h.b16 %v7959
    %v9510 = vunpack.c.l.b16 %v7960
    %v9511 = vunpack.c.h.b16 %v7960
    %v9512 = vunpack.c.l.b16 %v7961
    %v9513 = vunpack.c.l.b16 %v7962
    %v9514 = vunpack.c.h.b16 %v7962
    %v9515 = vunpack.c.l.b16 %v7963
    %v9516 = vunpack.c.h.b16 %v7963
    %v9517 = vunpack.c.l.b16 %v7964
    %v9518 = vunpack.c.h.b16 %v7964
    %v9519 = vunpack.c.l.b16 %v7965
    %v9520 = vunpack.c.l.b16 %v7966
    %v9521 = vunpack.c.h.b16 %v7966
    %v9522 = vunpack.c.l.b16 %v7967
    %v9523 = vunpack.c.h.b16 %v7967
    %v9524 = vunpack.c.l.b16 %v7968
    %v9525 = vunpack.c.h.b16 %v7968
    %v9526 = vunpack.c.l.b16 %v7969
    %v9527 = vunpack.c.l.b16 %v7970
    %v9528 = vunpack.c.h.b16 %v7970
    %v9529 = vunpack.c.l.b16 %v7971
    %v9530 = vunpack.c.h.b16 %v7971
    %v9531 = vunpack.c.l.b16 %v7972
    %v9532 = vunpack.c.h.b16 %v7972
    %v9533 = vunpack.c.l.b16 %v7973
    %v9534 = vunpack.c.l.b16 %v7974
    %v9535 = vunpack.c.h.b16 %v7974
    %v9536 = vunpack.c.l.b16 %v7975
    %v9537 = vunpack.c.h.b16 %v7975
    %v9538 = vunpack.c.l.b16 %v7976
    %v9539 = vunpack.c.h.b16 %v7976
    %v9540 = vunpack.c.l.b16 %v7977
    %v9541 = vunpack.c.l.b16 %v7978
    %v9542 = vunpack.c.h.b16 %v7978
    %v9543 = vunpack.c.l.b16 %v7979
    %v9544 = vunpack.c.h.b16 %v7979
    %v9545 = vunpack.c.l.b16 %v7980
    %v9546 = vunpack.c.h.b16 %v7980
    %v9547 = vunpack.c.l.b16 %v7981
    %v9548 = vunpack.c.l.b16 %v7982
    %v9549 = vunpack.c.h.b16 %v7982
    %v9550 = vunpack.c.l.b16 %v7983
    %v9551 = vunpack.c.h.b16 %v7983
    %v9552 = vunpack.c.l.b16 %v7984
    %v9553 = vunpack.c.h.b16 %v7984
    %v9554 = vunpack.c.l.b16 %v7985
    %v9555 = vunpack.c.l.b16 %v7986
    %v9556 = vunpack.c.h.b16 %v7986
    %v9557 = vunpack.c.l.b16 %v7987
    %v9558 = vunpack.c.h.b16 %v7987
    %v9559 = vunpack.c.l.b16 %v7988
    %v9560 = vunpack.c.h.b16 %v7988
    %v9561 = vunpack.c.l.b16 %v7989
    %v9562 = vunpack.c.l.b16 %v7990
    %v9563 = vunpack.c.h.b16 %v7990
    %v9564 = vunpack.c.l.b16 %v7991
    %v9565 = vunpack.c.h.b16 %v7991
    %v9566 = vunpack.c.l.b16 %v7992
    %v9567 = vunpack.c.h.b16 %v7992
    %v9568 = vunpack.c.l.b16 %v7993
    %v9569 = vunpack.c.l.b16 %v7994
    %v9570 = vunpack.c.h.b16 %v7994
    %v9571 = vunpack.c.l.b16 %v7995
    %v9572 = vunpack.c.h.b16 %v7995
    %v9573 = vunpack.c.l.b16 %v7996
    %v9574 = vunpack.c.h.b16 %v7996
    %v9575 = vunpack.c.l.b16 %v7997
    %v9576 = vunpack.c.l.b16 %v7998
    %v9577 = vunpack.c.h.b16 %v7998
    %v9578 = vunpack.c.l.b16 %v7999
    %v9579 = vunpack.c.h.b16 %v7999
    %v9580 = vunpack.c.l.b16 %v8000
    %v9581 = vunpack.c.h.b16 %v8000
    %v9582 = vunpack.c.l.b16 %v8001
    %v9583 = vunpack.c.l.b16 %v8002
    %v9584 = vunpack.c.h.b16 %v8002
    %v9585 = vunpack.c.l.b16 %v8003
    %v9586 = vunpack.c.h.b16 %v8003
    %v9587 = vunpack.c.l.b16 %v8004
    %v9588 = vunpack.c.h.b16 %v8004
    %v9589 = vunpack.c.l.b16 %v8005
    %v9590 = vunpack.c.l.b16 %v8006
    %v9591 = vunpack.c.h.b16 %v8006
    %v9592 = vunpack.c.l.b16 %v8007
    %v9593 = vunpack.c.h.b16 %v8007
    %v9594 = vunpack.c.l.b16 %v8008
    %v9595 = vunpack.c.h.b16 %v8008
    %v9596 = vunpack.c.l.b16 %v8009
    %v9597 = vunpack.c.l.b16 %v8010
    %v9598 = vunpack.c.h.b16 %v8010
    %v9599 = vunpack.c.l.b16 %v8011
    %v9600 = vunpack.c.h.b16 %v8011
    %v9601 = vunpack.c.l.b16 %v8012
    %v9602 = vunpack.c.h.b16 %v8012
    %v9603 = vunpack.c.l.b16 %v8013
    %v9604 = vunpack.c.l.b16 %v8014
    %v9605 = vunpack.c.h.b16 %v8014
    %v9606 = vunpack.c.l.b16 %v8015
    %v9607 = vunpack.c.h.b16 %v8015
    %v9608 = vunpack.c.l.b16 %v8016
    %v9609 = vunpack.c.h.b16 %v8016
    %v9610 = vunpack.c.l.b16 %v8017
    %v9611 = vunpack.c.l.b16 %v8018
    %v9612 = vunpack.c.h.b16 %v8018
    %v9613 = vunpack.c.l.b16 %v8019
    %v9614 = vunpack.c.h.b16 %v8019
    %v9615 = vunpack.c.l.b16 %v8020
    %v9616 = vunpack.c.h.b16 %v8020
    %v9617 = vunpack.c.l.b16 %v8021
    %v9618 = vunpack.c.l.b16 %v8022
    %v9619 = vunpack.c.h.b16 %v8022
    %v9620 = vunpack.c.l.b16 %v8023
    %v9621 = vunpack.c.h.b16 %v8023
    %v9622 = vunpack.c.l.b16 %v8024
    %v9623 = vunpack.c.h.b16 %v8024
    %v9624 = vunpack.c.l.b16 %v8025
    %v9625 = vunpack.c.l.b16 %v8026
    %v9626 = vunpack.c.h.b16 %v8026
    %v9627 = vunpack.c.l.b16 %v8027
    %v9628 = vunpack.c.h.b16 %v8027
    %v9629 = vunpack.c.l.b16 %v8028
    %v9630 = vunpack.c.h.b16 %v8028
    %v9631 = vunpack.c.l.b16 %v8029
    %v9632 = vunpack.c.l.b16 %v8030
    %v9633 = vunpack.c.h.b16 %v8030
    %v9634 = vunpack.c.l.b16 %v8031
    %v9635 = vunpack.c.h.b16 %v8031
    %v9636 = vunpack.c.l.b16 %v8032
    %v9637 = vunpack.c.h.b16 %v8032
    %v9638 = vunpack.c.l.b16 %v8033
    %v9639 = vunpack.c.l.b16 %v8034
    %v9640 = vunpack.c.h.b16 %v8034
    %v9641 = vunpack.c.l.b16 %v8035
    %v9642 = vunpack.c.h.b16 %v8035
    %v9643 = vunpack.c.l.b16 %v8036
    %v9644 = vunpack.c.h.b16 %v8036
    %v9645 = vunpack.c.l.b16 %v8037
    %v9646 = vunpack.c.l.b16 %v8038
    %v9647 = vunpack.c.h.b16 %v8038
    %v9648 = vunpack.c.l.b16 %v8039
    %v9649 = vunpack.c.h.b16 %v8039
    %v9650 = vunpack.c.l.b16 %v8040
    %v9651 = vunpack.c.h.b16 %v8040
    %v9652 = vunpack.c.l.b16 %v8041
    %v9653 = vunpack.c.l.b16 %v8042
    %v9654 = vunpack.c.h.b16 %v8042
    %v9655 = vunpack.c.l.b16 %v8043
    %v9656 = vunpack.c.h.b16 %v8043
    %v9657 = vunpack.c.l.b16 %v8044
    %v9658 = vunpack.c.h.b16 %v8044
    %v9659 = vunpack.c.l.b16 %v8045
    %v9660 = vunpack.c.l.b16 %v8046
    %v9661 = vunpack.c.h.b16 %v8046
    %v9662 = vunpack.c.l.b16 %v8047
    %v9663 = vunpack.c.h.b16 %v8047
    %v9664 = vunpack.c.l.b16 %v8048
    %v9665 = vunpack.c.h.b16 %v8048
    %v9666 = vunpack.c.l.b16 %v8049
    %v9667 = vunpack.c.l.b16 %v8050
    %v9668 = vunpack.c.h.b16 %v8050
    %v9669 = vunpack.c.l.b16 %v8051
    %v9670 = vunpack.c.h.b16 %v8051
    %v9671 = vunpack.c.l.b16 %v8052
    %v9672 = vunpack.c.h.b16 %v8052
    %v9673 = vunpack.c.l.b16 %v8053
    %v9674 = vunpack.c.l.b16 %v8054
    %v9675 = vunpack.c.h.b16 %v8054
    %v9676 = vunpack.c.l.b16 %v8055
    %v9677 = vunpack.c.h.b16 %v8055
    %v9678 = vunpack.c.l.b16 %v8056
    %v9679 = vunpack.c.h.b16 %v8056
    %v9680 = vunpack.c.l.b16 %v8057
    %v9681 = vunpack.c.l.b16 %v8058
    %v9682 = vunpack.c.h.b16 %v8058
    %v9683 = vunpack.c.l.b16 %v8059
    %v9684 = vunpack.c.h.b16 %v8059
    %v9685 = vunpack.c.l.b16 %v8060
    %v9686 = vunpack.c.h.b16 %v8060
    %v9687 = vunpack.c.l.b16 %v8061
    %v9688 = vunpack.c.l.b16 %v8062
    %v9689 = vunpack.c.h.b16 %v8062
    %v9690 = vunpack.c.l.b16 %v8063
    %v9691 = vunpack.c.h.b16 %v8063
    %v9692 = vunpack.c.l.b16 %v8064
    %v9693 = vunpack.c.h.b16 %v8064
    %v9694 = vunpack.c.l.b16 %v8065
    %v9695 = vunpack.c.l.b16 %v8066
    %v9696 = vunpack.c.h.b16 %v8066
    %v9697 = vunpack.c.l.b16 %v8067
    %v9698 = vunpack.c.h.b16 %v8067
    %v9699 = vunpack.c.l.b16 %v8068
    %v9700 = vunpack.c.h.b16 %v8068
    %v9701 = vunpack.c.l.b16 %v8069
    %v9702 = vunpack.c.l.b16 %v8070
    %v9703 = vunpack.c.h.b16 %v8070
    %v9704 = vunpack.c.l.b16 %v8071
    %v9705 = vunpack.c.h.b16 %v8071
    %v9706 = vunpack.c.l.b16 %v8072
    %v9707 = vunpack.c.h.b16 %v8072
    %v9708 = vunpack.c.l.b16 %v8073
    %v9709 = vunpack.c.l.b16 %v8074
    %v9710 = vunpack.c.h.b16 %v8074
    %v9711 = vunpack.c.l.b16 %v8075
    %v9712 = vunpack.c.h.b16 %v8075
    %v9713 = vunpack.c.l.b16 %v8076
    %v9714 = vunpack.c.h.b16 %v8076
    %v9715 = vunpack.c.l.b16 %v8077
    %v9716 = vunpack.c.l.b16 %v8078
    %v9717 = vunpack.c.h.b16 %v8078
    %v9718 = vunpack.c.l.b16 %v8079
    %v9719 = vunpack.c.h.b16 %v8079
    %v9720 = vunpack.c.l.b16 %v8080
    %v9721 = vunpack.c.h.b16 %v8080
    %v9722 = vunpack.c.l.b16 %v8081
    %v9723 = vunpack.c.l.b16 %v8082
    %v9724 = vunpack.c.h.b16 %v8082
    %v9725 = vunpack.c.l.b16 %v8083
    %v9726 = vunpack.c.h.b16 %v8083
    %v9727 = vunpack.c.l.b16 %v8084
    %v9728 = vunpack.c.h.b16 %v8084
    %v9729 = vunpack.c.l.b16 %v8085
    %v9730 = vunpack.c.l.b16 %v8086
    %v9731 = vunpack.c.h.b16 %v8086
    %v9732 = vunpack.c.l.b16 %v8087
    %v9733 = vunpack.c.h.b16 %v8087
    %v9734 = vunpack.c.l.b16 %v8088
    %v9735 = vunpack.c.h.b16 %v8088
    %v9736 = vunpack.c.l.b16 %v8089
    %v9737 = vunpack.c.l.b16 %v8090
    %v9738 = vunpack.c.h.b16 %v8090
    %v9739 = vunpack.c.l.b16 %v8091
    %v9740 = vunpack.c.h.b16 %v8091
    %v9741 = vunpack.c.l.b16 %v8092
    %v9742 = vunpack.c.h.b16 %v8092
    %v9743 = vunpack.c.l.b16 %v8093
    %v9744 = vunpack.c.l.b16 %v8094
    %v9745 = vunpack.c.h.b16 %v8094
    %v9746 = vunpack.c.l.b16 %v8095
    %v9747 = vunpack.c.h.b16 %v8095
    %v9748 = vunpack.c.l.b16 %v8096
    %v9749 = vunpack.c.h.b16 %v8096
    %v9750 = vunpack.c.l.b16 %v8097
    %v9751 = vunpack.c.l.b16 %v8098
    %v9752 = vunpack.c.h.b16 %v8098
    %v9753 = vunpack.c.l.b16 %v8099
    %v9754 = vunpack.c.h.b16 %v8099
    %v9755 = vunpack.c.l.b16 %v8100
    %v9756 = vunpack.c.h.b16 %v8100
    %v9757 = vunpack.c.l.b16 %v8101
    %v9758 = vunpack.c.l.b16 %v8102
    %v9759 = vunpack.c.h.b16 %v8102
    %v9760 = vunpack.c.l.b16 %v8103
    %v9761 = vunpack.c.h.b16 %v8103
    %v9762 = vunpack.c.l.b16 %v8104
    %v9763 = vunpack.c.h.b16 %v8104
    %v9764 = vunpack.c.l.b16 %v8105
    %v9765 = vunpack.c.l.b16 %v8106
    %v9766 = vunpack.c.h.b16 %v8106
    %v9767 = vunpack.c.l.b16 %v8107
    %v9768 = vunpack.c.h.b16 %v8107
    %v9769 = vunpack.c.l.b16 %v8108
    %v9770 = vunpack.c.h.b16 %v8108
    %v9771 = vunpack.c.l.b16 %v8109
    %v9772 = vunpack.c.l.b16 %v8110
    %v9773 = vunpack.c.h.b16 %v8110
    %v9774 = vunpack.c.l.b16 %v8111
    %v9775 = vunpack.c.h.b16 %v8111
    %v9776 = vunpack.c.l.b16 %v8112
    %v9777 = vunpack.c.h.b16 %v8112
    %v9778 = vunpack.c.l.b16 %v8113
    %v9779 = vunpack.c.l.b16 %v8114
    %v9780 = vunpack.c.h.b16 %v8114
    %v9781 = vunpack.c.l.b16 %v8115
    %v9782 = vunpack.c.h.b16 %v8115
    %v9783 = vunpack.c.l.b16 %v8116
    %v9784 = vunpack.c.h.b16 %v8116
    %v9785 = vunpack.c.l.b16 %v8117
    %v9786 = vunpack.c.l.b16 %v8118
    %v9787 = vunpack.c.h.b16 %v8118
    %v9788 = vunpack.c.l.b16 %v8119
    %v9789 = vunpack.c.h.b16 %v8119
    %v9790 = vunpack.c.l.b16 %v8120
    %v9791 = vunpack.c.h.b16 %v8120
    %v9792 = vunpack.c.l.b16 %v8121
    %v9793 = vunpack.c.l.b16 %v8122
    %v9794 = vunpack.c.h.b16 %v8122
    %v9795 = vunpack.c.l.b16 %v8123
    %v9796 = vunpack.c.h.b16 %v8123
    %v9797 = vunpack.c.l.b16 %v8124
    %v9798 = vunpack.c.h.b16 %v8124
    %v9799 = vunpack.c.l.b16 %v8125
    %v9800 = vunpack.c.l.b16 %v8126
    %v9801 = vunpack.c.h.b16 %v8126
    %v9802 = vunpack.c.l.b16 %v8127
    %v9803 = vunpack.c.h.b16 %v8127
    %v9804 = vunpack.c.l.b16 %v8128
    %v9805 = vunpack.c.h.b16 %v8128
    %v9806 = vunpack.c.l.b16 %v8129
    %v9807 = vunpack.c.l.b16 %v8130
    %v9808 = vunpack.c.h.b16 %v8130
    %v9809 = vunpack.c.l.b16 %v8131
    %v9810 = vunpack.c.h.b16 %v8131
    %v9811 = vunpack.c.l.b16 %v8132
    %v9812 = vunpack.c.h.b16 %v8132
    %v9813 = vunpack.c.l.b16 %v8133
    %v9814 = vunpack.c.l.b16 %v8134
    %v9815 = vunpack.c.h.b16 %v8134
    %v9816 = vunpack.c.l.b16 %v8135
    %v9817 = vunpack.c.h.b16 %v8135
    %v9818 = vunpack.c.l.b16 %v8136
    %v9819 = vunpack.c.h.b16 %v8136
    %v9820 = vunpack.c.l.b16 %v8137
    %v9821 = vunpack.c.l.b16 %v8138
    %v9822 = vunpack.c.h.b16 %v8138
    %v9823 = vunpack.c.l.b16 %v8139
    %v9824 = vunpack.c.h.b16 %v8139
    %v9825 = vunpack.c.l.b16 %v8140
    %v9826 = vunpack.c.h.b16 %v8140
    %v9827 = vunpack.c.l.b16 %v8141
    %v9828 = vunpack.c.l.b16 %v8142
    %v9829 = vunpack.c.h.b16 %v8142
    %v9830 = vunpack.c.l.b16 %v8143
    %v9831 = vunpack.c.h.b16 %v8143
    %v9832 = vunpack.c.l.b16 %v8144
    %v9833 = vunpack.c.h.b16 %v8144
    %v9834 = vunpack.c.l.b16 %v8145
    %v9835 = vunpack.c.l.b16 %v8146
    %v9836 = vunpack.c.h.b16 %v8146
    %v9837 = vunpack.c.l.b16 %v8147
    %v9838 = vunpack.c.h.b16 %v8147
    %v9839 = vunpack.c.l.b16 %v8148
    %v9840 = vunpack.c.h.b16 %v8148
    %v9841 = vunpack.c.l.b16 %v8149
    %v9842 = vunpack.c.l.b16 %v8150
    %v9843 = vunpack.c.h.b16 %v8150
    %v9844 = vunpack.c.l.b16 %v8151
    %v9845 = vunpack.c.h.b16 %v8151
    %v9846 = vunpack.c.l.b16 %v8152
    %v9847 = vunpack.c.h.b16 %v8152
    %v9848 = vunpack.c.l.b16 %v8153
    %v9849 = vunpack.c.l.b16 %v8154
    %v9850 = vunpack.c.h.b16 %v8154
    %v9851 = vunpack.c.l.b16 %v8155
    %v9852 = vunpack.c.h.b16 %v8155
    %v9853 = vunpack.c.l.b16 %v8156
    %v9854 = vunpack.c.h.b16 %v8156
    %v9855 = vunpack.c.l.b16 %v8157
    %v9856 = vunpack.c.l.b16 %v8158
    %v9857 = vunpack.c.h.b16 %v8158
    %v9858 = vunpack.c.l.b16 %v8159
    %v9859 = vunpack.c.h.b16 %v8159
    %v9860 = vunpack.c.l.b16 %v8160
    %v9861 = vunpack.c.h.b16 %v8160
    %v9862 = vunpack.c.l.b16 %v8161
    %v9863 = vunpack.c.l.b16 %v8162
    %v9864 = vunpack.c.h.b16 %v8162
    %v9865 = vunpack.c.l.b16 %v8163
    %v9866 = vunpack.c.h.b16 %v8163
    %v9867 = vunpack.c.l.b16 %v8164
    %v9868 = vunpack.c.h.b16 %v8164
    %v9869 = vunpack.c.l.b16 %v8165
    %v9870 = vunpack.c.l.b16 %v8166
    %v9871 = vunpack.c.h.b16 %v8166
    %v9872 = vunpack.c.l.b16 %v8167
    %v9873 = vunpack.c.h.b16 %v8167
    %v9874 = vunpack.c.l.b16 %v8168
    %v9875 = vunpack.c.h.b16 %v8168
    %v9876 = vunpack.c.l.b16 %v8169
    %v9877 = vunpack.c.l.b16 %v8170
    %v9878 = vunpack.c.h.b16 %v8170
    %v9879 = vunpack.c.l.b16 %v8171
    %v9880 = vunpack.c.h.b16 %v8171
    %v9881 = vunpack.c.l.b16 %v8172
    %v9882 = vunpack.c.h.b16 %v8172
    %v9883 = vunpack.c.l.b16 %v8173
    %v9884 = vunpack.c.l.b16 %v8174
    %v9885 = vunpack.c.h.b16 %v8174
    %v9886 = vunpack.c.l.b16 %v8175
    %v9887 = vunpack.c.h.b16 %v8175
    %v9888 = vunpack.c.l.b16 %v8176
    %v9889 = vunpack.c.h.b16 %v8176
    %v9890 = vunpack.c.l.b16 %v8177
    %v9891 = vunpack.c.l.b16 %v8178
    %v9892 = vunpack.c.h.b16 %v8178
    %v9893 = vunpack.c.l.b16 %v8179
    %v9894 = vunpack.c.h.b16 %v8179
    %v9895 = vunpack.c.l.b16 %v8180
    %v9896 = vunpack.c.h.b16 %v8180
    %v9897 = vunpack.c.l.b16 %v8181
    %v9898 = vunpack.c.l.b16 %v8182
    %v9899 = vunpack.c.h.b16 %v8182
    %v9900 = vunpack.c.l.b16 %v8183
    %v9901 = vunpack.c.h.b16 %v8183
    %v9902 = vunpack.c.l.b16 %v8184
    %v9903 = vunpack.c.h.b16 %v8184
    %v9904 = vunpack.c.l.b16 %v8185
    %v9905 = vunpack.c.l.b16 %v8186
    %v9906 = vunpack.c.h.b16 %v8186
    %v9907 = vunpack.c.l.b16 %v8187
    %v9908 = vunpack.c.h.b16 %v8187
    %v9909 = vunpack.c.l.b16 %v8188
    %v9910 = vunpack.c.h.b16 %v8188
    %v9911 = vunpack.c.l.b16 %v8189
    %v9912 = vunpack.c.l.b16 %v8190
    %v9913 = vunpack.c.h.b16 %v8190
    %v9914 = vunpack.c.l.b16 %v8191
    %v9915 = vunpack.c.h.b16 %v8191
    %v9916 = vunpack.c.l.b16 %v8192
    %v9917 = vunpack.c.h.b16 %v8192
    %v9918 = vunpack.c.l.b16 %v8193
    %v9919 = vunpack.c.l.b16 %v8194
    %v9920 = vunpack.c.h.b16 %v8194
    %v9921 = vunpack.c.l.b16 %v8195
    %v9922 = vunpack.c.h.b16 %v8195
    %v9923 = vunpack.c.l.b16 %v8196
    %v9924 = vunpack.c.h.b16 %v8196
    %v9925 = vunpack.c.l.b16 %v8197
    %v9926 = vunpack.c.l.b16 %v8198
    %v9927 = vunpack.c.h.b16 %v8198
    %v9928 = vunpack.c.l.b16 %v8199
    %v9929 = vunpack.c.h.b16 %v8199
    %v9930 = vunpack.c.l.b16 %v8200
    %v9931 = vunpack.c.h.b16 %v8200
    %v9932 = vunpack.c.l.b16 %v8201
    %v9933 = vunpack.c.l.b16 %v8202
    %v9934 = vunpack.c.h.b16 %v8202
    %v9935 = vunpack.c.l.b16 %v8203
    %v9936 = vunpack.c.h.b16 %v8203
    %v9937 = vunpack.c.l.b16 %v8204
    %v9938 = vunpack.c.h.b16 %v8204
    %v9939 = vunpack.c.l.b16 %v8205
    %v9940 = vunpack.c.l.b16 %v8206
    %v9941 = vunpack.c.h.b16 %v8206
    %v9942 = vunpack.c.l.b16 %v8207
    %v9943 = vunpack.c.h.b16 %v8207
    %v9944 = vunpack.c.l.b16 %v8208
    %v9945 = vunpack.c.h.b16 %v8208
    %v9946 = vunpack.c.l.b16 %v8209
    %v9947 = vunpack.c.l.b16 %v8210
    %v9948 = vunpack.c.h.b16 %v8210
    %v9949 = vunpack.c.l.b16 %v8211
    %v9950 = vunpack.c.h.b16 %v8211
    %v9951 = vunpack.c.l.b16 %v8212
    %v9952 = vunpack.c.h.b16 %v8212
    %v9953 = vunpack.c.l.b16 %v8213
    %v9954 = vunpack.c.l.b16 %v8214
    %v9955 = vunpack.c.h.b16 %v8214
    %v9956 = vunpack.c.l.b16 %v8215
    %v9957 = vunpack.c.h.b16 %v8215
    %v9958 = vunpack.c.l.b16 %v8216
    %v9959 = vunpack.c.h.b16 %v8216
    %v9960 = vunpack.c.l.b16 %v8217
    %v9961 = vunpack.c.l.b16 %v8218
    %v9962 = vunpack.c.h.b16 %v8218
    %v9963 = vunpack.c.l.b16 %v8219
    %v9964 = vunpack.c.h.b16 %v8219
    %v9965 = vunpack.c.l.b16 %v8220
    %v9966 = vunpack.c.h.b16 %v8220
    %v9967 = vunpack.c.l.b16 %v8221
    %v9968 = vunpack.c.l.b16 %v8222
    %v9969 = vunpack.c.h.b16 %v8222
    %v9970 = vunpack.c.l.b16 %v8223
    %v9971 = vunpack.c.h.b16 %v8223
    %v9972 = vunpack.c.l.b16 %v8224
    %v9973 = vunpack.c.h.b16 %v8224
    %v9974 = vunpack.c.l.b16 %v8225
    %v9975 = vunpack.c.l.b16 %v8226
    %v9976 = vunpack.c.h.b16 %v8226
    %v9977 = vunpack.c.l.b16 %v8227
    %v9978 = vunpack.c.h.b16 %v8227
    %v9979 = vunpack.c.l.b16 %v8228
    %v9980 = vunpack.c.h.b16 %v8228
    %v9981 = vunpack.c.l.b16 %v8229
    %v9982 = vunpack.c.l.b16 %v8230
    %v9983 = vunpack.c.h.b16 %v8230
    %v9984 = vunpack.c.l.b16 %v8231
    %v9985 = vunpack.c.h.b16 %v8231
    %v9986 = vunpack.c.l.b16 %v8232
    %v9987 = vunpack.c.h.b16 %v8232
    %v9988 = vunpack.c.l.b16 %v8233
    %v9989 = vunpack.c.l.b16 %v8234
    %v9990 = vunpack.c.h.b16 %v8234
    %v9991 = vunpack.c.l.b16 %v8235
    %v9992 = vunpack.c.h.b16 %v8235
    %v9993 = vunpack.c.l.b16 %v8236
    %v9994 = vunpack.c.h.b16 %v8236
    %v9995 = vunpack.c.l.b16 %v8237
    %v9996 = vunpack.c.l.b16 %v8238
    %v9997 = vunpack.c.h.b16 %v8238
    %v9998 = vunpack.c.l.b16 %v8239
    %v9999 = vunpack.c.h.b16 %v8239
    %v10000 = vunpack.c.l.b16 %v8240
    %v10001 = vunpack.c.h.b16 %v8240
    %v10002 = vunpack.c.l.b16 %v8241
    %v10003 = vunpack.c.l.b16 %v8242
    %v10004 = vunpack.c.h.b16 %v8242
    %v10005 = vunpack.c.l.b16 %v8243
    %v10006 = vunpack.c.h.b16 %v8243
    %v10007 = vunpack.c.l.b16 %v8244
    %v10008 = vunpack.c.h.b16 %v8244
    %v10009 = vunpack.c.l.b16 %v8245
    %v10010 = vunpack.c.l.b16 %v8246
    %v10011 = vunpack.c.h.b16 %v8246
    %v10012 = vunpack.c.l.b16 %v8247
    %v10013 = vunpack.c.h.b16 %v8247
    %v10014 = vunpack.c.l.b16 %v8248
    %v10015 = vunpack.c.h.b16 %v8248
    %v10016 = vunpack.c.l.b16 %v8249
    %v10017 = vunpack.c.l.b16 %v8250
    %v10018 = vunpack.c.h.b16 %v8250
    %v10019 = vunpack.c.l.b16 %v8251
    %v10020 = vunpack.c.h.b16 %v8251
    %v10021 = vunpack.c.l.b16 %v8252
    %v10022 = vunpack.c.h.b16 %v8252
    %v10023 = vunpack.c.l.b16 %v8253
    %v10024 = vunpack.c.l.b16 %v8254
    %v10025 = vunpack.c.h.b16 %v8254
    %v10026 = vunpack.c.l.b16 %v8255
    %v10027 = vunpack.c.h.b16 %v8255
    %v10028 = vunpack.c.l.b16 %v8256
    %v10029 = vunpack.c.h.b16 %v8256
    %v10030 = vunpack.c.l.b16 %v8257
    %v10031 = vunpack.c.l.b16 %v8258
    %v10032 = vunpack.c.h.b16 %v8258
    %v10033 = vunpack.c.l.b16 %v8259
    %v10034 = vunpack.c.h.b16 %v8259
    %v10035 = vunpack.c.l.b16 %v8260
    %v10036 = vunpack.c.h.b16 %v8260
    %v10037 = vunpack.c.l.b16 %v8261
    %v10038 = vpack.c.b16 %v8925, %v8918
    %v10039 = vpack.c.b16 %v8926, %v8919
    %v10040 = vpack.c.b16 %v8927, %v8920
    %v10041 = vpack.c.b16 %v8928, %v8921
    %v10042 = vpack.c.b16 %v8929, %v8922
    %v10043 = vpack.c.b16 %v8930, %v8923
    %v10044 = vpack.c.b16 %v8931, %v8924
    %v10045 = vpack.c.b16 %v8939, %v8932
    %v10046 = vpack.c.b16 %v8940, %v8933
    %v10047 = vpack.c.b16 %v8941, %v8934
    %v10048 = vpack.c.b16 %v8942, %v8935
    %v10049 = vpack.c.b16 %v8943, %v8936
    %v10050 = vpack.c.b16 %v8944, %v8937
    %v10051 = vpack.c.b16 %v8945, %v8938
    %v10052 = vpack.c.b16 %v8953, %v8946
    %v10053 = vpack.c.b16 %v8954, %v8947
    %v10054 = vpack.c.b16 %v8955, %v8948
    %v10055 = vpack.c.b16 %v8956, %v8949
    %v10056 = vpack.c.b16 %v8957, %v8950
    %v10057 = vpack.c.b16 %v8958, %v8951
    %v10058 = vpack.c.b16 %v8959, %v8952
    %v10059 = vpack.c.b16 %v8967, %v8960
    %v10060 = vpack.c.b16 %v8968, %v8961
    %v10061 = vpack.c.b16 %v8969, %v8962
    %v10062 = vpack.c.b16 %v8970, %v8963
    %v10063 = vpack.c.b16 %v8971, %v8964
    %v10064 = vpack.c.b16 %v8972, %v8965
    %v10065 = vpack.c.b16 %v8973, %v8966
    %v10066 = vpack.c.b16 %v8981, %v8974
    %v10067 = vpack.c.b16 %v8982, %v8975
    %v10068 = vpack.c.b16 %v8983, %v8976
    %v10069 = vpack.c.b16 %v8984, %v8977
    %v10070 = vpack.c.b16 %v8985, %v8978
    %v10071 = vpack.c.b16 %v8986, %v8979
    %v10072 = vpack.c.b16 %v8987, %v8980
    %v10073 = vpack.c.b16 %v8995, %v8988
    %v10074 = vpack.c.b16 %v8996, %v8989
    %v10075 = vpack.c.b16 %v8997, %v8990
    %v10076 = vpack.c.b16 %v8998, %v8991
    %v10077 = vpack.c.b16 %v8999, %v8992
    %v10078 = vpack.c.b16 %v9000, %v8993
    %v10079 = vpack.c.b16 %v9001, %v8994
    %v10080 = vpack.c.b16 %v9009, %v9002
    %v10081 = vpack.c.b16 %v9010, %v9003
    %v10082 = vpack.c.b16 %v9011, %v9004
    %v10083 = vpack.c.b16 %v9012, %v9005
    %v10084 = vpack.c.b16 %v9013, %v9006
    %v10085 = vpack.c.b16 %v9014, %v9007
    %v10086 = vpack.c.b16 %v9015, %v9008
    %v10087 = vpack.c.b16 %v9023, %v9016
    %v10088 = vpack.c.b16 %v9024, %v9017
    %v10089 = vpack.c.b16 %v9025, %v9018
    %v10090 = vpack.c.b16 %v9026, %v9019
    %v10091 = vpack.c.b16 %v9027, %v9020
    %v10092 = vpack.c.b16 %v9028, %v9021
    %v10093 = vpack.c.b16 %v9029, %v9022
    %v10094 = vpack.c.b16 %v9037, %v9030
    %v10095 = vpack.c.b16 %v9038, %v9031
    %v10096 = vpack.c.b16 %v9039, %v9032
    %v10097 = vpack.c.b16 %v9040, %v9033
    %v10098 = vpack.c.b16 %v9041, %v9034
    %v10099 = vpack.c.b16 %v9042, %v9035
    %v10100 = vpack.c.b16 %v9043, %v9036
    %v10101 = vpack.c.b16 %v9051, %v9044
    %v10102 = vpack.c.b16 %v9052, %v9045
    %v10103 = vpack.c.b16 %v9053, %v9046
    %v10104 = vpack.c.b16 %v9054, %v9047
    %v10105 = vpack.c.b16 %v9055, %v9048
    %v10106 = vpack.c.b16 %v9056, %v9049
    %v10107 = vpack.c.b16 %v9057, %v9050
    %v10108 = vpack.c.b16 %v9065, %v9058
    %v10109 = vpack.c.b16 %v9066, %v9059
    %v10110 = vpack.c.b16 %v9067, %v9060
    %v10111 = vpack.c.b16 %v9068, %v9061
    %v10112 = vpack.c.b16 %v9069, %v9062
    %v10113 = vpack.c.b16 %v9070, %v9063
    %v10114 = vpack.c.b16 %v9071, %v9064
    %v10115 = vpack.c.b16 %v9079, %v9072
    %v10116 = vpack.c.b16 %v9080, %v9073
    %v10117 = vpack.c.b16 %v9081, %v9074
    %v10118 = vpack.c.b16 %v9082, %v9075
    %v10119 = vpack.c.b16 %v9083, %v9076
    %v10120 = vpack.c.b16 %v9084, %v9077
    %v10121 = vpack.c.b16 %v9085, %v9078
    %v10122 = vpack.c.b16 %v9093, %v9086
    %v10123 = vpack.c.b16 %v9094, %v9087
    %v10124 = vpack.c.b16 %v9095, %v9088
    %v10125 = vpack.c.b16 %v9096, %v9089
    %v10126 = vpack.c.b16 %v9097, %v9090
    %v10127 = vpack.c.b16 %v9098, %v9091
    %v10128 = vpack.c.b16 %v9099, %v9092
    %v10129 = vpack.c.b16 %v9107, %v9100
    %v10130 = vpack.c.b16 %v9108, %v9101
    %v10131 = vpack.c.b16 %v9109, %v9102
    %v10132 = vpack.c.b16 %v9110, %v9103
    %v10133 = vpack.c.b16 %v9111, %v9104
    %v10134 = vpack.c.b16 %v9112, %v9105
    %v10135 = vpack.c.b16 %v9113, %v9106
    %v10136 = vpack.c.b16 %v9121, %v9114
    %v10137 = vpack.c.b16 %v9122, %v9115
    %v10138 = vpack.c.b16 %v9123, %v9116
    %v10139 = vpack.c.b16 %v9124, %v9117
    %v10140 = vpack.c.b16 %v9125, %v9118
    %v10141 = vpack.c.b16 %v9126, %v9119
    %v10142 = vpack.c.b16 %v9127, %v9120
    %v10143 = vpack.c.b16 %v9135, %v9128
    %v10144 = vpack.c.b16 %v9136, %v9129
    %v10145 = vpack.c.b16 %v9137, %v9130
    %v10146 = vpack.c.b16 %v9138, %v9131
    %v10147 = vpack.c.b16 %v9139, %v9132
    %v10148 = vpack.c.b16 %v9140, %v9133
    %v10149 = vpack.c.b16 %v9141, %v9134
    %v10150 = vpack.c.b16 %v9149, %v9142
    %v10151 = vpack.c.b16 %v9150, %v9143
    %v10152 = vpack.c.b16 %v9151, %v9144
    %v10153 = vpack.c.b16 %v9152, %v9145
    %v10154 = vpack.c.b16 %v9153, %v9146
    %v10155 = vpack.c.b16 %v9154, %v9147
    %v10156 = vpack.c.b16 %v9155, %v9148
    %v10157 = vpack.c.b16 %v9163, %v9156
    %v10158 = vpack.c.b16 %v9164, %v9157
    %v10159 = vpack.c.b16 %v9165, %v9158
    %v10160 = vpack.c.b16 %v9166, %v9159
    %v10161 = vpack.c.b16 %v9167, %v9160
    %v10162 = vpack.c.b16 %v9168, %v9161
    %v10163 = vpack.c.b16 %v9169, %v9162
    %v10164 = vpack.c.b16 %v9177, %v9170
    %v10165 = vpack.c.b16 %v9178, %v9171
    %v10166 = vpack.c.b16 %v9179, %v9172
    %v10167 = vpack.c.b16 %v9180, %v9173
    %v10168 = vpack.c.b16 %v9181, %v9174
    %v10169 = vpack.c.b16 %v9182, %v9175
    %v10170 = vpack.c.b16 %v9183, %v9176
    %v10171 = vpack.c.b16 %v9191, %v9184
    %v10172 = vpack.c.b16 %v9192, %v9185
    %v10173 = vpack.c.b16 %v9193, %v9186
    %v10174 = vpack.c.b16 %v9194, %v9187
    %v10175 = vpack.c.b16 %v9195, %v9188
    %v10176 = vpack.c.b16 %v9196, %v9189
    %v10177 = vpack.c.b16 %v9197, %v9190
    %v10178 = vpack.c.b16 %v9205, %v9198
    %v10179 = vpack.c.b16 %v9206, %v9199
    %v10180 = vpack.c.b16 %v9207, %v9200
    %v10181 = vpack.c.b16 %v9208, %v9201
    %v10182 = vpack.c.b16 %v9209, %v9202
    %v10183 = vpack.c.b16 %v9210, %v9203
    %v10184 = vpack.c.b16 %v9211, %v9204
    %v10185 = vpack.c.b16 %v9219, %v9212
    %v10186 = vpack.c.b16 %v9220, %v9213
    %v10187 = vpack.c.b16 %v9221, %v9214
    %v10188 = vpack.c.b16 %v9222, %v9215
    %v10189 = vpack.c.b16 %v9223, %v9216
    %v10190 = vpack.c.b16 %v9224, %v9217
    %v10191 = vpack.c.b16 %v9225, %v9218
    %v10192 = vpack.c.b16 %v9233, %v9226
    %v10193 = vpack.c.b16 %v9234, %v9227
    %v10194 = vpack.c.b16 %v9235, %v9228
    %v10195 = vpack.c.b16 %v9236, %v9229
    %v10196 = vpack.c.b16 %v9237, %v9230
    %v10197 = vpack.c.b16 %v9238, %v9231
    %v10198 = vpack.c.b16 %v9239, %v9232
    %v10199 = vpack.c.b16 %v9247, %v9240
    %v10200 = vpack.c.b16 %v9248, %v9241
    %v10201 = vpack.c.b16 %v9249, %v9242
    %v10202 = vpack.c.b16 %v9250, %v9243
    %v10203 = vpack.c.b16 %v9251, %v9244
    %v10204 = vpack.c.b16 %v9252, %v9245
    %v10205 = vpack.c.b16 %v9253, %v9246
    %v10206 = vpack.c.b16 %v9261, %v9254
    %v10207 = vpack.c.b16 %v9262, %v9255
    %v10208 = vpack.c.b16 %v9263, %v9256
    %v10209 = vpack.c.b16 %v9264, %v9257
    %v10210 = vpack.c.b16 %v9265, %v9258
    %v10211 = vpack.c.b16 %v9266, %v9259
    %v10212 = vpack.c.b16 %v9267, %v9260
    %v10213 = vpack.c.b16 %v9275, %v9268
    %v10214 = vpack.c.b16 %v9276, %v9269
    %v10215 = vpack.c.b16 %v9277, %v9270
    %v10216 = vpack.c.b16 %v9278, %v9271
    %v10217 = vpack.c.b16 %v9279, %v9272
    %v10218 = vpack.c.b16 %v9280, %v9273
    %v10219 = vpack.c.b16 %v9281, %v9274
    %v10220 = vpack.c.b16 %v9289, %v9282
    %v10221 = vpack.c.b16 %v9290, %v9283
    %v10222 = vpack.c.b16 %v9291, %v9284
    %v10223 = vpack.c.b16 %v9292, %v9285
    %v10224 = vpack.c.b16 %v9293, %v9286
    %v10225 = vpack.c.b16 %v9294, %v9287
    %v10226 = vpack.c.b16 %v9295, %v9288
    %v10227 = vpack.c.b16 %v9303, %v9296
    %v10228 = vpack.c.b16 %v9304, %v9297
    %v10229 = vpack.c.b16 %v9305, %v9298
    %v10230 = vpack.c.b16 %v9306, %v9299
    %v10231 = vpack.c.b16 %v9307, %v9300
    %v10232 = vpack.c.b16 %v9308, %v9301
    %v10233 = vpack.c.b16 %v9309, %v9302
    %v10234 = vpack.c.b16 %v9317, %v9310
    %v10235 = vpack.c.b16 %v9318, %v9311
    %v10236 = vpack.c.b16 %v9319, %v9312
    %v10237 = vpack.c.b16 %v9320, %v9313
    %v10238 = vpack.c.b16 %v9321, %v9314
    %v10239 = vpack.c.b16 %v9322, %v9315
    %v10240 = vpack.c.b16 %v9323, %v9316
    %v10241 = vpack.c.b16 %v9331, %v9324
    %v10242 = vpack.c.b16 %v9332, %v9325
    %v10243 = vpack.c.b16 %v9333, %v9326
    %v10244 = vpack.c.b16 %v9334, %v9327
    %v10245 = vpack.c.b16 %v9335, %v9328
    %v10246 = vpack.c.b16 %v9336, %v9329
    %v10247 = vpack.c.b16 %v9337, %v9330
    %v10248 = vpack.c.b16 %v9345, %v9338
    %v10249 = vpack.c.b16 %v9346, %v9339
    %v10250 = vpack.c.b16 %v9347, %v9340
    %v10251 = vpack.c.b16 %v9348, %v9341
    %v10252 = vpack.c.b16 %v9349, %v9342
    %v10253 = vpack.c.b16 %v9350, %v9343
    %v10254 = vpack.c.b16 %v9351, %v9344
    %v10255 = vpack.c.b16 %v9359, %v9352
    %v10256 = vpack.c.b16 %v9360, %v9353
    %v10257 = vpack.c.b16 %v9361, %v9354
    %v10258 = vpack.c.b16 %v9362, %v9355
    %v10259 = vpack.c.b16 %v9363, %v9356
    %v10260 = vpack.c.b16 %v9364, %v9357
    %v10261 = vpack.c.b16 %v9365, %v9358
    %v10262 = vpack.c.b16 %v9373, %v9366
    %v10263 = vpack.c.b16 %v9374, %v9367
    %v10264 = vpack.c.b16 %v9375, %v9368
    %v10265 = vpack.c.b16 %v9376, %v9369
    %v10266 = vpack.c.b16 %v9377, %v9370
    %v10267 = vpack.c.b16 %v9378, %v9371
    %v10268 = vpack.c.b16 %v9379, %v9372
    %v10269 = vpack.c.b16 %v9387, %v9380
    %v10270 = vpack.c.b16 %v9388, %v9381
    %v10271 = vpack.c.b16 %v9389, %v9382
    %v10272 = vpack.c.b16 %v9390, %v9383
    %v10273 = vpack.c.b16 %v9391, %v9384
    %v10274 = vpack.c.b16 %v9392, %v9385
    %v10275 = vpack.c.b16 %v9393, %v9386
    %v10276 = vpack.c.b16 %v9401, %v9394
    %v10277 = vpack.c.b16 %v9402, %v9395
    %v10278 = vpack.c.b16 %v9403, %v9396
    %v10279 = vpack.c.b16 %v9404, %v9397
    %v10280 = vpack.c.b16 %v9405, %v9398
    %v10281 = vpack.c.b16 %v9406, %v9399
    %v10282 = vpack.c.b16 %v9407, %v9400
    %v10283 = vpack.c.b16 %v9415, %v9408
    %v10284 = vpack.c.b16 %v9416, %v9409
    %v10285 = vpack.c.b16 %v9417, %v9410
    %v10286 = vpack.c.b16 %v9418, %v9411
    %v10287 = vpack.c.b16 %v9419, %v9412
    %v10288 = vpack.c.b16 %v9420, %v9413
    %v10289 = vpack.c.b16 %v9421, %v9414
    %v10290 = vpack.c.b16 %v9429, %v9422
    %v10291 = vpack.c.b16 %v9430, %v9423
    %v10292 = vpack.c.b16 %v9431, %v9424
    %v10293 = vpack.c.b16 %v9432, %v9425
    %v10294 = vpack.c.b16 %v9433, %v9426
    %v10295 = vpack.c.b16 %v9434, %v9427
    %v10296 = vpack.c.b16 %v9435, %v9428
    %v10297 = vpack.c.b16 %v9443, %v9436
    %v10298 = vpack.c.b16 %v9444, %v9437
    %v10299 = vpack.c.b16 %v9445, %v9438
    %v10300 = vpack.c.b16 %v9446, %v9439
    %v10301 = vpack.c.b16 %v9447, %v9440
    %v10302 = vpack.c.b16 %v9448, %v9441
    %v10303 = vpack.c.b16 %v9449, %v9442
    %v10304 = vpack.c.b16 %v9457, %v9450
    %v10305 = vpack.c.b16 %v9458, %v9451
    %v10306 = vpack.c.b16 %v9459, %v9452
    %v10307 = vpack.c.b16 %v9460, %v9453
    %v10308 = vpack.c.b16 %v9461, %v9454
    %v10309 = vpack.c.b16 %v9462, %v9455
    %v10310 = vpack.c.b16 %v9463, %v9456
    %v10311 = vpack.c.b16 %v9471, %v9464
    %v10312 = vpack.c.b16 %v9472, %v9465
    %v10313 = vpack.c.b16 %v9473, %v9466
    %v10314 = vpack.c.b16 %v9474, %v9467
    %v10315 = vpack.c.b16 %v9475, %v9468
    %v10316 = vpack.c.b16 %v9476, %v9469
    %v10317 = vpack.c.b16 %v9477, %v9470
    %v10318 = vpack.c.b16 %v9485, %v9478
    %v10319 = vpack.c.b16 %v9486, %v9479
    %v10320 = vpack.c.b16 %v9487, %v9480
    %v10321 = vpack.c.b16 %v9488, %v9481
    %v10322 = vpack.c.b16 %v9489, %v9482
    %v10323 = vpack.c.b16 %v9490, %v9483
    %v10324 = vpack.c.b16 %v9491, %v9484
    %v10325 = vpack.c.b16 %v9499, %v9492
    %v10326 = vpack.c.b16 %v9500, %v9493
    %v10327 = vpack.c.b16 %v9501, %v9494
    %v10328 = vpack.c.b16 %v9502, %v9495
    %v10329 = vpack.c.b16 %v9503, %v9496
    %v10330 = vpack.c.b16 %v9504, %v9497
    %v10331 = vpack.c.b16 %v9505, %v9498
    %v10332 = vpack.c.b16 %v9513, %v9506
    %v10333 = vpack.c.b16 %v9514, %v9507
    %v10334 = vpack.c.b16 %v9515, %v9508
    %v10335 = vpack.c.b16 %v9516, %v9509
    %v10336 = vpack.c.b16 %v9517, %v9510
    %v10337 = vpack.c.b16 %v9518, %v9511
    %v10338 = vpack.c.b16 %v9519, %v9512
    %v10339 = vpack.c.b16 %v9527, %v9520
    %v10340 = vpack.c.b16 %v9528, %v9521
    %v10341 = vpack.c.b16 %v9529, %v9522
    %v10342 = vpack.c.b16 %v9530, %v9523
    %v10343 = vpack.c.b16 %v9531, %v9524
    %v10344 = vpack.c.b16 %v9532, %v9525
    %v10345 = vpack.c.b16 %v9533, %v9526
    %v10346 = vpack.c.b16 %v9541, %v9534
    %v10347 = vpack.c.b16 %v9542, %v9535
    %v10348 = vpack.c.b16 %v9543, %v9536
    %v10349 = vpack.c.b16 %v9544, %v9537
    %v10350 = vpack.c.b16 %v9545, %v9538
    %v10351 = vpack.c.b16 %v9546, %v9539
    %v10352 = vpack.c.b16 %v9547, %v9540
    %v10353 = vpack.c.b16 %v9555, %v9548
    %v10354 = vpack.c.b16 %v9556, %v9549
    %v10355 = vpack.c.b16 %v9557, %v9550
    %v10356 = vpack.c.b16 %v9558, %v9551
    %v10357 = vpack.c.b16 %v9559, %v9552
    %v10358 = vpack.c.b16 %v9560, %v9553
    %v10359 = vpack.c.b16 %v9561, %v9554
    %v10360 = vpack.c.b16 %v9569, %v9562
    %v10361 = vpack.c.b16 %v9570, %v9563
    %v10362 = vpack.c.b16 %v9571, %v9564
    %v10363 = vpack.c.b16 %v9572, %v9565
    %v10364 = vpack.c.b16 %v9573, %v9566
    %v10365 = vpack.c.b16 %v9574, %v9567
    %v10366 = vpack.c.b16 %v9575, %v9568
    %v10367 = vpack.c.b16 %v9583, %v9576
    %v10368 = vpack.c.b16 %v9584, %v9577
    %v10369 = vpack.c.b16 %v9585, %v9578
    %v10370 = vpack.c.b16 %v9586, %v9579
    %v10371 = vpack.c.b16 %v9587, %v9580
    %v10372 = vpack.c.b16 %v9588, %v9581
    %v10373 = vpack.c.b16 %v9589, %v9582
    %v10374 = vpack.c.b16 %v9597, %v9590
    %v10375 = vpack.c.b16 %v9598, %v9591
    %v10376 = vpack.c.b16 %v9599, %v9592
    %v10377 = vpack.c.b16 %v9600, %v9593
    %v10378 = vpack.c.b16 %v9601, %v9594
    %v10379 = vpack.c.b16 %v9602, %v9595
    %v10380 = vpack.c.b16 %v9603, %v9596
    %v10381 = vpack.c.b16 %v9611, %v9604
    %v10382 = vpack.c.b16 %v9612, %v9605
    %v10383 = vpack.c.b16 %v9613, %v9606
    %v10384 = vpack.c.b16 %v9614, %v9607
    %v10385 = vpack.c.b16 %v9615, %v9608
    %v10386 = vpack.c.b16 %v9616, %v9609
    %v10387 = vpack.c.b16 %v9617, %v9610
    %v10388 = vpack.c.b16 %v9625, %v9618
    %v10389 = vpack.c.b16 %v9626, %v9619
    %v10390 = vpack.c.b16 %v9627, %v9620
    %v10391 = vpack.c.b16 %v9628, %v9621
    %v10392 = vpack.c.b16 %v9629, %v9622
    %v10393 = vpack.c.b16 %v9630, %v9623
    %v10394 = vpack.c.b16 %v9631, %v9624
    %v10395 = vpack.c.b16 %v9639, %v9632
    %v10396 = vpack.c.b16 %v9640, %v9633
    %v10397 = vpack.c.b16 %v9641, %v9634
    %v10398 = vpack.c.b16 %v9642, %v9635
    %v10399 = vpack.c.b16 %v9643, %v9636
    %v10400 = vpack.c.b16 %v9644, %v9637
    %v10401 = vpack.c.b16 %v9645, %v9638
    %v10402 = vpack.c.b16 %v9653, %v9646
    %v10403 = vpack.c.b16 %v9654, %v9647
    %v10404 = vpack.c.b16 %v9655, %v9648
    %v10405 = vpack.c.b16 %v9656, %v9649
    %v10406 = vpack.c.b16 %v9657, %v9650
    %v10407 = vpack.c.b16 %v9658, %v9651
    %v10408 = vpack.c.b16 %v9659, %v9652
    %v10409 = vpack.c.b16 %v9667, %v9660
    %v10410 = vpack.c.b16 %v9668, %v9661
    %v10411 = vpack.c.b16 %v9669, %v9662
    %v10412 = vpack.c.b16 %v9670, %v9663
    %v10413 = vpack.c.b16 %v9671, %v9664
    %v10414 = vpack.c.b16 %v9672, %v9665
    %v10415 = vpack.c.b16 %v9673, %v9666
    %v10416 = vpack.c.b16 %v9681, %v9674
    %v10417 = vpack.c.b16 %v9682, %v9675
    %v10418 = vpack.c.b16 %v9683, %v9676
    %v10419 = vpack.c.b16 %v9684, %v9677
    %v10420 = vpack.c.b16 %v9685, %v9678
    %v10421 = vpack.c.b16 %v9686, %v9679
    %v10422 = vpack.c.b16 %v9687, %v9680
    %v10423 = vpack.c.b16 %v9695, %v9688
    %v10424 = vpack.c.b16 %v9696, %v9689
    %v10425 = vpack.c.b16 %v9697, %v9690
    %v10426 = vpack.c.b16 %v9698, %v9691
    %v10427 = vpack.c.b16 %v9699, %v9692
    %v10428 = vpack.c.b16 %v9700, %v9693
    %v10429 = vpack.c.b16 %v9701, %v9694
    %v10430 = vpack.c.b16 %v9709, %v9702
    %v10431 = vpack.c.b16 %v9710, %v9703
    %v10432 = vpack.c.b16 %v9711, %v9704
    %v10433 = vpack.c.b16 %v9712, %v9705
    %v10434 = vpack.c.b16 %v9713, %v9706
    %v10435 = vpack.c.b16 %v9714, %v9707
    %v10436 = vpack.c.b16 %v9715, %v9708
    %v10437 = vpack.c.b16 %v9723, %v9716
    %v10438 = vpack.c.b16 %v9724, %v9717
    %v10439 = vpack.c.b16 %v9725, %v9718
    %v10440 = vpack.c.b16 %v9726, %v9719
    %v10441 = vpack.c.b16 %v9727, %v9720
    %v10442 = vpack.c.b16 %v9728, %v9721
    %v10443 = vpack.c.b16 %v9729, %v9722
    %v10444 = vpack.c.b16 %v9737, %v9730
    %v10445 = vpack.c.b16 %v9738, %v9731
    %v10446 = vpack.c.b16 %v9739, %v9732
    %v10447 = vpack.c.b16 %v9740, %v9733
    %v10448 = vpack.c.b16 %v9741, %v9734
    %v10449 = vpack.c.b16 %v9742, %v9735
    %v10450 = vpack.c.b16 %v9743, %v9736
    %v10451 = vpack.c.b16 %v9751, %v9744
    %v10452 = vpack.c.b16 %v9752, %v9745
    %v10453 = vpack.c.b16 %v9753, %v9746
    %v10454 = vpack.c.b16 %v9754, %v9747
    %v10455 = vpack.c.b16 %v9755, %v9748
    %v10456 = vpack.c.b16 %v9756, %v9749
    %v10457 = vpack.c.b16 %v9757, %v9750
    %v10458 = vpack.c.b16 %v9765, %v9758
    %v10459 = vpack.c.b16 %v9766, %v9759
    %v10460 = vpack.c.b16 %v9767, %v9760
    %v10461 = vpack.c.b16 %v9768, %v9761
    %v10462 = vpack.c.b16 %v9769, %v9762
    %v10463 = vpack.c.b16 %v9770, %v9763
    %v10464 = vpack.c.b16 %v9771, %v9764
    %v10465 = vpack.c.b16 %v9779, %v9772
    %v10466 = vpack.c.b16 %v9780, %v9773
    %v10467 = vpack.c.b16 %v9781, %v9774
    %v10468 = vpack.c.b16 %v9782, %v9775
    %v10469 = vpack.c.b16 %v9783, %v9776
    %v10470 = vpack.c.b16 %v9784, %v9777
    %v10471 = vpack.c.b16 %v9785, %v9778
    %v10472 = vpack.c.b16 %v9793, %v9786
    %v10473 = vpack.c.b16 %v9794, %v9787
    %v10474 = vpack.c.b16 %v9795, %v9788
    %v10475 = vpack.c.b16 %v9796, %v9789
    %v10476 = vpack.c.b16 %v9797, %v9790
    %v10477 = vpack.c.b16 %v9798, %v9791
    %v10478 = vpack.c.b16 %v9799, %v9792
    %v10479 = vpack.c.b16 %v9807, %v9800
    %v10480 = vpack.c.b16 %v9808, %v9801
    %v10481 = vpack.c.b16 %v9809, %v9802
    %v10482 = vpack.c.b16 %v9810, %v9803
    %v10483 = vpack.c.b16 %v9811, %v9804
    %v10484 = vpack.c.b16 %v9812, %v9805
    %v10485 = vpack.c.b16 %v9813, %v9806
    %v10486 = vpack.c.b16 %v9821, %v9814
    %v10487 = vpack.c.b16 %v9822, %v9815
    %v10488 = vpack.c.b16 %v9823, %v9816
    %v10489 = vpack.c.b16 %v9824, %v9817
    %v10490 = vpack.c.b16 %v9825, %v9818
    %v10491 = vpack.c.b16 %v9826, %v9819
    %v10492 = vpack.c.b16 %v9827, %v9820
    %v10493 = vpack.c.b16 %v9835, %v9828
    %v10494 = vpack.c.b16 %v9836, %v9829
    %v10495 = vpack.c.b16 %v9837, %v9830
    %v10496 = vpack.c.b16 %v9838, %v9831
    %v10497 = vpack.c.b16 %v9839, %v9832
    %v10498 = vpack.c.b16 %v9840, %v9833
    %v10499 = vpack.c.b16 %v9841, %v9834
    %v10500 = vpack.c.b16 %v9849, %v9842
    %v10501 = vpack.c.b16 %v9850, %v9843
    %v10502 = vpack.c.b16 %v9851, %v9844
    %v10503 = vpack.c.b16 %v9852, %v9845
    %v10504 = vpack.c.b16 %v9853, %v9846
    %v10505 = vpack.c.b16 %v9854, %v9847
    %v10506 = vpack.c.b16 %v9855, %v9848
    %v10507 = vpack.c.b16 %v9863, %v9856
    %v10508 = vpack.c.b16 %v9864, %v9857
    %v10509 = vpack.c.b16 %v9865, %v9858
    %v10510 = vpack.c.b16 %v9866, %v9859
    %v10511 = vpack.c.b16 %v9867, %v9860
    %v10512 = vpack.c.b16 %v9868, %v9861
    %v10513 = vpack.c.b16 %v9869, %v9862
    %v10514 = vpack.c.b16 %v9877, %v9870
    %v10515 = vpack.c.b16 %v9878, %v9871
    %v10516 = vpack.c.b16 %v9879, %v9872
    %v10517 = vpack.c.b16 %v9880, %v9873
    %v10518 = vpack.c.b16 %v9881, %v9874
    %v10519 = vpack.c.b16 %v9882, %v9875
    %v10520 = vpack.c.b16 %v9883, %v9876
    %v10521 = vpack.c.b16 %v9891, %v9884
    %v10522 = vpack.c.b16 %v9892, %v9885
    %v10523 = vpack.c.b16 %v9893, %v9886
    %v10524 = vpack.c.b16 %v9894, %v9887
    %v10525 = vpack.c.b16 %v9895, %v9888
    %v10526 = vpack.c.b16 %v9896, %v9889
    %v10527 = vpack.c.b16 %v9897, %v9890
    %v10528 = vpack.c.b16 %v9905, %v9898
    %v10529 = vpack.c.b16 %v9906, %v9899
    %v10530 = vpack.c.b16 %v9907, %v9900
    %v10531 = vpack.c.b16 %v9908, %v9901
    %v10532 = vpack.c.b16 %v9909, %v9902
    %v10533 = vpack.c.b16 %v9910, %v9903
    %v10534 = vpack.c.b16 %v9911, %v9904
    %v10535 = vpack.c.b16 %v9919, %v9912
    %v10536 = vpack.c.b16 %v9920, %v9913
    %v10537 = vpack.c.b16 %v9921, %v9914
    %v10538 = vpack.c.b16 %v9922, %v9915
    %v10539 = vpack.c.b16 %v9923, %v9916
    %v10540 = vpack.c.b16 %v9924, %v9917
    %v10541 = vpack.c.b16 %v9925, %v9918
    %v10542 = vpack.c.b16 %v9933, %v9926
    %v10543 = vpack.c.b16 %v9934, %v9927
    %v10544 = vpack.c.b16 %v9935, %v9928
    %v10545 = vpack.c.b16 %v9936, %v9929
    %v10546 = vpack.c.b16 %v9937, %v9930
    %v10547 = vpack.c.b16 %v9938, %v9931
    %v10548 = vpack.c.b16 %v9939, %v9932
    %v10549 = vpack.c.b16 %v9947, %v9940
    %v10550 = vpack.c.b16 %v9948, %v9941
    %v10551 = vpack.c.b16 %v9949, %v9942
    %v10552 = vpack.c.b16 %v9950, %v9943
    %v10553 = vpack.c.b16 %v9951, %v9944
    %v10554 = vpack.c.b16 %v9952, %v9945
    %v10555 = vpack.c.b16 %v9953, %v9946
    %v10556 = vpack.c.b16 %v9961, %v9954
    %v10557 = vpack.c.b16 %v9962, %v9955
    %v10558 = vpack.c.b16 %v9963, %v9956
    %v10559 = vpack.c.b16 %v9964, %v9957
    %v10560 = vpack.c.b16 %v9965, %v9958
    %v10561 = vpack.c.b16 %v9966, %v9959
    %v10562 = vpack.c.b16 %v9967, %v9960
    %v10563 = vpack.c.b16 %v9975, %v9968
    %v10564 = vpack.c.b16 %v9976, %v9969
    %v10565 = vpack.c.b16 %v9977, %v9970
    %v10566 = vpack.c.b16 %v9978, %v9971
    %v10567 = vpack.c.b16 %v9979, %v9972
    %v10568 = vpack.c.b16 %v9980, %v9973
    %v10569 = vpack.c.b16 %v9981, %v9974
    %v10570 = vpack.c.b16 %v9989, %v9982
    %v10571 = vpack.c.b16 %v9990, %v9983
    %v10572 = vpack.c.b16 %v9991, %v9984
    %v10573 = vpack.c.b16 %v9992, %v9985
    %v10574 = vpack.c.b16 %v9993, %v9986
    %v10575 = vpack.c.b16 %v9994, %v9987
    %v10576 = vpack.c.b16 %v9995, %v9988
    %v10577 = vpack.c.b16 %v10003, %v9996
    %v10578 = vpack.c.b16 %v10004, %v9997
    %v10579 = vpack.c.b16 %v10005, %v9998
    %v10580 = vpack.c.b16 %v10006, %v9999
    %v10581 = vpack.c.b16 %v10007, %v10000
    %v10582 = vpack.c.b16 %v10008, %v10001
    %v10583 = vpack.c.b16 %v10009, %v10002
    %v10584 = vpack.c.b16 %v10017, %v10010
    %v10585 = vpack.c.b16 %v10018, %v10011
    %v10586 = vpack.c.b16 %v10019, %v10012
    %v10587 = vpack.c.b16 %v10020, %v10013
    %v10588 = vpack.c.b16 %v10021, %v10014
    %v10589 = vpack.c.b16 %v10022, %v10015
    %v10590 = vpack.c.b16 %v10023, %v10016
    %v10591 = vpack.c.b16 %v10031, %v10024
    %v10592 = vpack.c.b16 %v10032, %v10025
    %v10593 = vpack.c.b16 %v10033, %v10026
    %v10594 = vpack.c.b16 %v10034, %v10027
    %v10595 = vpack.c.b16 %v10035, %v10028
    %v10596 = vpack.c.b16 %v10036, %v10029
    %v10597 = vpack.c.b16 %v10037, %v10030
    %11158 = vmatpush.bf16.msra.mxu0 %v10087
    %11159 = vmatpush.bf16.msra.mxu0 %v10080
    %11160 = vmatpush.bf16.msra.mxu0 %v10073
    %11161 = vmatpush.bf16.msra.mxu0 %v10066
    %11162 = vmatpush.bf16.msra.mxu0 %v10059
    %11163 = vmatpush.bf16.msra.mxu0 %v10052
    %11164 = vmatpush.bf16.msra.mxu0 %v10045
    %11165 = vmatpush.bf16.msra.mxu0 %v10038
    %11166 = vmatmul.bf16.gmra.mxu0 %v7612
    %v11167 = vpop.f32.mrf.mxu0
    %v11168 = vadd.f32 %v8264, %v11167
    %v11169 = vpop.f32.mrf.mxu0
    %11170 = vdwg.mxu0
    %11171 = vmatpush.bf16.msra.mxu0 %v10143
    %11172 = vmatpush.bf16.msra.mxu0 %v10136
    %11173 = vmatpush.bf16.msra.mxu0 %v10129
    %11174 = vmatpush.bf16.msra.mxu0 %v10122
    %11175 = vmatpush.bf16.msra.mxu0 %v10115
    %11176 = vmatpush.bf16.msra.mxu0 %v10108
    %11177 = vmatpush.bf16.msra.mxu0 %v10101
    %11178 = vmatpush.bf16.msra.mxu0 %v10094
    %11179 = vmatmul.bf16.gmra.mxu0 %v7613
    %v11180 = vpop.f32.mrf.mxu0
    %v11181 = vadd.f32 %v11168, %v11180
    %v11182 = vpop.f32.mrf.mxu0
    %11183 = vdwg.mxu0
    %11184 = vmatpush.bf16.msra.mxu0 %v10199
    %11185 = vmatpush.bf16.msra.mxu0 %v10192
    %11186 = vmatpush.bf16.msra.mxu0 %v10185
    %11187 = vmatpush.bf16.msra.mxu0 %v10178
    %11188 = vmatpush.bf16.msra.mxu0 %v10171
    %11189 = vmatpush.bf16.msra.mxu0 %v10164
    %11190 = vmatpush.bf16.msra.mxu0 %v10157
    %11191 = vmatpush.bf16.msra.mxu0 %v10150
    %11192 = vmatmul.bf16.gmra.mxu0 %v7614
    %v11193 = vpop.f32.mrf.mxu0
    %v11194 = vadd.f32 %v11181, %v11193
    %v11195 = vpop.f32.mrf.mxu0
    %11196 = vdwg.mxu0
    %11197 = vmatpush.bf16.msra.mxu0 %v10255
    %11198 = vmatpush.bf16.msra.mxu0 %v10248
    %11199 = vmatpush.bf16.msra.mxu0 %v10241
    %11200 = vmatpush.bf16.msra.mxu0 %v10234
    %11201 = vmatpush.bf16.msra.mxu0 %v10227
    %11202 = vmatpush.bf16.msra.mxu0 %v10220
    %11203 = vmatpush.bf16.msra.mxu0 %v10213
    %11204 = vmatpush.bf16.msra.mxu0 %v10206
    %11205 = vmatmul.bf16.gmra.mxu0 %v7615
    %v11206 = vpop.f32.mrf.mxu0
    %v11207 = vadd.f32 %v11194, %v11206
    %v11208 = vpop.f32.mrf.mxu0
    %11209 = vdwg.mxu0
    %11210 = vmatpush.bf16.msra.mxu0 %v10311
    %11211 = vmatpush.bf16.msra.mxu0 %v10304
    %11212 = vmatpush.bf16.msra.mxu0 %v10297
    %11213 = vmatpush.bf16.msra.mxu0 %v10290
    %11214 = vmatpush.bf16.msra.mxu0 %v10283
    %11215 = vmatpush.bf16.msra.mxu0 %v10276
    %11216 = vmatpush.bf16.msra.mxu0 %v10269
    %11217 = vmatpush.bf16.msra.mxu0 %v10262
    %11218 = vmatmul.bf16.gmra.mxu0 %v7616
    %v11219 = vpop.f32.mrf.mxu0
    %v11220 = vadd.f32 %v11207, %v11219
    %v11221 = vpop.f32.mrf.mxu0
    %11222 = vdwg.mxu0
    %11223 = vmatpush.bf16.msra.mxu0 %v10367
    %11224 = vmatpush.bf16.msra.mxu0 %v10360
    %11225 = vmatpush.bf16.msra.mxu0 %v10353
    %11226 = vmatpush.bf16.msra.mxu0 %v10346
    %11227 = vmatpush.bf16.msra.mxu0 %v10339
    %11228 = vmatpush.bf16.msra.mxu0 %v10332
    %11229 = vmatpush.bf16.msra.mxu0 %v10325
    %11230 = vmatpush.bf16.msra.mxu0 %v10318
    %11231 = vmatmul.bf16.gmra.mxu0 %v7617
    %v11232 = vpop.f32.mrf.mxu0
    %v11233 = vadd.f32 %v11220, %v11232
    %v11234 = vpop.f32.mrf.mxu0
    %11235 = vdwg.mxu0
    %11236 = vmatpush.bf16.msra.mxu0 %v10423
    %11237 = vmatpush.bf16.msra.mxu0 %v10416
    %11238 = vmatpush.bf16.msra.mxu0 %v10409
    %11239 = vmatpush.bf16.msra.mxu0 %v10402
    %11240 = vmatpush.bf16.msra.mxu0 %v10395
    %11241 = vmatpush.bf16.msra.mxu0 %v10388
    %11242 = vmatpush.bf16.msra.mxu0 %v10381
    %11243 = vmatpush.bf16.msra.mxu0 %v10374
    %11244 = vmatmul.bf16.gmra.mxu0 %v7618
    %v11245 = vpop.f32.mrf.mxu0
    %v11246 = vadd.f32 %v11233, %v11245
    %v11247 = vpop.f32.mrf.mxu0
    %11248 = vdwg.mxu0
    %11249 = vmatpush.bf16.msra.mxu0 %v10479
    %11250 = vmatpush.bf16.msra.mxu0 %v10472
    %11251 = vmatpush.bf16.msra.mxu0 %v10465
    %11252 = vmatpush.bf16.msra.mxu0 %v10458
    %11253 = vmatpush.bf16.msra.mxu0 %v10451
    %11254 = vmatpush.bf16.msra.mxu0 %v10444
    %11255 = vmatpush.bf16.msra.mxu0 %v10437
    %11256 = vmatpush.bf16.msra.mxu0 %v10430
    %11257 = vmatmul.bf16.gmra.mxu0 %v7619
    %v11258 = vpop.f32.mrf.mxu0
    %v11259 = vadd.f32 %v11246, %v11258
    %v11260 = vpop.f32.mrf.mxu0
    %11261 = vdwg.mxu0
    %11262 = vmatpush.bf16.msra.mxu0 %v10535
    %11263 = vmatpush.bf16.msra.mxu0 %v10528
    %11264 = vmatpush.bf16.msra.mxu0 %v10521
    %11265 = vmatpush.bf16.msra.mxu0 %v10514
    %11266 = vmatpush.bf16.msra.mxu0 %v10507
    %11267 = vmatpush.bf16.msra.mxu0 %v10500
    %11268 = vmatpush.bf16.msra.mxu0 %v10493
    %11269 = vmatpush.bf16.msra.mxu0 %v10486
    %11270 = vmatmul.bf16.gmra.mxu0 %v7620
    %v11271 = vpop.f32.mrf.mxu0
    %v11272 = vadd.f32 %v11259, %v11271
    %v11273 = vpop.f32.mrf.mxu0
    %11274 = vdwg.mxu0
    %11275 = vmatpush.bf16.msra.mxu0 %v10591
    %11276 = vmatpush.bf16.msra.mxu0 %v10584
    %11277 = vmatpush.bf16.msra.mxu0 %v10577
    %11278 = vmatpush.bf16.msra.mxu0 %v10570
    %11279 = vmatpush.bf16.msra.mxu0 %v10563
    %11280 = vmatpush.bf16.msra.mxu0 %v10556
    %11281 = vmatpush.bf16.msra.mxu0 %v10549
    %11282 = vmatpush.bf16.msra.mxu0 %v10542
    %11283 = vmatmul.bf16.gmra.mxu0 %v7621
    %v11284 = vpop.f32.mrf.mxu0
    %v11285 = vadd.f32 %v11272, %v11284
    %v11286 = vpop.f32.mrf.mxu0
    %11287 = vdwg.mxu0
    %11288 = vmatpush.bf16.msra.mxu0 %v10088
    %11289 = vmatpush.bf16.msra.mxu0 %v10081
    %11290 = vmatpush.bf16.msra.mxu0 %v10074
    %11291 = vmatpush.bf16.msra.mxu0 %v10067
    %11292 = vmatpush.bf16.msra.mxu0 %v10060
    %11293 = vmatpush.bf16.msra.mxu0 %v10053
    %11294 = vmatpush.bf16.msra.mxu0 %v10046
    %11295 = vmatpush.bf16.msra.mxu0 %v10039
    %11296 = vmatmul.bf16.gmra.mxu0 %v7612
    %v11297 = vpop.f32.mrf.mxu0
    %v11298 = vadd.f32 %v8265, %v11297
    %v11299 = vpop.f32.mrf.mxu0
    %11300 = vdwg.mxu0
    %11301 = vmatpush.bf16.msra.mxu0 %v10144
    %11302 = vmatpush.bf16.msra.mxu0 %v10137
    %11303 = vmatpush.bf16.msra.mxu0 %v10130
    %11304 = vmatpush.bf16.msra.mxu0 %v10123
    %11305 = vmatpush.bf16.msra.mxu0 %v10116
    %11306 = vmatpush.bf16.msra.mxu0 %v10109
    %11307 = vmatpush.bf16.msra.mxu0 %v10102
    %11308 = vmatpush.bf16.msra.mxu0 %v10095
    %11309 = vmatmul.bf16.gmra.mxu0 %v7613
    %v11310 = vpop.f32.mrf.mxu0
    %v11311 = vadd.f32 %v11298, %v11310
    %v11312 = vpop.f32.mrf.mxu0
    %11313 = vdwg.mxu0
    %11314 = vmatpush.bf16.msra.mxu0 %v10200
    %11315 = vmatpush.bf16.msra.mxu0 %v10193
    %11316 = vmatpush.bf16.msra.mxu0 %v10186
    %11317 = vmatpush.bf16.msra.mxu0 %v10179
    %11318 = vmatpush.bf16.msra.mxu0 %v10172
    %11319 = vmatpush.bf16.msra.mxu0 %v10165
    %11320 = vmatpush.bf16.msra.mxu0 %v10158
    %11321 = vmatpush.bf16.msra.mxu0 %v10151
    %11322 = vmatmul.bf16.gmra.mxu0 %v7614
    %v11323 = vpop.f32.mrf.mxu0
    %v11324 = vadd.f32 %v11311, %v11323
    %v11325 = vpop.f32.mrf.mxu0
    %11326 = vdwg.mxu0
    %11327 = vmatpush.bf16.msra.mxu0 %v10256
    %11328 = vmatpush.bf16.msra.mxu0 %v10249
    %11329 = vmatpush.bf16.msra.mxu0 %v10242
    %11330 = vmatpush.bf16.msra.mxu0 %v10235
    %11331 = vmatpush.bf16.msra.mxu0 %v10228
    %11332 = vmatpush.bf16.msra.mxu0 %v10221
    %11333 = vmatpush.bf16.msra.mxu0 %v10214
    %11334 = vmatpush.bf16.msra.mxu0 %v10207
    %11335 = vmatmul.bf16.gmra.mxu0 %v7615
    %v11336 = vpop.f32.mrf.mxu0
    %v11337 = vadd.f32 %v11324, %v11336
    %v11338 = vpop.f32.mrf.mxu0
    %11339 = vdwg.mxu0
    %11340 = vmatpush.bf16.msra.mxu0 %v10312
    %11341 = vmatpush.bf16.msra.mxu0 %v10305
    %11342 = vmatpush.bf16.msra.mxu0 %v10298
    %11343 = vmatpush.bf16.msra.mxu0 %v10291
    %11344 = vmatpush.bf16.msra.mxu0 %v10284
    %11345 = vmatpush.bf16.msra.mxu0 %v10277
    %11346 = vmatpush.bf16.msra.mxu0 %v10270
    %11347 = vmatpush.bf16.msra.mxu0 %v10263
    %11348 = vmatmul.bf16.gmra.mxu0 %v7616
    %v11349 = vpop.f32.mrf.mxu0
    %v11350 = vadd.f32 %v11337, %v11349
    %v11351 = vpop.f32.mrf.mxu0
    %11352 = vdwg.mxu0
    %11353 = vmatpush.bf16.msra.mxu0 %v10368
    %11354 = vmatpush.bf16.msra.mxu0 %v10361
    %11355 = vmatpush.bf16.msra.mxu0 %v10354
    %11356 = vmatpush.bf16.msra.mxu0 %v10347
    %11357 = vmatpush.bf16.msra.mxu0 %v10340
    %11358 = vmatpush.bf16.msra.mxu0 %v10333
    %11359 = vmatpush.bf16.msra.mxu0 %v10326
    %11360 = vmatpush.bf16.msra.mxu0 %v10319
    %11361 = vmatmul.bf16.gmra.mxu0 %v7617
    %v11362 = vpop.f32.mrf.mxu0
    %v11363 = vadd.f32 %v11350, %v11362
    %v11364 = vpop.f32.mrf.mxu0
    %11365 = vdwg.mxu0
    %11366 = vmatpush.bf16.msra.mxu0 %v10424
    %11367 = vmatpush.bf16.msra.mxu0 %v10417
    %11368 = vmatpush.bf16.msra.mxu0 %v10410
    %11369 = vmatpush.bf16.msra.mxu0 %v10403
    %11370 = vmatpush.bf16.msra.mxu0 %v10396
    %11371 = vmatpush.bf16.msra.mxu0 %v10389
    %11372 = vmatpush.bf16.msra.mxu0 %v10382
    %11373 = vmatpush.bf16.msra.mxu0 %v10375
    %11374 = vmatmul.bf16.gmra.mxu0 %v7618
    %v11375 = vpop.f32.mrf.mxu0
    %v11376 = vadd.f32 %v11363, %v11375
    %v11377 = vpop.f32.mrf.mxu0
    %11378 = vdwg.mxu0
    %11379 = vmatpush.bf16.msra.mxu0 %v10480
    %11380 = vmatpush.bf16.msra.mxu0 %v10473
    %11381 = vmatpush.bf16.msra.mxu0 %v10466
    %11382 = vmatpush.bf16.msra.mxu0 %v10459
    %11383 = vmatpush.bf16.msra.mxu0 %v10452
    %11384 = vmatpush.bf16.msra.mxu0 %v10445
    %11385 = vmatpush.bf16.msra.mxu0 %v10438
    %11386 = vmatpush.bf16.msra.mxu0 %v10431
    %11387 = vmatmul.bf16.gmra.mxu0 %v7619
    %v11388 = vpop.f32.mrf.mxu0
    %v11389 = vadd.f32 %v11376, %v11388
    %v11390 = vpop.f32.mrf.mxu0
    %11391 = vdwg.mxu0
    %11392 = vmatpush.bf16.msra.mxu0 %v10536
    %11393 = vmatpush.bf16.msra.mxu0 %v10529
    %11394 = vmatpush.bf16.msra.mxu0 %v10522
    %11395 = vmatpush.bf16.msra.mxu0 %v10515
    %11396 = vmatpush.bf16.msra.mxu0 %v10508
    %11397 = vmatpush.bf16.msra.mxu0 %v10501
    %11398 = vmatpush.bf16.msra.mxu0 %v10494
    %11399 = vmatpush.bf16.msra.mxu0 %v10487
    %11400 = vmatmul.bf16.gmra.mxu0 %v7620
    %v11401 = vpop.f32.mrf.mxu0
    %v11402 = vadd.f32 %v11389, %v11401
    %v11403 = vpop.f32.mrf.mxu0
    %11404 = vdwg.mxu0
    %11405 = vmatpush.bf16.msra.mxu0 %v10592
    %11406 = vmatpush.bf16.msra.mxu0 %v10585
    %11407 = vmatpush.bf16.msra.mxu0 %v10578
    %11408 = vmatpush.bf16.msra.mxu0 %v10571
    %11409 = vmatpush.bf16.msra.mxu0 %v10564
    %11410 = vmatpush.bf16.msra.mxu0 %v10557
    %11411 = vmatpush.bf16.msra.mxu0 %v10550
    %11412 = vmatpush.bf16.msra.mxu0 %v10543
    %11413 = vmatmul.bf16.gmra.mxu0 %v7621
    %v11414 = vpop.f32.mrf.mxu0
    %v11415 = vadd.f32 %v11402, %v11414
    %v11416 = vpop.f32.mrf.mxu0
    %11417 = vdwg.mxu0
    %11418 = vmatpush.bf16.msra.mxu0 %v10089
    %11419 = vmatpush.bf16.msra.mxu0 %v10082
    %11420 = vmatpush.bf16.msra.mxu0 %v10075
    %11421 = vmatpush.bf16.msra.mxu0 %v10068
    %11422 = vmatpush.bf16.msra.mxu0 %v10061
    %11423 = vmatpush.bf16.msra.mxu0 %v10054
    %11424 = vmatpush.bf16.msra.mxu0 %v10047
    %11425 = vmatpush.bf16.msra.mxu0 %v10040
    %11426 = vmatmul.bf16.gmra.mxu0 %v7612
    %v11427 = vpop.f32.mrf.mxu0
    %v11428 = vadd.f32 %v8266, %v11427
    %v11429 = vpop.f32.mrf.mxu0
    %11430 = vdwg.mxu0
    %11431 = vmatpush.bf16.msra.mxu0 %v10145
    %11432 = vmatpush.bf16.msra.mxu0 %v10138
    %11433 = vmatpush.bf16.msra.mxu0 %v10131
    %11434 = vmatpush.bf16.msra.mxu0 %v10124
    %11435 = vmatpush.bf16.msra.mxu0 %v10117
    %11436 = vmatpush.bf16.msra.mxu0 %v10110
    %11437 = vmatpush.bf16.msra.mxu0 %v10103
    %11438 = vmatpush.bf16.msra.mxu0 %v10096
    %11439 = vmatmul.bf16.gmra.mxu0 %v7613
    %v11440 = vpop.f32.mrf.mxu0
    %v11441 = vadd.f32 %v11428, %v11440
    %v11442 = vpop.f32.mrf.mxu0
    %11443 = vdwg.mxu0
    %11444 = vmatpush.bf16.msra.mxu0 %v10201
    %11445 = vmatpush.bf16.msra.mxu0 %v10194
    %11446 = vmatpush.bf16.msra.mxu0 %v10187
    %11447 = vmatpush.bf16.msra.mxu0 %v10180
    %11448 = vmatpush.bf16.msra.mxu0 %v10173
    %11449 = vmatpush.bf16.msra.mxu0 %v10166
    %11450 = vmatpush.bf16.msra.mxu0 %v10159
    %11451 = vmatpush.bf16.msra.mxu0 %v10152
    %11452 = vmatmul.bf16.gmra.mxu0 %v7614
    %v11453 = vpop.f32.mrf.mxu0
    %v11454 = vadd.f32 %v11441, %v11453
    %v11455 = vpop.f32.mrf.mxu0
    %11456 = vdwg.mxu0
    %11457 = vmatpush.bf16.msra.mxu0 %v10257
    %11458 = vmatpush.bf16.msra.mxu0 %v10250
    %11459 = vmatpush.bf16.msra.mxu0 %v10243
    %11460 = vmatpush.bf16.msra.mxu0 %v10236
    %11461 = vmatpush.bf16.msra.mxu0 %v10229
    %11462 = vmatpush.bf16.msra.mxu0 %v10222
    %11463 = vmatpush.bf16.msra.mxu0 %v10215
    %11464 = vmatpush.bf16.msra.mxu0 %v10208
    %11465 = vmatmul.bf16.gmra.mxu0 %v7615
    %v11466 = vpop.f32.mrf.mxu0
    %v11467 = vadd.f32 %v11454, %v11466
    %v11468 = vpop.f32.mrf.mxu0
    %11469 = vdwg.mxu0
    %11470 = vmatpush.bf16.msra.mxu0 %v10313
    %11471 = vmatpush.bf16.msra.mxu0 %v10306
    %11472 = vmatpush.bf16.msra.mxu0 %v10299
    %11473 = vmatpush.bf16.msra.mxu0 %v10292
    %11474 = vmatpush.bf16.msra.mxu0 %v10285
    %11475 = vmatpush.bf16.msra.mxu0 %v10278
    %11476 = vmatpush.bf16.msra.mxu0 %v10271
    %11477 = vmatpush.bf16.msra.mxu0 %v10264
    %11478 = vmatmul.bf16.gmra.mxu0 %v7616
    %v11479 = vpop.f32.mrf.mxu0
    %v11480 = vadd.f32 %v11467, %v11479
    %v11481 = vpop.f32.mrf.mxu0
    %11482 = vdwg.mxu0
    %11483 = vmatpush.bf16.msra.mxu0 %v10369
    %11484 = vmatpush.bf16.msra.mxu0 %v10362
    %11485 = vmatpush.bf16.msra.mxu0 %v10355
    %11486 = vmatpush.bf16.msra.mxu0 %v10348
    %11487 = vmatpush.bf16.msra.mxu0 %v10341
    %11488 = vmatpush.bf16.msra.mxu0 %v10334
    %11489 = vmatpush.bf16.msra.mxu0 %v10327
    %11490 = vmatpush.bf16.msra.mxu0 %v10320
    %11491 = vmatmul.bf16.gmra.mxu0 %v7617
    %v11492 = vpop.f32.mrf.mxu0
    %v11493 = vadd.f32 %v11480, %v11492
    %v11494 = vpop.f32.mrf.mxu0
    %11495 = vdwg.mxu0
    %11496 = vmatpush.bf16.msra.mxu0 %v10425
    %11497 = vmatpush.bf16.msra.mxu0 %v10418
    %11498 = vmatpush.bf16.msra.mxu0 %v10411
    %11499 = vmatpush.bf16.msra.mxu0 %v10404
    %11500 = vmatpush.bf16.msra.mxu0 %v10397
    %11501 = vmatpush.bf16.msra.mxu0 %v10390
    %11502 = vmatpush.bf16.msra.mxu0 %v10383
    %11503 = vmatpush.bf16.msra.mxu0 %v10376
    %11504 = vmatmul.bf16.gmra.mxu0 %v7618
    %v11505 = vpop.f32.mrf.mxu0
    %v11506 = vadd.f32 %v11493, %v11505
    %v11507 = vpop.f32.mrf.mxu0
    %11508 = vdwg.mxu0
    %11509 = vmatpush.bf16.msra.mxu0 %v10481
    %11510 = vmatpush.bf16.msra.mxu0 %v10474
    %11511 = vmatpush.bf16.msra.mxu0 %v10467
    %11512 = vmatpush.bf16.msra.mxu0 %v10460
    %11513 = vmatpush.bf16.msra.mxu0 %v10453
    %11514 = vmatpush.bf16.msra.mxu0 %v10446
    %11515 = vmatpush.bf16.msra.mxu0 %v10439
    %11516 = vmatpush.bf16.msra.mxu0 %v10432
    %11517 = vmatmul.bf16.gmra.mxu0 %v7619
    %v11518 = vpop.f32.mrf.mxu0
    %v11519 = vadd.f32 %v11506, %v11518
    %v11520 = vpop.f32.mrf.mxu0
    %11521 = vdwg.mxu0
    %11522 = vmatpush.bf16.msra.mxu0 %v10537
    %11523 = vmatpush.bf16.msra.mxu0 %v10530
    %11524 = vmatpush.bf16.msra.mxu0 %v10523
    %11525 = vmatpush.bf16.msra.mxu0 %v10516
    %11526 = vmatpush.bf16.msra.mxu0 %v10509
    %11527 = vmatpush.bf16.msra.mxu0 %v10502
    %11528 = vmatpush.bf16.msra.mxu0 %v10495
    %11529 = vmatpush.bf16.msra.mxu0 %v10488
    %11530 = vmatmul.bf16.gmra.mxu0 %v7620
    %v11531 = vpop.f32.mrf.mxu0
    %v11532 = vadd.f32 %v11519, %v11531
    %v11533 = vpop.f32.mrf.mxu0
    %11534 = vdwg.mxu0
    %11535 = vmatpush.bf16.msra.mxu0 %v10593
    %11536 = vmatpush.bf16.msra.mxu0 %v10586
    %11537 = vmatpush.bf16.msra.mxu0 %v10579
    %11538 = vmatpush.bf16.msra.mxu0 %v10572
    %11539 = vmatpush.bf16.msra.mxu0 %v10565
    %11540 = vmatpush.bf16.msra.mxu0 %v10558
    %11541 = vmatpush.bf16.msra.mxu0 %v10551
    %11542 = vmatpush.bf16.msra.mxu0 %v10544
    %11543 = vmatmul.bf16.gmra.mxu0 %v7621
    %v11544 = vpop.f32.mrf.mxu0
    %v11545 = vadd.f32 %v11532, %v11544
    %v11546 = vpop.f32.mrf.mxu0
    %11547 = vdwg.mxu0
    %11548 = vmatpush.bf16.msra.mxu0 %v10090
    %11549 = vmatpush.bf16.msra.mxu0 %v10083
    %11550 = vmatpush.bf16.msra.mxu0 %v10076
    %11551 = vmatpush.bf16.msra.mxu0 %v10069
    %11552 = vmatpush.bf16.msra.mxu0 %v10062
    %11553 = vmatpush.bf16.msra.mxu0 %v10055
    %11554 = vmatpush.bf16.msra.mxu0 %v10048
    %11555 = vmatpush.bf16.msra.mxu0 %v10041
    %11556 = vmatmul.bf16.gmra.mxu0 %v7612
    %v11557 = vpop.f32.mrf.mxu0
    %v11558 = vadd.f32 %v8267, %v11557
    %v11559 = vpop.f32.mrf.mxu0
    %11560 = vdwg.mxu0
    %11561 = vmatpush.bf16.msra.mxu0 %v10146
    %11562 = vmatpush.bf16.msra.mxu0 %v10139
    %11563 = vmatpush.bf16.msra.mxu0 %v10132
    %11564 = vmatpush.bf16.msra.mxu0 %v10125
    %11565 = vmatpush.bf16.msra.mxu0 %v10118
    %11566 = vmatpush.bf16.msra.mxu0 %v10111
    %11567 = vmatpush.bf16.msra.mxu0 %v10104
    %11568 = vmatpush.bf16.msra.mxu0 %v10097
    %11569 = vmatmul.bf16.gmra.mxu0 %v7613
    %v11570 = vpop.f32.mrf.mxu0
    %v11571 = vadd.f32 %v11558, %v11570
    %v11572 = vpop.f32.mrf.mxu0
    %11573 = vdwg.mxu0
    %11574 = vmatpush.bf16.msra.mxu0 %v10202
    %11575 = vmatpush.bf16.msra.mxu0 %v10195
    %11576 = vmatpush.bf16.msra.mxu0 %v10188
    %11577 = vmatpush.bf16.msra.mxu0 %v10181
    %11578 = vmatpush.bf16.msra.mxu0 %v10174
    %11579 = vmatpush.bf16.msra.mxu0 %v10167
    %11580 = vmatpush.bf16.msra.mxu0 %v10160
    %11581 = vmatpush.bf16.msra.mxu0 %v10153
    %11582 = vmatmul.bf16.gmra.mxu0 %v7614
    %v11583 = vpop.f32.mrf.mxu0
    %v11584 = vadd.f32 %v11571, %v11583
    %v11585 = vpop.f32.mrf.mxu0
    %11586 = vdwg.mxu0
    %11587 = vmatpush.bf16.msra.mxu0 %v10258
    %11588 = vmatpush.bf16.msra.mxu0 %v10251
    %11589 = vmatpush.bf16.msra.mxu0 %v10244
    %11590 = vmatpush.bf16.msra.mxu0 %v10237
    %11591 = vmatpush.bf16.msra.mxu0 %v10230
    %11592 = vmatpush.bf16.msra.mxu0 %v10223
    %11593 = vmatpush.bf16.msra.mxu0 %v10216
    %11594 = vmatpush.bf16.msra.mxu0 %v10209
    %11595 = vmatmul.bf16.gmra.mxu0 %v7615
    %v11596 = vpop.f32.mrf.mxu0
    %v11597 = vadd.f32 %v11584, %v11596
    %v11598 = vpop.f32.mrf.mxu0
    %11599 = vdwg.mxu0
    %11600 = vmatpush.bf16.msra.mxu0 %v10314
    %11601 = vmatpush.bf16.msra.mxu0 %v10307
    %11602 = vmatpush.bf16.msra.mxu0 %v10300
    %11603 = vmatpush.bf16.msra.mxu0 %v10293
    %11604 = vmatpush.bf16.msra.mxu0 %v10286
    %11605 = vmatpush.bf16.msra.mxu0 %v10279
    %11606 = vmatpush.bf16.msra.mxu0 %v10272
    %11607 = vmatpush.bf16.msra.mxu0 %v10265
    %11608 = vmatmul.bf16.gmra.mxu0 %v7616
    %v11609 = vpop.f32.mrf.mxu0
    %v11610 = vadd.f32 %v11597, %v11609
    %v11611 = vpop.f32.mrf.mxu0
    %11612 = vdwg.mxu0
    %11613 = vmatpush.bf16.msra.mxu0 %v10370
    %11614 = vmatpush.bf16.msra.mxu0 %v10363
    %11615 = vmatpush.bf16.msra.mxu0 %v10356
    %11616 = vmatpush.bf16.msra.mxu0 %v10349
    %11617 = vmatpush.bf16.msra.mxu0 %v10342
    %11618 = vmatpush.bf16.msra.mxu0 %v10335
    %11619 = vmatpush.bf16.msra.mxu0 %v10328
    %11620 = vmatpush.bf16.msra.mxu0 %v10321
    %11621 = vmatmul.bf16.gmra.mxu0 %v7617
    %v11622 = vpop.f32.mrf.mxu0
    %v11623 = vadd.f32 %v11610, %v11622
    %v11624 = vpop.f32.mrf.mxu0
    %11625 = vdwg.mxu0
    %11626 = vmatpush.bf16.msra.mxu0 %v10426
    %11627 = vmatpush.bf16.msra.mxu0 %v10419
    %11628 = vmatpush.bf16.msra.mxu0 %v10412
    %11629 = vmatpush.bf16.msra.mxu0 %v10405
    %11630 = vmatpush.bf16.msra.mxu0 %v10398
    %11631 = vmatpush.bf16.msra.mxu0 %v10391
    %11632 = vmatpush.bf16.msra.mxu0 %v10384
    %11633 = vmatpush.bf16.msra.mxu0 %v10377
    %11634 = vmatmul.bf16.gmra.mxu0 %v7618
    %v11635 = vpop.f32.mrf.mxu0
    %v11636 = vadd.f32 %v11623, %v11635
    %v11637 = vpop.f32.mrf.mxu0
    %11638 = vdwg.mxu0
    %11639 = vmatpush.bf16.msra.mxu0 %v10482
    %11640 = vmatpush.bf16.msra.mxu0 %v10475
    %11641 = vmatpush.bf16.msra.mxu0 %v10468
    %11642 = vmatpush.bf16.msra.mxu0 %v10461
    %11643 = vmatpush.bf16.msra.mxu0 %v10454
    %11644 = vmatpush.bf16.msra.mxu0 %v10447
    %11645 = vmatpush.bf16.msra.mxu0 %v10440
    %11646 = vmatpush.bf16.msra.mxu0 %v10433
    %11647 = vmatmul.bf16.gmra.mxu0 %v7619
    %v11648 = vpop.f32.mrf.mxu0
    %v11649 = vadd.f32 %v11636, %v11648
    %v11650 = vpop.f32.mrf.mxu0
    %11651 = vdwg.mxu0
    %11652 = vmatpush.bf16.msra.mxu0 %v10538
    %11653 = vmatpush.bf16.msra.mxu0 %v10531
    %11654 = vmatpush.bf16.msra.mxu0 %v10524
    %11655 = vmatpush.bf16.msra.mxu0 %v10517
    %11656 = vmatpush.bf16.msra.mxu0 %v10510
    %11657 = vmatpush.bf16.msra.mxu0 %v10503
    %11658 = vmatpush.bf16.msra.mxu0 %v10496
    %11659 = vmatpush.bf16.msra.mxu0 %v10489
    %11660 = vmatmul.bf16.gmra.mxu0 %v7620
    %v11661 = vpop.f32.mrf.mxu0
    %v11662 = vadd.f32 %v11649, %v11661
    %v11663 = vpop.f32.mrf.mxu0
    %11664 = vdwg.mxu0
    %11665 = vmatpush.bf16.msra.mxu0 %v10594
    %11666 = vmatpush.bf16.msra.mxu0 %v10587
    %11667 = vmatpush.bf16.msra.mxu0 %v10580
    %11668 = vmatpush.bf16.msra.mxu0 %v10573
    %11669 = vmatpush.bf16.msra.mxu0 %v10566
    %11670 = vmatpush.bf16.msra.mxu0 %v10559
    %11671 = vmatpush.bf16.msra.mxu0 %v10552
    %11672 = vmatpush.bf16.msra.mxu0 %v10545
    %11673 = vmatmul.bf16.gmra.mxu0 %v7621
    %v11674 = vpop.f32.mrf.mxu0
    %v11675 = vadd.f32 %v11662, %v11674
    %v11676 = vpop.f32.mrf.mxu0
    %11677 = vdwg.mxu0
    %11678 = vmatpush.bf16.msra.mxu0 %v10091
    %11679 = vmatpush.bf16.msra.mxu0 %v10084
    %11680 = vmatpush.bf16.msra.mxu0 %v10077
    %11681 = vmatpush.bf16.msra.mxu0 %v10070
    %11682 = vmatpush.bf16.msra.mxu0 %v10063
    %11683 = vmatpush.bf16.msra.mxu0 %v10056
    %11684 = vmatpush.bf16.msra.mxu0 %v10049
    %11685 = vmatpush.bf16.msra.mxu0 %v10042
    %11686 = vmatmul.bf16.gmra.mxu0 %v7612
    %v11687 = vpop.f32.mrf.mxu0
    %v11688 = vadd.f32 %v8268, %v11687
    %v11689 = vpop.f32.mrf.mxu0
    %11690 = vdwg.mxu0
    %11691 = vmatpush.bf16.msra.mxu0 %v10147
    %11692 = vmatpush.bf16.msra.mxu0 %v10140
    %11693 = vmatpush.bf16.msra.mxu0 %v10133
    %11694 = vmatpush.bf16.msra.mxu0 %v10126
    %11695 = vmatpush.bf16.msra.mxu0 %v10119
    %11696 = vmatpush.bf16.msra.mxu0 %v10112
    %11697 = vmatpush.bf16.msra.mxu0 %v10105
    %11698 = vmatpush.bf16.msra.mxu0 %v10098
    %11699 = vmatmul.bf16.gmra.mxu0 %v7613
    %v11700 = vpop.f32.mrf.mxu0
    %v11701 = vadd.f32 %v11688, %v11700
    %v11702 = vpop.f32.mrf.mxu0
    %11703 = vdwg.mxu0
    %11704 = vmatpush.bf16.msra.mxu0 %v10203
    %11705 = vmatpush.bf16.msra.mxu0 %v10196
    %11706 = vmatpush.bf16.msra.mxu0 %v10189
    %11707 = vmatpush.bf16.msra.mxu0 %v10182
    %11708 = vmatpush.bf16.msra.mxu0 %v10175
    %11709 = vmatpush.bf16.msra.mxu0 %v10168
    %11710 = vmatpush.bf16.msra.mxu0 %v10161
    %11711 = vmatpush.bf16.msra.mxu0 %v10154
    %11712 = vmatmul.bf16.gmra.mxu0 %v7614
    %v11713 = vpop.f32.mrf.mxu0
    %v11714 = vadd.f32 %v11701, %v11713
    %v11715 = vpop.f32.mrf.mxu0
    %11716 = vdwg.mxu0
    %11717 = vmatpush.bf16.msra.mxu0 %v10259
    %11718 = vmatpush.bf16.msra.mxu0 %v10252
    %11719 = vmatpush.bf16.msra.mxu0 %v10245
    %11720 = vmatpush.bf16.msra.mxu0 %v10238
    %11721 = vmatpush.bf16.msra.mxu0 %v10231
    %11722 = vmatpush.bf16.msra.mxu0 %v10224
    %11723 = vmatpush.bf16.msra.mxu0 %v10217
    %11724 = vmatpush.bf16.msra.mxu0 %v10210
    %11725 = vmatmul.bf16.gmra.mxu0 %v7615
    %v11726 = vpop.f32.mrf.mxu0
    %v11727 = vadd.f32 %v11714, %v11726
    %v11728 = vpop.f32.mrf.mxu0
    %11729 = vdwg.mxu0
    %11730 = vmatpush.bf16.msra.mxu0 %v10315
    %11731 = vmatpush.bf16.msra.mxu0 %v10308
    %11732 = vmatpush.bf16.msra.mxu0 %v10301
    %11733 = vmatpush.bf16.msra.mxu0 %v10294
    %11734 = vmatpush.bf16.msra.mxu0 %v10287
    %11735 = vmatpush.bf16.msra.mxu0 %v10280
    %11736 = vmatpush.bf16.msra.mxu0 %v10273
    %11737 = vmatpush.bf16.msra.mxu0 %v10266
    %11738 = vmatmul.bf16.gmra.mxu0 %v7616
    %v11739 = vpop.f32.mrf.mxu0
    %v11740 = vadd.f32 %v11727, %v11739
    %v11741 = vpop.f32.mrf.mxu0
    %11742 = vdwg.mxu0
    %11743 = vmatpush.bf16.msra.mxu0 %v10371
    %11744 = vmatpush.bf16.msra.mxu0 %v10364
    %11745 = vmatpush.bf16.msra.mxu0 %v10357
    %11746 = vmatpush.bf16.msra.mxu0 %v10350
    %11747 = vmatpush.bf16.msra.mxu0 %v10343
    %11748 = vmatpush.bf16.msra.mxu0 %v10336
    %11749 = vmatpush.bf16.msra.mxu0 %v10329
    %11750 = vmatpush.bf16.msra.mxu0 %v10322
    %11751 = vmatmul.bf16.gmra.mxu0 %v7617
    %v11752 = vpop.f32.mrf.mxu0
    %v11753 = vadd.f32 %v11740, %v11752
    %v11754 = vpop.f32.mrf.mxu0
    %11755 = vdwg.mxu0
    %11756 = vmatpush.bf16.msra.mxu0 %v10427
    %11757 = vmatpush.bf16.msra.mxu0 %v10420
    %11758 = vmatpush.bf16.msra.mxu0 %v10413
    %11759 = vmatpush.bf16.msra.mxu0 %v10406
    %11760 = vmatpush.bf16.msra.mxu0 %v10399
    %11761 = vmatpush.bf16.msra.mxu0 %v10392
    %11762 = vmatpush.bf16.msra.mxu0 %v10385
    %11763 = vmatpush.bf16.msra.mxu0 %v10378
    %11764 = vmatmul.bf16.gmra.mxu0 %v7618
    %v11765 = vpop.f32.mrf.mxu0
    %v11766 = vadd.f32 %v11753, %v11765
    %v11767 = vpop.f32.mrf.mxu0
    %11768 = vdwg.mxu0
    %11769 = vmatpush.bf16.msra.mxu0 %v10483
    %11770 = vmatpush.bf16.msra.mxu0 %v10476
    %11771 = vmatpush.bf16.msra.mxu0 %v10469
    %11772 = vmatpush.bf16.msra.mxu0 %v10462
    %11773 = vmatpush.bf16.msra.mxu0 %v10455
    %11774 = vmatpush.bf16.msra.mxu0 %v10448
    %11775 = vmatpush.bf16.msra.mxu0 %v10441
    %11776 = vmatpush.bf16.msra.mxu0 %v10434
    %11777 = vmatmul.bf16.gmra.mxu0 %v7619
    %v11778 = vpop.f32.mrf.mxu0
    %v11779 = vadd.f32 %v11766, %v11778
    %v11780 = vpop.f32.mrf.mxu0
    %11781 = vdwg.mxu0
    %11782 = vmatpush.bf16.msra.mxu0 %v10539
    %11783 = vmatpush.bf16.msra.mxu0 %v10532
    %11784 = vmatpush.bf16.msra.mxu0 %v10525
    %11785 = vmatpush.bf16.msra.mxu0 %v10518
    %11786 = vmatpush.bf16.msra.mxu0 %v10511
    %11787 = vmatpush.bf16.msra.mxu0 %v10504
    %11788 = vmatpush.bf16.msra.mxu0 %v10497
    %11789 = vmatpush.bf16.msra.mxu0 %v10490
    %11790 = vmatmul.bf16.gmra.mxu0 %v7620
    %v11791 = vpop.f32.mrf.mxu0
    %v11792 = vadd.f32 %v11779, %v11791
    %v11793 = vpop.f32.mrf.mxu0
    %11794 = vdwg.mxu0
    %11795 = vmatpush.bf16.msra.mxu0 %v10595
    %11796 = vmatpush.bf16.msra.mxu0 %v10588
    %11797 = vmatpush.bf16.msra.mxu0 %v10581
    %11798 = vmatpush.bf16.msra.mxu0 %v10574
    %11799 = vmatpush.bf16.msra.mxu0 %v10567
    %11800 = vmatpush.bf16.msra.mxu0 %v10560
    %11801 = vmatpush.bf16.msra.mxu0 %v10553
    %11802 = vmatpush.bf16.msra.mxu0 %v10546
    %11803 = vmatmul.bf16.gmra.mxu0 %v7621
    %v11804 = vpop.f32.mrf.mxu0
    %v11805 = vadd.f32 %v11792, %v11804
    %v11806 = vpop.f32.mrf.mxu0
    %11807 = vdwg.mxu0
    %11808 = vmatpush.bf16.msra.mxu0 %v10092
    %11809 = vmatpush.bf16.msra.mxu0 %v10085
    %11810 = vmatpush.bf16.msra.mxu0 %v10078
    %11811 = vmatpush.bf16.msra.mxu0 %v10071
    %11812 = vmatpush.bf16.msra.mxu0 %v10064
    %11813 = vmatpush.bf16.msra.mxu0 %v10057
    %11814 = vmatpush.bf16.msra.mxu0 %v10050
    %11815 = vmatpush.bf16.msra.mxu0 %v10043
    %11816 = vmatmul.bf16.gmra.mxu0 %v7612
    %v11817 = vpop.f32.mrf.mxu0
    %v11818 = vadd.f32 %v8269, %v11817
    %v11819 = vpop.f32.mrf.mxu0
    %11820 = vdwg.mxu0
    %11821 = vmatpush.bf16.msra.mxu0 %v10148
    %11822 = vmatpush.bf16.msra.mxu0 %v10141
    %11823 = vmatpush.bf16.msra.mxu0 %v10134
    %11824 = vmatpush.bf16.msra.mxu0 %v10127
    %11825 = vmatpush.bf16.msra.mxu0 %v10120
    %11826 = vmatpush.bf16.msra.mxu0 %v10113
    %11827 = vmatpush.bf16.msra.mxu0 %v10106
    %11828 = vmatpush.bf16.msra.mxu0 %v10099
    %11829 = vmatmul.bf16.gmra.mxu0 %v7613
    %v11830 = vpop.f32.mrf.mxu0
    %v11831 = vadd.f32 %v11818, %v11830
    %v11832 = vpop.f32.mrf.mxu0
    %11833 = vdwg.mxu0
    %11834 = vmatpush.bf16.msra.mxu0 %v10204
    %11835 = vmatpush.bf16.msra.mxu0 %v10197
    %11836 = vmatpush.bf16.msra.mxu0 %v10190
    %11837 = vmatpush.bf16.msra.mxu0 %v10183
    %11838 = vmatpush.bf16.msra.mxu0 %v10176
    %11839 = vmatpush.bf16.msra.mxu0 %v10169
    %11840 = vmatpush.bf16.msra.mxu0 %v10162
    %11841 = vmatpush.bf16.msra.mxu0 %v10155
    %11842 = vmatmul.bf16.gmra.mxu0 %v7614
    %v11843 = vpop.f32.mrf.mxu0
    %v11844 = vadd.f32 %v11831, %v11843
    %v11845 = vpop.f32.mrf.mxu0
    %11846 = vdwg.mxu0
    %11847 = vmatpush.bf16.msra.mxu0 %v10260
    %11848 = vmatpush.bf16.msra.mxu0 %v10253
    %11849 = vmatpush.bf16.msra.mxu0 %v10246
    %11850 = vmatpush.bf16.msra.mxu0 %v10239
    %11851 = vmatpush.bf16.msra.mxu0 %v10232
    %11852 = vmatpush.bf16.msra.mxu0 %v10225
    %11853 = vmatpush.bf16.msra.mxu0 %v10218
    %11854 = vmatpush.bf16.msra.mxu0 %v10211
    %11855 = vmatmul.bf16.gmra.mxu0 %v7615
    %v11856 = vpop.f32.mrf.mxu0
    %v11857 = vadd.f32 %v11844, %v11856
    %v11858 = vpop.f32.mrf.mxu0
    %11859 = vdwg.mxu0
    %11860 = vmatpush.bf16.msra.mxu0 %v10316
    %11861 = vmatpush.bf16.msra.mxu0 %v10309
    %11862 = vmatpush.bf16.msra.mxu0 %v10302
    %11863 = vmatpush.bf16.msra.mxu0 %v10295
    %11864 = vmatpush.bf16.msra.mxu0 %v10288
    %11865 = vmatpush.bf16.msra.mxu0 %v10281
    %11866 = vmatpush.bf16.msra.mxu0 %v10274
    %11867 = vmatpush.bf16.msra.mxu0 %v10267
    %11868 = vmatmul.bf16.gmra.mxu0 %v7616
    %v11869 = vpop.f32.mrf.mxu0
    %v11870 = vadd.f32 %v11857, %v11869
    %v11871 = vpop.f32.mrf.mxu0
    %11872 = vdwg.mxu0
    %11873 = vmatpush.bf16.msra.mxu0 %v10372
    %11874 = vmatpush.bf16.msra.mxu0 %v10365
    %11875 = vmatpush.bf16.msra.mxu0 %v10358
    %11876 = vmatpush.bf16.msra.mxu0 %v10351
    %11877 = vmatpush.bf16.msra.mxu0 %v10344
    %11878 = vmatpush.bf16.msra.mxu0 %v10337
    %11879 = vmatpush.bf16.msra.mxu0 %v10330
    %11880 = vmatpush.bf16.msra.mxu0 %v10323
    %11881 = vmatmul.bf16.gmra.mxu0 %v7617
    %v11882 = vpop.f32.mrf.mxu0
    %v11883 = vadd.f32 %v11870, %v11882
    %v11884 = vpop.f32.mrf.mxu0
    %11885 = vdwg.mxu0
    %11886 = vmatpush.bf16.msra.mxu0 %v10428
    %11887 = vmatpush.bf16.msra.mxu0 %v10421
    %11888 = vmatpush.bf16.msra.mxu0 %v10414
    %11889 = vmatpush.bf16.msra.mxu0 %v10407
    %11890 = vmatpush.bf16.msra.mxu0 %v10400
    %11891 = vmatpush.bf16.msra.mxu0 %v10393
    %11892 = vmatpush.bf16.msra.mxu0 %v10386
    %11893 = vmatpush.bf16.msra.mxu0 %v10379
    %11894 = vmatmul.bf16.gmra.mxu0 %v7618
    %v11895 = vpop.f32.mrf.mxu0
    %v11896 = vadd.f32 %v11883, %v11895
    %v11897 = vpop.f32.mrf.mxu0
    %11898 = vdwg.mxu0
    %11899 = vmatpush.bf16.msra.mxu0 %v10484
    %11900 = vmatpush.bf16.msra.mxu0 %v10477
    %11901 = vmatpush.bf16.msra.mxu0 %v10470
    %11902 = vmatpush.bf16.msra.mxu0 %v10463
    %11903 = vmatpush.bf16.msra.mxu0 %v10456
    %11904 = vmatpush.bf16.msra.mxu0 %v10449
    %11905 = vmatpush.bf16.msra.mxu0 %v10442
    %11906 = vmatpush.bf16.msra.mxu0 %v10435
    %11907 = vmatmul.bf16.gmra.mxu0 %v7619
    %v11908 = vpop.f32.mrf.mxu0
    %v11909 = vadd.f32 %v11896, %v11908
    %v11910 = vpop.f32.mrf.mxu0
    %11911 = vdwg.mxu0
    %11912 = vmatpush.bf16.msra.mxu0 %v10540
    %11913 = vmatpush.bf16.msra.mxu0 %v10533
    %11914 = vmatpush.bf16.msra.mxu0 %v10526
    %11915 = vmatpush.bf16.msra.mxu0 %v10519
    %11916 = vmatpush.bf16.msra.mxu0 %v10512
    %11917 = vmatpush.bf16.msra.mxu0 %v10505
    %11918 = vmatpush.bf16.msra.mxu0 %v10498
    %11919 = vmatpush.bf16.msra.mxu0 %v10491
    %11920 = vmatmul.bf16.gmra.mxu0 %v7620
    %v11921 = vpop.f32.mrf.mxu0
    %v11922 = vadd.f32 %v11909, %v11921
    %v11923 = vpop.f32.mrf.mxu0
    %11924 = vdwg.mxu0
    %11925 = vmatpush.bf16.msra.mxu0 %v10596
    %11926 = vmatpush.bf16.msra.mxu0 %v10589
    %11927 = vmatpush.bf16.msra.mxu0 %v10582
    %11928 = vmatpush.bf16.msra.mxu0 %v10575
    %11929 = vmatpush.bf16.msra.mxu0 %v10568
    %11930 = vmatpush.bf16.msra.mxu0 %v10561
    %11931 = vmatpush.bf16.msra.mxu0 %v10554
    %11932 = vmatpush.bf16.msra.mxu0 %v10547
    %11933 = vmatmul.bf16.gmra.mxu0 %v7621
    %v11934 = vpop.f32.mrf.mxu0
    %v11935 = vadd.f32 %v11922, %v11934
    %v11936 = vpop.f32.mrf.mxu0
    %11937 = vdwg.mxu0
    %11938 = vmatpush.bf16.msra.mxu0 %v10093
    %11939 = vmatpush.bf16.msra.mxu0 %v10086
    %11940 = vmatpush.bf16.msra.mxu0 %v10079
    %11941 = vmatpush.bf16.msra.mxu0 %v10072
    %11942 = vmatpush.bf16.msra.mxu0 %v10065
    %11943 = vmatpush.bf16.msra.mxu0 %v10058
    %11944 = vmatpush.bf16.msra.mxu0 %v10051
    %11945 = vmatpush.bf16.msra.mxu0 %v10044
    %11946 = vmatmul.bf16.gmra.mxu0 %v7612
    %v11947 = vpop.f32.mrf.mxu0
    %v11948 = vadd.f32 %v8270, %v11947
    %v11949 = vpop.f32.mrf.mxu0
    %11950 = vdwg.mxu0
    %11951 = vmatpush.bf16.msra.mxu0 %v10149
    %11952 = vmatpush.bf16.msra.mxu0 %v10142
    %11953 = vmatpush.bf16.msra.mxu0 %v10135
    %11954 = vmatpush.bf16.msra.mxu0 %v10128
    %11955 = vmatpush.bf16.msra.mxu0 %v10121
    %11956 = vmatpush.bf16.msra.mxu0 %v10114
    %11957 = vmatpush.bf16.msra.mxu0 %v10107
    %11958 = vmatpush.bf16.msra.mxu0 %v10100
    %11959 = vmatmul.bf16.gmra.mxu0 %v7613
    %v11960 = vpop.f32.mrf.mxu0
    %v11961 = vadd.f32 %v11948, %v11960
    %v11962 = vpop.f32.mrf.mxu0
    %11963 = vdwg.mxu0
    %11964 = vmatpush.bf16.msra.mxu0 %v10205
    %11965 = vmatpush.bf16.msra.mxu0 %v10198
    %11966 = vmatpush.bf16.msra.mxu0 %v10191
    %11967 = vmatpush.bf16.msra.mxu0 %v10184
    %11968 = vmatpush.bf16.msra.mxu0 %v10177
    %11969 = vmatpush.bf16.msra.mxu0 %v10170
    %11970 = vmatpush.bf16.msra.mxu0 %v10163
    %11971 = vmatpush.bf16.msra.mxu0 %v10156
    %11972 = vmatmul.bf16.gmra.mxu0 %v7614
    %v11973 = vpop.f32.mrf.mxu0
    %v11974 = vadd.f32 %v11961, %v11973
    %v11975 = vpop.f32.mrf.mxu0
    %11976 = vdwg.mxu0
    %11977 = vmatpush.bf16.msra.mxu0 %v10261
    %11978 = vmatpush.bf16.msra.mxu0 %v10254
    %11979 = vmatpush.bf16.msra.mxu0 %v10247
    %11980 = vmatpush.bf16.msra.mxu0 %v10240
    %11981 = vmatpush.bf16.msra.mxu0 %v10233
    %11982 = vmatpush.bf16.msra.mxu0 %v10226
    %11983 = vmatpush.bf16.msra.mxu0 %v10219
    %11984 = vmatpush.bf16.msra.mxu0 %v10212
    %11985 = vmatmul.bf16.gmra.mxu0 %v7615
    %v11986 = vpop.f32.mrf.mxu0
    %v11987 = vadd.f32 %v11974, %v11986
    %v11988 = vpop.f32.mrf.mxu0
    %11989 = vdwg.mxu0
    %11990 = vmatpush.bf16.msra.mxu0 %v10317
    %11991 = vmatpush.bf16.msra.mxu0 %v10310
    %11992 = vmatpush.bf16.msra.mxu0 %v10303
    %11993 = vmatpush.bf16.msra.mxu0 %v10296
    %11994 = vmatpush.bf16.msra.mxu0 %v10289
    %11995 = vmatpush.bf16.msra.mxu0 %v10282
    %11996 = vmatpush.bf16.msra.mxu0 %v10275
    %11997 = vmatpush.bf16.msra.mxu0 %v10268
    %11998 = vmatmul.bf16.gmra.mxu0 %v7616
    %v11999 = vpop.f32.mrf.mxu0
    %v12000 = vadd.f32 %v11987, %v11999
    %v12001 = vpop.f32.mrf.mxu0
    %12002 = vdwg.mxu0
    %12003 = vmatpush.bf16.msra.mxu0 %v10373
    %12004 = vmatpush.bf16.msra.mxu0 %v10366
    %12005 = vmatpush.bf16.msra.mxu0 %v10359
    %12006 = vmatpush.bf16.msra.mxu0 %v10352
    %12007 = vmatpush.bf16.msra.mxu0 %v10345
    %12008 = vmatpush.bf16.msra.mxu0 %v10338
    %12009 = vmatpush.bf16.msra.mxu0 %v10331
    %12010 = vmatpush.bf16.msra.mxu0 %v10324
    %12011 = vmatmul.bf16.gmra.mxu0 %v7617
    %v12012 = vpop.f32.mrf.mxu0
    %v12013 = vadd.f32 %v12000, %v12012
    %v12014 = vpop.f32.mrf.mxu0
    %12015 = vdwg.mxu0
    %12016 = vmatpush.bf16.msra.mxu0 %v10429
    %12017 = vmatpush.bf16.msra.mxu0 %v10422
    %12018 = vmatpush.bf16.msra.mxu0 %v10415
    %12019 = vmatpush.bf16.msra.mxu0 %v10408
    %12020 = vmatpush.bf16.msra.mxu0 %v10401
    %12021 = vmatpush.bf16.msra.mxu0 %v10394
    %12022 = vmatpush.bf16.msra.mxu0 %v10387
    %12023 = vmatpush.bf16.msra.mxu0 %v10380
    %12024 = vmatmul.bf16.gmra.mxu0 %v7618
    %v12025 = vpop.f32.mrf.mxu0
    %v12026 = vadd.f32 %v12013, %v12025
    %v12027 = vpop.f32.mrf.mxu0
    %12028 = vdwg.mxu0
    %12029 = vmatpush.bf16.msra.mxu0 %v10485
    %12030 = vmatpush.bf16.msra.mxu0 %v10478
    %12031 = vmatpush.bf16.msra.mxu0 %v10471
    %12032 = vmatpush.bf16.msra.mxu0 %v10464
    %12033 = vmatpush.bf16.msra.mxu0 %v10457
    %12034 = vmatpush.bf16.msra.mxu0 %v10450
    %12035 = vmatpush.bf16.msra.mxu0 %v10443
    %12036 = vmatpush.bf16.msra.mxu0 %v10436
    %12037 = vmatmul.bf16.gmra.mxu0 %v7619
    %v12038 = vpop.f32.mrf.mxu0
    %v12039 = vadd.f32 %v12026, %v12038
    %v12040 = vpop.f32.mrf.mxu0
    %12041 = vdwg.mxu0
    %12042 = vmatpush.bf16.msra.mxu0 %v10541
    %12043 = vmatpush.bf16.msra.mxu0 %v10534
    %12044 = vmatpush.bf16.msra.mxu0 %v10527
    %12045 = vmatpush.bf16.msra.mxu0 %v10520
    %12046 = vmatpush.bf16.msra.mxu0 %v10513
    %12047 = vmatpush.bf16.msra.mxu0 %v10506
    %12048 = vmatpush.bf16.msra.mxu0 %v10499
    %12049 = vmatpush.bf16.msra.mxu0 %v10492
    %12050 = vmatmul.bf16.gmra.mxu0 %v7620
    %v12051 = vpop.f32.mrf.mxu0
    %v12052 = vadd.f32 %v12039, %v12051
    %v12053 = vpop.f32.mrf.mxu0
    %12054 = vdwg.mxu0
    %12055 = vmatpush.bf16.msra.mxu0 %v10597
    %12056 = vmatpush.bf16.msra.mxu0 %v10590
    %12057 = vmatpush.bf16.msra.mxu0 %v10583
    %12058 = vmatpush.bf16.msra.mxu0 %v10576
    %12059 = vmatpush.bf16.msra.mxu0 %v10569
    %12060 = vmatpush.bf16.msra.mxu0 %v10562
    %12061 = vmatpush.bf16.msra.mxu0 %v10555
    %12062 = vmatpush.bf16.msra.mxu0 %v10548
    %12063 = vmatmul.bf16.gmra.mxu0 %v7621
    %v12064 = vpop.f32.mrf.mxu0
    %v12065 = vadd.f32 %v12052, %v12064
    %v12066 = vpop.f32.mrf.mxu0
    %12067 = vdwg.mxu0
    %v12068 = vsub.f32 0.0, %v11285
    %v12069 = vsub.f32 0.0, %v11415
    %v12070 = vsub.f32 0.0, %v11545
    %v12071 = vsub.f32 0.0, %v11675
    %v12072 = vsub.f32 0.0, %v11805
    %v12073 = vsub.f32 0.0, %v11935
    %v12074 = vsub.f32 0.0, %v12065
    %v12075 = vmul.f32 %v12068, 1.442695
    %v12076 = vpow.pop %v12075
    %v12077 = vmul.f32 %v12069, 1.442695
    %v12078 = vpow.pop %v12077
    %v12079 = vmul.f32 %v12070, 1.442695
    %v12080 = vpow.pop %v12079
    %v12081 = vmul.f32 %v12071, 1.442695
    %v12082 = vpow.pop %v12081
    %v12083 = vmul.f32 %v12072, 1.442695
    %v12084 = vpow.pop %v12083
    %v12085 = vmul.f32 %v12073, 1.442695
    %v12086 = vpow.pop %v12085
    %v12087 = vmul.f32 %v12074, 1.442695
    %v12088 = vpow.pop %v12087
    %v12089 = vadd.f32 %v12076, 1.0
    %v12090 = vadd.f32 %v12078, 1.0
    %v12091 = vadd.f32 %v12080, 1.0
    %v12092 = vadd.f32 %v12082, 1.0
    %v12093 = vadd.f32 %v12084, 1.0
    %v12094 = vadd.f32 %v12086, 1.0
    %v12095 = vadd.f32 %v12088, 1.0
    %v12096 = vrcp.pop %v12089
    %v12097 = vmul.f32 %v12089, %v12096
    %v12098 = vsub.f32 1.0, %v12097
    %v12099 = vmul.f32 %v12096, %v12098
    %v12100 = vadd.f32 %v12096, %v12099
    %vm12101 = vweird.f32 %v12089
    %vm12102 = vweird.f32 %v12096
    %vm12103 = vmor %vm12101, %vm12102
    %v12104 = vsel %vm12103, %v12096, %v12100
    %v12105 = vand.u32 2147483647, %v12089
    %vm12106 = vcmp.eq.f32.partialorder %v12105, 8.507059e+37
    %v12107 = vand.u32 %v12089, 2147483648
    %v12108 = vor.u32 1.1754944e-38, %v12107
    %v12109 = vsel %vm12106, %v12108, %v12104
    %v12110 = vmul.f32 1.0, %v12109
    %v12111 = vrcp.pop %v12090
    %v12112 = vmul.f32 %v12090, %v12111
    %v12113 = vsub.f32 1.0, %v12112
    %v12114 = vmul.f32 %v12111, %v12113
    %v12115 = vadd.f32 %v12111, %v12114
    %vm12116 = vweird.f32 %v12090
    %vm12117 = vweird.f32 %v12111
    %vm12118 = vmor %vm12116, %vm12117
    %v12119 = vsel %vm12118, %v12111, %v12115
    %v12120 = vand.u32 2147483647, %v12090
    %vm12121 = vcmp.eq.f32.partialorder %v12120, 8.507059e+37
    %v12122 = vand.u32 %v12090, 2147483648
    %v12123 = vor.u32 1.1754944e-38, %v12122
    %v12124 = vsel %vm12121, %v12123, %v12119
    %v12125 = vmul.f32 1.0, %v12124
    %v12126 = vrcp.pop %v12091
    %v12127 = vmul.f32 %v12091, %v12126
    %v12128 = vsub.f32 1.0, %v12127
    %v12129 = vmul.f32 %v12126, %v12128
    %v12130 = vadd.f32 %v12126, %v12129
    %vm12131 = vweird.f32 %v12091
    %vm12132 = vweird.f32 %v12126
    %vm12133 = vmor %vm12131, %vm12132
    %v12134 = vsel %vm12133, %v12126, %v12130
    %v12135 = vand.u32 2147483647, %v12091
    %vm12136 = vcmp.eq.f32.partialorder %v12135, 8.507059e+37
    %v12137 = vand.u32 %v12091, 2147483648
    %v12138 = vor.u32 1.1754944e-38, %v12137
    %v12139 = vsel %vm12136, %v12138, %v12134
    %v12140 = vmul.f32 1.0, %v12139
    %v12141 = vrcp.pop %v12092
    %v12142 = vmul.f32 %v12092, %v12141
    %v12143 = vsub.f32 1.0, %v12142
    %v12144 = vmul.f32 %v12141, %v12143
    %v12145 = vadd.f32 %v12141, %v12144
    %vm12146 = vweird.f32 %v12092
    %vm12147 = vweird.f32 %v12141
    %vm12148 = vmor %vm12146, %vm12147
    %v12149 = vsel %vm12148, %v12141, %v12145
    %v12150 = vand.u32 2147483647, %v12092
    %vm12151 = vcmp.eq.f32.partialorder %v12150, 8.507059e+37
    %v12152 = vand.u32 %v12092, 2147483648
    %v12153 = vor.u32 1.1754944e-38, %v12152
    %v12154 = vsel %vm12151, %v12153, %v12149
    %v12155 = vmul.f32 1.0, %v12154
    %v12156 = vrcp.pop %v12093
    %v12157 = vmul.f32 %v12093, %v12156
    %v12158 = vsub.f32 1.0, %v12157
    %v12159 = vmul.f32 %v12156, %v12158
    %v12160 = vadd.f32 %v12156, %v12159
    %vm12161 = vweird.f32 %v12093
    %vm12162 = vweird.f32 %v12156
    %vm12163 = vmor %vm12161, %vm12162
    %v12164 = vsel %vm12163, %v12156, %v12160
    %v12165 = vand.u32 2147483647, %v12093
    %vm12166 = vcmp.eq.f32.partialorder %v12165, 8.507059e+37
    %v12167 = vand.u32 %v12093, 2147483648
    %v12168 = vor.u32 1.1754944e-38, %v12167
    %v12169 = vsel %vm12166, %v12168, %v12164
    %v12170 = vmul.f32 1.0, %v12169
    %v12171 = vrcp.pop %v12094
    %v12172 = vmul.f32 %v12094, %v12171
    %v12173 = vsub.f32 1.0, %v12172
    %v12174 = vmul.f32 %v12171, %v12173
    %v12175 = vadd.f32 %v12171, %v12174
    %vm12176 = vweird.f32 %v12094
    %vm12177 = vweird.f32 %v12171
    %vm12178 = vmor %vm12176, %vm12177
    %v12179 = vsel %vm12178, %v12171, %v12175
    %v12180 = vand.u32 2147483647, %v12094
    %vm12181 = vcmp.eq.f32.partialorder %v12180, 8.507059e+37
    %v12182 = vand.u32 %v12094, 2147483648
    %v12183 = vor.u32 1.1754944e-38, %v12182
    %v12184 = vsel %vm12181, %v12183, %v12179
    %v12185 = vmul.f32 1.0, %v12184
    %v12186 = vrcp.pop %v12095
    %v12187 = vmul.f32 %v12095, %v12186
    %v12188 = vsub.f32 1.0, %v12187
    %v12189 = vmul.f32 %v12186, %v12188
    %v12190 = vadd.f32 %v12186, %v12189
    %vm12191 = vweird.f32 %v12095
    %vm12192 = vweird.f32 %v12186
    %vm12193 = vmor %vm12191, %vm12192
    %v12194 = vsel %vm12193, %v12186, %v12190
    %v12195 = vand.u32 2147483647, %v12095
    %vm12196 = vcmp.eq.f32.partialorder %v12195, 8.507059e+37
    %v12197 = vand.u32 %v12095, 2147483648
    %v12198 = vor.u32 1.1754944e-38, %v12197
    %v12199 = vsel %vm12196, %v12198, %v12194
    %v12200 = vmul.f32 1.0, %v12199
    %12201 = vst [vmem:[#allocation24] sm:$0xff] %v12110
    %12202 = vst [vmem:[#allocation24 + $0x8] sm:$0xff] %v12125
    %12203 = vst [vmem:[#allocation24 + $0x10] sm:$0xff] %v12140
    %12204 = vst [vmem:[#allocation24 + $0x18] sm:$0xff] %v12155
    %12205 = vst [vmem:[#allocation24 + $0x20] sm:$0xff] %v12170
    %12206 = vst [vmem:[#allocation24 + $0x28] sm:$0xff] %v12185
    %12207 = vst [vmem:[#allocation24 + $0x30] sm:$0xff] %v12200
    // Predicated region
    $region106: #{tpu_custom_call.1} parent=1 // pred_check
      _
    $region107: #{tpu_custom_call.1} parent=1 // pred_check_branch
      %12209 = sbr.rel (0) target = $region109
    $region108: #{tpu_custom_call.1} parent=1 // pred_region
      %12211 = vsyncadd [#allocation6], 0
      %s12213 = sshll.u32 [#allocation24], 4
      %s12214 = int_to_ptr.vmem [resolvable:$true] %s12213
      %s12215 = sshll.u32 %s14, 4
      %s12216 = int_to_ptr.hbm [resolvable:$true] %s12215
      %12218 = dma.vmem_to_hbm [thread:$0]  %s12214, 896, %s12216, [#allocation6]
    $region109: #{tpu_custom_call.1} parent=1 // pred_fallthru
      _
    // Predicated region
    $region110: #{tpu_custom_call.1} parent=1 // pred_check
      _
    $region111: #{tpu_custom_call.1} parent=1 // pred_check_branch
      %12220 = sbr.rel (0) target = $region113
    $region112: #{tpu_custom_call.1} parent=1 // pred_region
      %12222 = dma.done [#allocation6], 896
    $region113: #{tpu_custom_call.1} parent=1 // pred_fallthru
      _
    %12223 = vsyncpa [#allocation5], 1
    %12224 = vsyncpa [#allocation8], 1
    %12225 = vsyncpa [#allocation11], 1
    %12226 = vsyncpa [#allocation14], 1
    %12227 = vsyncpa [#allocation17], 1
    %12228 = vsyncpa [#allocation20], 1
    %12229 = vsyncpa [#allocation23], 1
    %12230 = vsyncpa [#allocation6], 1
  %12231 = vsyncmov [#allocation3]
  %s12232 = vpop.sfrf %12231
  %p12233 = scmp.eq.s32.totalorder %s12232, 0
  %p12234 = pneg %p12233
  %12236 = shalt.err (%p12234)

</llo_original>
